<compile_context>
chip_gen: v6e
topology: v6e:2x2x1
jax: 0.10.0
libtpu: 0.0.40
codegen_flags: <defaults>
</compile_context>

<pallas_src>
import functools

import jax
import jax.numpy as jnp
from jax.experimental import pallas as pl
from jax.experimental.pallas import tpu as pltpu


_VMEM_LIMIT = 48 * 1024 * 1024   # <= v7x physical (64 MiB), well under v5e/v6e


def _pick_cout_tile(cout):
    for t in (256, 128):
        if cout % t == 0:
            return t
    return cout  # small channel counts: one full (lane-resident) tile


def _pick_row_block(n_rows, cap):
    """Largest divisor of n_rows that is <= cap (rows processed per grid step)."""
    best = 1
    for r in range(1, min(n_rows, cap) + 1):
        if n_rows % r == 0:
            best = r
    return best


# ----------------------------------------------------------------------------
# Implicit-GEMM 3x3 valid convolution, K folded to 9*Cin, R rows per step
# (+ optional fused input BN/ReLU, + per-block channel statistics for the
#  following BatchNorm)
# ----------------------------------------------------------------------------
def _conv3x3_kernel(xm_ref, xh0_ref, xh1_ref, w_ref, sc_ref, sh_ref,
                    y_ref, ps_ref, *, R, Wo, Cin, tn, fuse_in_bnrelu):
    # xm_ref : (1, R, W, Cin) bf16 -- input rows [r*R, r*R+R)
    # xh*    : (1, 1, W, Cin) bf16 -- halo rows r*R+R, r*R+R+1
    # w_ref  : (9*Cin, tn)    bf16 -- taps folded into K, (dy, dx, cin)-major
    # sc/sh  : (1, Cin)       f32  -- previous layer's BN scale/shift
    # y_ref  : (1, R, Wo, tn) bf16 -- R output rows
    # ps_ref : (1, 1, 2, tn)  f32  -- per-block (sum, sum of squares)
    xw = jnp.concatenate([xm_ref[0], xh0_ref[0], xh1_ref[0]], axis=0)  # (R+2, W, Cin)
    if fuse_in_bnrelu:
        xw = jnp.maximum(xw.astype(jnp.float32) * sc_ref[...] + sh_ref[...],
                         0.0).astype(jnp.bfloat16)

    # im2col-in-VMEM: lane-concat the 9 (dy, dx) shifted taps -> single big-K dot.
    taps = [xw[dy:dy + R, dx:dx + Wo, :] for dy in range(3) for dx in range(3)]
    lhs = jnp.concatenate(taps, axis=-1).reshape(R * Wo, 9 * Cin)       # (R*Wo, 9*Cin)
    acc = jnp.dot(lhs, w_ref[...], preferred_element_type=jnp.float32)  # (R*Wo, tn) f32

    y_ref[0] = acc.reshape(R, Wo, tn).astype(y_ref.dtype)
    ps_ref[0, 0] = jnp.concatenate(
        [jnp.sum(acc, axis=0, keepdims=True),
         jnp.sum(acc * acc, axis=0, keepdims=True)], axis=0)            # (2, tn)


def conv3x3_valid(x, w, scale=None, shift=None, *, row_cap=16):
    """3x3 / stride-1 / padding-0 conv on NHWC (bias-free; see header note).

    If (scale, shift) are given, relu(x*scale + shift) (the previous layer's
    BN+ReLU) is applied to the streamed input rows inside the kernel.
    Returns (y_bf16, stats) with stats = (2, Cout) f32 = [sum, sum of squares]
    over all output elements, for the following BatchNorm.
    """
    N, H, W, Cin = x.shape
    Cout = w.shape[-1]
    Ho, Wo = H - 2, W - 2
    tn = _pick_cout_tile(Cout)
    R = _pick_row_block(Ho, row_cap)
    nR = Ho // R
    fuse = scale is not None
    sc = (scale if fuse else jnp.ones((Cin,), jnp.float32))
    sh = (shift if fuse else jnp.zeros((Cin,), jnp.float32))
    sc = sc.reshape(1, Cin).astype(jnp.float32)
    sh = sh.reshape(1, Cin).astype(jnp.float32)

    xb = x.astype(jnp.bfloat16)
    wb = w.reshape(9 * Cin, Cout).astype(jnp.bfloat16)   # (dy, dx, cin)-major K

    flops = 2 * N * Ho * Wo * 9 * Cin * Cout
    bytes_accessed = (N * H * W * Cin * 2 + 9 * Cin * Cout * 2
                      + N * Ho * Wo * Cout * 2 + N * nR * 2 * Cout * 4)

    y, ps = pl.pallas_call(
        functools.partial(_conv3x3_kernel, R=R, Wo=Wo, Cin=Cin, tn=tn,
                          fuse_in_bnrelu=fuse),
        out_shape=(jax.ShapeDtypeStruct((N, Ho, Wo, Cout), jnp.bfloat16),
                   jax.ShapeDtypeStruct((N, nR, 2, Cout), jnp.float32)),
        grid_spec=pltpu.PrefetchScalarGridSpec(
            num_scalar_prefetch=0,
            grid=(N, Cout // tn, nR),
            in_specs=[
                # main R-row window + two 1-row halos (block size 1 => block
                # index == element row index), so each input row is fetched
                # (R+2)/R times instead of 3x.
                pl.BlockSpec((1, R, W, Cin), lambda n, j, r: (n, r, 0, 0)),
                pl.BlockSpec((1, 1, W, Cin), lambda n, j, r: (n, r * R + R, 0, 0)),
                pl.BlockSpec((1, 1, W, Cin), lambda n, j, r: (n, r * R + R + 1, 0, 0)),
                pl.BlockSpec((9 * Cin, tn), lambda n, j, r: (0, j)),
                pl.BlockSpec((1, Cin), lambda n, j, r: (0, 0)),
                pl.BlockSpec((1, Cin), lambda n, j, r: (0, 0)),
            ],
            out_specs=(
                pl.BlockSpec((1, R, Wo, tn), lambda n, j, r: (n, r, 0, j)),
                pl.BlockSpec((1, 1, 2, tn), lambda n, j, r: (n, r, 0, j)),
            )),
        compiler_params=pltpu.CompilerParams(
            dimension_semantics=("parallel", "parallel", "parallel"),
            vmem_limit_bytes=_VMEM_LIMIT),
        cost_estimate=pl.CostEstimate(flops=flops, transcendentals=0,
                                      bytes_accessed=bytes_accessed),
    )(xb, xb, xb, wb, sc, sh)

    # O(C) epilogue glue: reduce the per-block partials to (2, Cout).
    return y, jnp.sum(ps, axis=(0, 1))


def bn_scale_shift(stats, count, gamma, beta, eps=1e-5):
    """Training-mode BatchNorm folded into per-channel scale/shift (O(C) glue)."""
    mean = stats[0] / count
    var = jnp.maximum(stats[1] / count - mean * mean, 0.0)   # biased, as PyTorch
    inv = jax.lax.rsqrt(var + eps)
    scale = gamma * inv
    shift = beta - mean * scale
    return scale, shift


# ----------------------------------------------------------------------------
# Fused BatchNorm + ReLU + 2x2 MaxPool (produces both Encoder outputs), a block
# of row-pairs per grid step, bf16 outputs.
# ----------------------------------------------------------------------------
def _bn_relu_pool_kernel(y_ref, sc_ref, sh_ref, x_ref, p_ref, *, rp, wo, c):
    # y_ref : (1, 2*rp, Wo, C) bf16 -- conv-output rows
    # x_ref : (1, 2*rp, Wo, C) bf16 -- normalised skip output
    # p_ref : (1, rp, Wo//2, C) bf16 -- pooled output rows
    z = jnp.maximum(y_ref[0].astype(jnp.float32) * sc_ref[...] + sh_ref[...],
                    0.0)                                     # (2*rp, Wo, C)
    x_ref[0] = z.astype(x_ref.dtype)
    z4 = z.reshape(rp, 2, wo, c)
    row_max = jnp.maximum(z4[:, 0], z4[:, 1])                # (rp, Wo, C)
    rm = row_max.reshape(rp, wo // 2, 2, c)
    p_ref[0] = jnp.max(rm, axis=2).astype(p_ref.dtype)       # (rp, Wo//2, C)


def batchnorm_relu_maxpool(y, scale, shift, *, pair_cap=8):
    N, Ho, Wo, C = y.shape
    # TODO(synk): odd conv-output spatial dims (MaxPool floor tail) are not
    # handled; unreachable for the even-sized inputs this UNet encoder uses.
    assert Ho % 2 == 0 and Wo % 2 == 0
    rp = _pick_row_block(Ho // 2, pair_cap)        # row-pairs per grid step
    nsteps = (Ho // 2) // rp
    flops = 5 * N * Ho * Wo * C
    bytes_accessed = (2 * N * Ho * Wo * C * 2
                      + N * (Ho // 2) * (Wo // 2) * C * 2)

    x_out, p_out = pl.pallas_call(
        functools.partial(_bn_relu_pool_kernel, rp=rp, wo=Wo, c=C),
        out_shape=(jax.ShapeDtypeStruct((N, Ho, Wo, C), jnp.bfloat16),
                   jax.ShapeDtypeStruct((N, Ho // 2, Wo // 2, C), jnp.bfloat16)),
        grid_spec=pltpu.PrefetchScalarGridSpec(
            num_scalar_prefetch=0,
            grid=(N, nsteps),
            in_specs=[
                pl.BlockSpec((1, 2 * rp, Wo, C), lambda n, r: (n, r, 0, 0)),
                pl.BlockSpec((1, C), lambda n, r: (0, 0)),
                pl.BlockSpec((1, C), lambda n, r: (0, 0)),
            ],
            out_specs=(
                pl.BlockSpec((1, 2 * rp, Wo, C), lambda n, r: (n, r, 0, 0)),
                pl.BlockSpec((1, rp, Wo // 2, C), lambda n, r: (n, r, 0, 0)),
            )),
        compiler_params=pltpu.CompilerParams(
            dimension_semantics=("parallel", "parallel"),
            vmem_limit_bytes=_VMEM_LIMIT),
        cost_estimate=pl.CostEstimate(flops=flops, transcendentals=0,
                                      bytes_accessed=bytes_accessed),
    )(y, scale.reshape(1, C).astype(jnp.float32),
      shift.reshape(1, C).astype(jnp.float32))
    return x_out, p_out


# ----------------------------------------------------------------------------
# Encoder forward (matches Encoder.forward: returns (x, p)).
# Activations stay NHWC (channel-last) end-to-end; outputs are NHWC bf16
# (the module's (x, p) with channels moved to the last axis — no output
# transposes, per the performance review).
# ----------------------------------------------------------------------------
def encoder_forward(params, x_nchw):
    x = jnp.transpose(x_nchw, (0, 2, 3, 1))        # one cheap low-channel transpose
    N, H, W, _ = x.shape

    # conv1 -> BN1 stats (BN1+ReLU is fused into conv2's streamed input rows)
    y1, s1 = conv3x3_valid(x, params['w1'])
    sc1, sh1 = bn_scale_shift(s1, N * (H - 2) * (W - 2),
                              params['g1'], params['be1'])

    # conv2 with conv1's BN+ReLU applied on the fly to its streamed inputs
    y2, s2 = conv3x3_valid(y1, params['w2'], scale=sc1, shift=sh1)
    sc2, sh2 = bn_scale_shift(s2, N * (H - 4) * (W - 4),
                              params['g2'], params['be2'])

    # BN2 + ReLU + MaxPool2d(2) fused; produces both Encoder outputs (NHWC bf16)
    x_skip, pooled = batchnorm_relu_maxpool(y2, sc2, sh2)
    return x_skip, pooled


# ----------------------------------------------------------------------------
# Parameter init (shapes from the module; conv biases omitted — they cancel
# exactly under training-mode BatchNorm)
# ----------------------------------------------------------------------------
def init_encoder(key, cin, cout):
    k1, k2 = jax.random.split(key)
    return dict(
        w1=jax.random.normal(k1, (3, 3, cin, cout), jnp.float32)
           * (1.0 / jnp.sqrt(cin * 9.0)),
        w2=jax.random.normal(k2, (3, 3, cout, cout), jnp.float32)
           * (1.0 / jnp.sqrt(cout * 9.0)),
        g1=jnp.ones((cout,), jnp.float32), be1=jnp.zeros((cout,), jnp.float32),
        g2=jnp.ones((cout,), jnp.float32), be2=jnp.zeros((cout,), jnp.float32),
    )


if __name__ == "__main__":
    key = jax.random.PRNGKey(0)
    pkey, xkey = jax.random.split(key)
    CIN, COUT = 4, 64
    params = init_encoder(pkey, CIN, COUT)
    x = jax.random.normal(xkey, (2, CIN, 16, 16), jnp.float32)   # NCHW like PyTorch

    fwd = jax.jit(encoder_forward)
    skip, pooled = fwd(params, x)
    jax.block_until_ready((skip, pooled))

    # NHWC outputs: two valid 3x3 convs -> 12x12 skip, MaxPool2d(2) -> 6x6
    assert skip.shape == (2, 12, 12, COUT), skip.shape
    assert pooled.shape == (2, 6, 6, COUT), pooled.shape
    assert bool(jnp.all(jnp.isfinite(skip.astype(jnp.float32))))
    assert bool(jnp.all(jnp.isfinite(pooled.astype(jnp.float32))))
    assert bool(jnp.all(skip >= 0)) and bool(jnp.all(pooled >= 0))  # post-ReLU
    print("KERNEL_OK")
</pallas_src>

<mosaic_0001>
module attributes {stable_mosaic.version = 11 : i64} {
  func.func @_conv3x3_kernel(%arg0: i32, %arg1: i32, %arg2: i32, %arg3: memref<1x12x14x64xbf16, #tpu.memory_space<vmem>>, %arg4: memref<1x1x14x64xbf16, #tpu.memory_space<vmem>>, %arg5: memref<1x1x14x64xbf16, #tpu.memory_space<vmem>>, %arg6: memref<576x64xbf16, #tpu.memory_space<vmem>>, %arg7: memref<1x64xf32, #tpu.memory_space<vmem>>, %arg8: memref<1x64xf32, #tpu.memory_space<vmem>>, %arg9: memref<1x12x12x64xbf16, #tpu.memory_space<vmem>>, %arg10: memref<1x1x2x64xf32, #tpu.memory_space<vmem>>) attributes {dimension_semantics = [#tpu.dimension_semantics<parallel>, #tpu.dimension_semantics<parallel>, #tpu.dimension_semantics<parallel>], iteration_bounds = array<i64: 2, 1, 1>, scalar_prefetch = 0 : i64, scratch_operands = 0 : i64, tpu.core_type = #tpu.core_type<tc>, window_params = [{transform_indices = @transform_0, window_bounds = array<i64: 1, 12, 14, 64>}, {transform_indices = @transform_1, window_bounds = array<i64: 1, 1, 14, 64>}, {transform_indices = @transform_2, window_bounds = array<i64: 1, 1, 14, 64>}, {transform_indices = @transform_3, window_bounds = array<i64: 576, 64>}, {pipeline_mode = #tpu.pipeline_mode<synchronous>, transform_indices = @transform_4, window_bounds = array<i64: 1, 64>}, {pipeline_mode = #tpu.pipeline_mode<synchronous>, transform_indices = @transform_5, window_bounds = array<i64: 1, 64>}, {transform_indices = @transform_6, window_bounds = array<i64: 1, 12, 12, 64>}, {transform_indices = @transform_7, window_bounds = array<i64: 1, 1, 2, 64>}]} {
    %c0 = arith.constant 0 : index
    %c0_0 = arith.constant 0 : index
    %c0_1 = arith.constant 0 : index
    %c0_2 = arith.constant 0 : index
    %0 = vector.load %arg3[%c0, %c0_0, %c0_1, %c0_2] : memref<1x12x14x64xbf16, #tpu.memory_space<vmem>>, vector<1x12x14x64xbf16>
    %1 = vector.shape_cast %0 : vector<1x12x14x64xbf16> to vector<12x14x64xbf16>
    %c0_3 = arith.constant 0 : index
    %c0_4 = arith.constant 0 : index
    %c0_5 = arith.constant 0 : index
    %c0_6 = arith.constant 0 : index
    %2 = vector.load %arg4[%c0_3, %c0_4, %c0_5, %c0_6] : memref<1x1x14x64xbf16, #tpu.memory_space<vmem>>, vector<1x1x14x64xbf16>
    %3 = vector.shape_cast %2 : vector<1x1x14x64xbf16> to vector<1x14x64xbf16>
    %c0_7 = arith.constant 0 : index
    %c0_8 = arith.constant 0 : index
    %c0_9 = arith.constant 0 : index
    %c0_10 = arith.constant 0 : index
    %4 = vector.load %arg5[%c0_7, %c0_8, %c0_9, %c0_10] : memref<1x1x14x64xbf16, #tpu.memory_space<vmem>>, vector<1x1x14x64xbf16>
    %5 = vector.shape_cast %4 : vector<1x1x14x64xbf16> to vector<1x14x64xbf16>
    %6 = tpu.concatenate %1, %3, %5 in 0 : vector<12x14x64xbf16>, vector<1x14x64xbf16>, vector<1x14x64xbf16> -> vector<14x14x64xbf16>
    %7 = arith.extf %6 : vector<14x14x64xbf16> to vector<14x14x64xf32>
    %c0_11 = arith.constant 0 : index
    %c0_12 = arith.constant 0 : index
    %8 = vector.load %arg7[%c0_11, %c0_12] : memref<1x64xf32, #tpu.memory_space<vmem>>, vector<1x64xf32>
    %9 = vector.shape_cast %8 : vector<1x64xf32> to vector<1x1x64xf32>
    %10 = vector.broadcast %9 : vector<1x1x64xf32> to vector<14x14x64xf32>
    %11 = arith.mulf %7, %10 : vector<14x14x64xf32>
    %c0_13 = arith.constant 0 : index
    %c0_14 = arith.constant 0 : index
    %12 = vector.load %arg8[%c0_13, %c0_14] : memref<1x64xf32, #tpu.memory_space<vmem>>, vector<1x64xf32>
    %13 = vector.shape_cast %12 : vector<1x64xf32> to vector<1x1x64xf32>
    %14 = vector.broadcast %13 : vector<1x1x64xf32> to vector<14x14x64xf32>
    %15 = arith.addf %11, %14 : vector<14x14x64xf32>
    %cst = arith.constant 0.000000e+00 : f32
    %16 = vector.broadcast %cst : f32 to vector<14x14x64xf32>
    %17 = arith.maximumf %15, %16 : vector<14x14x64xf32>
    %18 = arith.truncf %17 : vector<14x14x64xf32> to vector<14x14x64xbf16>
    %19 = vector.extract_strided_slice %18 {offsets = [0, 0, 0], sizes = [12, 12, 64], strides = [1, 1, 1]} : vector<14x14x64xbf16> to vector<12x12x64xbf16>
    %20 = vector.extract_strided_slice %18 {offsets = [0, 1, 0], sizes = [12, 12, 64], strides = [1, 1, 1]} : vector<14x14x64xbf16> to vector<12x12x64xbf16>
    %21 = vector.extract_strided_slice %18 {offsets = [0, 2, 0], sizes = [12, 12, 64], strides = [1, 1, 1]} : vector<14x14x64xbf16> to vector<12x12x64xbf16>
    %22 = vector.extract_strided_slice %18 {offsets = [1, 0, 0], sizes = [12, 12, 64], strides = [1, 1, 1]} : vector<14x14x64xbf16> to vector<12x12x64xbf16>
    %23 = vector.extract_strided_slice %18 {offsets = [1, 1, 0], sizes = [12, 12, 64], strides = [1, 1, 1]} : vector<14x14x64xbf16> to vector<12x12x64xbf16>
    %24 = vector.extract_strided_slice %18 {offsets = [1, 2, 0], sizes = [12, 12, 64], strides = [1, 1, 1]} : vector<14x14x64xbf16> to vector<12x12x64xbf16>
    %25 = vector.extract_strided_slice %18 {offsets = [2, 0, 0], sizes = [12, 12, 64], strides = [1, 1, 1]} : vector<14x14x64xbf16> to vector<12x12x64xbf16>
    %26 = vector.extract_strided_slice %18 {offsets = [2, 1, 0], sizes = [12, 12, 64], strides = [1, 1, 1]} : vector<14x14x64xbf16> to vector<12x12x64xbf16>
    %27 = vector.extract_strided_slice %18 {offsets = [2, 2, 0], sizes = [12, 12, 64], strides = [1, 1, 1]} : vector<14x14x64xbf16> to vector<12x12x64xbf16>
    %28 = tpu.concatenate %19, %20, %21, %22, %23, %24, %25, %26, %27 in 2 : vector<12x12x64xbf16>, vector<12x12x64xbf16>, vector<12x12x64xbf16>, vector<12x12x64xbf16>, vector<12x12x64xbf16>, vector<12x12x64xbf16>, vector<12x12x64xbf16>, vector<12x12x64xbf16>, vector<12x12x64xbf16> -> vector<12x12x576xbf16>
    %29 = vector.shape_cast %28 : vector<12x12x576xbf16> to vector<144x576xbf16>
    %c0_15 = arith.constant 0 : index
    %c0_16 = arith.constant 0 : index
    %30 = vector.load %arg6[%c0_15, %c0_16] : memref<576x64xbf16, #tpu.memory_space<vmem>>, vector<576x64xbf16>
    %cst_17 = arith.constant dense<0.000000e+00> : vector<144x64xf32>
    %31 = tpu.matmul %29, %30, %cst_17 {dimension_numbers = #tpu.dot_dimension_numbers<[1], [0], [0], [1], [0, 0, 1, 1], [], []>} : vector<144x576xbf16>, vector<576x64xbf16>, vector<144x64xf32> -> vector<144x64xf32>
    %32 = vector.shape_cast %31 : vector<144x64xf32> to vector<12x12x64xf32>
    %33 = arith.truncf %32 : vector<12x12x64xf32> to vector<12x12x64xbf16>
    %c0_18 = arith.constant 0 : index
    %c0_19 = arith.constant 0 : index
    %c0_20 = arith.constant 0 : index
    %c0_21 = arith.constant 0 : index
    %34 = vector.load %arg9[%c0_18, %c0_19, %c0_20, %c0_21] : memref<1x12x12x64xbf16, #tpu.memory_space<vmem>>, vector<1x12x12x64xbf16>
    %35 = vector.shape_cast %34 : vector<1x12x12x64xbf16> to vector<12x12x64xbf16>
    %36 = vector.shape_cast %33 : vector<12x12x64xbf16> to vector<1x12x12x64xbf16>
    tpu.vector_store %arg9[%c0_18, %c0_19, %c0_20, %c0_21], %36 {strides = array<i32>} : memref<1x12x12x64xbf16, #tpu.memory_space<vmem>>, vector<1x12x12x64xbf16>,
    %cst_22 = arith.constant dense<0.000000e+00> : vector<64xf32>
    %37 = vector.multi_reduction <add>, %31, %cst_22 [0] : vector<144x64xf32> to vector<64xf32>
    %38 = vector.shape_cast %37 : vector<64xf32> to vector<1x64xf32>
    %39 = arith.mulf %31, %31 : vector<144x64xf32>
    %cst_23 = arith.constant dense<0.000000e+00> : vector<64xf32>
    %40 = vector.multi_reduction <add>, %39, %cst_23 [0] : vector<144x64xf32> to vector<64xf32>
    %41 = vector.shape_cast %40 : vector<64xf32> to vector<1x64xf32>
    %42 = tpu.concatenate %38, %41 in 0 : vector<1x64xf32>, vector<1x64xf32> -> vector<2x64xf32>
    %c0_24 = arith.constant 0 : index
    %c0_25 = arith.constant 0 : index
    %c0_26 = arith.constant 0 : index
    %c0_27 = arith.constant 0 : index
    %43 = vector.load %arg10[%c0_24, %c0_25, %c0_26, %c0_27] : memref<1x1x2x64xf32, #tpu.memory_space<vmem>>, vector<1x1x2x64xf32>
    %44 = vector.shape_cast %43 : vector<1x1x2x64xf32> to vector<2x64xf32>
    %45 = vector.shape_cast %42 : vector<2x64xf32> to vector<1x1x2x64xf32>
    tpu.vector_store %arg10[%c0_24, %c0_25, %c0_26, %c0_27], %45 {strides = array<i32>} : memref<1x1x2x64xf32, #tpu.memory_space<vmem>>, vector<1x1x2x64xf32>,
    return
  }
  func.func @transform_0(%arg0: i32, %arg1: i32, %arg2: i32) -> (i32, i32, i32, i32) {
    %c0_i32 = arith.constant 0 : i32
    %c0_i32_0 = arith.constant 0 : i32
    %c0_i32_1 = arith.constant 0 : i32
    return %arg0, %arg2, %c0_i32, %c0_i32_0 : i32, i32, i32, i32
  }
  func.func @transform_1(%arg0: i32, %arg1: i32, %arg2: i32) -> (i32, i32, i32, i32) {
    %c12_i32 = arith.constant 12 : i32
    %0 = arith.muli %arg2, %c12_i32 : i32
    %c12_i32_0 = arith.constant 12 : i32
    %1 = arith.addi %0, %c12_i32_0 : i32
    %c0_i32 = arith.constant 0 : i32
    %c0_i32_1 = arith.constant 0 : i32
    %c0_i32_2 = arith.constant 0 : i32
    return %arg0, %1, %c0_i32, %c0_i32_1 : i32, i32, i32, i32
  }
  func.func @transform_2(%arg0: i32, %arg1: i32, %arg2: i32) -> (i32, i32, i32, i32) {
    %c12_i32 = arith.constant 12 : i32
    %0 = arith.muli %arg2, %c12_i32 : i32
    %c12_i32_0 = arith.constant 12 : i32
    %1 = arith.addi %0, %c12_i32_0 : i32
    %c1_i32 = arith.constant 1 : i32
    %2 = arith.addi %1, %c1_i32 : i32
    %c0_i32 = arith.constant 0 : i32
    %c0_i32_1 = arith.constant 0 : i32
    %c0_i32_2 = arith.constant 0 : i32
    return %arg0, %2, %c0_i32, %c0_i32_1 : i32, i32, i32, i32
  }
  func.func @transform_3(%arg0: i32, %arg1: i32, %arg2: i32) -> (i32, i32) {
    %c0_i32 = arith.constant 0 : i32
    %c0_i32_0 = arith.constant 0 : i32
    return %c0_i32, %arg1 : i32, i32
  }
  func.func @transform_4(%arg0: i32, %arg1: i32, %arg2: i32) -> (i32, i32) {
    %c0_i32 = arith.constant 0 : i32
    %c0_i32_0 = arith.constant 0 : i32
    %c0_i32_1 = arith.constant 0 : i32
    return %c0_i32, %c0_i32_0 : i32, i32
  }
  func.func @transform_5(%arg0: i32, %arg1: i32, %arg2: i32) -> (i32, i32) {
    %c0_i32 = arith.constant 0 : i32
    %c0_i32_0 = arith.constant 0 : i32
    %c0_i32_1 = arith.constant 0 : i32
    return %c0_i32, %c0_i32_0 : i32, i32
  }
  func.func @transform_6(%arg0: i32, %arg1: i32, %arg2: i32) -> (i32, i32, i32, i32) {
    %c0_i32 = arith.constant 0 : i32
    %c0_i32_0 = arith.constant 0 : i32
    return %arg0, %arg2, %c0_i32, %arg1 : i32, i32, i32, i32
  }
  func.func @transform_7(%arg0: i32, %arg1: i32, %arg2: i32) -> (i32, i32, i32, i32) {
    %c0_i32 = arith.constant 0 : i32
    %c0_i32_0 = arith.constant 0 : i32
    return %arg0, %arg2, %c0_i32, %arg1 : i32, i32, i32, i32
  }
}

module attributes {stable_mosaic.version = 11 : i64} {
  func.func @_conv3x3_kernel(%arg0: i32, %arg1: i32, %arg2: i32, %arg3: memref<1x14x16x4xbf16, #tpu.memory_space<vmem>>, %arg4: memref<1x1x16x4xbf16, #tpu.memory_space<vmem>>, %arg5: memref<1x1x16x4xbf16, #tpu.memory_space<vmem>>, %arg6: memref<36x64xbf16, #tpu.memory_space<vmem>>, %arg7: memref<1x4xf32, #tpu.memory_space<vmem>>, %arg8: memref<1x4xf32, #tpu.memory_space<vmem>>, %arg9: memref<1x14x14x64xbf16, #tpu.memory_space<vmem>>, %arg10: memref<1x1x2x64xf32, #tpu.memory_space<vmem>>) attributes {dimension_semantics = [#tpu.dimension_semantics<parallel>, #tpu.dimension_semantics<parallel>, #tpu.dimension_semantics<parallel>], iteration_bounds = array<i64: 2, 1, 1>, scalar_prefetch = 0 : i64, scratch_operands = 0 : i64, tpu.core_type = #tpu.core_type<tc>, window_params = [{transform_indices = @transform_0, window_bounds = array<i64: 1, 14, 16, 4>}, {transform_indices = @transform_1, window_bounds = array<i64: 1, 1, 16, 4>}, {transform_indices = @transform_2, window_bounds = array<i64: 1, 1, 16, 4>}, {transform_indices = @transform_3, window_bounds = array<i64: 36, 64>}, {pipeline_mode = #tpu.pipeline_mode<synchronous>, transform_indices = @transform_4, window_bounds = array<i64: 1, 4>}, {pipeline_mode = #tpu.pipeline_mode<synchronous>, transform_indices = @transform_5, window_bounds = array<i64: 1, 4>}, {transform_indices = @transform_6, window_bounds = array<i64: 1, 14, 14, 64>}, {transform_indices = @transform_7, window_bounds = array<i64: 1, 1, 2, 64>}]} {
    %c0 = arith.constant 0 : index
    %c0_0 = arith.constant 0 : index
    %c0_1 = arith.constant 0 : index
    %c0_2 = arith.constant 0 : index
    %0 = vector.load %arg3[%c0, %c0_0, %c0_1, %c0_2] : memref<1x14x16x4xbf16, #tpu.memory_space<vmem>>, vector<1x14x16x4xbf16>
    %1 = vector.shape_cast %0 : vector<1x14x16x4xbf16> to vector<14x16x4xbf16>
    %c0_3 = arith.constant 0 : index
    %c0_4 = arith.constant 0 : index
    %c0_5 = arith.constant 0 : index
    %c0_6 = arith.constant 0 : index
    %2 = vector.load %arg4[%c0_3, %c0_4, %c0_5, %c0_6] : memref<1x1x16x4xbf16, #tpu.memory_space<vmem>>, vector<1x1x16x4xbf16>
    %3 = vector.shape_cast %2 : vector<1x1x16x4xbf16> to vector<1x16x4xbf16>
    %c0_7 = arith.constant 0 : index
    %c0_8 = arith.constant 0 : index
    %c0_9 = arith.constant 0 : index
    %c0_10 = arith.constant 0 : index
    %4 = vector.load %arg5[%c0_7, %c0_8, %c0_9, %c0_10] : memref<1x1x16x4xbf16, #tpu.memory_space<vmem>>, vector<1x1x16x4xbf16>
    %5 = vector.shape_cast %4 : vector<1x1x16x4xbf16> to vector<1x16x4xbf16>
    %6 = tpu.concatenate %1, %3, %5 in 0 : vector<14x16x4xbf16>, vector<1x16x4xbf16>, vector<1x16x4xbf16> -> vector<16x16x4xbf16>
    %7 = vector.extract_strided_slice %6 {offsets = [0, 0, 0], sizes = [14, 14, 4], strides = [1, 1, 1]} : vector<16x16x4xbf16> to vector<14x14x4xbf16>
    %8 = vector.extract_strided_slice %6 {offsets = [0, 1, 0], sizes = [14, 14, 4], strides = [1, 1, 1]} : vector<16x16x4xbf16> to vector<14x14x4xbf16>
    %9 = vector.extract_strided_slice %6 {offsets = [0, 2, 0], sizes = [14, 14, 4], strides = [1, 1, 1]} : vector<16x16x4xbf16> to vector<14x14x4xbf16>
    %10 = vector.extract_strided_slice %6 {offsets = [1, 0, 0], sizes = [14, 14, 4], strides = [1, 1, 1]} : vector<16x16x4xbf16> to vector<14x14x4xbf16>
    %11 = vector.extract_strided_slice %6 {offsets = [1, 1, 0], sizes = [14, 14, 4], strides = [1, 1, 1]} : vector<16x16x4xbf16> to vector<14x14x4xbf16>
    %12 = vector.extract_strided_slice %6 {offsets = [1, 2, 0], sizes = [14, 14, 4], strides = [1, 1, 1]} : vector<16x16x4xbf16> to vector<14x14x4xbf16>
    %13 = vector.extract_strided_slice %6 {offsets = [2, 0, 0], sizes = [14, 14, 4], strides = [1, 1, 1]} : vector<16x16x4xbf16> to vector<14x14x4xbf16>
    %14 = vector.extract_strided_slice %6 {offsets = [2, 1, 0], sizes = [14, 14, 4], strides = [1, 1, 1]} : vector<16x16x4xbf16> to vector<14x14x4xbf16>
    %15 = vector.extract_strided_slice %6 {offsets = [2, 2, 0], sizes = [14, 14, 4], strides = [1, 1, 1]} : vector<16x16x4xbf16> to vector<14x14x4xbf16>
    %16 = tpu.concatenate %7, %8, %9, %10, %11, %12, %13, %14, %15 in 2 : vector<14x14x4xbf16>, vector<14x14x4xbf16>, vector<14x14x4xbf16>, vector<14x14x4xbf16>, vector<14x14x4xbf16>, vector<14x14x4xbf16>, vector<14x14x4xbf16>, vector<14x14x4xbf16>, vector<14x14x4xbf16> -> vector<14x14x36xbf16>
    %17 = vector.shape_cast %16 : vector<14x14x36xbf16> to vector<196x36xbf16>
    %c0_11 = arith.constant 0 : index
    %c0_12 = arith.constant 0 : index
    %18 = vector.load %arg6[%c0_11, %c0_12] : memref<36x64xbf16, #tpu.memory_space<vmem>>, vector<36x64xbf16>
    %cst = arith.constant dense<0.000000e+00> : vector<196x64xf32>
    %19 = tpu.matmul %17, %18, %cst {dimension_numbers = #tpu.dot_dimension_numbers<[1], [0], [0], [1], [0, 0, 1, 1], [], []>} : vector<196x36xbf16>, vector<36x64xbf16>, vector<196x64xf32> -> vector<196x64xf32>
    %20 = vector.shape_cast %19 : vector<196x64xf32> to vector<14x14x64xf32>
    %21 = arith.truncf %20 : vector<14x14x64xf32> to vector<14x14x64xbf16>
    %c0_13 = arith.constant 0 : index
    %c0_14 = arith.constant 0 : index
    %c0_15 = arith.constant 0 : index
    %c0_16 = arith.constant 0 : index
    %22 = vector.load %arg9[%c0_13, %c0_14, %c0_15, %c0_16] : memref<1x14x14x64xbf16, #tpu.memory_space<vmem>>, vector<1x14x14x64xbf16>
    %23 = vector.shape_cast %22 : vector<1x14x14x64xbf16> to vector<14x14x64xbf16>
    %24 = vector.shape_cast %21 : vector<14x14x64xbf16> to vector<1x14x14x64xbf16>
    tpu.vector_store %arg9[%c0_13, %c0_14, %c0_15, %c0_16], %24 {strides = array<i32>} : memref<1x14x14x64xbf16, #tpu.memory_space<vmem>>, vector<1x14x14x64xbf16>,
    %cst_17 = arith.constant dense<0.000000e+00> : vector<64xf32>
    %25 = vector.multi_reduction <add>, %19, %cst_17 [0] : vector<196x64xf32> to vector<64xf32>
    %26 = vector.shape_cast %25 : vector<64xf32> to vector<1x64xf32>
    %27 = arith.mulf %19, %19 : vector<196x64xf32>
    %cst_18 = arith.constant dense<0.000000e+00> : vector<64xf32>
    %28 = vector.multi_reduction <add>, %27, %cst_18 [0] : vector<196x64xf32> to vector<64xf32>
    %29 = vector.shape_cast %28 : vector<64xf32> to vector<1x64xf32>
    %30 = tpu.concatenate %26, %29 in 0 : vector<1x64xf32>, vector<1x64xf32> -> vector<2x64xf32>
    %c0_19 = arith.constant 0 : index
    %c0_20 = arith.constant 0 : index
    %c0_21 = arith.constant 0 : index
    %c0_22 = arith.constant 0 : index
    %31 = vector.load %arg10[%c0_19, %c0_20, %c0_21, %c0_22] : memref<1x1x2x64xf32, #tpu.memory_space<vmem>>, vector<1x1x2x64xf32>
    %32 = vector.shape_cast %31 : vector<1x1x2x64xf32> to vector<2x64xf32>
    %33 = vector.shape_cast %30 : vector<2x64xf32> to vector<1x1x2x64xf32>
    tpu.vector_store %arg10[%c0_19, %c0_20, %c0_21, %c0_22], %33 {strides = array<i32>} : memref<1x1x2x64xf32, #tpu.memory_space<vmem>>, vector<1x1x2x64xf32>,
    return
  }
  func.func @transform_0(%arg0: i32, %arg1: i32, %arg2: i32) -> (i32, i32, i32, i32) {
    %c0_i32 = arith.constant 0 : i32
    %c0_i32_0 = arith.constant 0 : i32
    %c0_i32_1 = arith.constant 0 : i32
    return %arg0, %arg2, %c0_i32, %c0_i32_0 : i32, i32, i32, i32
  }
  func.func @transform_1(%arg0: i32, %arg1: i32, %arg2: i32) -> (i32, i32, i32, i32) {
    %c14_i32 = arith.constant 14 : i32
    %0 = arith.muli %arg2, %c14_i32 : i32
    %c14_i32_0 = arith.constant 14 : i32
    %1 = arith.addi %0, %c14_i32_0 : i32
    %c0_i32 = arith.constant 0 : i32
    %c0_i32_1 = arith.constant 0 : i32
    %c0_i32_2 = arith.constant 0 : i32
    return %arg0, %1, %c0_i32, %c0_i32_1 : i32, i32, i32, i32
  }
  func.func @transform_2(%arg0: i32, %arg1: i32, %arg2: i32) -> (i32, i32, i32, i32) {
    %c14_i32 = arith.constant 14 : i32
    %0 = arith.muli %arg2, %c14_i32 : i32
    %c14_i32_0 = arith.constant 14 : i32
    %1 = arith.addi %0, %c14_i32_0 : i32
    %c1_i32 = arith.constant 1 : i32
    %2 = arith.addi %1, %c1_i32 : i32
    %c0_i32 = arith.constant 0 : i32
    %c0_i32_1 = arith.constant 0 : i32
    %c0_i32_2 = arith.constant 0 : i32
    return %arg0, %2, %c0_i32, %c0_i32_1 : i32, i32, i32, i32
  }
  func.func @transform_3(%arg0: i32, %arg1: i32, %arg2: i32) -> (i32, i32) {
    %c0_i32 = arith.constant 0 : i32
    %c0_i32_0 = arith.constant 0 : i32
    return %c0_i32, %arg1 : i32, i32
  }
  func.func @transform_4(%arg0: i32, %arg1: i32, %arg2: i32) -> (i32, i32) {
    %c0_i32 = arith.constant 0 : i32
    %c0_i32_0 = arith.constant 0 : i32
    %c0_i32_1 = arith.constant 0 : i32
    return %c0_i32, %c0_i32_0 : i32, i32
  }
  func.func @transform_5(%arg0: i32, %arg1: i32, %arg2: i32) -> (i32, i32) {
    %c0_i32 = arith.constant 0 : i32
    %c0_i32_0 = arith.constant 0 : i32
    %c0_i32_1 = arith.constant 0 : i32
    return %c0_i32, %c0_i32_0 : i32, i32
  }
  func.func @transform_6(%arg0: i32, %arg1: i32, %arg2: i32) -> (i32, i32, i32, i32) {
    %c0_i32 = arith.constant 0 : i32
    %c0_i32_0 = arith.constant 0 : i32
    return %arg0, %arg2, %c0_i32, %arg1 : i32, i32, i32, i32
  }
  func.func @transform_7(%arg0: i32, %arg1: i32, %arg2: i32) -> (i32, i32, i32, i32) {
    %c0_i32 = arith.constant 0 : i32
    %c0_i32_0 = arith.constant 0 : i32
    return %arg0, %arg2, %c0_i32, %arg1 : i32, i32, i32, i32
  }
}

module attributes {stable_mosaic.version = 11 : i64} {
  func.func @_bn_relu_pool_kernel(%arg0: i32, %arg1: i32, %arg2: memref<1x12x12x64xbf16, #tpu.memory_space<vmem>>, %arg3: memref<1x64xf32, #tpu.memory_space<vmem>>, %arg4: memref<1x64xf32, #tpu.memory_space<vmem>>, %arg5: memref<1x12x12x64xbf16, #tpu.memory_space<vmem>>, %arg6: memref<1x6x6x64xbf16, #tpu.memory_space<vmem>>) attributes {dimension_semantics = [#tpu.dimension_semantics<parallel>, #tpu.dimension_semantics<parallel>], iteration_bounds = array<i64: 2, 1>, scalar_prefetch = 0 : i64, scratch_operands = 0 : i64, tpu.core_type = #tpu.core_type<tc>, window_params = [{transform_indices = @transform_0, window_bounds = array<i64: 1, 12, 12, 64>}, {pipeline_mode = #tpu.pipeline_mode<synchronous>, transform_indices = @transform_1, window_bounds = array<i64: 1, 64>}, {pipeline_mode = #tpu.pipeline_mode<synchronous>, transform_indices = @transform_2, window_bounds = array<i64: 1, 64>}, {transform_indices = @transform_3, window_bounds = array<i64: 1, 12, 12, 64>}, {transform_indices = @transform_4, window_bounds = array<i64: 1, 6, 6, 64>}]} {
    %c0 = arith.constant 0 : index
    %c0_0 = arith.constant 0 : index
    %c0_1 = arith.constant 0 : index
    %c0_2 = arith.constant 0 : index
    %0 = vector.load %arg2[%c0, %c0_0, %c0_1, %c0_2] : memref<1x12x12x64xbf16, #tpu.memory_space<vmem>>, vector<1x12x12x64xbf16>
    %1 = vector.shape_cast %0 : vector<1x12x12x64xbf16> to vector<12x12x64xbf16>
    %2 = arith.extf %1 : vector<12x12x64xbf16> to vector<12x12x64xf32>
    %c0_3 = arith.constant 0 : index
    %c0_4 = arith.constant 0 : index
    %3 = vector.load %arg3[%c0_3, %c0_4] : memref<1x64xf32, #tpu.memory_space<vmem>>, vector<1x64xf32>
    %4 = vector.shape_cast %3 : vector<1x64xf32> to vector<1x1x64xf32>
    %5 = vector.broadcast %4 : vector<1x1x64xf32> to vector<12x12x64xf32>
    %6 = arith.mulf %2, %5 : vector<12x12x64xf32>
    %c0_5 = arith.constant 0 : index
    %c0_6 = arith.constant 0 : index
    %7 = vector.load %arg4[%c0_5, %c0_6] : memref<1x64xf32, #tpu.memory_space<vmem>>, vector<1x64xf32>
    %8 = vector.shape_cast %7 : vector<1x64xf32> to vector<1x1x64xf32>
    %9 = vector.broadcast %8 : vector<1x1x64xf32> to vector<12x12x64xf32>
    %10 = arith.addf %6, %9 : vector<12x12x64xf32>
    %cst = arith.constant 0.000000e+00 : f32
    %11 = vector.broadcast %cst : f32 to vector<12x12x64xf32>
    %12 = arith.maximumf %10, %11 : vector<12x12x64xf32>
    %13 = arith.truncf %12 : vector<12x12x64xf32> to vector<12x12x64xbf16>
    %c0_7 = arith.constant 0 : index
    %c0_8 = arith.constant 0 : index
    %c0_9 = arith.constant 0 : index
    %c0_10 = arith.constant 0 : index
    %14 = vector.load %arg5[%c0_7, %c0_8, %c0_9, %c0_10] : memref<1x12x12x64xbf16, #tpu.memory_space<vmem>>, vector<1x12x12x64xbf16>
    %15 = vector.shape_cast %14 : vector<1x12x12x64xbf16> to vector<12x12x64xbf16>
    %16 = vector.shape_cast %13 : vector<12x12x64xbf16> to vector<1x12x12x64xbf16>
    tpu.vector_store %arg5[%c0_7, %c0_8, %c0_9, %c0_10], %16 {strides = array<i32>} : memref<1x12x12x64xbf16, #tpu.memory_space<vmem>>, vector<1x12x12x64xbf16>,
    %17 = vector.shape_cast %12 : vector<12x12x64xf32> to vector<6x2x12x64xf32>
    %18 = vector.extract_strided_slice %17 {offsets = [0, 0, 0, 0], sizes = [6, 1, 12, 64], strides = [1, 1, 1, 1]} : vector<6x2x12x64xf32> to vector<6x1x12x64xf32>
    %19 = vector.shape_cast %18 : vector<6x1x12x64xf32> to vector<6x12x64xf32>
    %20 = vector.extract_strided_slice %17 {offsets = [0, 1, 0, 0], sizes = [6, 1, 12, 64], strides = [1, 1, 1, 1]} : vector<6x2x12x64xf32> to vector<6x1x12x64xf32>
    %21 = vector.shape_cast %20 : vector<6x1x12x64xf32> to vector<6x12x64xf32>
    %22 = arith.maximumf %19, %21 : vector<6x12x64xf32>
    %23 = vector.shape_cast %22 : vector<6x12x64xf32> to vector<6x6x2x64xf32>
    %cst_11 = arith.constant dense<0xFF800000> : vector<6x6x64xf32>
    %24 = vector.multi_reduction <maximumf>, %23, %cst_11 [2] : vector<6x6x2x64xf32> to vector<6x6x64xf32>
    %25 = arith.truncf %24 : vector<6x6x64xf32> to vector<6x6x64xbf16>
    %c0_12 = arith.constant 0 : index
    %c0_13 = arith.constant 0 : index
    %c0_14 = arith.constant 0 : index
    %c0_15 = arith.constant 0 : index
    %26 = vector.load %arg6[%c0_12, %c0_13, %c0_14, %c0_15] : memref<1x6x6x64xbf16, #tpu.memory_space<vmem>>, vector<1x6x6x64xbf16>
    %27 = vector.shape_cast %26 : vector<1x6x6x64xbf16> to vector<6x6x64xbf16>
    %28 = vector.shape_cast %25 : vector<6x6x64xbf16> to vector<1x6x6x64xbf16>
    tpu.vector_store %arg6[%c0_12, %c0_13, %c0_14, %c0_15], %28 {strides = array<i32>} : memref<1x6x6x64xbf16, #tpu.memory_space<vmem>>, vector<1x6x6x64xbf16>,
    return
  }
  func.func @transform_0(%arg0: i32, %arg1: i32) -> (i32, i32, i32, i32) {
    %c0_i32 = arith.constant 0 : i32
    %c0_i32_0 = arith.constant 0 : i32
    %c0_i32_1 = arith.constant 0 : i32
    return %arg0, %arg1, %c0_i32, %c0_i32_0 : i32, i32, i32, i32
  }
  func.func @transform_1(%arg0: i32, %arg1: i32) -> (i32, i32) {
    %c0_i32 = arith.constant 0 : i32
    %c0_i32_0 = arith.constant 0 : i32
    %c0_i32_1 = arith.constant 0 : i32
    return %c0_i32, %c0_i32_0 : i32, i32
  }
  func.func @transform_2(%arg0: i32, %arg1: i32) -> (i32, i32) {
    %c0_i32 = arith.constant 0 : i32
    %c0_i32_0 = arith.constant 0 : i32
    %c0_i32_1 = arith.constant 0 : i32
    return %c0_i32, %c0_i32_0 : i32, i32
  }
  func.func @transform_3(%arg0: i32, %arg1: i32) -> (i32, i32, i32, i32) {
    %c0_i32 = arith.constant 0 : i32
    %c0_i32_0 = arith.constant 0 : i32
    %c0_i32_1 = arith.constant 0 : i32
    return %arg0, %arg1, %c0_i32, %c0_i32_0 : i32, i32, i32, i32
  }
  func.func @transform_4(%arg0: i32, %arg1: i32) -> (i32, i32, i32, i32) {
    %c0_i32 = arith.constant 0 : i32
    %c0_i32_0 = arith.constant 0 : i32
    %c0_i32_1 = arith.constant 0 : i32
    return %arg0, %arg1, %c0_i32, %c0_i32_0 : i32, i32, i32, i32
  }
}

</mosaic_0001>

<llo_original>
// kernel: encoder_forward.5
$region0: #{encoder_forward.5}
  #allocation0 [shape = 'u32[]', space=smem, size = 0x4, offset = 0x4, fixed_abs, tag = 'smem constant byte address 0x4 - core index']
  #allocation1 [shape = 'u32[144,128]{1,0:T(1,128)}', space=vmem, size = 0x12000, scoped, tag = 'internal scratch']
  %s0 = inlined_call_operand.vmem [shape: bf16[2,12,12,64], index: 0, kind: input, shape index: {}]
  %s1 = inlined_call_operand.vmem [shape: f32[1,64], index: 1, kind: input, shape index: {}]
  %s2 = inlined_call_operand.vmem [shape: f32[1,64], index: 2, kind: input, shape index: {}]
  %s3 = inlined_call_operand.vmem [shape: bf16[2,12,12,64], index: 3, kind: output, shape index: {0}]
  %s4 = inlined_call_operand.vmem [shape: bf16[2,6,6,64], index: 4, kind: output, shape index: {1}]
  %5 = xla_tuple %s3, %s4
  %s6 = sld [smem:[#allocation0]]
  $region53: #{encoder_forward.5} parent=0
    _
  %s8 = ssub.s32 1, %s6
  %s9 = scalar_select 0, %s8, %s6
  loop: start=0, step=1, limit=4
  $region2: #{encoder_forward.5} parent=0 // loop_pre_header
    _
  $region3: #{encoder_forward.5} parent=0 // loop_header
    %s11 = sphi 0, %s15
    %p12 = scmp.ge.s32.totalorder %s11, 4
    %s18 = sphi 0, %s30
    %s19 = sphi 0, %s26
    %s20 = sphi 0, %s18
    %s21 = sphi 0, %s19
    %s22 = sphi 0, %s20
    %s23 = sphi 0, %s21
    %s35 = sphi 0, %s37
    %s38 = sphi 0, %s35
    %s39 = sphi 0, %s38
    %s55 = sphi 0, %s39
    %s59 = sphi 0, %s59
    %s61 = sphi 0, %s59
    %s62 = sphi 0, %s61
    %s76 = sphi 0, %s62
    %s80 = sphi 0, %s80
    %s82 = sphi 0, %s80
    %s83 = sphi 0, %s82
    %s97 = sphi 0, %s83
    %s105 = sphi 0, %s107
    %s108 = sphi 0, %s105
    %s109 = sphi 0, %s108
    %s125 = sphi 0, %s109
    %s133 = sphi 0, %s135
    %s136 = sphi 0, %s133
    %s137 = sphi 0, %s136
    %s153 = sphi 0, %s137
  $region4: #{encoder_forward.5} parent=0 // loop_header_branch
    %14 = sbr.rel (%p12) target = $region8
  $region5: #{encoder_forward.5} parent=0 // loop_body
    %s16 = ssub.s32 %s11, 1
    %s17 = ssub.s32 %s11, 2
    %s24 = sadd.s32 1, %s19
    %p25 = scmp.ge.s32.totalorder %s24, 1
    %s26 = scalar_select %p25, 0, %s24
    %s27 = sadd.s32 1, %s18
    %s28 = scalar_select %p25, %s27, %s18
    %p29 = scmp.ge.s32.totalorder %s28, 2
    %s30 = scalar_select %p29, 0, %s28
    %s31 = ssub.s32 %s18, %s30
    %s32 = ssub.s32 %s19, %s26
    %s33 = sor.u32 %s31, %s32
    %p34 = scmp.eq.s32.totalorder %s33, 0
    %s36 = sadd.s32 %s35, 1
    %s37 = scalar_select %p34, %s35, %s36
    %p40 = pneg %p34
    %p41 = scmp.eq.s32.totalorder %s11, 1
    %p42 = por %p40, %p41
    %p43 = scmp.ne.s32.totalorder %s35, %s38
    %p44 = scmp.eq.s32.totalorder %s11, 0
    %p45 = por %p43, %p44
    %p46 = scmp.ne.s32.totalorder %s35, %s38
    %p47 = scmp.eq.s32.totalorder %s16, 1
    %p48 = por %p46, %p47
    %p49 = scmp.ne.s32.totalorder %s38, %s39
    %p50 = scmp.eq.s32.totalorder %s16, 0
    %p51 = por %p49, %p50
    %p52 = scmp.ne.s32.totalorder %s38, %s39
    %p53 = scmp.eq.s32.totalorder %s17, 1
    %p54 = por %p52, %p53
    %p56 = scmp.ne.s32.totalorder %s39, %s55
    %p57 = scmp.eq.s32.totalorder %s17, 0
    %p58 = por %p56, %p57
    %s60 = sadd.s32 %s59, 1
    %p63 = scmp.eq.s32.totalorder %s11, 1
    %p64 = scmp.ne.s32.totalorder %s59, %s61
    %p65 = scmp.eq.s32.totalorder %s11, 0
    %p66 = por %p64, %p65
    %p67 = scmp.ne.s32.totalorder %s59, %s61
    %p68 = scmp.eq.s32.totalorder %s16, 1
    %p69 = por %p67, %p68
    %p70 = scmp.ne.s32.totalorder %s61, %s62
    %p71 = scmp.eq.s32.totalorder %s16, 0
    %p72 = por %p70, %p71
    %p73 = scmp.ne.s32.totalorder %s61, %s62
    %p74 = scmp.eq.s32.totalorder %s17, 1
    %p75 = por %p73, %p74
    %p77 = scmp.ne.s32.totalorder %s62, %s76
    %p78 = scmp.eq.s32.totalorder %s17, 0
    %p79 = por %p77, %p78
    %s81 = sadd.s32 %s80, 1
    %p84 = scmp.eq.s32.totalorder %s11, 1
    %p85 = scmp.ne.s32.totalorder %s80, %s82
    %p86 = scmp.eq.s32.totalorder %s11, 0
    %p87 = por %p85, %p86
    %p88 = scmp.ne.s32.totalorder %s80, %s82
    %p89 = scmp.eq.s32.totalorder %s16, 1
    %p90 = por %p88, %p89
    %p91 = scmp.ne.s32.totalorder %s82, %s83
    %p92 = scmp.eq.s32.totalorder %s16, 0
    %p93 = por %p91, %p92
    %p94 = scmp.ne.s32.totalorder %s82, %s83
    %p95 = scmp.eq.s32.totalorder %s17, 1
    %p96 = por %p94, %p95
    %p98 = scmp.ne.s32.totalorder %s83, %s97
    %p99 = scmp.eq.s32.totalorder %s17, 0
    %p100 = por %p98, %p99
    %s101 = ssub.s32 %s18, %s30
    %s102 = ssub.s32 %s19, %s26
    %s103 = sor.u32 %s101, %s102
    %p104 = scmp.eq.s32.totalorder %s103, 0
    %s106 = sadd.s32 %s105, 1
    %s107 = scalar_select %p104, %s105, %s106
    %p110 = pneg %p104
    %p111 = scmp.eq.s32.totalorder %s11, 1
    %p112 = por %p110, %p111
    %p113 = scmp.ne.s32.totalorder %s105, %s108
    %p114 = scmp.eq.s32.totalorder %s11, 0
    %p115 = por %p113, %p114
    %p116 = scmp.ne.s32.totalorder %s105, %s108
    %p117 = scmp.eq.s32.totalorder %s16, 1
    %p118 = por %p116, %p117
    %p119 = scmp.ne.s32.totalorder %s108, %s109
    %p120 = scmp.eq.s32.totalorder %s16, 0
    %p121 = por %p119, %p120
    %p122 = scmp.ne.s32.totalorder %s108, %s109
    %p123 = scmp.eq.s32.totalorder %s17, 1
    %p124 = por %p122, %p123
    %p126 = scmp.ne.s32.totalorder %s109, %s125
    %p127 = scmp.eq.s32.totalorder %s17, 0
    %p128 = por %p126, %p127
    %s129 = ssub.s32 %s18, %s30
    %s130 = ssub.s32 %s19, %s26
    %s131 = sor.u32 %s129, %s130
    %p132 = scmp.eq.s32.totalorder %s131, 0
    %s134 = sadd.s32 %s133, 1
    %s135 = scalar_select %p132, %s133, %s134
    %p138 = pneg %p132
    %p139 = scmp.eq.s32.totalorder %s11, 1
    %p140 = por %p138, %p139
    %p141 = scmp.ne.s32.totalorder %s133, %s136
    %p142 = scmp.eq.s32.totalorder %s11, 0
    %p143 = por %p141, %p142
    %p144 = scmp.ne.s32.totalorder %s133, %s136
    %p145 = scmp.eq.s32.totalorder %s16, 1
    %p146 = por %p144, %p145
    %p147 = scmp.ne.s32.totalorder %s136, %s137
    %p148 = scmp.eq.s32.totalorder %s16, 0
    %p149 = por %p147, %p148
    %p150 = scmp.ne.s32.totalorder %s136, %s137
    %p151 = scmp.eq.s32.totalorder %s17, 1
    %p152 = por %p150, %p151
    %p154 = scmp.ne.s32.totalorder %s137, %s153
    %p155 = scmp.eq.s32.totalorder %s17, 0
    %p156 = por %p154, %p155
    %p157 = scmp.le.s32.totalorder 1, %s11
    %p158 = scmp.lt.s32.totalorder %s11, 3
    %p159 = pnand %p157, %p158
    %p160 = pneg %p159
    // Predicated region
    $region9: #{encoder_forward.5} parent=5 // pred_check
      _
    $region10: #{encoder_forward.5} parent=5 // pred_check_branch
      %162 = sbr.rel (%p159) target = $region12
    $region11: #{encoder_forward.5} parent=5 // pred_region
      %s163 = ssub.s32 %s11, 1
      // Predicated region
      $region13: #{encoder_forward.5} parent=11 // pred_check
        %p164 = pneg %p72
      $region14: #{encoder_forward.5} parent=11 // pred_check_branch
        %166 = sbr.rel (%p164) target = $region16
      $region15: #{encoder_forward.5} parent=11 // pred_region
        _
      $region16: #{encoder_forward.5} parent=11 // pred_fallthru
        _
      // Predicated region
      $region17: #{encoder_forward.5} parent=11 // pred_check
        %p167 = pneg %p93
      $region18: #{encoder_forward.5} parent=11 // pred_check_branch
        %169 = sbr.rel (%p167) target = $region20
      $region19: #{encoder_forward.5} parent=11 // pred_region
        _
      $region20: #{encoder_forward.5} parent=11 // pred_fallthru
        _
    $region12: #{encoder_forward.5} parent=5 // pred_fallthru
      _
    %p170 = scmp.lt.s32.totalorder %s11, 2
    // Predicated region
    $region21: #{encoder_forward.5} parent=5 // pred_check
      %p171 = pneg %p170
    $region22: #{encoder_forward.5} parent=5 // pred_check_branch
      %173 = sbr.rel (%p171) target = $region24
    $region23: #{encoder_forward.5} parent=5 // pred_region
      // Predicated region
      $region25: #{encoder_forward.5} parent=23 // pred_check
        %p174 = pneg %p45
      $region26: #{encoder_forward.5} parent=23 // pred_check_branch
        %176 = sbr.rel (%p174) target = $region28
      $region27: #{encoder_forward.5} parent=23 // pred_region
        %s177 = smul.u32 12, %s19
        %p178 = scmp.lt.s32.totalorder %s18, 1
        %s179 = scalar_select %p178, %s18, 1
        %p180 = scmp.lt.s32.totalorder %s177, 11
        %s181 = scalar_select %p180, %s177, 11
        %s182 = smul.addr %s181, 2
        %s183 = smul.addr %s179, 24
        %s184 = sadd.s32 %s182, %s183
        %s185 = smul.addr %s184, 4
        %s186 = scalar_lea.vmem %s0, %s185
        %s187 = smul.u32 12, %s19
      $region28: #{encoder_forward.5} parent=23 // pred_fallthru
        _
    $region24: #{encoder_forward.5} parent=5 // pred_fallthru
      _
    %p188 = scmp.le.s32.totalorder 1, %s11
    %p189 = scmp.lt.s32.totalorder %s11, 3
    %p190 = pnand %p188, %p189
    %p191 = pneg %p190
    // Predicated region
    $region29: #{encoder_forward.5} parent=5 // pred_check
      _
    $region30: #{encoder_forward.5} parent=5 // pred_check_branch
      %193 = sbr.rel (%p190) target = $region32
    $region31: #{encoder_forward.5} parent=5 // pred_region
      %s194 = ssub.s32 %s11, 1
      %s195 = smul.u32 12, %s21
      %p196 = scmp.lt.s32.totalorder %s20, 1
      %s197 = scalar_select %p196, %s20, 1
      %p198 = scmp.lt.s32.totalorder %s195, 11
      %s199 = scalar_select %p198, %s195, 11
      %s200 = smul.addr %s199, 2
      %s201 = smul.addr %s197, 24
      %s202 = sadd.s32 %s200, %s201
      %s203 = smul.addr %s202, 4
      %s204 = scalar_lea.vmem %s0, %s203
      %p205 = pneg %p51
      %p206 = pneg %p48
      %p207 = pneg %p72
      %p208 = pneg %p69
      %p209 = pneg %p93
      %p210 = pneg %p90
      %p211 = pneg %p121
      %p212 = pneg %p118
      %s213 = smul.u32 12, %s21
      %p214 = scmp.lt.s32.totalorder %s20, 1
      %s215 = scalar_select %p214, %s20, 1
      %p216 = scmp.lt.s32.totalorder %s213, 11
      %s217 = scalar_select %p216, %s213, 11
      %s218 = smul.addr %s217, 2
      %s219 = smul.addr %s215, 24
      %s220 = sadd.s32 %s218, %s219
      %s221 = smul.addr %s220, 4
      %s222 = scalar_lea.vmem %s3, %s221
      %p223 = pneg %p149
      %p224 = pneg %p146
      %s225 = smul.u32 6, %s21
      %p226 = scmp.lt.s32.totalorder %s20, 1
      %s227 = scalar_select %p226, %s20, 1
      %p228 = scmp.lt.s32.totalorder %s225, 5
      %s229 = scalar_select %p228, %s225, 5
      %s230 = smul.addr %s227, 6
      %s231 = sadd.s32 %s229, %s230
      %s232 = smul.addr %s231, 4
      %s233 = scalar_lea.vmem %s4, %s232
      %s234 = smul.u32 12, %s21
      %p235 = scmp.lt.s32.totalorder %s20, 1
      %s236 = scalar_select %p235, %s20, 1
      %p237 = scmp.lt.s32.totalorder %s234, 11
      %s238 = scalar_select %p237, %s234, 11
      %s239 = smul.addr %s238, 2
      %s240 = smul.addr %s236, 24
      %s241 = sadd.s32 %s239, %s240
      %s242 = smul.addr %s241, 4
      %s243 = scalar_lea.vmem %s0, %s242
      %s244 = smul.u32 12, %s21
      %s245 = smul.u32 12, %s21
      %p246 = scmp.lt.s32.totalorder %s20, 1
      %s247 = scalar_select %p246, %s20, 1
      %p248 = scmp.lt.s32.totalorder %s245, 11
      %s249 = scalar_select %p248, %s245, 11
      %s250 = smul.addr %s249, 2
      %s251 = smul.addr %s247, 24
      %s252 = sadd.s32 %s250, %s251
      %s253 = smul.addr %s252, 4
      %s254 = scalar_lea.vmem %s3, %s253
      %s255 = smul.u32 12, %s21
      %s256 = smul.u32 6, %s21
      %p257 = scmp.lt.s32.totalorder %s20, 1
      %s258 = scalar_select %p257, %s20, 1
      %p259 = scmp.lt.s32.totalorder %s256, 5
      %s260 = scalar_select %p259, %s256, 5
      %s261 = smul.addr %s258, 6
      %s262 = sadd.s32 %s260, %s261
      %s263 = smul.addr %s262, 4
      %s264 = scalar_lea.vmem %s4, %s263
      %s265 = smul.u32 6, %s21
      %v266 = vld [vmem:[%s243] sm:$0xf]
      %v267 = vld [vmem:[%s243 + $0x4] sm:$0x3]
      %v268 = vld [vmem:[%s243 + $0x8] sm:$0xf]
      %v269 = vld [vmem:[%s243 + $0xc] sm:$0x3]
      %v270 = vld [vmem:[%s243 + $0x10] sm:$0xf]
      %v271 = vld [vmem:[%s243 + $0x14] sm:$0x3]
      %v272 = vld [vmem:[%s243 + $0x18] sm:$0xf]
      %v273 = vld [vmem:[%s243 + $0x1c] sm:$0x3]
      %v274 = vld [vmem:[%s243 + $0x20] sm:$0xf]
      %v275 = vld [vmem:[%s243 + $0x24] sm:$0x3]
      %v276 = vld [vmem:[%s243 + $0x28] sm:$0xf]
      %v277 = vld [vmem:[%s243 + $0x2c] sm:$0x3]
      %v278 = vld [vmem:[%s243 + $0x30] sm:$0xf]
      %v279 = vld [vmem:[%s243 + $0x34] sm:$0x3]
      %v280 = vld [vmem:[%s243 + $0x38] sm:$0xf]
      %v281 = vld [vmem:[%s243 + $0x3c] sm:$0x3]
      %v282 = vld [vmem:[%s243 + $0x40] sm:$0xf]
      %v283 = vld [vmem:[%s243 + $0x44] sm:$0x3]
      %v284 = vld [vmem:[%s243 + $0x48] sm:$0xf]
      %v285 = vld [vmem:[%s243 + $0x4c] sm:$0x3]
      %v286 = vld [vmem:[%s243 + $0x50] sm:$0xf]
      %v287 = vld [vmem:[%s243 + $0x54] sm:$0x3]
      %v288 = vld [vmem:[%s243 + $0x58] sm:$0xf]
      %v289 = vld [vmem:[%s243 + $0x5c] sm:$0x3]
      %v290 = vunpack.c.l.bf16 %v266
      %v291 = vunpack.c.l.bf16 %v267
      %v292 = vunpack.c.l.bf16 %v268
      %v293 = vunpack.c.l.bf16 %v269
      %v294 = vunpack.c.l.bf16 %v270
      %v295 = vunpack.c.l.bf16 %v271
      %v296 = vunpack.c.l.bf16 %v272
      %v297 = vunpack.c.l.bf16 %v273
      %v298 = vunpack.c.l.bf16 %v274
      %v299 = vunpack.c.l.bf16 %v275
      %v300 = vunpack.c.l.bf16 %v276
      %v301 = vunpack.c.l.bf16 %v277
      %v302 = vunpack.c.l.bf16 %v278
      %v303 = vunpack.c.l.bf16 %v279
      %v304 = vunpack.c.l.bf16 %v280
      %v305 = vunpack.c.l.bf16 %v281
      %v306 = vunpack.c.l.bf16 %v282
      %v307 = vunpack.c.l.bf16 %v283
      %v308 = vunpack.c.l.bf16 %v284
      %v309 = vunpack.c.l.bf16 %v285
      %v310 = vunpack.c.l.bf16 %v286
      %v311 = vunpack.c.l.bf16 %v287
      %v312 = vunpack.c.l.bf16 %v288
      %v313 = vunpack.c.l.bf16 %v289
      %v314 = vld [vmem:[%s1] sm:$0x1]
      %v316 = vlaneseq
      %v317 = vshrl.u32 %v316, 7
      %v318 = vsub.s32 0, %v317
      %v319 = vrot.slane %v314, %v318
      %v321 = vmul.f32 %v290, %v319
      %v322 = vmul.f32 %v291, %v319
      %v323 = vmul.f32 %v292, %v319
      %v324 = vmul.f32 %v293, %v319
      %v325 = vmul.f32 %v294, %v319
      %v326 = vmul.f32 %v295, %v319
      %v327 = vmul.f32 %v296, %v319
      %v328 = vmul.f32 %v297, %v319
      %v329 = vmul.f32 %v298, %v319
      %v330 = vmul.f32 %v299, %v319
      %v331 = vmul.f32 %v300, %v319
      %v332 = vmul.f32 %v301, %v319
      %v333 = vmul.f32 %v302, %v319
      %v334 = vmul.f32 %v303, %v319
      %v335 = vmul.f32 %v304, %v319
      %v336 = vmul.f32 %v305, %v319
      %v337 = vmul.f32 %v306, %v319
      %v338 = vmul.f32 %v307, %v319
      %v339 = vmul.f32 %v308, %v319
      %v340 = vmul.f32 %v309, %v319
      %v341 = vmul.f32 %v310, %v319
      %v342 = vmul.f32 %v311, %v319
      %v343 = vmul.f32 %v312, %v319
      %v344 = vmul.f32 %v313, %v319
      %v345 = vld [vmem:[%s2] sm:$0x1]
      %v347 = vlaneseq
      %v348 = vshrl.u32 %v347, 7
      %v349 = vsub.s32 0, %v348
      %v350 = vrot.slane %v345, %v349
      %v352 = vadd.f32 %v321, %v350
      %v353 = vadd.f32 %v322, %v350
      %v354 = vadd.f32 %v323, %v350
      %v355 = vadd.f32 %v324, %v350
      %v356 = vadd.f32 %v325, %v350
      %v357 = vadd.f32 %v326, %v350
      %v358 = vadd.f32 %v327, %v350
      %v359 = vadd.f32 %v328, %v350
      %v360 = vadd.f32 %v329, %v350
      %v361 = vadd.f32 %v330, %v350
      %v362 = vadd.f32 %v331, %v350
      %v363 = vadd.f32 %v332, %v350
      %v364 = vadd.f32 %v333, %v350
      %v365 = vadd.f32 %v334, %v350
      %v366 = vadd.f32 %v335, %v350
      %v367 = vadd.f32 %v336, %v350
      %v368 = vadd.f32 %v337, %v350
      %v369 = vadd.f32 %v338, %v350
      %v370 = vadd.f32 %v339, %v350
      %v371 = vadd.f32 %v340, %v350
      %v372 = vadd.f32 %v341, %v350
      %v373 = vadd.f32 %v342, %v350
      %v374 = vadd.f32 %v343, %v350
      %v375 = vadd.f32 %v344, %v350
      %v376 = vmax.f32 %v352, 0.0
      %v377 = vmax.f32 %v353, 0.0
      %v378 = vmax.f32 %v354, 0.0
      %v379 = vmax.f32 %v355, 0.0
      %v380 = vmax.f32 %v356, 0.0
      %v381 = vmax.f32 %v357, 0.0
      %v382 = vmax.f32 %v358, 0.0
      %v383 = vmax.f32 %v359, 0.0
      %v384 = vmax.f32 %v360, 0.0
      %v385 = vmax.f32 %v361, 0.0
      %v386 = vmax.f32 %v362, 0.0
      %v387 = vmax.f32 %v363, 0.0
      %v388 = vmax.f32 %v364, 0.0
      %v389 = vmax.f32 %v365, 0.0
      %v390 = vmax.f32 %v366, 0.0
      %v391 = vmax.f32 %v367, 0.0
      %v392 = vmax.f32 %v368, 0.0
      %v393 = vmax.f32 %v369, 0.0
      %v394 = vmax.f32 %v370, 0.0
      %v395 = vmax.f32 %v371, 0.0
      %v396 = vmax.f32 %v372, 0.0
      %v397 = vmax.f32 %v373, 0.0
      %v398 = vmax.f32 %v374, 0.0
      %v399 = vmax.f32 %v375, 0.0
      %v400 = vpack.c.bf16 %v377, %v376
      %v401 = vpack.c.bf16 %v379, %v378
      %v402 = vpack.c.bf16 %v381, %v380
      %v403 = vpack.c.bf16 %v383, %v382
      %v404 = vpack.c.bf16 %v385, %v384
      %v405 = vpack.c.bf16 %v387, %v386
      %v406 = vpack.c.bf16 %v389, %v388
      %v407 = vpack.c.bf16 %v391, %v390
      %v408 = vpack.c.bf16 %v393, %v392
      %v409 = vpack.c.bf16 %v395, %v394
      %v410 = vpack.c.bf16 %v397, %v396
      %v411 = vpack.c.bf16 %v399, %v398
      %v424 = vunpack.c.l.b16 %v400
      %v425 = vunpack.c.h.b16 %v400
      %v426 = vunpack.c.l.b16 %v401
      %v427 = vunpack.c.h.b16 %v401
      %v428 = vunpack.c.l.b16 %v402
      %v429 = vunpack.c.h.b16 %v402
      %v430 = vunpack.c.l.b16 %v403
      %v431 = vunpack.c.h.b16 %v403
      %v432 = vunpack.c.l.b16 %v404
      %v433 = vunpack.c.h.b16 %v404
      %v434 = vunpack.c.l.b16 %v405
      %v435 = vunpack.c.h.b16 %v405
      %v436 = vunpack.c.l.b16 %v406
      %v437 = vunpack.c.h.b16 %v406
      %v438 = vunpack.c.l.b16 %v407
      %v439 = vunpack.c.h.b16 %v407
      %v440 = vunpack.c.l.b16 %v408
      %v441 = vunpack.c.h.b16 %v408
      %v442 = vunpack.c.l.b16 %v409
      %v443 = vunpack.c.h.b16 %v409
      %v444 = vunpack.c.l.b16 %v410
      %v445 = vunpack.c.h.b16 %v410
      %v446 = vunpack.c.l.b16 %v411
      %v447 = vunpack.c.h.b16 %v411
      %v448 = vpack.c.b16 %v424, %v424
      %v449 = vpack.c.b16 %v425, %v425
      %v450 = vpack.c.b16 %v426, %v426
      %v451 = vpack.c.b16 %v427, %v427
      %v452 = vpack.c.b16 %v428, %v428
      %v453 = vpack.c.b16 %v429, %v429
      %v454 = vpack.c.b16 %v430, %v430
      %v455 = vpack.c.b16 %v431, %v431
      %v456 = vpack.c.b16 %v432, %v432
      %v457 = vpack.c.b16 %v433, %v433
      %v458 = vpack.c.b16 %v434, %v434
      %v459 = vpack.c.b16 %v435, %v435
      %v460 = vpack.c.b16 %v436, %v436
      %v461 = vpack.c.b16 %v437, %v437
      %v462 = vpack.c.b16 %v438, %v438
      %v463 = vpack.c.b16 %v439, %v439
      %v464 = vpack.c.b16 %v440, %v440
      %v465 = vpack.c.b16 %v441, %v441
      %v466 = vpack.c.b16 %v442, %v442
      %v467 = vpack.c.b16 %v443, %v443
      %v468 = vpack.c.b16 %v444, %v444
      %v469 = vpack.c.b16 %v445, %v445
      %v470 = vpack.c.b16 %v446, %v446
      %v471 = vpack.c.b16 %v447, %v447
      %vm496 = vcmask 519168
      %497 = vst.msk [vmem:[%s254] sm:$0xf] %vm496, %v448
      %vm498 = vcmask 517120
      %499 = vst.msk [vmem:[%s254 + $0x4] sm:$0x3] %vm498, %v449
      %500 = vst.msk [vmem:[%s254 + $0x8] sm:$0xf] %vm496, %v450
      %501 = vst.msk [vmem:[%s254 + $0xc] sm:$0x3] %vm498, %v451
      %502 = vst.msk [vmem:[%s254 + $0x10] sm:$0xf] %vm496, %v452
      %503 = vst.msk [vmem:[%s254 + $0x14] sm:$0x3] %vm498, %v453
      %504 = vst.msk [vmem:[%s254 + $0x18] sm:$0xf] %vm496, %v454
      %505 = vst.msk [vmem:[%s254 + $0x1c] sm:$0x3] %vm498, %v455
      %506 = vst.msk [vmem:[%s254 + $0x20] sm:$0xf] %vm496, %v456
      %507 = vst.msk [vmem:[%s254 + $0x24] sm:$0x3] %vm498, %v457
      %508 = vst.msk [vmem:[%s254 + $0x28] sm:$0xf] %vm496, %v458
      %509 = vst.msk [vmem:[%s254 + $0x2c] sm:$0x3] %vm498, %v459
      %510 = vst.msk [vmem:[%s254 + $0x30] sm:$0xf] %vm496, %v460
      %511 = vst.msk [vmem:[%s254 + $0x34] sm:$0x3] %vm498, %v461
      %512 = vst.msk [vmem:[%s254 + $0x38] sm:$0xf] %vm496, %v462
      %513 = vst.msk [vmem:[%s254 + $0x3c] sm:$0x3] %vm498, %v463
      %514 = vst.msk [vmem:[%s254 + $0x40] sm:$0xf] %vm496, %v464
      %515 = vst.msk [vmem:[%s254 + $0x44] sm:$0x3] %vm498, %v465
      %516 = vst.msk [vmem:[%s254 + $0x48] sm:$0xf] %vm496, %v466
      %517 = vst.msk [vmem:[%s254 + $0x4c] sm:$0x3] %vm498, %v467
      %518 = vst.msk [vmem:[%s254 + $0x50] sm:$0xf] %vm496, %v468
      %519 = vst.msk [vmem:[%s254 + $0x54] sm:$0x3] %vm498, %v469
      %520 = vst.msk [vmem:[%s254 + $0x58] sm:$0xf] %vm496, %v470
      %521 = vst.msk [vmem:[%s254 + $0x5c] sm:$0x3] %vm498, %v471
      %v522 = vmax.f32 %v376, %v378
      %v523 = vmax.f32 %v377, %v379
      %v524 = vmax.f32 %v380, %v382
      %v525 = vmax.f32 %v381, %v383
      %v526 = vmax.f32 %v384, %v386
      %v527 = vmax.f32 %v385, %v387
      %v528 = vmax.f32 %v388, %v390
      %v529 = vmax.f32 %v389, %v391
      %v530 = vmax.f32 %v392, %v394
      %v531 = vmax.f32 %v393, %v395
      %v532 = vmax.f32 %v396, %v398
      %v533 = vmax.f32 %v397, %v399
      %v546 = vcombine.high %v522, %v522
      %v548 = vunpack.c.l.s4 1983009808
      %v549 = vunpack.c.0.s8 %v548
      %v550 = vlaneseq
      %v551 = vshrl.u32 %v550, 7
      %v552 = vsub.s32 %v549, %v551
      %v553 = vrot.slane %v522, %v552
      %v555 = vunpack.c.l.s4 1983009808
      %v556 = vunpack.c.0.s8 %v555
      %v557 = vlaneseq
      %v558 = vshrl.u32 %v557, 7
      %v559 = vsub.s32 %v556, %v558
      %v560 = vrot.slane %v546, %v559
      %v561 = vcombine.high %v553, %v553
      %v562 = vcombine.high %v560, %v560
      %v564 = vunpack.c.l.s4 1983009808
      %v565 = vunpack.c.0.s8 %v564
      %v566 = vlaneseq
      %v567 = vshrl.u32 %v566, 7
      %v568 = vsub.s32 %v565, %v567
      %v569 = vrot.slane %v523, %v568
      %v570 = vcombine.high %v569, %v569
      %v571 = vcombine.high %v524, %v524
      %v573 = vunpack.c.l.s4 1983009808
      %v574 = vunpack.c.0.s8 %v573
      %v575 = vlaneseq
      %v576 = vshrl.u32 %v575, 7
      %v577 = vsub.s32 %v574, %v576
      %v578 = vrot.slane %v524, %v577
      %v580 = vunpack.c.l.s4 1983009808
      %v581 = vunpack.c.0.s8 %v580
      %v582 = vlaneseq
      %v583 = vshrl.u32 %v582, 7
      %v584 = vsub.s32 %v581, %v583
      %v585 = vrot.slane %v571, %v584
      %v586 = vcombine.high %v578, %v578
      %v587 = vcombine.high %v585, %v585
      %v589 = vunpack.c.l.s4 1983009808
      %v590 = vunpack.c.0.s8 %v589
      %v591 = vlaneseq
      %v592 = vshrl.u32 %v591, 7
      %v593 = vsub.s32 %v590, %v592
      %v594 = vrot.slane %v525, %v593
      %v595 = vcombine.high %v594, %v594
      %v596 = vcombine.high %v526, %v526
      %v598 = vunpack.c.l.s4 1983009808
      %v599 = vunpack.c.0.s8 %v598
      %v600 = vlaneseq
      %v601 = vshrl.u32 %v600, 7
      %v602 = vsub.s32 %v599, %v601
      %v603 = vrot.slane %v526, %v602
      %v605 = vunpack.c.l.s4 1983009808
      %v606 = vunpack.c.0.s8 %v605
      %v607 = vlaneseq
      %v608 = vshrl.u32 %v607, 7
      %v609 = vsub.s32 %v606, %v608
      %v610 = vrot.slane %v596, %v609
      %v611 = vcombine.high %v603, %v603
      %v612 = vcombine.high %v610, %v610
      %v614 = vunpack.c.l.s4 1983009808
      %v615 = vunpack.c.0.s8 %v614
      %v616 = vlaneseq
      %v617 = vshrl.u32 %v616, 7
      %v618 = vsub.s32 %v615, %v617
      %v619 = vrot.slane %v527, %v618
      %v620 = vcombine.high %v619, %v619
      %v621 = vcombine.high %v528, %v528
      %v623 = vunpack.c.l.s4 1983009808
      %v624 = vunpack.c.0.s8 %v623
      %v625 = vlaneseq
      %v626 = vshrl.u32 %v625, 7
      %v627 = vsub.s32 %v624, %v626
      %v628 = vrot.slane %v528, %v627
      %v630 = vunpack.c.l.s4 1983009808
      %v631 = vunpack.c.0.s8 %v630
      %v632 = vlaneseq
      %v633 = vshrl.u32 %v632, 7
      %v634 = vsub.s32 %v631, %v633
      %v635 = vrot.slane %v621, %v634
      %v636 = vcombine.high %v628, %v628
      %v637 = vcombine.high %v635, %v635
      %v639 = vunpack.c.l.s4 1983009808
      %v640 = vunpack.c.0.s8 %v639
      %v641 = vlaneseq
      %v642 = vshrl.u32 %v641, 7
      %v643 = vsub.s32 %v640, %v642
      %v644 = vrot.slane %v529, %v643
      %v645 = vcombine.high %v644, %v644
      %v646 = vcombine.high %v530, %v530
      %v648 = vunpack.c.l.s4 1983009808
      %v649 = vunpack.c.0.s8 %v648
      %v650 = vlaneseq
      %v651 = vshrl.u32 %v650, 7
      %v652 = vsub.s32 %v649, %v651
      %v653 = vrot.slane %v530, %v652
      %v655 = vunpack.c.l.s4 1983009808
      %v656 = vunpack.c.0.s8 %v655
      %v657 = vlaneseq
      %v658 = vshrl.u32 %v657, 7
      %v659 = vsub.s32 %v656, %v658
      %v660 = vrot.slane %v646, %v659
      %v661 = vcombine.high %v653, %v653
      %v662 = vcombine.high %v660, %v660
      %v664 = vunpack.c.l.s4 1983009808
      %v665 = vunpack.c.0.s8 %v664
      %v666 = vlaneseq
      %v667 = vshrl.u32 %v666, 7
      %v668 = vsub.s32 %v665, %v667
      %v669 = vrot.slane %v531, %v668
      %v670 = vcombine.high %v669, %v669
      %v671 = vcombine.high %v532, %v532
      %v673 = vunpack.c.l.s4 1983009808
      %v674 = vunpack.c.0.s8 %v673
      %v675 = vlaneseq
      %v676 = vshrl.u32 %v675, 7
      %v677 = vsub.s32 %v674, %v676
      %v678 = vrot.slane %v532, %v677
      %v680 = vunpack.c.l.s4 1983009808
      %v681 = vunpack.c.0.s8 %v680
      %v682 = vlaneseq
      %v683 = vshrl.u32 %v682, 7
      %v684 = vsub.s32 %v681, %v683
      %v685 = vrot.slane %v671, %v684
      %v686 = vcombine.high %v678, %v678
      %v687 = vcombine.high %v685, %v685
      %v689 = vunpack.c.l.s4 1983009808
      %v690 = vunpack.c.0.s8 %v689
      %v691 = vlaneseq
      %v692 = vshrl.u32 %v691, 7
      %v693 = vsub.s32 %v690, %v692
      %v694 = vrot.slane %v533, %v693
      %v695 = vcombine.high %v694, %v694
      %v732 = vsel %vm498, %v553, -inf
      %v733 = vrot.slane %v732, 4
      %v734 = vmax.f32 %v732, %v733
      %v735 = vrot.slane %v734, 2
      %v736 = vmax.f32 %v734, %v735
      %v737 = vrot.slane %v736, 1
      %v738 = vmax.f32 %v736, %v737
      %v739 = vsel %vm498, %v561, -inf
      %v740 = vrot.slane %v739, 4
      %v741 = vmax.f32 %v739, %v740
      %v742 = vrot.slane %v741, 2
      %v743 = vmax.f32 %v741, %v742
      %v744 = vrot.slane %v743, 1
      %v745 = vmax.f32 %v743, %v744
      %v746 = vsel %vm498, %v560, -inf
      %v747 = vrot.slane %v746, 4
      %v748 = vmax.f32 %v746, %v747
      %v749 = vrot.slane %v748, 2
      %v750 = vmax.f32 %v748, %v749
      %v751 = vrot.slane %v750, 1
      %v752 = vmax.f32 %v750, %v751
      %v753 = vsel %vm498, %v562, -inf
      %v754 = vrot.slane %v753, 4
      %v755 = vmax.f32 %v753, %v754
      %v756 = vrot.slane %v755, 2
      %v757 = vmax.f32 %v755, %v756
      %v758 = vrot.slane %v757, 1
      %v759 = vmax.f32 %v757, %v758
      %v760 = vsel %vm498, %v569, -inf
      %v761 = vrot.slane %v760, 4
      %v762 = vmax.f32 %v760, %v761
      %v763 = vrot.slane %v762, 2
      %v764 = vmax.f32 %v762, %v763
      %v765 = vrot.slane %v764, 1
      %v766 = vmax.f32 %v764, %v765
      %v767 = vsel %vm498, %v570, -inf
      %v768 = vrot.slane %v767, 4
      %v769 = vmax.f32 %v767, %v768
      %v770 = vrot.slane %v769, 2
      %v771 = vmax.f32 %v769, %v770
      %v772 = vrot.slane %v771, 1
      %v773 = vmax.f32 %v771, %v772
      %v774 = vsel %vm498, %v578, -inf
      %v775 = vrot.slane %v774, 4
      %v776 = vmax.f32 %v774, %v775
      %v777 = vrot.slane %v776, 2
      %v778 = vmax.f32 %v776, %v777
      %v779 = vrot.slane %v778, 1
      %v780 = vmax.f32 %v778, %v779
      %v781 = vsel %vm498, %v586, -inf
      %v782 = vrot.slane %v781, 4
      %v783 = vmax.f32 %v781, %v782
      %v784 = vrot.slane %v783, 2
      %v785 = vmax.f32 %v783, %v784
      %v786 = vrot.slane %v785, 1
      %v787 = vmax.f32 %v785, %v786
      %v788 = vsel %vm498, %v585, -inf
      %v789 = vrot.slane %v788, 4
      %v790 = vmax.f32 %v788, %v789
      %v791 = vrot.slane %v790, 2
      %v792 = vmax.f32 %v790, %v791
      %v793 = vrot.slane %v792, 1
      %v794 = vmax.f32 %v792, %v793
      %v795 = vsel %vm498, %v587, -inf
      %v796 = vrot.slane %v795, 4
      %v797 = vmax.f32 %v795, %v796
      %v798 = vrot.slane %v797, 2
      %v799 = vmax.f32 %v797, %v798
      %v800 = vrot.slane %v799, 1
      %v801 = vmax.f32 %v799, %v800
      %v802 = vsel %vm498, %v594, -inf
      %v803 = vrot.slane %v802, 4
      %v804 = vmax.f32 %v802, %v803
      %v805 = vrot.slane %v804, 2
      %v806 = vmax.f32 %v804, %v805
      %v807 = vrot.slane %v806, 1
      %v808 = vmax.f32 %v806, %v807
      %v809 = vsel %vm498, %v595, -inf
      %v810 = vrot.slane %v809, 4
      %v811 = vmax.f32 %v809, %v810
      %v812 = vrot.slane %v811, 2
      %v813 = vmax.f32 %v811, %v812
      %v814 = vrot.slane %v813, 1
      %v815 = vmax.f32 %v813, %v814
      %v816 = vsel %vm498, %v603, -inf
      %v817 = vrot.slane %v816, 4
      %v818 = vmax.f32 %v816, %v817
      %v819 = vrot.slane %v818, 2
      %v820 = vmax.f32 %v818, %v819
      %v821 = vrot.slane %v820, 1
      %v822 = vmax.f32 %v820, %v821
      %v823 = vsel %vm498, %v611, -inf
      %v824 = vrot.slane %v823, 4
      %v825 = vmax.f32 %v823, %v824
      %v826 = vrot.slane %v825, 2
      %v827 = vmax.f32 %v825, %v826
      %v828 = vrot.slane %v827, 1
      %v829 = vmax.f32 %v827, %v828
      %v830 = vsel %vm498, %v610, -inf
      %v831 = vrot.slane %v830, 4
      %v832 = vmax.f32 %v830, %v831
      %v833 = vrot.slane %v832, 2
      %v834 = vmax.f32 %v832, %v833
      %v835 = vrot.slane %v834, 1
      %v836 = vmax.f32 %v834, %v835
      %v837 = vsel %vm498, %v612, -inf
      %v838 = vrot.slane %v837, 4
      %v839 = vmax.f32 %v837, %v838
      %v840 = vrot.slane %v839, 2
      %v841 = vmax.f32 %v839, %v840
      %v842 = vrot.slane %v841, 1
      %v843 = vmax.f32 %v841, %v842
      %v844 = vsel %vm498, %v619, -inf
      %v845 = vrot.slane %v844, 4
      %v846 = vmax.f32 %v844, %v845
      %v847 = vrot.slane %v846, 2
      %v848 = vmax.f32 %v846, %v847
      %v849 = vrot.slane %v848, 1
      %v850 = vmax.f32 %v848, %v849
      %v851 = vsel %vm498, %v620, -inf
      %v852 = vrot.slane %v851, 4
      %v853 = vmax.f32 %v851, %v852
      %v854 = vrot.slane %v853, 2
      %v855 = vmax.f32 %v853, %v854
      %v856 = vrot.slane %v855, 1
      %v857 = vmax.f32 %v855, %v856
      %v858 = vsel %vm498, %v628, -inf
      %v859 = vrot.slane %v858, 4
      %v860 = vmax.f32 %v858, %v859
      %v861 = vrot.slane %v860, 2
      %v862 = vmax.f32 %v860, %v861
      %v863 = vrot.slane %v862, 1
      %v864 = vmax.f32 %v862, %v863
      %v865 = vsel %vm498, %v636, -inf
      %v866 = vrot.slane %v865, 4
      %v867 = vmax.f32 %v865, %v866
      %v868 = vrot.slane %v867, 2
      %v869 = vmax.f32 %v867, %v868
      %v870 = vrot.slane %v869, 1
      %v871 = vmax.f32 %v869, %v870
      %v872 = vsel %vm498, %v635, -inf
      %v873 = vrot.slane %v872, 4
      %v874 = vmax.f32 %v872, %v873
      %v875 = vrot.slane %v874, 2
      %v876 = vmax.f32 %v874, %v875
      %v877 = vrot.slane %v876, 1
      %v878 = vmax.f32 %v876, %v877
      %v879 = vsel %vm498, %v637, -inf
      %v880 = vrot.slane %v879, 4
      %v881 = vmax.f32 %v879, %v880
      %v882 = vrot.slane %v881, 2
      %v883 = vmax.f32 %v881, %v882
      %v884 = vrot.slane %v883, 1
      %v885 = vmax.f32 %v883, %v884
      %v886 = vsel %vm498, %v644, -inf
      %v887 = vrot.slane %v886, 4
      %v888 = vmax.f32 %v886, %v887
      %v889 = vrot.slane %v888, 2
      %v890 = vmax.f32 %v888, %v889
      %v891 = vrot.slane %v890, 1
      %v892 = vmax.f32 %v890, %v891
      %v893 = vsel %vm498, %v645, -inf
      %v894 = vrot.slane %v893, 4
      %v895 = vmax.f32 %v893, %v894
      %v896 = vrot.slane %v895, 2
      %v897 = vmax.f32 %v895, %v896
      %v898 = vrot.slane %v897, 1
      %v899 = vmax.f32 %v897, %v898
      %v900 = vsel %vm498, %v653, -inf
      %v901 = vrot.slane %v900, 4
      %v902 = vmax.f32 %v900, %v901
      %v903 = vrot.slane %v902, 2
      %v904 = vmax.f32 %v902, %v903
      %v905 = vrot.slane %v904, 1
      %v906 = vmax.f32 %v904, %v905
      %v907 = vsel %vm498, %v661, -inf
      %v908 = vrot.slane %v907, 4
      %v909 = vmax.f32 %v907, %v908
      %v910 = vrot.slane %v909, 2
      %v911 = vmax.f32 %v909, %v910
      %v912 = vrot.slane %v911, 1
      %v913 = vmax.f32 %v911, %v912
      %v914 = vsel %vm498, %v660, -inf
      %v915 = vrot.slane %v914, 4
      %v916 = vmax.f32 %v914, %v915
      %v917 = vrot.slane %v916, 2
      %v918 = vmax.f32 %v916, %v917
      %v919 = vrot.slane %v918, 1
      %v920 = vmax.f32 %v918, %v919
      %v921 = vsel %vm498, %v662, -inf
      %v922 = vrot.slane %v921, 4
      %v923 = vmax.f32 %v921, %v922
      %v924 = vrot.slane %v923, 2
      %v925 = vmax.f32 %v923, %v924
      %v926 = vrot.slane %v925, 1
      %v927 = vmax.f32 %v925, %v926
      %v928 = vsel %vm498, %v669, -inf
      %v929 = vrot.slane %v928, 4
      %v930 = vmax.f32 %v928, %v929
      %v931 = vrot.slane %v930, 2
      %v932 = vmax.f32 %v930, %v931
      %v933 = vrot.slane %v932, 1
      %v934 = vmax.f32 %v932, %v933
      %v935 = vsel %vm498, %v670, -inf
      %v936 = vrot.slane %v935, 4
      %v937 = vmax.f32 %v935, %v936
      %v938 = vrot.slane %v937, 2
      %v939 = vmax.f32 %v937, %v938
      %v940 = vrot.slane %v939, 1
      %v941 = vmax.f32 %v939, %v940
      %v942 = vsel %vm498, %v678, -inf
      %v943 = vrot.slane %v942, 4
      %v944 = vmax.f32 %v942, %v943
      %v945 = vrot.slane %v944, 2
      %v946 = vmax.f32 %v944, %v945
      %v947 = vrot.slane %v946, 1
      %v948 = vmax.f32 %v946, %v947
      %v949 = vsel %vm498, %v686, -inf
      %v950 = vrot.slane %v949, 4
      %v951 = vmax.f32 %v949, %v950
      %v952 = vrot.slane %v951, 2
      %v953 = vmax.f32 %v951, %v952
      %v954 = vrot.slane %v953, 1
      %v955 = vmax.f32 %v953, %v954
      %v956 = vsel %vm498, %v685, -inf
      %v957 = vrot.slane %v956, 4
      %v958 = vmax.f32 %v956, %v957
      %v959 = vrot.slane %v958, 2
      %v960 = vmax.f32 %v958, %v959
      %v961 = vrot.slane %v960, 1
      %v962 = vmax.f32 %v960, %v961
      %v963 = vsel %vm498, %v687, -inf
      %v964 = vrot.slane %v963, 4
      %v965 = vmax.f32 %v963, %v964
      %v966 = vrot.slane %v965, 2
      %v967 = vmax.f32 %v965, %v966
      %v968 = vrot.slane %v967, 1
      %v969 = vmax.f32 %v967, %v968
      %v970 = vsel %vm498, %v694, -inf
      %v971 = vrot.slane %v970, 4
      %v972 = vmax.f32 %v970, %v971
      %v973 = vrot.slane %v972, 2
      %v974 = vmax.f32 %v972, %v973
      %v975 = vrot.slane %v974, 1
      %v976 = vmax.f32 %v974, %v975
      %v977 = vsel %vm498, %v695, -inf
      %v978 = vrot.slane %v977, 4
      %v979 = vmax.f32 %v977, %v978
      %v980 = vrot.slane %v979, 2
      %v981 = vmax.f32 %v979, %v980
      %v982 = vrot.slane %v981, 1
      %v983 = vmax.f32 %v981, %v982
      %v984 = vpack.c.bf16 %v738, %v738
      %v985 = vpack.c.bf16 %v745, %v745
      %v986 = vpack.c.bf16 %v752, %v752
      %v987 = vpack.c.bf16 %v759, %v759
      %v988 = vpack.c.bf16 %v766, %v766
      %v989 = vpack.c.bf16 %v773, %v773
      %v990 = vpack.c.bf16 %v780, %v780
      %v991 = vpack.c.bf16 %v787, %v787
      %v992 = vpack.c.bf16 %v794, %v794
      %v993 = vpack.c.bf16 %v801, %v801
      %v994 = vpack.c.bf16 %v808, %v808
      %v995 = vpack.c.bf16 %v815, %v815
      %v996 = vpack.c.bf16 %v822, %v822
      %v997 = vpack.c.bf16 %v829, %v829
      %v998 = vpack.c.bf16 %v836, %v836
      %v999 = vpack.c.bf16 %v843, %v843
      %v1000 = vpack.c.bf16 %v850, %v850
      %v1001 = vpack.c.bf16 %v857, %v857
      %v1002 = vpack.c.bf16 %v864, %v864
      %v1003 = vpack.c.bf16 %v871, %v871
      %v1004 = vpack.c.bf16 %v878, %v878
      %v1005 = vpack.c.bf16 %v885, %v885
      %v1006 = vpack.c.bf16 %v892, %v892
      %v1007 = vpack.c.bf16 %v899, %v899
      %v1008 = vpack.c.bf16 %v906, %v906
      %v1009 = vpack.c.bf16 %v913, %v913
      %v1010 = vpack.c.bf16 %v920, %v920
      %v1011 = vpack.c.bf16 %v927, %v927
      %v1012 = vpack.c.bf16 %v934, %v934
      %v1013 = vpack.c.bf16 %v941, %v941
      %v1014 = vpack.c.bf16 %v948, %v948
      %v1015 = vpack.c.bf16 %v955, %v955
      %v1016 = vpack.c.bf16 %v962, %v962
      %v1017 = vpack.c.bf16 %v969, %v969
      %v1018 = vpack.c.bf16 %v976, %v976
      %v1019 = vpack.c.bf16 %v983, %v983
      %v1056 = vunpack.c.l.b16 %v984
      %v1057 = vunpack.c.l.b16 %v985
      %v1058 = vunpack.c.l.b16 %v986
      %v1059 = vunpack.c.l.b16 %v987
      %v1060 = vunpack.c.l.b16 %v988
      %v1061 = vunpack.c.l.b16 %v989
      %v1062 = vunpack.c.l.b16 %v990
      %v1063 = vunpack.c.l.b16 %v991
      %v1064 = vunpack.c.l.b16 %v992
      %v1065 = vunpack.c.l.b16 %v993
      %v1066 = vunpack.c.l.b16 %v994
      %v1067 = vunpack.c.l.b16 %v995
      %v1068 = vunpack.c.l.b16 %v996
      %v1069 = vunpack.c.l.b16 %v997
      %v1070 = vunpack.c.l.b16 %v998
      %v1071 = vunpack.c.l.b16 %v999
      %v1072 = vunpack.c.l.b16 %v1000
      %v1073 = vunpack.c.l.b16 %v1001
      %v1074 = vunpack.c.l.b16 %v1002
      %v1075 = vunpack.c.l.b16 %v1003
      %v1076 = vunpack.c.l.b16 %v1004
      %v1077 = vunpack.c.l.b16 %v1005
      %v1078 = vunpack.c.l.b16 %v1006
      %v1079 = vunpack.c.l.b16 %v1007
      %v1080 = vunpack.c.l.b16 %v1008
      %v1081 = vunpack.c.l.b16 %v1009
      %v1082 = vunpack.c.l.b16 %v1010
      %v1083 = vunpack.c.l.b16 %v1011
      %v1084 = vunpack.c.l.b16 %v1012
      %v1085 = vunpack.c.l.b16 %v1013
      %v1086 = vunpack.c.l.b16 %v1014
      %v1087 = vunpack.c.l.b16 %v1015
      %v1088 = vunpack.c.l.b16 %v1016
      %v1089 = vunpack.c.l.b16 %v1017
      %v1090 = vunpack.c.l.b16 %v1018
      %v1091 = vunpack.c.l.b16 %v1019
      %v1092 = vpack.c.b16 %v1056, %v1056
      %v1093 = vpack.c.b16 %v1057, %v1057
      %v1094 = vpack.c.b16 %v1058, %v1058
      %v1095 = vpack.c.b16 %v1059, %v1059
      %v1096 = vpack.c.b16 %v1060, %v1060
      %v1097 = vpack.c.b16 %v1061, %v1061
      %v1098 = vpack.c.b16 %v1062, %v1062
      %v1099 = vpack.c.b16 %v1063, %v1063
      %v1100 = vpack.c.b16 %v1064, %v1064
      %v1101 = vpack.c.b16 %v1065, %v1065
      %v1102 = vpack.c.b16 %v1066, %v1066
      %v1103 = vpack.c.b16 %v1067, %v1067
      %v1104 = vpack.c.b16 %v1068, %v1068
      %v1105 = vpack.c.b16 %v1069, %v1069
      %v1106 = vpack.c.b16 %v1070, %v1070
      %v1107 = vpack.c.b16 %v1071, %v1071
      %v1108 = vpack.c.b16 %v1072, %v1072
      %v1109 = vpack.c.b16 %v1073, %v1073
      %v1110 = vpack.c.b16 %v1074, %v1074
      %v1111 = vpack.c.b16 %v1075, %v1075
      %v1112 = vpack.c.b16 %v1076, %v1076
      %v1113 = vpack.c.b16 %v1077, %v1077
      %v1114 = vpack.c.b16 %v1078, %v1078
      %v1115 = vpack.c.b16 %v1079, %v1079
      %v1116 = vpack.c.b16 %v1080, %v1080
      %v1117 = vpack.c.b16 %v1081, %v1081
      %v1118 = vpack.c.b16 %v1082, %v1082
      %v1119 = vpack.c.b16 %v1083, %v1083
      %v1120 = vpack.c.b16 %v1084, %v1084
      %v1121 = vpack.c.b16 %v1085, %v1085
      %v1122 = vpack.c.b16 %v1086, %v1086
      %v1123 = vpack.c.b16 %v1087, %v1087
      %v1124 = vpack.c.b16 %v1088, %v1088
      %v1125 = vpack.c.b16 %v1089, %v1089
      %v1126 = vpack.c.b16 %v1090, %v1090
      %v1127 = vpack.c.b16 %v1091, %v1091
      %v1128 = vunpack.c.l.b16 %v1092
      %v1129 = vunpack.c.l.b16 %v1093
      %v1130 = vunpack.c.l.b16 %v1094
      %v1131 = vunpack.c.l.b16 %v1095
      %v1132 = vunpack.c.l.b16 %v1096
      %v1133 = vunpack.c.l.b16 %v1097
      %v1134 = vunpack.c.l.b16 %v1098
      %v1135 = vunpack.c.l.b16 %v1099
      %v1136 = vunpack.c.l.b16 %v1100
      %v1137 = vunpack.c.l.b16 %v1101
      %v1138 = vunpack.c.l.b16 %v1102
      %v1139 = vunpack.c.l.b16 %v1103
      %v1140 = vunpack.c.l.b16 %v1104
      %v1141 = vunpack.c.l.b16 %v1105
      %v1142 = vunpack.c.l.b16 %v1106
      %v1143 = vunpack.c.l.b16 %v1107
      %v1144 = vunpack.c.l.b16 %v1108
      %v1145 = vunpack.c.l.b16 %v1109
      %v1146 = vunpack.c.l.b16 %v1110
      %v1147 = vunpack.c.l.b16 %v1111
      %v1148 = vunpack.c.l.b16 %v1112
      %v1149 = vunpack.c.l.b16 %v1113
      %v1150 = vunpack.c.l.b16 %v1114
      %v1151 = vunpack.c.l.b16 %v1115
      %v1152 = vunpack.c.l.b16 %v1116
      %v1153 = vunpack.c.l.b16 %v1117
      %v1154 = vunpack.c.l.b16 %v1118
      %v1155 = vunpack.c.l.b16 %v1119
      %v1156 = vunpack.c.l.b16 %v1120
      %v1157 = vunpack.c.l.b16 %v1121
      %v1158 = vunpack.c.l.b16 %v1122
      %v1159 = vunpack.c.l.b16 %v1123
      %v1160 = vunpack.c.l.b16 %v1124
      %v1161 = vunpack.c.l.b16 %v1125
      %v1162 = vunpack.c.l.b16 %v1126
      %v1163 = vunpack.c.l.b16 %v1127
      %vm1164 = vcmask 1041409
      %v1165 = vsel %vm1164, %v1129, %v1128
      %vm1166 = vcmask 1042434
      %v1167 = vsel %vm1166, %v1130, %v1165
      %vm1168 = vcmask 1043459
      %v1169 = vsel %vm1168, %v1131, %v1167
      %vm1170 = vcmask 1044484
      %v1171 = vsel %vm1170, %v1132, %v1169
      %vm1172 = vcmask 1045509
      %v1173 = vsel %vm1172, %v1133, %v1171
      %v1174 = vsel %vm1164, %v1135, %v1134
      %v1175 = vsel %vm1166, %v1136, %v1174
      %v1176 = vsel %vm1168, %v1137, %v1175
      %v1177 = vsel %vm1170, %v1138, %v1176
      %v1178 = vsel %vm1172, %v1139, %v1177
      %v1179 = vsel %vm1164, %v1141, %v1140
      %v1180 = vsel %vm1166, %v1142, %v1179
      %v1181 = vsel %vm1168, %v1143, %v1180
      %v1182 = vsel %vm1170, %v1144, %v1181
      %v1183 = vsel %vm1172, %v1145, %v1182
      %v1184 = vsel %vm1164, %v1147, %v1146
      %v1185 = vsel %vm1166, %v1148, %v1184
      %v1186 = vsel %vm1168, %v1149, %v1185
      %v1187 = vsel %vm1170, %v1150, %v1186
      %v1188 = vsel %vm1172, %v1151, %v1187
      %v1189 = vsel %vm1164, %v1153, %v1152
      %v1190 = vsel %vm1166, %v1154, %v1189
      %v1191 = vsel %vm1168, %v1155, %v1190
      %v1192 = vsel %vm1170, %v1156, %v1191
      %v1193 = vsel %vm1172, %v1157, %v1192
      %v1194 = vsel %vm1164, %v1159, %v1158
      %v1195 = vsel %vm1166, %v1160, %v1194
      %v1196 = vsel %vm1168, %v1161, %v1195
      %v1197 = vsel %vm1170, %v1162, %v1196
      %v1198 = vsel %vm1172, %v1163, %v1197
      %v1199 = vpack.c.b16 %v1173, %v1173
      %v1200 = vpack.c.b16 %v1178, %v1178
      %v1201 = vpack.c.b16 %v1183, %v1183
      %v1202 = vpack.c.b16 %v1188, %v1188
      %v1203 = vpack.c.b16 %v1193, %v1193
      %v1204 = vpack.c.b16 %v1198, %v1198
      %vm1211 = vcmask 518144
      %1212 = vst.msk [vmem:[%s264] sm:$0x7] %vm1211, %v1199
      %1213 = vst.msk [vmem:[%s264 + $0x4] sm:$0x7] %vm1211, %v1200
      %1214 = vst.msk [vmem:[%s264 + $0x8] sm:$0x7] %vm1211, %v1201
      %1215 = vst.msk [vmem:[%s264 + $0xc] sm:$0x7] %vm1211, %v1202
      %1216 = vst.msk [vmem:[%s264 + $0x10] sm:$0x7] %vm1211, %v1203
      %1217 = vst.msk [vmem:[%s264 + $0x14] sm:$0x7] %vm1211, %v1204
      %s1218 = smul.u32 12, %s21
      %p1219 = scmp.lt.s32.totalorder %s20, 1
      %s1220 = scalar_select %p1219, %s20, 1
      %p1221 = scmp.lt.s32.totalorder %s1218, 11
      %s1222 = scalar_select %p1221, %s1218, 11
      %s1223 = smul.addr %s1222, 2
      %s1224 = smul.addr %s1220, 24
      %s1225 = sadd.s32 %s1223, %s1224
      %s1226 = smul.addr %s1225, 4
      %s1227 = scalar_lea.vmem %s3, %s1226
      %s1228 = smul.u32 6, %s21
      %p1229 = scmp.lt.s32.totalorder %s20, 1
      %s1230 = scalar_select %p1229, %s20, 1
      %p1231 = scmp.lt.s32.totalorder %s1228, 5
      %s1232 = scalar_select %p1231, %s1228, 5
      %s1233 = smul.addr %s1230, 6
      %s1234 = sadd.s32 %s1232, %s1233
      %s1235 = smul.addr %s1234, 4
      %s1236 = scalar_lea.vmem %s4, %s1235
      // Predicated region
      $region33: #{encoder_forward.5} parent=31 // pred_check
        %p1237 = pneg %p118
      $region34: #{encoder_forward.5} parent=31 // pred_check_branch
        %1239 = sbr.rel (%p1237) target = $region36
      $region35: #{encoder_forward.5} parent=31 // pred_region
        %s1240 = smul.u32 12, %s21
      $region36: #{encoder_forward.5} parent=31 // pred_fallthru
        _
      // Predicated region
      $region37: #{encoder_forward.5} parent=31 // pred_check
        %p1241 = pneg %p146
      $region38: #{encoder_forward.5} parent=31 // pred_check_branch
        %1243 = sbr.rel (%p1241) target = $region40
      $region39: #{encoder_forward.5} parent=31 // pred_region
        %s1244 = smul.u32 6, %s21
      $region40: #{encoder_forward.5} parent=31 // pred_fallthru
        _
    $region32: #{encoder_forward.5} parent=5 // pred_fallthru
      _
    %p1245 = scmp.le.s32.totalorder 2, %s11
    // Predicated region
    $region41: #{encoder_forward.5} parent=5 // pred_check
      %p1246 = pneg %p1245
    $region42: #{encoder_forward.5} parent=5 // pred_check_branch
      %1248 = sbr.rel (%p1246) target = $region44
    $region43: #{encoder_forward.5} parent=5 // pred_region
      %s1249 = ssub.s32 %s11, 2
      // Predicated region
      $region45: #{encoder_forward.5} parent=43 // pred_check
        %p1250 = pneg %p124
      $region46: #{encoder_forward.5} parent=43 // pred_check_branch
        %1252 = sbr.rel (%p1250) target = $region48
      $region47: #{encoder_forward.5} parent=43 // pred_region
        %s1253 = smul.u32 12, %s23
        %p1254 = scmp.lt.s32.totalorder %s22, 1
        %s1255 = scalar_select %p1254, %s22, 1
        %p1256 = scmp.lt.s32.totalorder %s1253, 11
        %s1257 = scalar_select %p1256, %s1253, 11
        %s1258 = smul.addr %s1257, 2
        %s1259 = smul.addr %s1255, 24
        %s1260 = sadd.s32 %s1258, %s1259
        %s1261 = smul.addr %s1260, 4
        %s1262 = scalar_lea.vmem %s3, %s1261
      $region48: #{encoder_forward.5} parent=43 // pred_fallthru
        _
      // Predicated region
      $region49: #{encoder_forward.5} parent=43 // pred_check
        %p1263 = pneg %p152
      $region50: #{encoder_forward.5} parent=43 // pred_check_branch
        %1265 = sbr.rel (%p1263) target = $region52
      $region51: #{encoder_forward.5} parent=43 // pred_region
        %s1266 = smul.u32 6, %s23
        %p1267 = scmp.lt.s32.totalorder %s22, 1
        %s1268 = scalar_select %p1267, %s22, 1
        %p1269 = scmp.lt.s32.totalorder %s1266, 5
        %s1270 = scalar_select %p1269, %s1266, 5
        %s1271 = smul.addr %s1268, 6
        %s1272 = sadd.s32 %s1270, %s1271
        %s1273 = smul.addr %s1272, 4
        %s1274 = scalar_lea.vmem %s4, %s1273
      $region52: #{encoder_forward.5} parent=43 // pred_fallthru
        _
    $region44: #{encoder_forward.5} parent=5 // pred_fallthru
      _
  $region6: #{encoder_forward.5} parent=0 // loop_footer
    %s15 = sadd.s32 1, %s11
  $region7: #{encoder_forward.5} parent=0 // loop_footer_branch
    %10 = sbr.rel target = $region3
  $region8: #{encoder_forward.5} parent=0 // loop_exit
    _

// kernel: encoder_forward.4
$region0: #{encoder_forward.4}
  #allocation0 [shape = 'u32[]', space=smem, size = 0x4, offset = 0x4, fixed_abs, tag = 'smem constant byte address 0x4 - core index']
  #allocation1 [shape = 'u32[144,128]{1,0:T(1,128)}', space=vmem, size = 0x12000, scoped, tag = 'internal scratch']
  %s0 = inlined_call_operand.vmem [shape: bf16[2,14,14,64], index: 0, kind: input, shape index: {}, may-alias: {0,1,2}]
  %s1 = inlined_call_operand.vmem [shape: bf16[2,14,14,64], index: 1, kind: input, shape index: {}, may-alias: {0,1,2}]
  %s2 = inlined_call_operand.vmem [shape: bf16[2,14,14,64], index: 2, kind: input, shape index: {}, may-alias: {0,1,2}]
  %s3 = inlined_call_operand.vmem [shape: bf16[576,64], index: 3, kind: input, shape index: {}]
  %s4 = inlined_call_operand.vmem [shape: f32[1,64], index: 4, kind: input, shape index: {}]
  %s5 = inlined_call_operand.vmem [shape: f32[1,64], index: 5, kind: input, shape index: {}]
  %s6 = inlined_call_operand.vmem [shape: bf16[2,12,12,64], index: 6, kind: output, shape index: {0}]
  %s7 = inlined_call_operand.vmem [shape: f32[2,1,2,64], index: 7, kind: output, shape index: {1}]
  %8 = xla_tuple %s6, %s7
  %s9 = sld [smem:[#allocation0]]
  $region65: #{encoder_forward.4} parent=0
    _
  %s11 = ssub.s32 1, %s9
  %s12 = scalar_select 0, %s11, %s9
  loop: start=0, step=1, limit=4
  $region2: #{encoder_forward.4} parent=0 // loop_pre_header
    _
  $region3: #{encoder_forward.4} parent=0 // loop_header
    %s14 = sphi 0, %s18
    %p15 = scmp.ge.s32.totalorder %s14, 4
    %s21 = sphi 0, %s40
    %s22 = sphi 0, %s36
    %s23 = sphi 0, %s32
    %s24 = sphi 0, %s21
    %s25 = sphi 0, %s22
    %s26 = sphi 0, %s23
    %s27 = sphi 0, %s24
    %s28 = sphi 0, %s25
    %s29 = sphi 0, %s26
    %s45 = sphi 0, %s47
    %s48 = sphi 0, %s45
    %s49 = sphi 0, %s48
    %s65 = sphi 0, %s49
    %s77 = sphi 0, %s79
    %s80 = sphi 0, %s77
    %s81 = sphi 0, %s80
    %s97 = sphi 0, %s81
    %s109 = sphi 0, %s111
    %s112 = sphi 0, %s109
    %s113 = sphi 0, %s112
    %s129 = sphi 0, %s113
    %s135 = sphi 0, %s137
    %s138 = sphi 0, %s135
    %s139 = sphi 0, %s138
    %s155 = sphi 0, %s139
    %s159 = sphi 0, %s159
    %s161 = sphi 0, %s159
    %s162 = sphi 0, %s161
    %s176 = sphi 0, %s162
    %s180 = sphi 0, %s180
    %s182 = sphi 0, %s180
    %s183 = sphi 0, %s182
    %s197 = sphi 0, %s183
    %s207 = sphi 0, %s209
    %s210 = sphi 0, %s207
    %s211 = sphi 0, %s210
    %s227 = sphi 0, %s211
    %s237 = sphi 0, %s239
    %s240 = sphi 0, %s237
    %s241 = sphi 0, %s240
    %s257 = sphi 0, %s241
  $region4: #{encoder_forward.4} parent=0 // loop_header_branch
    %17 = sbr.rel (%p15) target = $region8
  $region5: #{encoder_forward.4} parent=0 // loop_body
    %s19 = ssub.s32 %s14, 1
    %s20 = ssub.s32 %s14, 2
    %s30 = sadd.s32 1, %s23
    %p31 = scmp.ge.s32.totalorder %s30, 1
    %s32 = scalar_select %p31, 0, %s30
    %s33 = sadd.s32 1, %s22
    %s34 = scalar_select %p31, %s33, %s22
    %p35 = scmp.ge.s32.totalorder %s34, 1
    %s36 = scalar_select %p35, 0, %s34
    %s37 = sadd.s32 1, %s21
    %s38 = scalar_select %p35, %s37, %s21
    %p39 = scmp.ge.s32.totalorder %s38, 2
    %s40 = scalar_select %p39, 0, %s38
    %s41 = ssub.s32 %s21, %s40
    %s42 = ssub.s32 %s23, %s32
    %s43 = sor.u32 %s41, %s42
    %p44 = scmp.eq.s32.totalorder %s43, 0
    %s46 = sadd.s32 %s45, 1
    %s47 = scalar_select %p44, %s45, %s46
    %p50 = pneg %p44
    %p51 = scmp.eq.s32.totalorder %s14, 1
    %p52 = por %p50, %p51
    %p53 = scmp.ne.s32.totalorder %s45, %s48
    %p54 = scmp.eq.s32.totalorder %s14, 0
    %p55 = por %p53, %p54
    %p56 = scmp.ne.s32.totalorder %s45, %s48
    %p57 = scmp.eq.s32.totalorder %s19, 1
    %p58 = por %p56, %p57
    %p59 = scmp.ne.s32.totalorder %s48, %s49
    %p60 = scmp.eq.s32.totalorder %s19, 0
    %p61 = por %p59, %p60
    %p62 = scmp.ne.s32.totalorder %s48, %s49
    %p63 = scmp.eq.s32.totalorder %s20, 1
    %p64 = por %p62, %p63
    %p66 = scmp.ne.s32.totalorder %s49, %s65
    %p67 = scmp.eq.s32.totalorder %s20, 0
    %p68 = por %p66, %p67
    %s69 = smul.u32 %s23, 12
    %s70 = sadd.s32 %s69, 12
    %s71 = smul.u32 %s32, 12
    %s72 = sadd.s32 %s71, 12
    %s73 = ssub.s32 %s21, %s40
    %s74 = ssub.s32 %s70, %s72
    %s75 = sor.u32 %s73, %s74
    %p76 = scmp.eq.s32.totalorder %s75, 0
    %s78 = sadd.s32 %s77, 1
    %s79 = scalar_select %p76, %s77, %s78
    %p82 = pneg %p76
    %p83 = scmp.eq.s32.totalorder %s14, 1
    %p84 = por %p82, %p83
    %p85 = scmp.ne.s32.totalorder %s77, %s80
    %p86 = scmp.eq.s32.totalorder %s14, 0
    %p87 = por %p85, %p86
    %p88 = scmp.ne.s32.totalorder %s77, %s80
    %p89 = scmp.eq.s32.totalorder %s19, 1
    %p90 = por %p88, %p89
    %p91 = scmp.ne.s32.totalorder %s80, %s81
    %p92 = scmp.eq.s32.totalorder %s19, 0
    %p93 = por %p91, %p92
    %p94 = scmp.ne.s32.totalorder %s80, %s81
    %p95 = scmp.eq.s32.totalorder %s20, 1
    %p96 = por %p94, %p95
    %p98 = scmp.ne.s32.totalorder %s81, %s97
    %p99 = scmp.eq.s32.totalorder %s20, 0
    %p100 = por %p98, %p99
    %s101 = smul.u32 %s23, 12
    %s102 = sadd.s32 %s101, 13
    %s103 = smul.u32 %s32, 12
    %s104 = sadd.s32 %s103, 13
    %s105 = ssub.s32 %s21, %s40
    %s106 = ssub.s32 %s102, %s104
    %s107 = sor.u32 %s105, %s106
    %p108 = scmp.eq.s32.totalorder %s107, 0
    %s110 = sadd.s32 %s109, 1
    %s111 = scalar_select %p108, %s109, %s110
    %p114 = pneg %p108
    %p115 = scmp.eq.s32.totalorder %s14, 1
    %p116 = por %p114, %p115
    %p117 = scmp.ne.s32.totalorder %s109, %s112
    %p118 = scmp.eq.s32.totalorder %s14, 0
    %p119 = por %p117, %p118
    %p120 = scmp.ne.s32.totalorder %s109, %s112
    %p121 = scmp.eq.s32.totalorder %s19, 1
    %p122 = por %p120, %p121
    %p123 = scmp.ne.s32.totalorder %s112, %s113
    %p124 = scmp.eq.s32.totalorder %s19, 0
    %p125 = por %p123, %p124
    %p126 = scmp.ne.s32.totalorder %s112, %s113
    %p127 = scmp.eq.s32.totalorder %s20, 1
    %p128 = por %p126, %p127
    %p130 = scmp.ne.s32.totalorder %s113, %s129
    %p131 = scmp.eq.s32.totalorder %s20, 0
    %p132 = por %p130, %p131
    %s133 = ssub.s32 %s22, %s36
    %p134 = scmp.eq.s32.totalorder %s133, 0
    %s136 = sadd.s32 %s135, 1
    %s137 = scalar_select %p134, %s135, %s136
    %p140 = pneg %p134
    %p141 = scmp.eq.s32.totalorder %s14, 1
    %p142 = por %p140, %p141
    %p143 = scmp.ne.s32.totalorder %s135, %s138
    %p144 = scmp.eq.s32.totalorder %s14, 0
    %p145 = por %p143, %p144
    %p146 = scmp.ne.s32.totalorder %s135, %s138
    %p147 = scmp.eq.s32.totalorder %s19, 1
    %p148 = por %p146, %p147
    %p149 = scmp.ne.s32.totalorder %s138, %s139
    %p150 = scmp.eq.s32.totalorder %s19, 0
    %p151 = por %p149, %p150
    %p152 = scmp.ne.s32.totalorder %s138, %s139
    %p153 = scmp.eq.s32.totalorder %s20, 1
    %p154 = por %p152, %p153
    %p156 = scmp.ne.s32.totalorder %s139, %s155
    %p157 = scmp.eq.s32.totalorder %s20, 0
    %p158 = por %p156, %p157
    %s160 = sadd.s32 %s159, 1
    %p163 = scmp.eq.s32.totalorder %s14, 1
    %p164 = scmp.ne.s32.totalorder %s159, %s161
    %p165 = scmp.eq.s32.totalorder %s14, 0
    %p166 = por %p164, %p165
    %p167 = scmp.ne.s32.totalorder %s159, %s161
    %p168 = scmp.eq.s32.totalorder %s19, 1
    %p169 = por %p167, %p168
    %p170 = scmp.ne.s32.totalorder %s161, %s162
    %p171 = scmp.eq.s32.totalorder %s19, 0
    %p172 = por %p170, %p171
    %p173 = scmp.ne.s32.totalorder %s161, %s162
    %p174 = scmp.eq.s32.totalorder %s20, 1
    %p175 = por %p173, %p174
    %p177 = scmp.ne.s32.totalorder %s162, %s176
    %p178 = scmp.eq.s32.totalorder %s20, 0
    %p179 = por %p177, %p178
    %s181 = sadd.s32 %s180, 1
    %p184 = scmp.eq.s32.totalorder %s14, 1
    %p185 = scmp.ne.s32.totalorder %s180, %s182
    %p186 = scmp.eq.s32.totalorder %s14, 0
    %p187 = por %p185, %p186
    %p188 = scmp.ne.s32.totalorder %s180, %s182
    %p189 = scmp.eq.s32.totalorder %s19, 1
    %p190 = por %p188, %p189
    %p191 = scmp.ne.s32.totalorder %s182, %s183
    %p192 = scmp.eq.s32.totalorder %s19, 0
    %p193 = por %p191, %p192
    %p194 = scmp.ne.s32.totalorder %s182, %s183
    %p195 = scmp.eq.s32.totalorder %s20, 1
    %p196 = por %p194, %p195
    %p198 = scmp.ne.s32.totalorder %s183, %s197
    %p199 = scmp.eq.s32.totalorder %s20, 0
    %p200 = por %p198, %p199
    %s201 = ssub.s32 %s21, %s40
    %s202 = ssub.s32 %s23, %s32
    %s203 = sor.u32 %s201, %s202
    %s204 = ssub.s32 %s22, %s36
    %s205 = sor.u32 %s203, %s204
    %p206 = scmp.eq.s32.totalorder %s205, 0
    %s208 = sadd.s32 %s207, 1
    %s209 = scalar_select %p206, %s207, %s208
    %p212 = pneg %p206
    %p213 = scmp.eq.s32.totalorder %s14, 1
    %p214 = por %p212, %p213
    %p215 = scmp.ne.s32.totalorder %s207, %s210
    %p216 = scmp.eq.s32.totalorder %s14, 0
    %p217 = por %p215, %p216
    %p218 = scmp.ne.s32.totalorder %s207, %s210
    %p219 = scmp.eq.s32.totalorder %s19, 1
    %p220 = por %p218, %p219
    %p221 = scmp.ne.s32.totalorder %s210, %s211
    %p222 = scmp.eq.s32.totalorder %s19, 0
    %p223 = por %p221, %p222
    %p224 = scmp.ne.s32.totalorder %s210, %s211
    %p225 = scmp.eq.s32.totalorder %s20, 1
    %p226 = por %p224, %p225
    %p228 = scmp.ne.s32.totalorder %s211, %s227
    %p229 = scmp.eq.s32.totalorder %s20, 0
    %p230 = por %p228, %p229
    %s231 = ssub.s32 %s21, %s40
    %s232 = ssub.s32 %s23, %s32
    %s233 = sor.u32 %s231, %s232
    %s234 = ssub.s32 %s22, %s36
    %s235 = sor.u32 %s233, %s234
    %p236 = scmp.eq.s32.totalorder %s235, 0
    %s238 = sadd.s32 %s237, 1
    %s239 = scalar_select %p236, %s237, %s238
    %p242 = pneg %p236
    %p243 = scmp.eq.s32.totalorder %s14, 1
    %p244 = por %p242, %p243
    %p245 = scmp.ne.s32.totalorder %s237, %s240
    %p246 = scmp.eq.s32.totalorder %s14, 0
    %p247 = por %p245, %p246
    %p248 = scmp.ne.s32.totalorder %s237, %s240
    %p249 = scmp.eq.s32.totalorder %s19, 1
    %p250 = por %p248, %p249
    %p251 = scmp.ne.s32.totalorder %s240, %s241
    %p252 = scmp.eq.s32.totalorder %s19, 0
    %p253 = por %p251, %p252
    %p254 = scmp.ne.s32.totalorder %s240, %s241
    %p255 = scmp.eq.s32.totalorder %s20, 1
    %p256 = por %p254, %p255
    %p258 = scmp.ne.s32.totalorder %s241, %s257
    %p259 = scmp.eq.s32.totalorder %s20, 0
    %p260 = por %p258, %p259
    %p261 = scmp.le.s32.totalorder 1, %s14
    %p262 = scmp.lt.s32.totalorder %s14, 3
    %p263 = pnand %p261, %p262
    %p264 = pneg %p263
    // Predicated region
    $region9: #{encoder_forward.4} parent=5 // pred_check
      _
    $region10: #{encoder_forward.4} parent=5 // pred_check_branch
      %266 = sbr.rel (%p263) target = $region12
    $region11: #{encoder_forward.4} parent=5 // pred_region
      %s267 = ssub.s32 %s14, 1
      // Predicated region
      $region13: #{encoder_forward.4} parent=11 // pred_check
        %p268 = pneg %p151
      $region14: #{encoder_forward.4} parent=11 // pred_check_branch
        %270 = sbr.rel (%p268) target = $region16
      $region15: #{encoder_forward.4} parent=11 // pred_region
        %p271 = scmp.lt.s32.totalorder %s25, 0
        %s272 = scalar_select %p271, %s25, 0
        %s273 = smul.addr %s272, 4
        %s274 = scalar_lea.vmem %s3, %s273
      $region16: #{encoder_forward.4} parent=11 // pred_fallthru
        _
      // Predicated region
      $region17: #{encoder_forward.4} parent=11 // pred_check
        %p275 = pneg %p172
      $region18: #{encoder_forward.4} parent=11 // pred_check_branch
        %277 = sbr.rel (%p275) target = $region20
      $region19: #{encoder_forward.4} parent=11 // pred_region
        _
      $region20: #{encoder_forward.4} parent=11 // pred_fallthru
        _
      // Predicated region
      $region21: #{encoder_forward.4} parent=11 // pred_check
        %p278 = pneg %p193
      $region22: #{encoder_forward.4} parent=11 // pred_check_branch
        %280 = sbr.rel (%p278) target = $region24
      $region23: #{encoder_forward.4} parent=11 // pred_region
        _
      $region24: #{encoder_forward.4} parent=11 // pred_fallthru
        _
    $region12: #{encoder_forward.4} parent=5 // pred_fallthru
      _
    %p281 = scmp.lt.s32.totalorder %s14, 2
    // Predicated region
    $region25: #{encoder_forward.4} parent=5 // pred_check
      %p282 = pneg %p281
    $region26: #{encoder_forward.4} parent=5 // pred_check_branch
      %284 = sbr.rel (%p282) target = $region28
    $region27: #{encoder_forward.4} parent=5 // pred_region
      // Predicated region
      $region29: #{encoder_forward.4} parent=27 // pred_check
        %p285 = pneg %p55
      $region30: #{encoder_forward.4} parent=27 // pred_check_branch
        %287 = sbr.rel (%p285) target = $region32
      $region31: #{encoder_forward.4} parent=27 // pred_region
        %s288 = smul.u32 12, %s23
        %s289 = ssub.s32 14, %s288
        %p290 = scmp.lt.s32.totalorder %s289, 12
        %s291 = scalar_select %p290, %s289, 12
        %s292 = smul.u32 64, %s291
        %s293 = smul.u32 %s292, 2
        %p294 = scmp.lt.s32.totalorder %s21, 1
        %s295 = scalar_select %p294, %s21, 1
        %p296 = scmp.lt.s32.totalorder %s288, 13
        %s297 = scalar_select %p296, %s288, 13
        %s298 = smul.addr %s297, 2
        %s299 = smul.addr %s295, 28
        %s300 = sadd.s32 %s298, %s299
        %s301 = smul.addr %s300, 4
        %s302 = scalar_lea.vmem %s0, %s301
        %s303 = smul.u32 12, %s23
        %s304 = ssub.s32 14, %s303
        %p305 = scmp.lt.s32.totalorder %s304, 12
        %s306 = scalar_select %p305, %s304, 12
        %s307 = smul.u32 64, %s306
        %s308 = smul.u32 %s307, 2
      $region32: #{encoder_forward.4} parent=27 // pred_fallthru
        _
      // Predicated region
      $region33: #{encoder_forward.4} parent=27 // pred_check
        %p309 = pneg %p87
      $region34: #{encoder_forward.4} parent=27 // pred_check_branch
        %311 = sbr.rel (%p309) target = $region36
      $region35: #{encoder_forward.4} parent=27 // pred_region
        %s312 = smul.u32 %s23, 12
        %s313 = sadd.s32 %s312, 12
        %p314 = scmp.lt.s32.totalorder %s21, 1
        %s315 = scalar_select %p314, %s21, 1
        %p316 = scmp.lt.s32.totalorder %s313, 13
        %s317 = scalar_select %p316, %s313, 13
        %s318 = smul.addr %s317, 2
        %s319 = smul.addr %s315, 28
        %s320 = sadd.s32 %s318, %s319
        %s321 = smul.addr %s320, 4
        %s322 = scalar_lea.vmem %s1, %s321
        %s323 = smul.u32 %s23, 12
        %s324 = sadd.s32 %s323, 12
      $region36: #{encoder_forward.4} parent=27 // pred_fallthru
        _
      // Predicated region
      $region37: #{encoder_forward.4} parent=27 // pred_check
        %p325 = pneg %p119
      $region38: #{encoder_forward.4} parent=27 // pred_check_branch
        %327 = sbr.rel (%p325) target = $region40
      $region39: #{encoder_forward.4} parent=27 // pred_region
        %s328 = smul.u32 %s23, 12
        %s329 = sadd.s32 %s328, 13
        %p330 = scmp.lt.s32.totalorder %s21, 1
        %s331 = scalar_select %p330, %s21, 1
        %p332 = scmp.lt.s32.totalorder %s329, 13
        %s333 = scalar_select %p332, %s329, 13
        %s334 = smul.addr %s333, 2
        %s335 = smul.addr %s331, 28
        %s336 = sadd.s32 %s334, %s335
        %s337 = smul.addr %s336, 4
        %s338 = scalar_lea.vmem %s2, %s337
        %s339 = smul.u32 %s23, 12
        %s340 = sadd.s32 %s339, 13
      $region40: #{encoder_forward.4} parent=27 // pred_fallthru
        _
    $region28: #{encoder_forward.4} parent=5 // pred_fallthru
      _
    %p341 = scmp.le.s32.totalorder 1, %s14
    %p342 = scmp.lt.s32.totalorder %s14, 3
    %p343 = pnand %p341, %p342
    %p344 = pneg %p343
    // Predicated region
    $region41: #{encoder_forward.4} parent=5 // pred_check
      _
    $region42: #{encoder_forward.4} parent=5 // pred_check_branch
      %346 = sbr.rel (%p343) target = $region44
    $region43: #{encoder_forward.4} parent=5 // pred_region
      %s347 = ssub.s32 %s14, 1
      %s348 = smul.u32 12, %s26
      %s349 = ssub.s32 14, %s348
      %p350 = scmp.lt.s32.totalorder %s349, 12
      %s351 = scalar_select %p350, %s349, 12
      %s352 = smul.u32 64, %s351
      %s353 = smul.u32 %s352, 2
      %p354 = scmp.lt.s32.totalorder %s24, 1
      %s355 = scalar_select %p354, %s24, 1
      %p356 = scmp.lt.s32.totalorder %s348, 13
      %s357 = scalar_select %p356, %s348, 13
      %s358 = smul.addr %s357, 2
      %s359 = smul.addr %s355, 28
      %s360 = sadd.s32 %s358, %s359
      %s361 = smul.addr %s360, 4
      %s362 = scalar_lea.vmem %s0, %s361
      %p363 = pneg %p61
      %p364 = pneg %p58
      %s365 = smul.u32 %s26, 12
      %s366 = sadd.s32 %s365, 12
      %p367 = scmp.lt.s32.totalorder %s24, 1
      %s368 = scalar_select %p367, %s24, 1
      %p369 = scmp.lt.s32.totalorder %s366, 13
      %s370 = scalar_select %p369, %s366, 13
      %s371 = smul.addr %s370, 2
      %s372 = smul.addr %s368, 28
      %s373 = sadd.s32 %s371, %s372
      %s374 = smul.addr %s373, 4
      %s375 = scalar_lea.vmem %s1, %s374
      %p376 = pneg %p93
      %p377 = pneg %p90
      %s378 = smul.u32 %s26, 12
      %s379 = sadd.s32 %s378, 13
      %p380 = scmp.lt.s32.totalorder %s24, 1
      %s381 = scalar_select %p380, %s24, 1
      %p382 = scmp.lt.s32.totalorder %s379, 13
      %s383 = scalar_select %p382, %s379, 13
      %s384 = smul.addr %s383, 2
      %s385 = smul.addr %s381, 28
      %s386 = sadd.s32 %s384, %s385
      %s387 = smul.addr %s386, 4
      %s388 = scalar_lea.vmem %s2, %s387
      %p389 = pneg %p125
      %p390 = pneg %p122
      %p391 = scmp.lt.s32.totalorder %s25, 0
      %s392 = scalar_select %p391, %s25, 0
      %s393 = smul.addr %s392, 4
      %s394 = scalar_lea.vmem %s3, %s393
      %p395 = pneg %p151
      %p396 = pneg %p148
      %p397 = pneg %p172
      %p398 = pneg %p169
      %p399 = pneg %p193
      %p400 = pneg %p190
      %p401 = pneg %p223
      %p402 = pneg %p220
      %s403 = smul.u32 12, %s26
      %p404 = scmp.lt.s32.totalorder %s24, 1
      %s405 = scalar_select %p404, %s24, 1
      %p406 = scmp.lt.s32.totalorder %s403, 11
      %s407 = scalar_select %p406, %s403, 11
      %p408 = scmp.lt.s32.totalorder %s25, 0
      %s409 = scalar_select %p408, %s25, 0
      %s410 = smul.addr %s407, 2
      %s411 = sadd.s32 %s409, %s410
      %s412 = smul.addr %s405, 24
      %s413 = sadd.s32 %s411, %s412
      %s414 = smul.addr %s413, 4
      %s415 = scalar_lea.vmem %s6, %s414
      %p416 = pneg %p253
      %p417 = pneg %p250
      %p418 = scmp.lt.s32.totalorder %s24, 1
      %s419 = scalar_select %p418, %s24, 1
      %p420 = scmp.lt.s32.totalorder %s26, 0
      %s421 = scalar_select %p420, %s26, 0
      %p422 = scmp.lt.s32.totalorder %s25, 0
      %s423 = scalar_select %p422, %s25, 0
      %s424 = sadd.s32 %s423, %s421
      %s425 = sadd.s32 %s424, %s419
      %s426 = smul.addr %s425, 2
      %s427 = scalar_lea.vmem %s7, %s426
      %s428 = smul.u32 12, %s26
      %s429 = ssub.s32 14, %s428
      %p430 = scmp.lt.s32.totalorder %s429, 12
      %s431 = scalar_select %p430, %s429, 12
      %s432 = smul.u32 64, %s431
      %s433 = smul.u32 %s432, 2
      %p434 = scmp.lt.s32.totalorder %s24, 1
      %s435 = scalar_select %p434, %s24, 1
      %p436 = scmp.lt.s32.totalorder %s428, 13
      %s437 = scalar_select %p436, %s428, 13
      %s438 = smul.addr %s437, 2
      %s439 = smul.addr %s435, 28
      %s440 = sadd.s32 %s438, %s439
      %s441 = smul.addr %s440, 4
      %s442 = scalar_lea.vmem %s0, %s441
      %s443 = smul.u32 12, %s26
      %s444 = ssub.s32 14, %s443
      %p445 = scmp.lt.s32.totalorder %s444, 12
      %s446 = scalar_select %p445, %s444, 12
      %s447 = smul.u32 64, %s446
      %s448 = smul.u32 %s447, 2
      %s449 = smul.u32 %s26, 12
      %s450 = sadd.s32 %s449, 12
      %p451 = scmp.lt.s32.totalorder %s24, 1
      %s452 = scalar_select %p451, %s24, 1
      %p453 = scmp.lt.s32.totalorder %s450, 13
      %s454 = scalar_select %p453, %s450, 13
      %s455 = smul.addr %s454, 2
      %s456 = smul.addr %s452, 28
      %s457 = sadd.s32 %s455, %s456
      %s458 = smul.addr %s457, 4
      %s459 = scalar_lea.vmem %s1, %s458
      %s460 = smul.u32 %s26, 12
      %s461 = sadd.s32 %s460, 12
      %s462 = smul.u32 %s26, 12
      %s463 = sadd.s32 %s462, 13
      %p464 = scmp.lt.s32.totalorder %s24, 1
      %s465 = scalar_select %p464, %s24, 1
      %p466 = scmp.lt.s32.totalorder %s463, 13
      %s467 = scalar_select %p466, %s463, 13
      %s468 = smul.addr %s467, 2
      %s469 = smul.addr %s465, 28
      %s470 = sadd.s32 %s468, %s469
      %s471 = smul.addr %s470, 4
      %s472 = scalar_lea.vmem %s2, %s471
      %s473 = smul.u32 %s26, 12
      %s474 = sadd.s32 %s473, 13
      %p475 = scmp.lt.s32.totalorder %s25, 0
      %s476 = scalar_select %p475, %s25, 0
      %s477 = smul.addr %s476, 4
      %s478 = scalar_lea.vmem %s3, %s477
      %s479 = smul.u32 12, %s26
      %p480 = scmp.lt.s32.totalorder %s24, 1
      %s481 = scalar_select %p480, %s24, 1
      %p482 = scmp.lt.s32.totalorder %s479, 11
      %s483 = scalar_select %p482, %s479, 11
      %p484 = scmp.lt.s32.totalorder %s25, 0
      %s485 = scalar_select %p484, %s25, 0
      %s486 = smul.addr %s483, 2
      %s487 = sadd.s32 %s485, %s486
      %s488 = smul.addr %s481, 24
      %s489 = sadd.s32 %s487, %s488
      %s490 = smul.addr %s489, 4
      %s491 = scalar_lea.vmem %s6, %s490
      %s492 = smul.u32 12, %s26
      %p493 = scmp.lt.s32.totalorder %s24, 1
      %s494 = scalar_select %p493, %s24, 1
      %p495 = scmp.lt.s32.totalorder %s26, 0
      %s496 = scalar_select %p495, %s26, 0
      %p497 = scmp.lt.s32.totalorder %s25, 0
      %s498 = scalar_select %p497, %s25, 0
      %s499 = sadd.s32 %s498, %s496
      %s500 = sadd.s32 %s499, %s494
      %s501 = smul.addr %s500, 2
      %s502 = scalar_lea.vmem %s7, %s501
      %v504 = vld [vmem:[%s442] sm:$0xf]
      %v505 = vld [vmem:[%s442 + $0x4] sm:$0x7]
      %v506 = vld [vmem:[%s442 + $0x8] sm:$0xf]
      %v507 = vld [vmem:[%s442 + $0xc] sm:$0x7]
      %v508 = vld [vmem:[%s442 + $0x10] sm:$0xf]
      %v509 = vld [vmem:[%s442 + $0x14] sm:$0x7]
      %v510 = vld [vmem:[%s442 + $0x18] sm:$0xf]
      %v511 = vld [vmem:[%s442 + $0x1c] sm:$0x7]
      %v512 = vld [vmem:[%s442 + $0x20] sm:$0xf]
      %v513 = vld [vmem:[%s442 + $0x24] sm:$0x7]
      %v514 = vld [vmem:[%s442 + $0x28] sm:$0xf]
      %v515 = vld [vmem:[%s442 + $0x2c] sm:$0x7]
      %v516 = vld [vmem:[%s442 + $0x30] sm:$0xf]
      %v517 = vld [vmem:[%s442 + $0x34] sm:$0x7]
      %v518 = vld [vmem:[%s442 + $0x38] sm:$0xf]
      %v519 = vld [vmem:[%s442 + $0x3c] sm:$0x7]
      %v520 = vld [vmem:[%s442 + $0x40] sm:$0xf]
      %v521 = vld [vmem:[%s442 + $0x44] sm:$0x7]
      %v522 = vld [vmem:[%s442 + $0x48] sm:$0xf]
      %v523 = vld [vmem:[%s442 + $0x4c] sm:$0x7]
      %v524 = vld [vmem:[%s442 + $0x50] sm:$0xf]
      %v525 = vld [vmem:[%s442 + $0x54] sm:$0x7]
      %v526 = vld [vmem:[%s442 + $0x58] sm:$0xf]
      %v527 = vld [vmem:[%s442 + $0x5c] sm:$0x7]
      %v528 = vld [vmem:[%s459] sm:$0xf]
      %v529 = vld [vmem:[%s459 + $0x4] sm:$0x7]
      %v530 = vld [vmem:[%s472] sm:$0xf]
      %v531 = vld [vmem:[%s472 + $0x4] sm:$0x7]
      %v532 = vunpack.c.l.bf16 %v504
      %v533 = vunpack.c.l.bf16 %v505
      %v534 = vunpack.c.l.bf16 %v506
      %v535 = vunpack.c.l.bf16 %v507
      %v536 = vunpack.c.l.bf16 %v508
      %v537 = vunpack.c.l.bf16 %v509
      %v538 = vunpack.c.l.bf16 %v510
      %v539 = vunpack.c.l.bf16 %v511
      %v540 = vunpack.c.l.bf16 %v512
      %v541 = vunpack.c.l.bf16 %v513
      %v542 = vunpack.c.l.bf16 %v514
      %v543 = vunpack.c.l.bf16 %v515
      %v544 = vunpack.c.l.bf16 %v516
      %v545 = vunpack.c.l.bf16 %v517
      %v546 = vunpack.c.l.bf16 %v518
      %v547 = vunpack.c.l.bf16 %v519
      %v548 = vunpack.c.l.bf16 %v520
      %v549 = vunpack.c.l.bf16 %v521
      %v550 = vunpack.c.l.bf16 %v522
      %v551 = vunpack.c.l.bf16 %v523
      %v552 = vunpack.c.l.bf16 %v524
      %v553 = vunpack.c.l.bf16 %v525
      %v554 = vunpack.c.l.bf16 %v526
      %v555 = vunpack.c.l.bf16 %v527
      %v556 = vunpack.c.l.bf16 %v528
      %v557 = vunpack.c.l.bf16 %v529
      %v558 = vunpack.c.l.bf16 %v530
      %v559 = vunpack.c.l.bf16 %v531
      %v560 = vld [vmem:[%s4] sm:$0x1]
      %v562 = vlaneseq
      %v563 = vshrl.u32 %v562, 7
      %v564 = vsub.s32 0, %v563
      %v565 = vrot.slane %v560, %v564
      %v567 = vmul.f32 %v532, %v565
      %v568 = vmul.f32 %v533, %v565
      %v569 = vmul.f32 %v534, %v565
      %v570 = vmul.f32 %v535, %v565
      %v571 = vmul.f32 %v536, %v565
      %v572 = vmul.f32 %v537, %v565
      %v573 = vmul.f32 %v538, %v565
      %v574 = vmul.f32 %v539, %v565
      %v575 = vmul.f32 %v540, %v565
      %v576 = vmul.f32 %v541, %v565
      %v577 = vmul.f32 %v542, %v565
      %v578 = vmul.f32 %v543, %v565
      %v579 = vmul.f32 %v544, %v565
      %v580 = vmul.f32 %v545, %v565
      %v581 = vmul.f32 %v546, %v565
      %v582 = vmul.f32 %v547, %v565
      %v583 = vmul.f32 %v548, %v565
      %v584 = vmul.f32 %v549, %v565
      %v585 = vmul.f32 %v550, %v565
      %v586 = vmul.f32 %v551, %v565
      %v587 = vmul.f32 %v552, %v565
      %v588 = vmul.f32 %v553, %v565
      %v589 = vmul.f32 %v554, %v565
      %v590 = vmul.f32 %v555, %v565
      %v591 = vmul.f32 %v556, %v565
      %v592 = vmul.f32 %v557, %v565
      %v593 = vmul.f32 %v558, %v565
      %v594 = vmul.f32 %v559, %v565
      %v595 = vld [vmem:[%s5] sm:$0x1]
      %v597 = vlaneseq
      %v598 = vshrl.u32 %v597, 7
      %v599 = vsub.s32 0, %v598
      %v600 = vrot.slane %v595, %v599
      %v602 = vadd.f32 %v567, %v600
      %v603 = vadd.f32 %v568, %v600
      %v604 = vadd.f32 %v569, %v600
      %v605 = vadd.f32 %v570, %v600
      %v606 = vadd.f32 %v571, %v600
      %v607 = vadd.f32 %v572, %v600
      %v608 = vadd.f32 %v573, %v600
      %v609 = vadd.f32 %v574, %v600
      %v610 = vadd.f32 %v575, %v600
      %v611 = vadd.f32 %v576, %v600
      %v612 = vadd.f32 %v577, %v600
      %v613 = vadd.f32 %v578, %v600
      %v614 = vadd.f32 %v579, %v600
      %v615 = vadd.f32 %v580, %v600
      %v616 = vadd.f32 %v581, %v600
      %v617 = vadd.f32 %v582, %v600
      %v618 = vadd.f32 %v583, %v600
      %v619 = vadd.f32 %v584, %v600
      %v620 = vadd.f32 %v585, %v600
      %v621 = vadd.f32 %v586, %v600
      %v622 = vadd.f32 %v587, %v600
      %v623 = vadd.f32 %v588, %v600
      %v624 = vadd.f32 %v589, %v600
      %v625 = vadd.f32 %v590, %v600
      %v626 = vadd.f32 %v591, %v600
      %v627 = vadd.f32 %v592, %v600
      %v628 = vadd.f32 %v593, %v600
      %v629 = vadd.f32 %v594, %v600
      %v630 = vmax.f32 %v602, 0.0
      %v631 = vmax.f32 %v603, 0.0
      %v632 = vmax.f32 %v604, 0.0
      %v633 = vmax.f32 %v605, 0.0
      %v634 = vmax.f32 %v606, 0.0
      %v635 = vmax.f32 %v607, 0.0
      %v636 = vmax.f32 %v608, 0.0
      %v637 = vmax.f32 %v609, 0.0
      %v638 = vmax.f32 %v610, 0.0
      %v639 = vmax.f32 %v611, 0.0
      %v640 = vmax.f32 %v612, 0.0
      %v641 = vmax.f32 %v613, 0.0
      %v642 = vmax.f32 %v614, 0.0
      %v643 = vmax.f32 %v615, 0.0
      %v644 = vmax.f32 %v616, 0.0
      %v645 = vmax.f32 %v617, 0.0
      %v646 = vmax.f32 %v618, 0.0
      %v647 = vmax.f32 %v619, 0.0
      %v648 = vmax.f32 %v620, 0.0
      %v649 = vmax.f32 %v621, 0.0
      %v650 = vmax.f32 %v622, 0.0
      %v651 = vmax.f32 %v623, 0.0
      %v652 = vmax.f32 %v624, 0.0
      %v653 = vmax.f32 %v625, 0.0
      %v654 = vmax.f32 %v626, 0.0
      %v655 = vmax.f32 %v627, 0.0
      %v656 = vmax.f32 %v628, 0.0
      %v657 = vmax.f32 %v629, 0.0
      %v658 = vpack.c.bf16 %v631, %v630
      %v659 = vpack.c.bf16 %v633, %v632
      %v660 = vpack.c.bf16 %v635, %v634
      %v661 = vpack.c.bf16 %v637, %v636
      %v662 = vpack.c.bf16 %v639, %v638
      %v663 = vpack.c.bf16 %v641, %v640
      %v664 = vpack.c.bf16 %v643, %v642
      %v665 = vpack.c.bf16 %v645, %v644
      %v666 = vpack.c.bf16 %v647, %v646
      %v667 = vpack.c.bf16 %v649, %v648
      %v668 = vpack.c.bf16 %v651, %v650
      %v669 = vpack.c.bf16 %v653, %v652
      %v670 = vpack.c.bf16 %v655, %v654
      %v671 = vpack.c.bf16 %v657, %v656
      %v673 = vshrl.u32 %v658, 16
      %v675 = vshll.u32 %v658, 16
      %v677 = vrot.slane %v675, 1
      %v678 = vor.u32 %v673, %v677
      %v680 = vshrl.u32 %v659, 16
      %v682 = vshll.u32 %v659, 16
      %v684 = vrot.slane %v682, 1
      %v685 = vor.u32 %v680, %v684
      %v687 = vshrl.u32 %v660, 16
      %v689 = vshll.u32 %v660, 16
      %v691 = vrot.slane %v689, 1
      %v692 = vor.u32 %v687, %v691
      %v694 = vshrl.u32 %v661, 16
      %v696 = vshll.u32 %v661, 16
      %v698 = vrot.slane %v696, 1
      %v699 = vor.u32 %v694, %v698
      %v701 = vshrl.u32 %v662, 16
      %v703 = vshll.u32 %v662, 16
      %v705 = vrot.slane %v703, 1
      %v706 = vor.u32 %v701, %v705
      %v708 = vshrl.u32 %v663, 16
      %v710 = vshll.u32 %v663, 16
      %v712 = vrot.slane %v710, 1
      %v713 = vor.u32 %v708, %v712
      %v715 = vshrl.u32 %v664, 16
      %v717 = vshll.u32 %v664, 16
      %v719 = vrot.slane %v717, 1
      %v720 = vor.u32 %v715, %v719
      %v722 = vshrl.u32 %v665, 16
      %v724 = vshll.u32 %v665, 16
      %v726 = vrot.slane %v724, 1
      %v727 = vor.u32 %v722, %v726
      %v729 = vshrl.u32 %v666, 16
      %v731 = vshll.u32 %v666, 16
      %v733 = vrot.slane %v731, 1
      %v734 = vor.u32 %v729, %v733
      %v736 = vshrl.u32 %v667, 16
      %v738 = vshll.u32 %v667, 16
      %v740 = vrot.slane %v738, 1
      %v741 = vor.u32 %v736, %v740
      %v743 = vshrl.u32 %v668, 16
      %v745 = vshll.u32 %v668, 16
      %v747 = vrot.slane %v745, 1
      %v748 = vor.u32 %v743, %v747
      %v750 = vshrl.u32 %v669, 16
      %v752 = vshll.u32 %v669, 16
      %v754 = vrot.slane %v752, 1
      %v755 = vor.u32 %v750, %v754
      %756 = vrot.lane.b32.xlu0 %v678, 64
      %v757 = vpop.permute.xlu0 %756
      %758 = vrot.lane.b32.xlu0 %v685, 64
      %v759 = vpop.permute.xlu0 %758
      %760 = vrot.lane.b32.xlu0 %v692, 64
      %v761 = vpop.permute.xlu0 %760
      %762 = vrot.lane.b32.xlu0 %v699, 64
      %v763 = vpop.permute.xlu0 %762
      %764 = vrot.lane.b32.xlu0 %v706, 64
      %v765 = vpop.permute.xlu0 %764
      %766 = vrot.lane.b32.xlu0 %v713, 64
      %v767 = vpop.permute.xlu0 %766
      %768 = vrot.lane.b32.xlu0 %v720, 64
      %v769 = vpop.permute.xlu0 %768
      %770 = vrot.lane.b32.xlu0 %v727, 64
      %v771 = vpop.permute.xlu0 %770
      %772 = vrot.lane.b32.xlu0 %v734, 64
      %v773 = vpop.permute.xlu0 %772
      %774 = vrot.lane.b32.xlu0 %v741, 64
      %v775 = vpop.permute.xlu0 %774
      %776 = vrot.lane.b32.xlu0 %v748, 64
      %v777 = vpop.permute.xlu0 %776
      %778 = vrot.lane.b32.xlu0 %v755, 64
      %v779 = vpop.permute.xlu0 %778
      %v792 = vrot.slane %v658, 1
      %v793 = vrot.slane %v659, 1
      %v794 = vrot.slane %v660, 1
      %v795 = vrot.slane %v661, 1
      %v796 = vrot.slane %v662, 1
      %v797 = vrot.slane %v663, 1
      %v798 = vrot.slane %v664, 1
      %v799 = vrot.slane %v665, 1
      %v800 = vrot.slane %v666, 1
      %v801 = vrot.slane %v667, 1
      %v802 = vrot.slane %v668, 1
      %v803 = vrot.slane %v669, 1
      %805 = vrot.lane.b32.xlu0 %v659, 64
      %v806 = vpop.permute.xlu0 %805
      %807 = vrot.lane.b32.xlu0 %v660, 64
      %v808 = vpop.permute.xlu0 %807
      %809 = vrot.lane.b32.xlu0 %v661, 64
      %v810 = vpop.permute.xlu0 %809
      %811 = vrot.lane.b32.xlu0 %v662, 64
      %v812 = vpop.permute.xlu0 %811
      %813 = vrot.lane.b32.xlu0 %v663, 64
      %v814 = vpop.permute.xlu0 %813
      %815 = vrot.lane.b32.xlu0 %v664, 64
      %v816 = vpop.permute.xlu0 %815
      %817 = vrot.lane.b32.xlu0 %v665, 64
      %v818 = vpop.permute.xlu0 %817
      %819 = vrot.lane.b32.xlu0 %v666, 64
      %v820 = vpop.permute.xlu0 %819
      %821 = vrot.lane.b32.xlu0 %v667, 64
      %v822 = vpop.permute.xlu0 %821
      %823 = vrot.lane.b32.xlu0 %v668, 64
      %v824 = vpop.permute.xlu0 %823
      %825 = vrot.lane.b32.xlu0 %v669, 64
      %v826 = vpop.permute.xlu0 %825
      %827 = vrot.lane.b32.xlu0 %v670, 64
      %v828 = vpop.permute.xlu0 %827
      %v830 = vshrl.u32 %v670, 16
      %v832 = vshll.u32 %v670, 16
      %v834 = vrot.slane %v832, 1
      %v835 = vor.u32 %v830, %v834
      %v836 = vrot.slane %v670, 1
      %837 = vrot.lane.b32.xlu0 %v793, 64
      %v838 = vpop.permute.xlu0 %837
      %839 = vrot.lane.b32.xlu0 %v794, 64
      %v840 = vpop.permute.xlu0 %839
      %841 = vrot.lane.b32.xlu0 %v795, 64
      %v842 = vpop.permute.xlu0 %841
      %843 = vrot.lane.b32.xlu0 %v796, 64
      %v844 = vpop.permute.xlu0 %843
      %845 = vrot.lane.b32.xlu0 %v797, 64
      %v846 = vpop.permute.xlu0 %845
      %847 = vrot.lane.b32.xlu0 %v798, 64
      %v848 = vpop.permute.xlu0 %847
      %849 = vrot.lane.b32.xlu0 %v799, 64
      %v850 = vpop.permute.xlu0 %849
      %851 = vrot.lane.b32.xlu0 %v800, 64
      %v852 = vpop.permute.xlu0 %851
      %853 = vrot.lane.b32.xlu0 %v801, 64
      %v854 = vpop.permute.xlu0 %853
      %855 = vrot.lane.b32.xlu0 %v802, 64
      %v856 = vpop.permute.xlu0 %855
      %857 = vrot.lane.b32.xlu0 %v803, 64
      %v858 = vpop.permute.xlu0 %857
      %859 = vrot.lane.b32.xlu0 %v836, 64
      %v860 = vpop.permute.xlu0 %859
      %v862 = vshrl.u32 %v671, 16
      %v864 = vshll.u32 %v671, 16
      %v866 = vrot.slane %v864, 1
      %v867 = vor.u32 %v862, %v866
      %868 = vrot.lane.b32.xlu0 %v835, 64
      %v869 = vpop.permute.xlu0 %868
      %870 = vrot.lane.b32.xlu0 %v867, 64
      %v871 = vpop.permute.xlu0 %870
      %v873 = vrot.slane %v671, 1
      %vm874 = vcmask 523264
      %v876 = vsel %vm874, %v658, %v757
      %v878 = vsel %vm874, %v659, %v759
      %v880 = vsel %vm874, %v660, %v761
      %v882 = vsel %vm874, %v661, %v763
      %v884 = vsel %vm874, %v662, %v765
      %v886 = vsel %vm874, %v663, %v767
      %v888 = vsel %vm874, %v664, %v769
      %v890 = vsel %vm874, %v665, %v771
      %v892 = vsel %vm874, %v666, %v773
      %v894 = vsel %vm874, %v667, %v775
      %v896 = vsel %vm874, %v668, %v777
      %v898 = vsel %vm874, %v669, %v779
      %v901 = vsel %vm874, %v792, %v806
      %v904 = vsel %vm874, %v793, %v808
      %v907 = vsel %vm874, %v794, %v810
      %v910 = vsel %vm874, %v795, %v812
      %v913 = vsel %vm874, %v796, %v814
      %v916 = vsel %vm874, %v797, %v816
      %v919 = vsel %vm874, %v798, %v818
      %v922 = vsel %vm874, %v799, %v820
      %v925 = vsel %vm874, %v800, %v822
      %v928 = vsel %vm874, %v801, %v824
      %v931 = vsel %vm874, %v802, %v826
      %v934 = vsel %vm874, %v803, %v828
      %v937 = vsel %vm874, %v685, %v838
      %v940 = vsel %vm874, %v692, %v840
      %v943 = vsel %vm874, %v699, %v842
      %v946 = vsel %vm874, %v706, %v844
      %v949 = vsel %vm874, %v713, %v846
      %v952 = vsel %vm874, %v720, %v848
      %v955 = vsel %vm874, %v727, %v850
      %v958 = vsel %vm874, %v734, %v852
      %v961 = vsel %vm874, %v741, %v854
      %v964 = vsel %vm874, %v748, %v856
      %v967 = vsel %vm874, %v755, %v858
      %v970 = vsel %vm874, %v835, %v860
      %v972 = vsel %vm874, %v670, %v869
      %v974 = vsel %vm874, %v671, %v871
      %v1013 = vcombine.low %v876, %v901
      %v1014 = vcombine.high %v876, %v901
      %v1015 = vcombine.low %v937, %v880
      %v1016 = vcombine.high %v937, %v880
      %v1018 = vunpack.c.l.s4 1983009808
      %v1019 = vunpack.c.0.s8 %v1018
      %v1020 = vlaneseq
      %v1021 = vshrl.u32 %v1020, 7
      %v1022 = vsub.s32 %v1019, %v1021
      %v1023 = vrot.slane %v1013, %v1022
      %v1025 = vunpack.c.l.s4 1983009808
      %v1026 = vunpack.c.0.s8 %v1025
      %v1027 = vlaneseq
      %v1028 = vshrl.u32 %v1027, 7
      %v1029 = vsub.s32 %v1026, %v1028
      %v1030 = vrot.slane %v1014, %v1029
      %v1032 = vunpack.c.l.s4 1983009808
      %v1033 = vunpack.c.0.s8 %v1032
      %v1034 = vlaneseq
      %v1035 = vshrl.u32 %v1034, 7
      %v1036 = vsub.s32 %v1033, %v1035
      %v1037 = vrot.slane %v1015, %v1036
      %v1039 = vunpack.c.l.s4 1983009808
      %v1040 = vunpack.c.0.s8 %v1039
      %v1041 = vlaneseq
      %v1042 = vshrl.u32 %v1041, 7
      %v1043 = vsub.s32 %v1040, %v1042
      %v1044 = vrot.slane %v1016, %v1043
      %v1045 = vcombine.low %v1023, %v1037
      %v1046 = vcombine.high %v1023, %v1037
      %v1047 = vcombine.low %v1030, %v1044
      %v1048 = vcombine.high %v794, %v794
      %v1050 = vunpack.c.l.s4 1983009808
      %v1051 = vunpack.c.0.s8 %v1050
      %v1052 = vlaneseq
      %v1053 = vshrl.u32 %v1052, 7
      %v1054 = vsub.s32 %v1051, %v1053
      %v1055 = vrot.slane %v794, %v1054
      %v1057 = vunpack.c.l.s4 1983009808
      %v1058 = vunpack.c.0.s8 %v1057
      %v1059 = vlaneseq
      %v1060 = vshrl.u32 %v1059, 7
      %v1061 = vsub.s32 %v1058, %v1060
      %v1062 = vrot.slane %v1048, %v1061
      %v1063 = vcombine.high %v1055, %v1055
      %v1064 = vcombine.low %v878, %v904
      %v1065 = vcombine.high %v878, %v904
      %v1066 = vcombine.low %v940, %v882
      %v1067 = vcombine.high %v940, %v882
      %v1069 = vunpack.c.l.s4 1983009808
      %v1070 = vunpack.c.0.s8 %v1069
      %v1071 = vlaneseq
      %v1072 = vshrl.u32 %v1071, 7
      %v1073 = vsub.s32 %v1070, %v1072
      %v1074 = vrot.slane %v1064, %v1073
      %v1076 = vunpack.c.l.s4 1983009808
      %v1077 = vunpack.c.0.s8 %v1076
      %v1078 = vlaneseq
      %v1079 = vshrl.u32 %v1078, 7
      %v1080 = vsub.s32 %v1077, %v1079
      %v1081 = vrot.slane %v1065, %v1080
      %v1083 = vunpack.c.l.s4 1983009808
      %v1084 = vunpack.c.0.s8 %v1083
      %v1085 = vlaneseq
      %v1086 = vshrl.u32 %v1085, 7
      %v1087 = vsub.s32 %v1084, %v1086
      %v1088 = vrot.slane %v1066, %v1087
      %v1090 = vunpack.c.l.s4 1983009808
      %v1091 = vunpack.c.0.s8 %v1090
      %v1092 = vlaneseq
      %v1093 = vshrl.u32 %v1092, 7
      %v1094 = vsub.s32 %v1091, %v1093
      %v1095 = vrot.slane %v1067, %v1094
      %v1096 = vcombine.low %v1074, %v1088
      %v1097 = vcombine.high %v1074, %v1088
      %v1098 = vcombine.low %v1081, %v1095
      %v1099 = vcombine.high %v795, %v795
      %v1101 = vunpack.c.l.s4 1983009808
      %v1102 = vunpack.c.0.s8 %v1101
      %v1103 = vlaneseq
      %v1104 = vshrl.u32 %v1103, 7
      %v1105 = vsub.s32 %v1102, %v1104
      %v1106 = vrot.slane %v795, %v1105
      %v1108 = vunpack.c.l.s4 1983009808
      %v1109 = vunpack.c.0.s8 %v1108
      %v1110 = vlaneseq
      %v1111 = vshrl.u32 %v1110, 7
      %v1112 = vsub.s32 %v1109, %v1111
      %v1113 = vrot.slane %v1099, %v1112
      %v1114 = vcombine.high %v1106, %v1106
      %v1115 = vcombine.low %v880, %v907
      %v1116 = vcombine.high %v880, %v907
      %v1117 = vcombine.low %v943, %v884
      %v1118 = vcombine.high %v943, %v884
      %v1120 = vunpack.c.l.s4 1983009808
      %v1121 = vunpack.c.0.s8 %v1120
      %v1122 = vlaneseq
      %v1123 = vshrl.u32 %v1122, 7
      %v1124 = vsub.s32 %v1121, %v1123
      %v1125 = vrot.slane %v1115, %v1124
      %v1127 = vunpack.c.l.s4 1983009808
      %v1128 = vunpack.c.0.s8 %v1127
      %v1129 = vlaneseq
      %v1130 = vshrl.u32 %v1129, 7
      %v1131 = vsub.s32 %v1128, %v1130
      %v1132 = vrot.slane %v1116, %v1131
      %v1134 = vunpack.c.l.s4 1983009808
      %v1135 = vunpack.c.0.s8 %v1134
      %v1136 = vlaneseq
      %v1137 = vshrl.u32 %v1136, 7
      %v1138 = vsub.s32 %v1135, %v1137
      %v1139 = vrot.slane %v1117, %v1138
      %v1141 = vunpack.c.l.s4 1983009808
      %v1142 = vunpack.c.0.s8 %v1141
      %v1143 = vlaneseq
      %v1144 = vshrl.u32 %v1143, 7
      %v1145 = vsub.s32 %v1142, %v1144
      %v1146 = vrot.slane %v1118, %v1145
      %v1147 = vcombine.low %v1125, %v1139
      %v1148 = vcombine.high %v1125, %v1139
      %v1149 = vcombine.low %v1132, %v1146
      %v1150 = vcombine.high %v796, %v796
      %v1152 = vunpack.c.l.s4 1983009808
      %v1153 = vunpack.c.0.s8 %v1152
      %v1154 = vlaneseq
      %v1155 = vshrl.u32 %v1154, 7
      %v1156 = vsub.s32 %v1153, %v1155
      %v1157 = vrot.slane %v796, %v1156
      %v1159 = vunpack.c.l.s4 1983009808
      %v1160 = vunpack.c.0.s8 %v1159
      %v1161 = vlaneseq
      %v1162 = vshrl.u32 %v1161, 7
      %v1163 = vsub.s32 %v1160, %v1162
      %v1164 = vrot.slane %v1150, %v1163
      %v1165 = vcombine.high %v1157, %v1157
      %v1166 = vcombine.low %v882, %v910
      %v1167 = vcombine.high %v882, %v910
      %v1168 = vcombine.low %v946, %v886
      %v1169 = vcombine.high %v946, %v886
      %v1171 = vunpack.c.l.s4 1983009808
      %v1172 = vunpack.c.0.s8 %v1171
      %v1173 = vlaneseq
      %v1174 = vshrl.u32 %v1173, 7
      %v1175 = vsub.s32 %v1172, %v1174
      %v1176 = vrot.slane %v1166, %v1175
      %v1178 = vunpack.c.l.s4 1983009808
      %v1179 = vunpack.c.0.s8 %v1178
      %v1180 = vlaneseq
      %v1181 = vshrl.u32 %v1180, 7
      %v1182 = vsub.s32 %v1179, %v1181
      %v1183 = vrot.slane %v1167, %v1182
      %v1185 = vunpack.c.l.s4 1983009808
      %v1186 = vunpack.c.0.s8 %v1185
      %v1187 = vlaneseq
      %v1188 = vshrl.u32 %v1187, 7
      %v1189 = vsub.s32 %v1186, %v1188
      %v1190 = vrot.slane %v1168, %v1189
      %v1192 = vunpack.c.l.s4 1983009808
      %v1193 = vunpack.c.0.s8 %v1192
      %v1194 = vlaneseq
      %v1195 = vshrl.u32 %v1194, 7
      %v1196 = vsub.s32 %v1193, %v1195
      %v1197 = vrot.slane %v1169, %v1196
      %v1198 = vcombine.low %v1176, %v1190
      %v1199 = vcombine.high %v1176, %v1190
      %v1200 = vcombine.low %v1183, %v1197
      %v1201 = vcombine.high %v797, %v797
      %v1203 = vunpack.c.l.s4 1983009808
      %v1204 = vunpack.c.0.s8 %v1203
      %v1205 = vlaneseq
      %v1206 = vshrl.u32 %v1205, 7
      %v1207 = vsub.s32 %v1204, %v1206
      %v1208 = vrot.slane %v797, %v1207
      %v1210 = vunpack.c.l.s4 1983009808
      %v1211 = vunpack.c.0.s8 %v1210
      %v1212 = vlaneseq
      %v1213 = vshrl.u32 %v1212, 7
      %v1214 = vsub.s32 %v1211, %v1213
      %v1215 = vrot.slane %v1201, %v1214
      %v1216 = vcombine.high %v1208, %v1208
      %v1217 = vcombine.low %v884, %v913
      %v1218 = vcombine.high %v884, %v913
      %v1219 = vcombine.low %v949, %v888
      %v1220 = vcombine.high %v949, %v888
      %v1222 = vunpack.c.l.s4 1983009808
      %v1223 = vunpack.c.0.s8 %v1222
      %v1224 = vlaneseq
      %v1225 = vshrl.u32 %v1224, 7
      %v1226 = vsub.s32 %v1223, %v1225
      %v1227 = vrot.slane %v1217, %v1226
      %v1229 = vunpack.c.l.s4 1983009808
      %v1230 = vunpack.c.0.s8 %v1229
      %v1231 = vlaneseq
      %v1232 = vshrl.u32 %v1231, 7
      %v1233 = vsub.s32 %v1230, %v1232
      %v1234 = vrot.slane %v1218, %v1233
      %v1236 = vunpack.c.l.s4 1983009808
      %v1237 = vunpack.c.0.s8 %v1236
      %v1238 = vlaneseq
      %v1239 = vshrl.u32 %v1238, 7
      %v1240 = vsub.s32 %v1237, %v1239
      %v1241 = vrot.slane %v1219, %v1240
      %v1243 = vunpack.c.l.s4 1983009808
      %v1244 = vunpack.c.0.s8 %v1243
      %v1245 = vlaneseq
      %v1246 = vshrl.u32 %v1245, 7
      %v1247 = vsub.s32 %v1244, %v1246
      %v1248 = vrot.slane %v1220, %v1247
      %v1249 = vcombine.low %v1227, %v1241
      %v1250 = vcombine.high %v1227, %v1241
      %v1251 = vcombine.low %v1234, %v1248
      %v1252 = vcombine.high %v798, %v798
      %v1254 = vunpack.c.l.s4 1983009808
      %v1255 = vunpack.c.0.s8 %v1254
      %v1256 = vlaneseq
      %v1257 = vshrl.u32 %v1256, 7
      %v1258 = vsub.s32 %v1255, %v1257
      %v1259 = vrot.slane %v798, %v1258
      %v1261 = vunpack.c.l.s4 1983009808
      %v1262 = vunpack.c.0.s8 %v1261
      %v1263 = vlaneseq
      %v1264 = vshrl.u32 %v1263, 7
      %v1265 = vsub.s32 %v1262, %v1264
      %v1266 = vrot.slane %v1252, %v1265
      %v1267 = vcombine.high %v1259, %v1259
      %v1268 = vcombine.low %v886, %v916
      %v1269 = vcombine.high %v886, %v916
      %v1270 = vcombine.low %v952, %v890
      %v1271 = vcombine.high %v952, %v890
      %v1273 = vunpack.c.l.s4 1983009808
      %v1274 = vunpack.c.0.s8 %v1273
      %v1275 = vlaneseq
      %v1276 = vshrl.u32 %v1275, 7
      %v1277 = vsub.s32 %v1274, %v1276
      %v1278 = vrot.slane %v1268, %v1277
      %v1280 = vunpack.c.l.s4 1983009808
      %v1281 = vunpack.c.0.s8 %v1280
      %v1282 = vlaneseq
      %v1283 = vshrl.u32 %v1282, 7
      %v1284 = vsub.s32 %v1281, %v1283
      %v1285 = vrot.slane %v1269, %v1284
      %v1287 = vunpack.c.l.s4 1983009808
      %v1288 = vunpack.c.0.s8 %v1287
      %v1289 = vlaneseq
      %v1290 = vshrl.u32 %v1289, 7
      %v1291 = vsub.s32 %v1288, %v1290
      %v1292 = vrot.slane %v1270, %v1291
      %v1294 = vunpack.c.l.s4 1983009808
      %v1295 = vunpack.c.0.s8 %v1294
      %v1296 = vlaneseq
      %v1297 = vshrl.u32 %v1296, 7
      %v1298 = vsub.s32 %v1295, %v1297
      %v1299 = vrot.slane %v1271, %v1298
      %v1300 = vcombine.low %v1278, %v1292
      %v1301 = vcombine.high %v1278, %v1292
      %v1302 = vcombine.low %v1285, %v1299
      %v1303 = vcombine.high %v799, %v799
      %v1305 = vunpack.c.l.s4 1983009808
      %v1306 = vunpack.c.0.s8 %v1305
      %v1307 = vlaneseq
      %v1308 = vshrl.u32 %v1307, 7
      %v1309 = vsub.s32 %v1306, %v1308
      %v1310 = vrot.slane %v799, %v1309
      %v1312 = vunpack.c.l.s4 1983009808
      %v1313 = vunpack.c.0.s8 %v1312
      %v1314 = vlaneseq
      %v1315 = vshrl.u32 %v1314, 7
      %v1316 = vsub.s32 %v1313, %v1315
      %v1317 = vrot.slane %v1303, %v1316
      %v1318 = vcombine.high %v1310, %v1310
      %v1319 = vcombine.low %v888, %v919
      %v1320 = vcombine.high %v888, %v919
      %v1321 = vcombine.low %v955, %v892
      %v1322 = vcombine.high %v955, %v892
      %v1324 = vunpack.c.l.s4 1983009808
      %v1325 = vunpack.c.0.s8 %v1324
      %v1326 = vlaneseq
      %v1327 = vshrl.u32 %v1326, 7
      %v1328 = vsub.s32 %v1325, %v1327
      %v1329 = vrot.slane %v1319, %v1328
      %v1331 = vunpack.c.l.s4 1983009808
      %v1332 = vunpack.c.0.s8 %v1331
      %v1333 = vlaneseq
      %v1334 = vshrl.u32 %v1333, 7
      %v1335 = vsub.s32 %v1332, %v1334
      %v1336 = vrot.slane %v1320, %v1335
      %v1338 = vunpack.c.l.s4 1983009808
      %v1339 = vunpack.c.0.s8 %v1338
      %v1340 = vlaneseq
      %v1341 = vshrl.u32 %v1340, 7
      %v1342 = vsub.s32 %v1339, %v1341
      %v1343 = vrot.slane %v1321, %v1342
      %v1345 = vunpack.c.l.s4 1983009808
      %v1346 = vunpack.c.0.s8 %v1345
      %v1347 = vlaneseq
      %v1348 = vshrl.u32 %v1347, 7
      %v1349 = vsub.s32 %v1346, %v1348
      %v1350 = vrot.slane %v1322, %v1349
      %v1351 = vcombine.low %v1329, %v1343
      %v1352 = vcombine.high %v1329, %v1343
      %v1353 = vcombine.low %v1336, %v1350
      %v1354 = vcombine.high %v800, %v800
      %v1356 = vunpack.c.l.s4 1983009808
      %v1357 = vunpack.c.0.s8 %v1356
      %v1358 = vlaneseq
      %v1359 = vshrl.u32 %v1358, 7
      %v1360 = vsub.s32 %v1357, %v1359
      %v1361 = vrot.slane %v800, %v1360
      %v1363 = vunpack.c.l.s4 1983009808
      %v1364 = vunpack.c.0.s8 %v1363
      %v1365 = vlaneseq
      %v1366 = vshrl.u32 %v1365, 7
      %v1367 = vsub.s32 %v1364, %v1366
      %v1368 = vrot.slane %v1354, %v1367
      %v1369 = vcombine.high %v1361, %v1361
      %v1370 = vcombine.low %v890, %v922
      %v1371 = vcombine.high %v890, %v922
      %v1372 = vcombine.low %v958, %v894
      %v1373 = vcombine.high %v958, %v894
      %v1375 = vunpack.c.l.s4 1983009808
      %v1376 = vunpack.c.0.s8 %v1375
      %v1377 = vlaneseq
      %v1378 = vshrl.u32 %v1377, 7
      %v1379 = vsub.s32 %v1376, %v1378
      %v1380 = vrot.slane %v1370, %v1379
      %v1382 = vunpack.c.l.s4 1983009808
      %v1383 = vunpack.c.0.s8 %v1382
      %v1384 = vlaneseq
      %v1385 = vshrl.u32 %v1384, 7
      %v1386 = vsub.s32 %v1383, %v1385
      %v1387 = vrot.slane %v1371, %v1386
      %v1389 = vunpack.c.l.s4 1983009808
      %v1390 = vunpack.c.0.s8 %v1389
      %v1391 = vlaneseq
      %v1392 = vshrl.u32 %v1391, 7
      %v1393 = vsub.s32 %v1390, %v1392
      %v1394 = vrot.slane %v1372, %v1393
      %v1396 = vunpack.c.l.s4 1983009808
      %v1397 = vunpack.c.0.s8 %v1396
      %v1398 = vlaneseq
      %v1399 = vshrl.u32 %v1398, 7
      %v1400 = vsub.s32 %v1397, %v1399
      %v1401 = vrot.slane %v1373, %v1400
      %v1402 = vcombine.low %v1380, %v1394
      %v1403 = vcombine.high %v1380, %v1394
      %v1404 = vcombine.low %v1387, %v1401
      %v1405 = vcombine.high %v801, %v801
      %v1407 = vunpack.c.l.s4 1983009808
      %v1408 = vunpack.c.0.s8 %v1407
      %v1409 = vlaneseq
      %v1410 = vshrl.u32 %v1409, 7
      %v1411 = vsub.s32 %v1408, %v1410
      %v1412 = vrot.slane %v801, %v1411
      %v1414 = vunpack.c.l.s4 1983009808
      %v1415 = vunpack.c.0.s8 %v1414
      %v1416 = vlaneseq
      %v1417 = vshrl.u32 %v1416, 7
      %v1418 = vsub.s32 %v1415, %v1417
      %v1419 = vrot.slane %v1405, %v1418
      %v1420 = vcombine.high %v1412, %v1412
      %v1421 = vcombine.low %v892, %v925
      %v1422 = vcombine.high %v892, %v925
      %v1423 = vcombine.low %v961, %v896
      %v1424 = vcombine.high %v961, %v896
      %v1426 = vunpack.c.l.s4 1983009808
      %v1427 = vunpack.c.0.s8 %v1426
      %v1428 = vlaneseq
      %v1429 = vshrl.u32 %v1428, 7
      %v1430 = vsub.s32 %v1427, %v1429
      %v1431 = vrot.slane %v1421, %v1430
      %v1433 = vunpack.c.l.s4 1983009808
      %v1434 = vunpack.c.0.s8 %v1433
      %v1435 = vlaneseq
      %v1436 = vshrl.u32 %v1435, 7
      %v1437 = vsub.s32 %v1434, %v1436
      %v1438 = vrot.slane %v1422, %v1437
      %v1440 = vunpack.c.l.s4 1983009808
      %v1441 = vunpack.c.0.s8 %v1440
      %v1442 = vlaneseq
      %v1443 = vshrl.u32 %v1442, 7
      %v1444 = vsub.s32 %v1441, %v1443
      %v1445 = vrot.slane %v1423, %v1444
      %v1447 = vunpack.c.l.s4 1983009808
      %v1448 = vunpack.c.0.s8 %v1447
      %v1449 = vlaneseq
      %v1450 = vshrl.u32 %v1449, 7
      %v1451 = vsub.s32 %v1448, %v1450
      %v1452 = vrot.slane %v1424, %v1451
      %v1453 = vcombine.low %v1431, %v1445
      %v1454 = vcombine.high %v1431, %v1445
      %v1455 = vcombine.low %v1438, %v1452
      %v1456 = vcombine.high %v802, %v802
      %v1458 = vunpack.c.l.s4 1983009808
      %v1459 = vunpack.c.0.s8 %v1458
      %v1460 = vlaneseq
      %v1461 = vshrl.u32 %v1460, 7
      %v1462 = vsub.s32 %v1459, %v1461
      %v1463 = vrot.slane %v802, %v1462
      %v1465 = vunpack.c.l.s4 1983009808
      %v1466 = vunpack.c.0.s8 %v1465
      %v1467 = vlaneseq
      %v1468 = vshrl.u32 %v1467, 7
      %v1469 = vsub.s32 %v1466, %v1468
      %v1470 = vrot.slane %v1456, %v1469
      %v1471 = vcombine.high %v1463, %v1463
      %v1472 = vcombine.low %v894, %v928
      %v1473 = vcombine.high %v894, %v928
      %v1474 = vcombine.low %v964, %v898
      %v1475 = vcombine.high %v964, %v898
      %v1477 = vunpack.c.l.s4 1983009808
      %v1478 = vunpack.c.0.s8 %v1477
      %v1479 = vlaneseq
      %v1480 = vshrl.u32 %v1479, 7
      %v1481 = vsub.s32 %v1478, %v1480
      %v1482 = vrot.slane %v1472, %v1481
      %v1484 = vunpack.c.l.s4 1983009808
      %v1485 = vunpack.c.0.s8 %v1484
      %v1486 = vlaneseq
      %v1487 = vshrl.u32 %v1486, 7
      %v1488 = vsub.s32 %v1485, %v1487
      %v1489 = vrot.slane %v1473, %v1488
      %v1491 = vunpack.c.l.s4 1983009808
      %v1492 = vunpack.c.0.s8 %v1491
      %v1493 = vlaneseq
      %v1494 = vshrl.u32 %v1493, 7
      %v1495 = vsub.s32 %v1492, %v1494
      %v1496 = vrot.slane %v1474, %v1495
      %v1498 = vunpack.c.l.s4 1983009808
      %v1499 = vunpack.c.0.s8 %v1498
      %v1500 = vlaneseq
      %v1501 = vshrl.u32 %v1500, 7
      %v1502 = vsub.s32 %v1499, %v1501
      %v1503 = vrot.slane %v1475, %v1502
      %v1504 = vcombine.low %v1482, %v1496
      %v1505 = vcombine.high %v1482, %v1496
      %v1506 = vcombine.low %v1489, %v1503
      %v1507 = vcombine.high %v803, %v803
      %v1509 = vunpack.c.l.s4 1983009808
      %v1510 = vunpack.c.0.s8 %v1509
      %v1511 = vlaneseq
      %v1512 = vshrl.u32 %v1511, 7
      %v1513 = vsub.s32 %v1510, %v1512
      %v1514 = vrot.slane %v803, %v1513
      %v1516 = vunpack.c.l.s4 1983009808
      %v1517 = vunpack.c.0.s8 %v1516
      %v1518 = vlaneseq
      %v1519 = vshrl.u32 %v1518, 7
      %v1520 = vsub.s32 %v1517, %v1519
      %v1521 = vrot.slane %v1507, %v1520
      %v1522 = vcombine.high %v1514, %v1514
      %v1523 = vcombine.low %v896, %v931
      %v1524 = vcombine.high %v896, %v931
      %v1525 = vcombine.low %v967, %v972
      %v1526 = vcombine.high %v967, %v972
      %v1528 = vunpack.c.l.s4 1983009808
      %v1529 = vunpack.c.0.s8 %v1528
      %v1530 = vlaneseq
      %v1531 = vshrl.u32 %v1530, 7
      %v1532 = vsub.s32 %v1529, %v1531
      %v1533 = vrot.slane %v1523, %v1532
      %v1535 = vunpack.c.l.s4 1983009808
      %v1536 = vunpack.c.0.s8 %v1535
      %v1537 = vlaneseq
      %v1538 = vshrl.u32 %v1537, 7
      %v1539 = vsub.s32 %v1536, %v1538
      %v1540 = vrot.slane %v1524, %v1539
      %v1542 = vunpack.c.l.s4 1983009808
      %v1543 = vunpack.c.0.s8 %v1542
      %v1544 = vlaneseq
      %v1545 = vshrl.u32 %v1544, 7
      %v1546 = vsub.s32 %v1543, %v1545
      %v1547 = vrot.slane %v1525, %v1546
      %v1549 = vunpack.c.l.s4 1983009808
      %v1550 = vunpack.c.0.s8 %v1549
      %v1551 = vlaneseq
      %v1552 = vshrl.u32 %v1551, 7
      %v1553 = vsub.s32 %v1550, %v1552
      %v1554 = vrot.slane %v1526, %v1553
      %v1555 = vcombine.low %v1533, %v1547
      %v1556 = vcombine.high %v1533, %v1547
      %v1557 = vcombine.low %v1540, %v1554
      %v1558 = vcombine.high %v836, %v836
      %v1560 = vunpack.c.l.s4 1983009808
      %v1561 = vunpack.c.0.s8 %v1560
      %v1562 = vlaneseq
      %v1563 = vshrl.u32 %v1562, 7
      %v1564 = vsub.s32 %v1561, %v1563
      %v1565 = vrot.slane %v836, %v1564
      %v1567 = vunpack.c.l.s4 1983009808
      %v1568 = vunpack.c.0.s8 %v1567
      %v1569 = vlaneseq
      %v1570 = vshrl.u32 %v1569, 7
      %v1571 = vsub.s32 %v1568, %v1570
      %v1572 = vrot.slane %v1558, %v1571
      %v1573 = vcombine.high %v1565, %v1565
      %v1574 = vcombine.low %v898, %v934
      %v1575 = vcombine.high %v898, %v934
      %v1576 = vcombine.low %v970, %v974
      %v1577 = vcombine.high %v970, %v974
      %v1579 = vunpack.c.l.s4 1983009808
      %v1580 = vunpack.c.0.s8 %v1579
      %v1581 = vlaneseq
      %v1582 = vshrl.u32 %v1581, 7
      %v1583 = vsub.s32 %v1580, %v1582
      %v1584 = vrot.slane %v1574, %v1583
      %v1586 = vunpack.c.l.s4 1983009808
      %v1587 = vunpack.c.0.s8 %v1586
      %v1588 = vlaneseq
      %v1589 = vshrl.u32 %v1588, 7
      %v1590 = vsub.s32 %v1587, %v1589
      %v1591 = vrot.slane %v1575, %v1590
      %v1593 = vunpack.c.l.s4 1983009808
      %v1594 = vunpack.c.0.s8 %v1593
      %v1595 = vlaneseq
      %v1596 = vshrl.u32 %v1595, 7
      %v1597 = vsub.s32 %v1594, %v1596
      %v1598 = vrot.slane %v1576, %v1597
      %v1600 = vunpack.c.l.s4 1983009808
      %v1601 = vunpack.c.0.s8 %v1600
      %v1602 = vlaneseq
      %v1603 = vshrl.u32 %v1602, 7
      %v1604 = vsub.s32 %v1601, %v1603
      %v1605 = vrot.slane %v1577, %v1604
      %v1606 = vcombine.low %v1584, %v1598
      %v1607 = vcombine.high %v1584, %v1598
      %v1608 = vcombine.low %v1591, %v1605
      %v1609 = vcombine.high %v873, %v873
      %v1611 = vunpack.c.l.s4 1983009808
      %v1612 = vunpack.c.0.s8 %v1611
      %v1613 = vlaneseq
      %v1614 = vshrl.u32 %v1613, 7
      %v1615 = vsub.s32 %v1612, %v1614
      %v1616 = vrot.slane %v873, %v1615
      %v1618 = vunpack.c.l.s4 1983009808
      %v1619 = vunpack.c.0.s8 %v1618
      %v1620 = vlaneseq
      %v1621 = vshrl.u32 %v1620, 7
      %v1622 = vsub.s32 %v1619, %v1621
      %v1623 = vrot.slane %v1609, %v1622
      %v1624 = vcombine.high %v1616, %v1616
      %v1625 = vld [vmem:[%s478] sm:$0xf]
      %v1626 = vld [vmem:[%s478 + $0x4] sm:$0xf]
      %v1627 = vld [vmem:[%s478 + $0x8] sm:$0xf]
      %v1628 = vld [vmem:[%s478 + $0xc] sm:$0xf]
      %v1629 = vld [vmem:[%s478 + $0x10] sm:$0xf]
      %v1630 = vld [vmem:[%s478 + $0x14] sm:$0xf]
      %v1631 = vld [vmem:[%s478 + $0x18] sm:$0xf]
      %v1632 = vld [vmem:[%s478 + $0x1c] sm:$0xf]
      %v1633 = vld [vmem:[%s478 + $0x20] sm:$0xf]
      %v1634 = vld [vmem:[%s478 + $0x24] sm:$0xf]
      %v1635 = vld [vmem:[%s478 + $0x28] sm:$0xf]
      %v1636 = vld [vmem:[%s478 + $0x2c] sm:$0xf]
      %v1637 = vld [vmem:[%s478 + $0x30] sm:$0xf]
      %v1638 = vld [vmem:[%s478 + $0x34] sm:$0xf]
      %v1639 = vld [vmem:[%s478 + $0x38] sm:$0xf]
      %v1640 = vld [vmem:[%s478 + $0x3c] sm:$0xf]
      %v1641 = vld [vmem:[%s478 + $0x40] sm:$0xf]
      %v1642 = vld [vmem:[%s478 + $0x44] sm:$0xf]
      %v1643 = vld [vmem:[%s478 + $0x48] sm:$0xf]
      %v1644 = vld [vmem:[%s478 + $0x4c] sm:$0xf]
      %v1645 = vld [vmem:[%s478 + $0x50] sm:$0xf]
      %v1646 = vld [vmem:[%s478 + $0x54] sm:$0xf]
      %v1647 = vld [vmem:[%s478 + $0x58] sm:$0xf]
      %v1648 = vld [vmem:[%s478 + $0x5c] sm:$0xf]
      %v1649 = vld [vmem:[%s478 + $0x60] sm:$0xf]
      %v1650 = vld [vmem:[%s478 + $0x64] sm:$0xf]
      %v1651 = vld [vmem:[%s478 + $0x68] sm:$0xf]
      %v1652 = vld [vmem:[%s478 + $0x6c] sm:$0xf]
      %v1653 = vld [vmem:[%s478 + $0x70] sm:$0xf]
      %v1654 = vld [vmem:[%s478 + $0x74] sm:$0xf]
      %v1655 = vld [vmem:[%s478 + $0x78] sm:$0xf]
      %v1656 = vld [vmem:[%s478 + $0x7c] sm:$0xf]
      %v1657 = vld [vmem:[%s478 + $0x80] sm:$0xf]
      %v1658 = vld [vmem:[%s478 + $0x84] sm:$0xf]
      %v1659 = vld [vmem:[%s478 + $0x88] sm:$0xf]
      %v1660 = vld [vmem:[%s478 + $0x8c] sm:$0xf]
      %v1661 = vld [vmem:[%s478 + $0x90] sm:$0xf]
      %v1662 = vld [vmem:[%s478 + $0x94] sm:$0xf]
      %v1663 = vld [vmem:[%s478 + $0x98] sm:$0xf]
      %v1664 = vld [vmem:[%s478 + $0x9c] sm:$0xf]
      %v1665 = vld [vmem:[%s478 + $0xa0] sm:$0xf]
      %v1666 = vld [vmem:[%s478 + $0xa4] sm:$0xf]
      %v1667 = vld [vmem:[%s478 + $0xa8] sm:$0xf]
      %v1668 = vld [vmem:[%s478 + $0xac] sm:$0xf]
      %v1669 = vld [vmem:[%s478 + $0xb0] sm:$0xf]
      %v1670 = vld [vmem:[%s478 + $0xb4] sm:$0xf]
      %v1671 = vld [vmem:[%s478 + $0xb8] sm:$0xf]
      %v1672 = vld [vmem:[%s478 + $0xbc] sm:$0xf]
      %v1673 = vld [vmem:[%s478 + $0xc0] sm:$0xf]
      %v1674 = vld [vmem:[%s478 + $0xc4] sm:$0xf]
      %v1675 = vld [vmem:[%s478 + $0xc8] sm:$0xf]
      %v1676 = vld [vmem:[%s478 + $0xcc] sm:$0xf]
      %v1677 = vld [vmem:[%s478 + $0xd0] sm:$0xf]
      %v1678 = vld [vmem:[%s478 + $0xd4] sm:$0xf]
      %v1679 = vld [vmem:[%s478 + $0xd8] sm:$0xf]
      %v1680 = vld [vmem:[%s478 + $0xdc] sm:$0xf]
      %v1681 = vld [vmem:[%s478 + $0xe0] sm:$0xf]
      %v1682 = vld [vmem:[%s478 + $0xe4] sm:$0xf]
      %v1683 = vld [vmem:[%s478 + $0xe8] sm:$0xf]
      %v1684 = vld [vmem:[%s478 + $0xec] sm:$0xf]
      %v1685 = vld [vmem:[%s478 + $0xf0] sm:$0xf]
      %v1686 = vld [vmem:[%s478 + $0xf4] sm:$0xf]
      %v1687 = vld [vmem:[%s478 + $0xf8] sm:$0xf]
      %v1688 = vld [vmem:[%s478 + $0xfc] sm:$0xf]
      %v1689 = vld [vmem:[%s478 + $0x100] sm:$0xf]
      %v1690 = vld [vmem:[%s478 + $0x104] sm:$0xf]
      %v1691 = vld [vmem:[%s478 + $0x108] sm:$0xf]
      %v1692 = vld [vmem:[%s478 + $0x10c] sm:$0xf]
      %v1693 = vld [vmem:[%s478 + $0x110] sm:$0xf]
      %v1694 = vld [vmem:[%s478 + $0x114] sm:$0xf]
      %v1695 = vld [vmem:[%s478 + $0x118] sm:$0xf]
      %v1696 = vld [vmem:[%s478 + $0x11c] sm:$0xf]
      %v1697 = vcombine.low %v1045, %v1046
      %v1698 = vcombine.high %v1045, %v1046
      %v1699 = vcombine.low %v1047, %v1096
      %v1700 = vcombine.high %v1047, %v1096
      %v1702 = vunpack.c.l.s4 1983009808
      %v1703 = vunpack.c.0.s8 %v1702
      %v1704 = vlaneseq
      %v1705 = vshrl.u32 %v1704, 7
      %v1706 = vsub.s32 %v1703, %v1705
      %v1707 = vrot.slane %v1697, %v1706
      %v1709 = vunpack.c.l.s4 1983009808
      %v1710 = vunpack.c.0.s8 %v1709
      %v1711 = vlaneseq
      %v1712 = vshrl.u32 %v1711, 7
      %v1713 = vsub.s32 %v1710, %v1712
      %v1714 = vrot.slane %v1698, %v1713
      %v1716 = vunpack.c.l.s4 1983009808
      %v1717 = vunpack.c.0.s8 %v1716
      %v1718 = vlaneseq
      %v1719 = vshrl.u32 %v1718, 7
      %v1720 = vsub.s32 %v1717, %v1719
      %v1721 = vrot.slane %v1699, %v1720
      %v1723 = vunpack.c.l.s4 1983009808
      %v1724 = vunpack.c.0.s8 %v1723
      %v1725 = vlaneseq
      %v1726 = vshrl.u32 %v1725, 7
      %v1727 = vsub.s32 %v1724, %v1726
      %v1728 = vrot.slane %v1700, %v1727
      %v1729 = vcombine.low %v1707, %v1721
      %v1730 = vcombine.high %v1707, %v1721
      %v1731 = vcombine.low %v1714, %v1728
      %v1732 = vcombine.high %v1714, %v1728
      %v1733 = vcombine.low %v1055, %v1063
      %v1734 = vcombine.low %v1062, %v1106
      %v1736 = vunpack.c.l.s4 1983009808
      %v1737 = vunpack.c.0.s8 %v1736
      %v1738 = vlaneseq
      %v1739 = vshrl.u32 %v1738, 7
      %v1740 = vsub.s32 %v1737, %v1739
      %v1741 = vrot.slane %v1733, %v1740
      %v1743 = vunpack.c.l.s4 1983009808
      %v1744 = vunpack.c.0.s8 %v1743
      %v1745 = vlaneseq
      %v1746 = vshrl.u32 %v1745, 7
      %v1747 = vsub.s32 %v1744, %v1746
      %v1748 = vrot.slane %v1734, %v1747
      %v1749 = vcombine.low %v1741, %v1748
      %v1750 = vcombine.low %v1097, %v1098
      %v1751 = vcombine.high %v1097, %v1098
      %v1752 = vcombine.low %v1147, %v1148
      %v1753 = vcombine.high %v1147, %v1148
      %v1755 = vunpack.c.l.s4 1983009808
      %v1756 = vunpack.c.0.s8 %v1755
      %v1757 = vlaneseq
      %v1758 = vshrl.u32 %v1757, 7
      %v1759 = vsub.s32 %v1756, %v1758
      %v1760 = vrot.slane %v1750, %v1759
      %v1762 = vunpack.c.l.s4 1983009808
      %v1763 = vunpack.c.0.s8 %v1762
      %v1764 = vlaneseq
      %v1765 = vshrl.u32 %v1764, 7
      %v1766 = vsub.s32 %v1763, %v1765
      %v1767 = vrot.slane %v1751, %v1766
      %v1769 = vunpack.c.l.s4 1983009808
      %v1770 = vunpack.c.0.s8 %v1769
      %v1771 = vlaneseq
      %v1772 = vshrl.u32 %v1771, 7
      %v1773 = vsub.s32 %v1770, %v1772
      %v1774 = vrot.slane %v1752, %v1773
      %v1776 = vunpack.c.l.s4 1983009808
      %v1777 = vunpack.c.0.s8 %v1776
      %v1778 = vlaneseq
      %v1779 = vshrl.u32 %v1778, 7
      %v1780 = vsub.s32 %v1777, %v1779
      %v1781 = vrot.slane %v1753, %v1780
      %v1782 = vcombine.low %v1760, %v1774
      %v1783 = vcombine.high %v1760, %v1774
      %v1784 = vcombine.low %v1767, %v1781
      %v1785 = vcombine.high %v1767, %v1781
      %v1786 = vcombine.low %v1114, %v1113
      %v1787 = vcombine.low %v1157, %v1165
      %v1789 = vunpack.c.l.s4 1983009808
      %v1790 = vunpack.c.0.s8 %v1789
      %v1791 = vlaneseq
      %v1792 = vshrl.u32 %v1791, 7
      %v1793 = vsub.s32 %v1790, %v1792
      %v1794 = vrot.slane %v1786, %v1793
      %v1796 = vunpack.c.l.s4 1983009808
      %v1797 = vunpack.c.0.s8 %v1796
      %v1798 = vlaneseq
      %v1799 = vshrl.u32 %v1798, 7
      %v1800 = vsub.s32 %v1797, %v1799
      %v1801 = vrot.slane %v1787, %v1800
      %v1802 = vcombine.low %v1794, %v1801
      %v1803 = vcombine.low %v1149, %v1198
      %v1804 = vcombine.high %v1149, %v1198
      %v1805 = vcombine.low %v1199, %v1200
      %v1806 = vcombine.high %v1199, %v1200
      %v1808 = vunpack.c.l.s4 1983009808
      %v1809 = vunpack.c.0.s8 %v1808
      %v1810 = vlaneseq
      %v1811 = vshrl.u32 %v1810, 7
      %v1812 = vsub.s32 %v1809, %v1811
      %v1813 = vrot.slane %v1803, %v1812
      %v1815 = vunpack.c.l.s4 1983009808
      %v1816 = vunpack.c.0.s8 %v1815
      %v1817 = vlaneseq
      %v1818 = vshrl.u32 %v1817, 7
      %v1819 = vsub.s32 %v1816, %v1818
      %v1820 = vrot.slane %v1804, %v1819
      %v1822 = vunpack.c.l.s4 1983009808
      %v1823 = vunpack.c.0.s8 %v1822
      %v1824 = vlaneseq
      %v1825 = vshrl.u32 %v1824, 7
      %v1826 = vsub.s32 %v1823, %v1825
      %v1827 = vrot.slane %v1805, %v1826
      %v1829 = vunpack.c.l.s4 1983009808
      %v1830 = vunpack.c.0.s8 %v1829
      %v1831 = vlaneseq
      %v1832 = vshrl.u32 %v1831, 7
      %v1833 = vsub.s32 %v1830, %v1832
      %v1834 = vrot.slane %v1806, %v1833
      %v1835 = vcombine.low %v1813, %v1827
      %v1836 = vcombine.high %v1813, %v1827
      %v1837 = vcombine.low %v1820, %v1834
      %v1838 = vcombine.high %v1820, %v1834
      %v1839 = vcombine.low %v1164, %v1208
      %v1840 = vcombine.low %v1216, %v1215
      %v1842 = vunpack.c.l.s4 1983009808
      %v1843 = vunpack.c.0.s8 %v1842
      %v1844 = vlaneseq
      %v1845 = vshrl.u32 %v1844, 7
      %v1846 = vsub.s32 %v1843, %v1845
      %v1847 = vrot.slane %v1839, %v1846
      %v1849 = vunpack.c.l.s4 1983009808
      %v1850 = vunpack.c.0.s8 %v1849
      %v1851 = vlaneseq
      %v1852 = vshrl.u32 %v1851, 7
      %v1853 = vsub.s32 %v1850, %v1852
      %v1854 = vrot.slane %v1840, %v1853
      %v1855 = vcombine.low %v1847, %v1854
      %v1856 = vcombine.low %v1249, %v1250
      %v1857 = vcombine.high %v1249, %v1250
      %v1858 = vcombine.low %v1251, %v1300
      %v1859 = vcombine.high %v1251, %v1300
      %v1861 = vunpack.c.l.s4 1983009808
      %v1862 = vunpack.c.0.s8 %v1861
      %v1863 = vlaneseq
      %v1864 = vshrl.u32 %v1863, 7
      %v1865 = vsub.s32 %v1862, %v1864
      %v1866 = vrot.slane %v1856, %v1865
      %v1868 = vunpack.c.l.s4 1983009808
      %v1869 = vunpack.c.0.s8 %v1868
      %v1870 = vlaneseq
      %v1871 = vshrl.u32 %v1870, 7
      %v1872 = vsub.s32 %v1869, %v1871
      %v1873 = vrot.slane %v1857, %v1872
      %v1875 = vunpack.c.l.s4 1983009808
      %v1876 = vunpack.c.0.s8 %v1875
      %v1877 = vlaneseq
      %v1878 = vshrl.u32 %v1877, 7
      %v1879 = vsub.s32 %v1876, %v1878
      %v1880 = vrot.slane %v1858, %v1879
      %v1882 = vunpack.c.l.s4 1983009808
      %v1883 = vunpack.c.0.s8 %v1882
      %v1884 = vlaneseq
      %v1885 = vshrl.u32 %v1884, 7
      %v1886 = vsub.s32 %v1883, %v1885
      %v1887 = vrot.slane %v1859, %v1886
      %v1888 = vcombine.low %v1866, %v1880
      %v1889 = vcombine.high %v1866, %v1880
      %v1890 = vcombine.low %v1873, %v1887
      %v1891 = vcombine.high %v1873, %v1887
      %v1892 = vcombine.low %v1259, %v1267
      %v1893 = vcombine.low %v1266, %v1310
      %v1895 = vunpack.c.l.s4 1983009808
      %v1896 = vunpack.c.0.s8 %v1895
      %v1897 = vlaneseq
      %v1898 = vshrl.u32 %v1897, 7
      %v1899 = vsub.s32 %v1896, %v1898
      %v1900 = vrot.slane %v1892, %v1899
      %v1902 = vunpack.c.l.s4 1983009808
      %v1903 = vunpack.c.0.s8 %v1902
      %v1904 = vlaneseq
      %v1905 = vshrl.u32 %v1904, 7
      %v1906 = vsub.s32 %v1903, %v1905
      %v1907 = vrot.slane %v1893, %v1906
      %v1908 = vcombine.low %v1900, %v1907
      %v1909 = vcombine.low %v1301, %v1302
      %v1910 = vcombine.high %v1301, %v1302
      %v1911 = vcombine.low %v1351, %v1352
      %v1912 = vcombine.high %v1351, %v1352
      %v1914 = vunpack.c.l.s4 1983009808
      %v1915 = vunpack.c.0.s8 %v1914
      %v1916 = vlaneseq
      %v1917 = vshrl.u32 %v1916, 7
      %v1918 = vsub.s32 %v1915, %v1917
      %v1919 = vrot.slane %v1909, %v1918
      %v1921 = vunpack.c.l.s4 1983009808
      %v1922 = vunpack.c.0.s8 %v1921
      %v1923 = vlaneseq
      %v1924 = vshrl.u32 %v1923, 7
      %v1925 = vsub.s32 %v1922, %v1924
      %v1926 = vrot.slane %v1910, %v1925
      %v1928 = vunpack.c.l.s4 1983009808
      %v1929 = vunpack.c.0.s8 %v1928
      %v1930 = vlaneseq
      %v1931 = vshrl.u32 %v1930, 7
      %v1932 = vsub.s32 %v1929, %v1931
      %v1933 = vrot.slane %v1911, %v1932
      %v1935 = vunpack.c.l.s4 1983009808
      %v1936 = vunpack.c.0.s8 %v1935
      %v1937 = vlaneseq
      %v1938 = vshrl.u32 %v1937, 7
      %v1939 = vsub.s32 %v1936, %v1938
      %v1940 = vrot.slane %v1912, %v1939
      %v1941 = vcombine.low %v1919, %v1933
      %v1942 = vcombine.high %v1919, %v1933
      %v1943 = vcombine.low %v1926, %v1940
      %v1944 = vcombine.high %v1926, %v1940
      %v1945 = vcombine.low %v1318, %v1317
      %v1946 = vcombine.low %v1361, %v1369
      %v1948 = vunpack.c.l.s4 1983009808
      %v1949 = vunpack.c.0.s8 %v1948
      %v1950 = vlaneseq
      %v1951 = vshrl.u32 %v1950, 7
      %v1952 = vsub.s32 %v1949, %v1951
      %v1953 = vrot.slane %v1945, %v1952
      %v1955 = vunpack.c.l.s4 1983009808
      %v1956 = vunpack.c.0.s8 %v1955
      %v1957 = vlaneseq
      %v1958 = vshrl.u32 %v1957, 7
      %v1959 = vsub.s32 %v1956, %v1958
      %v1960 = vrot.slane %v1946, %v1959
      %v1961 = vcombine.low %v1953, %v1960
      %v1962 = vcombine.low %v1353, %v1402
      %v1963 = vcombine.high %v1353, %v1402
      %v1964 = vcombine.low %v1403, %v1404
      %v1965 = vcombine.high %v1403, %v1404
      %v1967 = vunpack.c.l.s4 1983009808
      %v1968 = vunpack.c.0.s8 %v1967
      %v1969 = vlaneseq
      %v1970 = vshrl.u32 %v1969, 7
      %v1971 = vsub.s32 %v1968, %v1970
      %v1972 = vrot.slane %v1962, %v1971
      %v1974 = vunpack.c.l.s4 1983009808
      %v1975 = vunpack.c.0.s8 %v1974
      %v1976 = vlaneseq
      %v1977 = vshrl.u32 %v1976, 7
      %v1978 = vsub.s32 %v1975, %v1977
      %v1979 = vrot.slane %v1963, %v1978
      %v1981 = vunpack.c.l.s4 1983009808
      %v1982 = vunpack.c.0.s8 %v1981
      %v1983 = vlaneseq
      %v1984 = vshrl.u32 %v1983, 7
      %v1985 = vsub.s32 %v1982, %v1984
      %v1986 = vrot.slane %v1964, %v1985
      %v1988 = vunpack.c.l.s4 1983009808
      %v1989 = vunpack.c.0.s8 %v1988
      %v1990 = vlaneseq
      %v1991 = vshrl.u32 %v1990, 7
      %v1992 = vsub.s32 %v1989, %v1991
      %v1993 = vrot.slane %v1965, %v1992
      %v1994 = vcombine.low %v1972, %v1986
      %v1995 = vcombine.high %v1972, %v1986
      %v1996 = vcombine.low %v1979, %v1993
      %v1997 = vcombine.high %v1979, %v1993
      %v1998 = vcombine.low %v1368, %v1412
      %v1999 = vcombine.low %v1420, %v1419
      %v2001 = vunpack.c.l.s4 1983009808
      %v2002 = vunpack.c.0.s8 %v2001
      %v2003 = vlaneseq
      %v2004 = vshrl.u32 %v2003, 7
      %v2005 = vsub.s32 %v2002, %v2004
      %v2006 = vrot.slane %v1998, %v2005
      %v2008 = vunpack.c.l.s4 1983009808
      %v2009 = vunpack.c.0.s8 %v2008
      %v2010 = vlaneseq
      %v2011 = vshrl.u32 %v2010, 7
      %v2012 = vsub.s32 %v2009, %v2011
      %v2013 = vrot.slane %v1999, %v2012
      %v2014 = vcombine.low %v2006, %v2013
      %v2015 = vcombine.low %v1453, %v1454
      %v2016 = vcombine.high %v1453, %v1454
      %v2017 = vcombine.low %v1455, %v1504
      %v2018 = vcombine.high %v1455, %v1504
      %v2020 = vunpack.c.l.s4 1983009808
      %v2021 = vunpack.c.0.s8 %v2020
      %v2022 = vlaneseq
      %v2023 = vshrl.u32 %v2022, 7
      %v2024 = vsub.s32 %v2021, %v2023
      %v2025 = vrot.slane %v2015, %v2024
      %v2027 = vunpack.c.l.s4 1983009808
      %v2028 = vunpack.c.0.s8 %v2027
      %v2029 = vlaneseq
      %v2030 = vshrl.u32 %v2029, 7
      %v2031 = vsub.s32 %v2028, %v2030
      %v2032 = vrot.slane %v2016, %v2031
      %v2034 = vunpack.c.l.s4 1983009808
      %v2035 = vunpack.c.0.s8 %v2034
      %v2036 = vlaneseq
      %v2037 = vshrl.u32 %v2036, 7
      %v2038 = vsub.s32 %v2035, %v2037
      %v2039 = vrot.slane %v2017, %v2038
      %v2041 = vunpack.c.l.s4 1983009808
      %v2042 = vunpack.c.0.s8 %v2041
      %v2043 = vlaneseq
      %v2044 = vshrl.u32 %v2043, 7
      %v2045 = vsub.s32 %v2042, %v2044
      %v2046 = vrot.slane %v2018, %v2045
      %v2047 = vcombine.low %v2025, %v2039
      %v2048 = vcombine.high %v2025, %v2039
      %v2049 = vcombine.low %v2032, %v2046
      %v2050 = vcombine.high %v2032, %v2046
      %v2051 = vcombine.low %v1463, %v1471
      %v2052 = vcombine.low %v1470, %v1514
      %v2054 = vunpack.c.l.s4 1983009808
      %v2055 = vunpack.c.0.s8 %v2054
      %v2056 = vlaneseq
      %v2057 = vshrl.u32 %v2056, 7
      %v2058 = vsub.s32 %v2055, %v2057
      %v2059 = vrot.slane %v2051, %v2058
      %v2061 = vunpack.c.l.s4 1983009808
      %v2062 = vunpack.c.0.s8 %v2061
      %v2063 = vlaneseq
      %v2064 = vshrl.u32 %v2063, 7
      %v2065 = vsub.s32 %v2062, %v2064
      %v2066 = vrot.slane %v2052, %v2065
      %v2067 = vcombine.low %v2059, %v2066
      %v2068 = vcombine.low %v1505, %v1506
      %v2069 = vcombine.high %v1505, %v1506
      %v2070 = vcombine.low %v1555, %v1556
      %v2071 = vcombine.high %v1555, %v1556
      %v2073 = vunpack.c.l.s4 1983009808
      %v2074 = vunpack.c.0.s8 %v2073
      %v2075 = vlaneseq
      %v2076 = vshrl.u32 %v2075, 7
      %v2077 = vsub.s32 %v2074, %v2076
      %v2078 = vrot.slane %v2068, %v2077
      %v2080 = vunpack.c.l.s4 1983009808
      %v2081 = vunpack.c.0.s8 %v2080
      %v2082 = vlaneseq
      %v2083 = vshrl.u32 %v2082, 7
      %v2084 = vsub.s32 %v2081, %v2083
      %v2085 = vrot.slane %v2069, %v2084
      %v2087 = vunpack.c.l.s4 1983009808
      %v2088 = vunpack.c.0.s8 %v2087
      %v2089 = vlaneseq
      %v2090 = vshrl.u32 %v2089, 7
      %v2091 = vsub.s32 %v2088, %v2090
      %v2092 = vrot.slane %v2070, %v2091
      %v2094 = vunpack.c.l.s4 1983009808
      %v2095 = vunpack.c.0.s8 %v2094
      %v2096 = vlaneseq
      %v2097 = vshrl.u32 %v2096, 7
      %v2098 = vsub.s32 %v2095, %v2097
      %v2099 = vrot.slane %v2071, %v2098
      %v2100 = vcombine.low %v2078, %v2092
      %v2101 = vcombine.high %v2078, %v2092
      %v2102 = vcombine.low %v2085, %v2099
      %v2103 = vcombine.high %v2085, %v2099
      %v2104 = vcombine.low %v1522, %v1521
      %v2105 = vcombine.low %v1565, %v1573
      %v2107 = vunpack.c.l.s4 1983009808
      %v2108 = vunpack.c.0.s8 %v2107
      %v2109 = vlaneseq
      %v2110 = vshrl.u32 %v2109, 7
      %v2111 = vsub.s32 %v2108, %v2110
      %v2112 = vrot.slane %v2104, %v2111
      %v2114 = vunpack.c.l.s4 1983009808
      %v2115 = vunpack.c.0.s8 %v2114
      %v2116 = vlaneseq
      %v2117 = vshrl.u32 %v2116, 7
      %v2118 = vsub.s32 %v2115, %v2117
      %v2119 = vrot.slane %v2105, %v2118
      %v2120 = vcombine.low %v2112, %v2119
      %v2121 = vcombine.low %v1557, %v1606
      %v2122 = vcombine.high %v1557, %v1606
      %v2123 = vcombine.low %v1607, %v1608
      %v2124 = vcombine.high %v1607, %v1608
      %v2126 = vunpack.c.l.s4 1983009808
      %v2127 = vunpack.c.0.s8 %v2126
      %v2128 = vlaneseq
      %v2129 = vshrl.u32 %v2128, 7
      %v2130 = vsub.s32 %v2127, %v2129
      %v2131 = vrot.slane %v2121, %v2130
      %v2133 = vunpack.c.l.s4 1983009808
      %v2134 = vunpack.c.0.s8 %v2133
      %v2135 = vlaneseq
      %v2136 = vshrl.u32 %v2135, 7
      %v2137 = vsub.s32 %v2134, %v2136
      %v2138 = vrot.slane %v2122, %v2137
      %v2140 = vunpack.c.l.s4 1983009808
      %v2141 = vunpack.c.0.s8 %v2140
      %v2142 = vlaneseq
      %v2143 = vshrl.u32 %v2142, 7
      %v2144 = vsub.s32 %v2141, %v2143
      %v2145 = vrot.slane %v2123, %v2144
      %v2147 = vunpack.c.l.s4 1983009808
      %v2148 = vunpack.c.0.s8 %v2147
      %v2149 = vlaneseq
      %v2150 = vshrl.u32 %v2149, 7
      %v2151 = vsub.s32 %v2148, %v2150
      %v2152 = vrot.slane %v2124, %v2151
      %v2153 = vcombine.low %v2131, %v2145
      %v2154 = vcombine.high %v2131, %v2145
      %v2155 = vcombine.low %v2138, %v2152
      %v2156 = vcombine.high %v2138, %v2152
      %v2157 = vcombine.low %v1572, %v1616
      %v2158 = vcombine.low %v1624, %v1623
      %v2160 = vunpack.c.l.s4 1983009808
      %v2161 = vunpack.c.0.s8 %v2160
      %v2162 = vlaneseq
      %v2163 = vshrl.u32 %v2162, 7
      %v2164 = vsub.s32 %v2161, %v2163
      %v2165 = vrot.slane %v2157, %v2164
      %v2167 = vunpack.c.l.s4 1983009808
      %v2168 = vunpack.c.0.s8 %v2167
      %v2169 = vlaneseq
      %v2170 = vshrl.u32 %v2169, 7
      %v2171 = vsub.s32 %v2168, %v2170
      %v2172 = vrot.slane %v2158, %v2171
      %v2173 = vcombine.low %v2165, %v2172
      %v2282 = vunpack.c.l.b16 %v1625
      %v2283 = vunpack.c.l.b16 %v1626
      %v2284 = vunpack.c.l.b16 %v1627
      %v2285 = vunpack.c.l.b16 %v1628
      %v2286 = vunpack.c.l.b16 %v1629
      %v2287 = vunpack.c.l.b16 %v1630
      %v2288 = vunpack.c.l.b16 %v1631
      %v2289 = vunpack.c.l.b16 %v1632
      %v2290 = vunpack.c.l.b16 %v1633
      %v2291 = vunpack.c.l.b16 %v1634
      %v2292 = vunpack.c.l.b16 %v1635
      %v2293 = vunpack.c.l.b16 %v1636
      %v2294 = vunpack.c.l.b16 %v1637
      %v2295 = vunpack.c.l.b16 %v1638
      %v2296 = vunpack.c.l.b16 %v1639
      %v2297 = vunpack.c.l.b16 %v1640
      %v2298 = vunpack.c.l.b16 %v1641
      %v2299 = vunpack.c.l.b16 %v1642
      %v2300 = vunpack.c.l.b16 %v1643
      %v2301 = vunpack.c.l.b16 %v1644
      %v2302 = vunpack.c.l.b16 %v1645
      %v2303 = vunpack.c.l.b16 %v1646
      %v2304 = vunpack.c.l.b16 %v1647
      %v2305 = vunpack.c.l.b16 %v1648
      %v2306 = vunpack.c.l.b16 %v1649
      %v2307 = vunpack.c.l.b16 %v1650
      %v2308 = vunpack.c.l.b16 %v1651
      %v2309 = vunpack.c.l.b16 %v1652
      %v2310 = vunpack.c.l.b16 %v1653
      %v2311 = vunpack.c.l.b16 %v1654
      %v2312 = vunpack.c.l.b16 %v1655
      %v2313 = vunpack.c.l.b16 %v1656
      %v2314 = vunpack.c.l.b16 %v1657
      %v2315 = vunpack.c.l.b16 %v1658
      %v2316 = vunpack.c.l.b16 %v1659
      %v2317 = vunpack.c.l.b16 %v1660
      %v2318 = vunpack.c.l.b16 %v1661
      %v2319 = vunpack.c.l.b16 %v1662
      %v2320 = vunpack.c.l.b16 %v1663
      %v2321 = vunpack.c.l.b16 %v1664
      %v2322 = vunpack.c.l.b16 %v1665
      %v2323 = vunpack.c.l.b16 %v1666
      %v2324 = vunpack.c.l.b16 %v1667
      %v2325 = vunpack.c.l.b16 %v1668
      %v2326 = vunpack.c.l.b16 %v1669
      %v2327 = vunpack.c.l.b16 %v1670
      %v2328 = vunpack.c.l.b16 %v1671
      %v2329 = vunpack.c.l.b16 %v1672
      %v2330 = vunpack.c.l.b16 %v1673
      %v2331 = vunpack.c.l.b16 %v1674
      %v2332 = vunpack.c.l.b16 %v1675
      %v2333 = vunpack.c.l.b16 %v1676
      %v2334 = vunpack.c.l.b16 %v1677
      %v2335 = vunpack.c.l.b16 %v1678
      %v2336 = vunpack.c.l.b16 %v1679
      %v2337 = vunpack.c.l.b16 %v1680
      %v2338 = vunpack.c.l.b16 %v1681
      %v2339 = vunpack.c.l.b16 %v1682
      %v2340 = vunpack.c.l.b16 %v1683
      %v2341 = vunpack.c.l.b16 %v1684
      %v2342 = vunpack.c.l.b16 %v1685
      %v2343 = vunpack.c.l.b16 %v1686
      %v2344 = vunpack.c.l.b16 %v1687
      %v2345 = vunpack.c.l.b16 %v1688
      %v2346 = vunpack.c.l.b16 %v1689
      %v2347 = vunpack.c.l.b16 %v1690
      %v2348 = vunpack.c.l.b16 %v1691
      %v2349 = vunpack.c.l.b16 %v1692
      %v2350 = vunpack.c.l.b16 %v1693
      %v2351 = vunpack.c.l.b16 %v1694
      %v2352 = vunpack.c.l.b16 %v1695
      %v2353 = vunpack.c.l.b16 %v1696
      %v2354 = vpack.c.b16 %v2283, %v2282
      %v2355 = vpack.c.b16 %v2285, %v2284
      %v2356 = vpack.c.b16 %v2287, %v2286
      %v2357 = vpack.c.b16 %v2289, %v2288
      %v2358 = vpack.c.b16 %v2291, %v2290
      %v2359 = vpack.c.b16 %v2293, %v2292
      %v2360 = vpack.c.b16 %v2295, %v2294
      %v2361 = vpack.c.b16 %v2297, %v2296
      %v2362 = vpack.c.b16 %v2299, %v2298
      %v2363 = vpack.c.b16 %v2301, %v2300
      %v2364 = vpack.c.b16 %v2303, %v2302
      %v2365 = vpack.c.b16 %v2305, %v2304
      %v2366 = vpack.c.b16 %v2307, %v2306
      %v2367 = vpack.c.b16 %v2309, %v2308
      %v2368 = vpack.c.b16 %v2311, %v2310
      %v2369 = vpack.c.b16 %v2313, %v2312
      %v2370 = vpack.c.b16 %v2315, %v2314
      %v2371 = vpack.c.b16 %v2317, %v2316
      %v2372 = vpack.c.b16 %v2319, %v2318
      %v2373 = vpack.c.b16 %v2321, %v2320
      %v2374 = vpack.c.b16 %v2323, %v2322
      %v2375 = vpack.c.b16 %v2325, %v2324
      %v2376 = vpack.c.b16 %v2327, %v2326
      %v2377 = vpack.c.b16 %v2329, %v2328
      %v2378 = vpack.c.b16 %v2331, %v2330
      %v2379 = vpack.c.b16 %v2333, %v2332
      %v2380 = vpack.c.b16 %v2335, %v2334
      %v2381 = vpack.c.b16 %v2337, %v2336
      %v2382 = vpack.c.b16 %v2339, %v2338
      %v2383 = vpack.c.b16 %v2341, %v2340
      %v2384 = vpack.c.b16 %v2343, %v2342
      %v2385 = vpack.c.b16 %v2345, %v2344
      %v2386 = vpack.c.b16 %v2347, %v2346
      %v2387 = vpack.c.b16 %v2349, %v2348
      %v2388 = vpack.c.b16 %v2351, %v2350
      %v2389 = vpack.c.b16 %v2353, %v2352
      %v2427 = vsel %vm874, %v1749, 0
      %v2430 = vsel %vm874, %v1802, 0
      %v2433 = vsel %vm874, %v1855, 0
      %v2436 = vsel %vm874, %v1908, 0
      %v2439 = vsel %vm874, %v1961, 0
      %v2442 = vsel %vm874, %v2014, 0
      %v2445 = vsel %vm874, %v2067, 0
      %v2448 = vsel %vm874, %v2120, 0
      %v2451 = vsel %vm874, %v2173, 0
      %2453 = vmatprep.subr.bf16.mxu0 0
      %2454 = vmatpush1.bf16.msra.mxu0 %v2361
      %2455 = vmatprep.subr.bf16.mxu0 0
      %2456 = vmatpush1.bf16.msra.mxu0 %v2360
      %2457 = vmatprep.subr.bf16.mxu0 0
      %2458 = vmatpush1.bf16.msra.mxu0 %v2359
      %2459 = vmatprep.subr.bf16.mxu0 0
      %2460 = vmatpush1.bf16.msra.mxu0 %v2358
      %2461 = vmatprep.subr.bf16.mxu0 0
      %2462 = vmatpush1.bf16.msra.mxu0 %v2357
      %2463 = vmatprep.subr.bf16.mxu0 0
      %2464 = vmatpush1.bf16.msra.mxu0 %v2356
      %2465 = vmatprep.subr.bf16.mxu0 0
      %2466 = vmatpush1.bf16.msra.mxu0 %v2355
      %2467 = vmatprep.subr.bf16.mxu0 0
      %2468 = vmatpush1.bf16.msra.mxu0 %v2354
      %2469 = vmatprep.subr.bf16.mxu0 0
      %2470 = vmatpush2.bf16.msra.mxu0 %v2369
      %2471 = vmatprep.subr.bf16.mxu0 0
      %2472 = vmatpush2.bf16.msra.mxu0 %v2368
      %2473 = vmatprep.subr.bf16.mxu0 0
      %2474 = vmatpush2.bf16.msra.mxu0 %v2367
      %2475 = vmatprep.subr.bf16.mxu0 0
      %2476 = vmatpush2.bf16.msra.mxu0 %v2366
      %2477 = vmatprep.subr.bf16.mxu0 0
      %2478 = vmatpush2.bf16.msra.mxu0 %v2365
      %2479 = vmatprep.subr.bf16.mxu0 0
      %2480 = vmatpush2.bf16.msra.mxu0 %v2364
      %2481 = vmatprep.subr.bf16.mxu0 0
      %2482 = vmatpush2.bf16.msra.mxu0 %v2363
      %2483 = vmatprep.subr.bf16.mxu0 0
      %2484 = vmatpush2.bf16.msra.mxu0 %v2362
      %2485 = vmatprep.mubr.bf16.mxu0 %v1730
      %2486 = vmatmul.mubr.bf16.gmra.mxu0 %v1729
      %v2487 = vpop.f32.mrf.mxu0
      %v2488 = vadd.f32 0.0, %v2487
      %v2489 = vpop.f32.mrf.mxu0
      %v2490 = vpop.f32.mrf.mxu0
      %v2491 = vadd.f32 0.0, %v2490
      %v2492 = vpop.f32.mrf.mxu0
      %2493 = vmatprep.mubr.bf16.mxu0 %v1783
      %2494 = vmatmul.mubr.bf16.gmra.mxu0 %v1782
      %v2495 = vpop.f32.mrf.mxu0
      %v2496 = vadd.f32 0.0, %v2495
      %v2497 = vpop.f32.mrf.mxu0
      %v2498 = vpop.f32.mrf.mxu0
      %v2499 = vadd.f32 0.0, %v2498
      %v2500 = vpop.f32.mrf.mxu0
      %2501 = vmatprep.mubr.bf16.mxu0 %v1836
      %2502 = vmatmul.mubr.bf16.gmra.mxu0 %v1835
      %v2503 = vpop.f32.mrf.mxu0
      %v2504 = vadd.f32 0.0, %v2503
      %v2505 = vpop.f32.mrf.mxu0
      %v2506 = vpop.f32.mrf.mxu0
      %v2507 = vadd.f32 0.0, %v2506
      %v2508 = vpop.f32.mrf.mxu0
      %2509 = vmatprep.mubr.bf16.mxu0 %v1889
      %2510 = vmatmul.mubr.bf16.gmra.mxu0 %v1888
      %v2511 = vpop.f32.mrf.mxu0
      %v2512 = vadd.f32 0.0, %v2511
      %v2513 = vpop.f32.mrf.mxu0
      %v2514 = vpop.f32.mrf.mxu0
      %v2515 = vadd.f32 0.0, %v2514
      %v2516 = vpop.f32.mrf.mxu0
      %2517 = vmatprep.mubr.bf16.mxu0 %v1942
      %2518 = vmatmul.mubr.bf16.gmra.mxu0 %v1941
      %v2519 = vpop.f32.mrf.mxu0
      %v2520 = vadd.f32 0.0, %v2519
      %v2521 = vpop.f32.mrf.mxu0
      %v2522 = vpop.f32.mrf.mxu0
      %v2523 = vadd.f32 0.0, %v2522
      %v2524 = vpop.f32.mrf.mxu0
      %2525 = vmatprep.mubr.bf16.mxu0 %v1995
      %2526 = vmatmul.mubr.bf16.gmra.mxu0 %v1994
      %v2527 = vpop.f32.mrf.mxu0
      %v2528 = vadd.f32 0.0, %v2527
      %v2529 = vpop.f32.mrf.mxu0
      %v2530 = vpop.f32.mrf.mxu0
      %v2531 = vadd.f32 0.0, %v2530
      %v2532 = vpop.f32.mrf.mxu0
      %2533 = vmatprep.mubr.bf16.mxu0 %v2048
      %2534 = vmatmul.mubr.bf16.gmra.mxu0 %v2047
      %v2535 = vpop.f32.mrf.mxu0
      %v2536 = vadd.f32 0.0, %v2535
      %v2537 = vpop.f32.mrf.mxu0
      %v2538 = vpop.f32.mrf.mxu0
      %v2539 = vadd.f32 0.0, %v2538
      %v2540 = vpop.f32.mrf.mxu0
      %2541 = vmatprep.mubr.bf16.mxu0 %v2101
      %2542 = vmatmul.mubr.bf16.gmra.mxu0 %v2100
      %v2543 = vpop.f32.mrf.mxu0
      %v2544 = vadd.f32 0.0, %v2543
      %v2545 = vpop.f32.mrf.mxu0
      %v2546 = vpop.f32.mrf.mxu0
      %v2547 = vadd.f32 0.0, %v2546
      %v2548 = vpop.f32.mrf.mxu0
      %2549 = vmatprep.mubr.bf16.mxu0 %v2154
      %2550 = vmatmul.mubr.bf16.gmra.mxu0 %v2153
      %v2551 = vpop.f32.mrf.mxu0
      %v2552 = vadd.f32 0.0, %v2551
      %v2553 = vpop.f32.mrf.mxu0
      %v2554 = vpop.f32.mrf.mxu0
      %v2555 = vadd.f32 0.0, %v2554
      %v2556 = vpop.f32.mrf.mxu0
      %2557 = vdwg.mxu0
      %2558 = vmatprep.subr.bf16.mxu0 0
      %2559 = vmatpush1.bf16.msra.mxu0 %v2377
      %2560 = vmatprep.subr.bf16.mxu0 0
      %2561 = vmatpush1.bf16.msra.mxu0 %v2376
      %2562 = vmatprep.subr.bf16.mxu0 0
      %2563 = vmatpush1.bf16.msra.mxu0 %v2375
      %2564 = vmatprep.subr.bf16.mxu0 0
      %2565 = vmatpush1.bf16.msra.mxu0 %v2374
      %2566 = vmatprep.subr.bf16.mxu0 0
      %2567 = vmatpush1.bf16.msra.mxu0 %v2373
      %2568 = vmatprep.subr.bf16.mxu0 0
      %2569 = vmatpush1.bf16.msra.mxu0 %v2372
      %2570 = vmatprep.subr.bf16.mxu0 0
      %2571 = vmatpush1.bf16.msra.mxu0 %v2371
      %2572 = vmatprep.subr.bf16.mxu0 0
      %2573 = vmatpush1.bf16.msra.mxu0 %v2370
      %2574 = vmatprep.subr.bf16.mxu0 0
      %2575 = vmatpush2.bf16.msra.mxu0 %v2385
      %2576 = vmatprep.subr.bf16.mxu0 0
      %2577 = vmatpush2.bf16.msra.mxu0 %v2384
      %2578 = vmatprep.subr.bf16.mxu0 0
      %2579 = vmatpush2.bf16.msra.mxu0 %v2383
      %2580 = vmatprep.subr.bf16.mxu0 0
      %2581 = vmatpush2.bf16.msra.mxu0 %v2382
      %2582 = vmatprep.subr.bf16.mxu0 0
      %2583 = vmatpush2.bf16.msra.mxu0 %v2381
      %2584 = vmatprep.subr.bf16.mxu0 0
      %2585 = vmatpush2.bf16.msra.mxu0 %v2380
      %2586 = vmatprep.subr.bf16.mxu0 0
      %2587 = vmatpush2.bf16.msra.mxu0 %v2379
      %2588 = vmatprep.subr.bf16.mxu0 0
      %2589 = vmatpush2.bf16.msra.mxu0 %v2378
      %2590 = vmatprep.mubr.bf16.mxu0 %v1732
      %2591 = vmatmul.mubr.bf16.gmra.mxu0 %v1731
      %v2592 = vpop.f32.mrf.mxu0
      %v2593 = vadd.f32 %v2488, %v2592
      %v2594 = vpop.f32.mrf.mxu0
      %v2595 = vpop.f32.mrf.mxu0
      %v2596 = vadd.f32 %v2491, %v2595
      %v2597 = vpop.f32.mrf.mxu0
      %2598 = vmatprep.mubr.bf16.mxu0 %v1785
      %2599 = vmatmul.mubr.bf16.gmra.mxu0 %v1784
      %v2600 = vpop.f32.mrf.mxu0
      %v2601 = vadd.f32 %v2496, %v2600
      %v2602 = vpop.f32.mrf.mxu0
      %v2603 = vpop.f32.mrf.mxu0
      %v2604 = vadd.f32 %v2499, %v2603
      %v2605 = vpop.f32.mrf.mxu0
      %2606 = vmatprep.mubr.bf16.mxu0 %v1838
      %2607 = vmatmul.mubr.bf16.gmra.mxu0 %v1837
      %v2608 = vpop.f32.mrf.mxu0
      %v2609 = vadd.f32 %v2504, %v2608
      %v2610 = vpop.f32.mrf.mxu0
      %v2611 = vpop.f32.mrf.mxu0
      %v2612 = vadd.f32 %v2507, %v2611
      %v2613 = vpop.f32.mrf.mxu0
      %2614 = vmatprep.mubr.bf16.mxu0 %v1891
      %2615 = vmatmul.mubr.bf16.gmra.mxu0 %v1890
      %v2616 = vpop.f32.mrf.mxu0
      %v2617 = vadd.f32 %v2512, %v2616
      %v2618 = vpop.f32.mrf.mxu0
      %v2619 = vpop.f32.mrf.mxu0
      %v2620 = vadd.f32 %v2515, %v2619
      %v2621 = vpop.f32.mrf.mxu0
      %2622 = vmatprep.mubr.bf16.mxu0 %v1944
      %2623 = vmatmul.mubr.bf16.gmra.mxu0 %v1943
      %v2624 = vpop.f32.mrf.mxu0
      %v2625 = vadd.f32 %v2520, %v2624
      %v2626 = vpop.f32.mrf.mxu0
      %v2627 = vpop.f32.mrf.mxu0
      %v2628 = vadd.f32 %v2523, %v2627
      %v2629 = vpop.f32.mrf.mxu0
      %2630 = vmatprep.mubr.bf16.mxu0 %v1997
      %2631 = vmatmul.mubr.bf16.gmra.mxu0 %v1996
      %v2632 = vpop.f32.mrf.mxu0
      %v2633 = vadd.f32 %v2528, %v2632
      %v2634 = vpop.f32.mrf.mxu0
      %v2635 = vpop.f32.mrf.mxu0
      %v2636 = vadd.f32 %v2531, %v2635
      %v2637 = vpop.f32.mrf.mxu0
      %2638 = vmatprep.mubr.bf16.mxu0 %v2050
      %2639 = vmatmul.mubr.bf16.gmra.mxu0 %v2049
      %v2640 = vpop.f32.mrf.mxu0
      %v2641 = vadd.f32 %v2536, %v2640
      %v2642 = vpop.f32.mrf.mxu0
      %v2643 = vpop.f32.mrf.mxu0
      %v2644 = vadd.f32 %v2539, %v2643
      %v2645 = vpop.f32.mrf.mxu0
      %2646 = vmatprep.mubr.bf16.mxu0 %v2103
      %2647 = vmatmul.mubr.bf16.gmra.mxu0 %v2102
      %v2648 = vpop.f32.mrf.mxu0
      %v2649 = vadd.f32 %v2544, %v2648
      %v2650 = vpop.f32.mrf.mxu0
      %v2651 = vpop.f32.mrf.mxu0
      %v2652 = vadd.f32 %v2547, %v2651
      %v2653 = vpop.f32.mrf.mxu0
      %2654 = vmatprep.mubr.bf16.mxu0 %v2156
      %2655 = vmatmul.mubr.bf16.gmra.mxu0 %v2155
      %v2656 = vpop.f32.mrf.mxu0
      %v2657 = vadd.f32 %v2552, %v2656
      %v2658 = vpop.f32.mrf.mxu0
      %v2659 = vpop.f32.mrf.mxu0
      %v2660 = vadd.f32 %v2555, %v2659
      %v2661 = vpop.f32.mrf.mxu0
      %2662 = vdwg.mxu0
      %2663 = vmatprep.subr.bf16.mxu0 0
      %2664 = vmatpush1.bf16.msra.mxu0 0
      %2665 = vmatprep.subr.bf16.mxu0 0
      %2666 = vmatpush1.bf16.msra.mxu0 0
      %2667 = vmatprep.subr.bf16.mxu0 0
      %2668 = vmatpush1.bf16.msra.mxu0 0
      %2669 = vmatprep.subr.bf16.mxu0 0
      %2670 = vmatpush1.bf16.msra.mxu0 0
      %2671 = vmatprep.subr.bf16.mxu0 0
      %2672 = vmatpush1.bf16.msra.mxu0 %v2389
      %2673 = vmatprep.subr.bf16.mxu0 0
      %2674 = vmatpush1.bf16.msra.mxu0 %v2388
      %2675 = vmatprep.subr.bf16.mxu0 0
      %2676 = vmatpush1.bf16.msra.mxu0 %v2387
      %2677 = vmatprep.subr.bf16.mxu0 0
      %2678 = vmatpush1.bf16.msra.mxu0 %v2386
      %2679 = vmatprep.subr.bf16.mxu0 0
      %2680 = vmatpush2.bf16.msra.mxu0 0
      %2681 = vmatprep.subr.bf16.mxu0 0
      %2682 = vmatpush2.bf16.msra.mxu0 0
      %2683 = vmatprep.subr.bf16.mxu0 0
      %2684 = vmatpush2.bf16.msra.mxu0 0
      %2685 = vmatprep.subr.bf16.mxu0 0
      %2686 = vmatpush2.bf16.msra.mxu0 0
      %2687 = vmatprep.subr.bf16.mxu0 0
      %2688 = vmatpush2.bf16.msra.mxu0 0
      %2689 = vmatprep.subr.bf16.mxu0 0
      %2690 = vmatpush2.bf16.msra.mxu0 0
      %2691 = vmatprep.subr.bf16.mxu0 0
      %2692 = vmatpush2.bf16.msra.mxu0 0
      %2693 = vmatprep.subr.bf16.mxu0 0
      %2694 = vmatpush2.bf16.msra.mxu0 0
      %2695 = vmatprep.mubr.bf16.mxu0 0
      %2696 = vmatmul.mubr.bf16.gmra.mxu0 %v2427
      %v2697 = vpop.f32.mrf.mxu0
      %v2698 = vadd.f32 %v2593, %v2697
      %v2699 = vpop.f32.mrf.mxu0
      %v2700 = vpop.f32.mrf.mxu0
      %v2701 = vadd.f32 %v2596, %v2700
      %v2702 = vpop.f32.mrf.mxu0
      %2703 = vmatprep.mubr.bf16.mxu0 0
      %2704 = vmatmul.mubr.bf16.gmra.mxu0 %v2430
      %v2705 = vpop.f32.mrf.mxu0
      %v2706 = vadd.f32 %v2601, %v2705
      %v2707 = vpop.f32.mrf.mxu0
      %v2708 = vpop.f32.mrf.mxu0
      %v2709 = vadd.f32 %v2604, %v2708
      %v2710 = vpop.f32.mrf.mxu0
      %2711 = vmatprep.mubr.bf16.mxu0 0
      %2712 = vmatmul.mubr.bf16.gmra.mxu0 %v2433
      %v2713 = vpop.f32.mrf.mxu0
      %v2714 = vadd.f32 %v2609, %v2713
      %v2715 = vpop.f32.mrf.mxu0
      %v2716 = vpop.f32.mrf.mxu0
      %v2717 = vadd.f32 %v2612, %v2716
      %v2718 = vpop.f32.mrf.mxu0
      %2719 = vmatprep.mubr.bf16.mxu0 0
      %2720 = vmatmul.mubr.bf16.gmra.mxu0 %v2436
      %v2721 = vpop.f32.mrf.mxu0
      %v2722 = vadd.f32 %v2617, %v2721
      %v2723 = vpop.f32.mrf.mxu0
      %v2724 = vpop.f32.mrf.mxu0
      %v2725 = vadd.f32 %v2620, %v2724
      %v2726 = vpop.f32.mrf.mxu0
      %2727 = vmatprep.mubr.bf16.mxu0 0
      %2728 = vmatmul.mubr.bf16.gmra.mxu0 %v2439
      %v2729 = vpop.f32.mrf.mxu0
      %v2730 = vadd.f32 %v2625, %v2729
      %v2731 = vpop.f32.mrf.mxu0
      %v2732 = vpop.f32.mrf.mxu0
      %v2733 = vadd.f32 %v2628, %v2732
      %v2734 = vpop.f32.mrf.mxu0
      %2735 = vmatprep.mubr.bf16.mxu0 0
      %2736 = vmatmul.mubr.bf16.gmra.mxu0 %v2442
      %v2737 = vpop.f32.mrf.mxu0
      %v2738 = vadd.f32 %v2633, %v2737
      %v2739 = vpop.f32.mrf.mxu0
      %v2740 = vpop.f32.mrf.mxu0
      %v2741 = vadd.f32 %v2636, %v2740
      %v2742 = vpop.f32.mrf.mxu0
      %2743 = vmatprep.mubr.bf16.mxu0 0
      %2744 = vmatmul.mubr.bf16.gmra.mxu0 %v2445
      %v2745 = vpop.f32.mrf.mxu0
      %v2746 = vadd.f32 %v2641, %v2745
      %v2747 = vpop.f32.mrf.mxu0
      %v2748 = vpop.f32.mrf.mxu0
      %v2749 = vadd.f32 %v2644, %v2748
      %v2750 = vpop.f32.mrf.mxu0
      %2751 = vmatprep.mubr.bf16.mxu0 0
      %2752 = vmatmul.mubr.bf16.gmra.mxu0 %v2448
      %v2753 = vpop.f32.mrf.mxu0
      %v2754 = vadd.f32 %v2649, %v2753
      %v2755 = vpop.f32.mrf.mxu0
      %v2756 = vpop.f32.mrf.mxu0
      %v2757 = vadd.f32 %v2652, %v2756
      %v2758 = vpop.f32.mrf.mxu0
      %2759 = vmatprep.mubr.bf16.mxu0 0
      %2760 = vmatmul.mubr.bf16.gmra.mxu0 %v2451
      %v2761 = vpop.f32.mrf.mxu0
      %v2762 = vadd.f32 %v2657, %v2761
      %v2763 = vpop.f32.mrf.mxu0
      %v2764 = vpop.f32.mrf.mxu0
      %v2765 = vadd.f32 %v2660, %v2764
      %v2766 = vpop.f32.mrf.mxu0
      %2767 = vdwg.mxu0
      %v2786 = vcombine.high %v2698, %v2698
      %v2787 = vcombine.high %v2701, %v2701
      %v2788 = vcombine.high %v2706, %v2706
      %v2789 = vcombine.high %v2709, %v2709
      %v2790 = vcombine.high %v2714, %v2714
      %v2791 = vcombine.high %v2717, %v2717
      %v2792 = vcombine.high %v2722, %v2722
      %v2793 = vcombine.high %v2725, %v2725
      %v2794 = vcombine.high %v2730, %v2730
      %v2795 = vcombine.high %v2733, %v2733
      %v2796 = vcombine.high %v2738, %v2738
      %v2797 = vcombine.high %v2741, %v2741
      %v2798 = vcombine.high %v2746, %v2746
      %v2799 = vcombine.high %v2749, %v2749
      %v2800 = vcombine.high %v2754, %v2754
      %v2801 = vcombine.high %v2757, %v2757
      %v2802 = vcombine.high %v2762, %v2762
      %v2803 = vcombine.high %v2765, %v2765
      %v2810 = vcombine.low %v2698, %v2786
      %v2811 = vcombine.low %v2787, %v2706
      %v2812 = vcombine.low %v2709, %v2789
      %v2813 = vcombine.low %v2790, %v2717
      %v2814 = vcombine.low %v2722, %v2792
      %v2815 = vcombine.low %v2793, %v2730
      %v2816 = vcombine.low %v2733, %v2795
      %v2817 = vcombine.low %v2796, %v2741
      %v2818 = vcombine.low %v2746, %v2798
      %v2819 = vcombine.low %v2799, %v2754
      %v2820 = vcombine.low %v2757, %v2801
      %v2821 = vcombine.low %v2802, %v2765
      %v2834 = vpack.c.bf16 %v2701, %v2810
      %v2835 = vpack.c.bf16 %v2788, %v2811
      %v2836 = vpack.c.bf16 %v2714, %v2812
      %v2837 = vpack.c.bf16 %v2791, %v2813
      %v2838 = vpack.c.bf16 %v2725, %v2814
      %v2839 = vpack.c.bf16 %v2794, %v2815
      %v2840 = vpack.c.bf16 %v2738, %v2816
      %v2841 = vpack.c.bf16 %v2797, %v2817
      %v2842 = vpack.c.bf16 %v2749, %v2818
      %v2843 = vpack.c.bf16 %v2800, %v2819
      %v2844 = vpack.c.bf16 %v2762, %v2820
      %v2845 = vpack.c.bf16 %v2803, %v2821
      %v2858 = vunpack.c.l.b16 %v2834
      %v2859 = vunpack.c.h.b16 %v2834
      %v2860 = vunpack.c.l.b16 %v2835
      %v2861 = vunpack.c.h.b16 %v2835
      %v2862 = vunpack.c.l.b16 %v2836
      %v2863 = vunpack.c.h.b16 %v2836
      %v2864 = vunpack.c.l.b16 %v2837
      %v2865 = vunpack.c.h.b16 %v2837
      %v2866 = vunpack.c.l.b16 %v2838
      %v2867 = vunpack.c.h.b16 %v2838
      %v2868 = vunpack.c.l.b16 %v2839
      %v2869 = vunpack.c.h.b16 %v2839
      %v2870 = vunpack.c.l.b16 %v2840
      %v2871 = vunpack.c.h.b16 %v2840
      %v2872 = vunpack.c.l.b16 %v2841
      %v2873 = vunpack.c.h.b16 %v2841
      %v2874 = vunpack.c.l.b16 %v2842
      %v2875 = vunpack.c.h.b16 %v2842
      %v2876 = vunpack.c.l.b16 %v2843
      %v2877 = vunpack.c.h.b16 %v2843
      %v2878 = vunpack.c.l.b16 %v2844
      %v2879 = vunpack.c.h.b16 %v2844
      %v2880 = vunpack.c.l.b16 %v2845
      %v2881 = vunpack.c.h.b16 %v2845
      %v2882 = vpack.c.b16 %v2858, %v2858
      %v2883 = vpack.c.b16 %v2859, %v2859
      %v2884 = vpack.c.b16 %v2860, %v2860
      %v2885 = vpack.c.b16 %v2861, %v2861
      %v2886 = vpack.c.b16 %v2862, %v2862
      %v2887 = vpack.c.b16 %v2863, %v2863
      %v2888 = vpack.c.b16 %v2864, %v2864
      %v2889 = vpack.c.b16 %v2865, %v2865
      %v2890 = vpack.c.b16 %v2866, %v2866
      %v2891 = vpack.c.b16 %v2867, %v2867
      %v2892 = vpack.c.b16 %v2868, %v2868
      %v2893 = vpack.c.b16 %v2869, %v2869
      %v2894 = vpack.c.b16 %v2870, %v2870
      %v2895 = vpack.c.b16 %v2871, %v2871
      %v2896 = vpack.c.b16 %v2872, %v2872
      %v2897 = vpack.c.b16 %v2873, %v2873
      %v2898 = vpack.c.b16 %v2874, %v2874
      %v2899 = vpack.c.b16 %v2875, %v2875
      %v2900 = vpack.c.b16 %v2876, %v2876
      %v2901 = vpack.c.b16 %v2877, %v2877
      %v2902 = vpack.c.b16 %v2878, %v2878
      %v2903 = vpack.c.b16 %v2879, %v2879
      %v2904 = vpack.c.b16 %v2880, %v2880
      %v2905 = vpack.c.b16 %v2881, %v2881
      %vm2930 = vcmask 519168
      %2931 = vst.msk [vmem:[%s491] sm:$0xf] %vm2930, %v2882
      %vm2932 = vcmask 517120
      %2933 = vst.msk [vmem:[%s491 + $0x4] sm:$0x3] %vm2932, %v2883
      %2934 = vst.msk [vmem:[%s491 + $0x8] sm:$0xf] %vm2930, %v2884
      %2935 = vst.msk [vmem:[%s491 + $0xc] sm:$0x3] %vm2932, %v2885
      %2936 = vst.msk [vmem:[%s491 + $0x10] sm:$0xf] %vm2930, %v2886
      %2937 = vst.msk [vmem:[%s491 + $0x14] sm:$0x3] %vm2932, %v2887
      %2938 = vst.msk [vmem:[%s491 + $0x18] sm:$0xf] %vm2930, %v2888
      %2939 = vst.msk [vmem:[%s491 + $0x1c] sm:$0x3] %vm2932, %v2889
      %2940 = vst.msk [vmem:[%s491 + $0x20] sm:$0xf] %vm2930, %v2890
      %2941 = vst.msk [vmem:[%s491 + $0x24] sm:$0x3] %vm2932, %v2891
      %2942 = vst.msk [vmem:[%s491 + $0x28] sm:$0xf] %vm2930, %v2892
      %2943 = vst.msk [vmem:[%s491 + $0x2c] sm:$0x3] %vm2932, %v2893
      %2944 = vst.msk [vmem:[%s491 + $0x30] sm:$0xf] %vm2930, %v2894
      %2945 = vst.msk [vmem:[%s491 + $0x34] sm:$0x3] %vm2932, %v2895
      %2946 = vst.msk [vmem:[%s491 + $0x38] sm:$0xf] %vm2930, %v2896
      %2947 = vst.msk [vmem:[%s491 + $0x3c] sm:$0x3] %vm2932, %v2897
      %2948 = vst.msk [vmem:[%s491 + $0x40] sm:$0xf] %vm2930, %v2898
      %2949 = vst.msk [vmem:[%s491 + $0x44] sm:$0x3] %vm2932, %v2899
      %2950 = vst.msk [vmem:[%s491 + $0x48] sm:$0xf] %vm2930, %v2900
      %2951 = vst.msk [vmem:[%s491 + $0x4c] sm:$0x3] %vm2932, %v2901
      %2952 = vst.msk [vmem:[%s491 + $0x50] sm:$0xf] %vm2930, %v2902
      %2953 = vst.msk [vmem:[%s491 + $0x54] sm:$0x3] %vm2932, %v2903
      %2954 = vst.msk [vmem:[%s491 + $0x58] sm:$0xf] %vm2930, %v2904
      %2955 = vst.msk [vmem:[%s491 + $0x5c] sm:$0x3] %vm2932, %v2905
      %v2956 = vsel %vm874, %v2698, 0.0
      %v2957 = vsel %vm874, %v2701, 0.0
      %v2958 = vadd.f32 %v2956, %v2957
      %v2959 = vsel %vm874, %v2706, 0.0
      %v2960 = vadd.f32 %v2958, %v2959
      %v2961 = vsel %vm874, %v2709, 0.0
      %v2962 = vadd.f32 %v2960, %v2961
      %v2963 = vsel %vm874, %v2714, 0.0
      %v2964 = vadd.f32 %v2962, %v2963
      %v2965 = vsel %vm874, %v2717, 0.0
      %v2966 = vadd.f32 %v2964, %v2965
      %v2967 = vsel %vm874, %v2722, 0.0
      %v2968 = vadd.f32 %v2966, %v2967
      %v2969 = vsel %vm874, %v2725, 0.0
      %v2970 = vadd.f32 %v2968, %v2969
      %v2971 = vsel %vm874, %v2730, 0.0
      %v2972 = vadd.f32 %v2970, %v2971
      %v2973 = vsel %vm874, %v2733, 0.0
      %v2974 = vadd.f32 %v2972, %v2973
      %v2975 = vsel %vm874, %v2738, 0.0
      %v2976 = vadd.f32 %v2974, %v2975
      %v2977 = vsel %vm874, %v2741, 0.0
      %v2978 = vadd.f32 %v2976, %v2977
      %v2979 = vsel %vm874, %v2746, 0.0
      %v2980 = vadd.f32 %v2978, %v2979
      %v2981 = vsel %vm874, %v2749, 0.0
      %v2982 = vadd.f32 %v2980, %v2981
      %v2983 = vsel %vm874, %v2754, 0.0
      %v2984 = vadd.f32 %v2982, %v2983
      %v2985 = vsel %vm874, %v2757, 0.0
      %v2986 = vadd.f32 %v2984, %v2985
      %v2987 = vsel %vm874, %v2762, 0.0
      %v2988 = vadd.f32 %v2986, %v2987
      %v2989 = vsel %vm874, %v2765, 0.0
      %v2990 = vadd.f32 %v2988, %v2989
      %v2991 = vrot.slane %v2990, 4
      %v2992 = vadd.f32 %v2990, %v2991
      %v2993 = vrot.slane %v2992, 2
      %v2994 = vadd.f32 %v2992, %v2993
      %v2995 = vrot.slane %v2994, 1
      %v2996 = vadd.f32 %v2994, %v2995
      %v2997 = vmul.f32 %v2698, %v2698
      %v2998 = vmul.f32 %v2701, %v2701
      %v2999 = vmul.f32 %v2706, %v2706
      %v3000 = vmul.f32 %v2709, %v2709
      %v3001 = vmul.f32 %v2714, %v2714
      %v3002 = vmul.f32 %v2717, %v2717
      %v3003 = vmul.f32 %v2722, %v2722
      %v3004 = vmul.f32 %v2725, %v2725
      %v3005 = vmul.f32 %v2730, %v2730
      %v3006 = vmul.f32 %v2733, %v2733
      %v3007 = vmul.f32 %v2738, %v2738
      %v3008 = vmul.f32 %v2741, %v2741
      %v3009 = vmul.f32 %v2746, %v2746
      %v3010 = vmul.f32 %v2749, %v2749
      %v3011 = vmul.f32 %v2754, %v2754
      %v3012 = vmul.f32 %v2757, %v2757
      %v3013 = vmul.f32 %v2762, %v2762
      %v3014 = vmul.f32 %v2765, %v2765
      %v3015 = vsel %vm874, %v2997, 0.0
      %v3016 = vsel %vm874, %v2998, 0.0
      %v3017 = vadd.f32 %v3015, %v3016
      %v3018 = vsel %vm874, %v2999, 0.0
      %v3019 = vadd.f32 %v3017, %v3018
      %v3020 = vsel %vm874, %v3000, 0.0
      %v3021 = vadd.f32 %v3019, %v3020
      %v3022 = vsel %vm874, %v3001, 0.0
      %v3023 = vadd.f32 %v3021, %v3022
      %v3024 = vsel %vm874, %v3002, 0.0
      %v3025 = vadd.f32 %v3023, %v3024
      %v3026 = vsel %vm874, %v3003, 0.0
      %v3027 = vadd.f32 %v3025, %v3026
      %v3028 = vsel %vm874, %v3004, 0.0
      %v3029 = vadd.f32 %v3027, %v3028
      %v3030 = vsel %vm874, %v3005, 0.0
      %v3031 = vadd.f32 %v3029, %v3030
      %v3032 = vsel %vm874, %v3006, 0.0
      %v3033 = vadd.f32 %v3031, %v3032
      %v3034 = vsel %vm874, %v3007, 0.0
      %v3035 = vadd.f32 %v3033, %v3034
      %v3036 = vsel %vm874, %v3008, 0.0
      %v3037 = vadd.f32 %v3035, %v3036
      %v3038 = vsel %vm874, %v3009, 0.0
      %v3039 = vadd.f32 %v3037, %v3038
      %v3040 = vsel %vm874, %v3010, 0.0
      %v3041 = vadd.f32 %v3039, %v3040
      %v3042 = vsel %vm874, %v3011, 0.0
      %v3043 = vadd.f32 %v3041, %v3042
      %v3044 = vsel %vm874, %v3012, 0.0
      %v3045 = vadd.f32 %v3043, %v3044
      %v3046 = vsel %vm874, %v3013, 0.0
      %v3047 = vadd.f32 %v3045, %v3046
      %v3048 = vsel %vm874, %v3014, 0.0
      %v3049 = vadd.f32 %v3047, %v3048
      %v3050 = vrot.slane %v3049, 4
      %v3051 = vadd.f32 %v3049, %v3050
      %v3052 = vrot.slane %v3051, 2
      %v3053 = vadd.f32 %v3051, %v3052
      %v3054 = vrot.slane %v3053, 1
      %v3055 = vadd.f32 %v3053, %v3054
      %vm3056 = vcmask 1040384
      %v3057 = vsel %vm3056, %v2996, %v3055
      %3058 = vst.msk [vmem:[%s502] sm:$0x3] %vm2932, %v3057
      %s3059 = smul.u32 12, %s26
      %p3060 = scmp.lt.s32.totalorder %s24, 1
      %s3061 = scalar_select %p3060, %s24, 1
      %p3062 = scmp.lt.s32.totalorder %s3059, 11
      %s3063 = scalar_select %p3062, %s3059, 11
      %p3064 = scmp.lt.s32.totalorder %s25, 0
      %s3065 = scalar_select %p3064, %s25, 0
      %s3066 = smul.addr %s3063, 2
      %s3067 = sadd.s32 %s3065, %s3066
      %s3068 = smul.addr %s3061, 24
      %s3069 = sadd.s32 %s3067, %s3068
      %s3070 = smul.addr %s3069, 4
      %s3071 = scalar_lea.vmem %s6, %s3070
      %p3072 = scmp.lt.s32.totalorder %s24, 1
      %s3073 = scalar_select %p3072, %s24, 1
      %p3074 = scmp.lt.s32.totalorder %s26, 0
      %s3075 = scalar_select %p3074, %s26, 0
      %p3076 = scmp.lt.s32.totalorder %s25, 0
      %s3077 = scalar_select %p3076, %s25, 0
      %s3078 = sadd.s32 %s3077, %s3075
      %s3079 = sadd.s32 %s3078, %s3073
      %s3080 = smul.addr %s3079, 2
      %s3081 = scalar_lea.vmem %s7, %s3080
      // Predicated region
      $region45: #{encoder_forward.4} parent=43 // pred_check
        %p3082 = pneg %p220
      $region46: #{encoder_forward.4} parent=43 // pred_check_branch
        %3084 = sbr.rel (%p3082) target = $region48
      $region47: #{encoder_forward.4} parent=43 // pred_region
        %s3085 = smul.u32 12, %s26
      $region48: #{encoder_forward.4} parent=43 // pred_fallthru
        _
      // Predicated region
      $region49: #{encoder_forward.4} parent=43 // pred_check
        %p3086 = pneg %p250
      $region50: #{encoder_forward.4} parent=43 // pred_check_branch
        %3088 = sbr.rel (%p3086) target = $region52
      $region51: #{encoder_forward.4} parent=43 // pred_region
        _
      $region52: #{encoder_forward.4} parent=43 // pred_fallthru
        _
    $region44: #{encoder_forward.4} parent=5 // pred_fallthru
      _
    %p3089 = scmp.le.s32.totalorder 2, %s14
    // Predicated region
    $region53: #{encoder_forward.4} parent=5 // pred_check
      %p3090 = pneg %p3089
    $region54: #{encoder_forward.4} parent=5 // pred_check_branch
      %3092 = sbr.rel (%p3090) target = $region56
    $region55: #{encoder_forward.4} parent=5 // pred_region
      %s3093 = ssub.s32 %s14, 2
      // Predicated region
      $region57: #{encoder_forward.4} parent=55 // pred_check
        %p3094 = pneg %p226
      $region58: #{encoder_forward.4} parent=55 // pred_check_branch
        %3096 = sbr.rel (%p3094) target = $region60
      $region59: #{encoder_forward.4} parent=55 // pred_region
        %s3097 = smul.u32 12, %s29
        %p3098 = scmp.lt.s32.totalorder %s27, 1
        %s3099 = scalar_select %p3098, %s27, 1
        %p3100 = scmp.lt.s32.totalorder %s3097, 11
        %s3101 = scalar_select %p3100, %s3097, 11
        %p3102 = scmp.lt.s32.totalorder %s28, 0
        %s3103 = scalar_select %p3102, %s28, 0
        %s3104 = smul.addr %s3101, 2
        %s3105 = sadd.s32 %s3103, %s3104
        %s3106 = smul.addr %s3099, 24
        %s3107 = sadd.s32 %s3105, %s3106
        %s3108 = smul.addr %s3107, 4
        %s3109 = scalar_lea.vmem %s6, %s3108
      $region60: #{encoder_forward.4} parent=55 // pred_fallthru
        _
      // Predicated region
      $region61: #{encoder_forward.4} parent=55 // pred_check
        %p3110 = pneg %p256
      $region62: #{encoder_forward.4} parent=55 // pred_check_branch
        %3112 = sbr.rel (%p3110) target = $region64
      $region63: #{encoder_forward.4} parent=55 // pred_region
        %p3113 = scmp.lt.s32.totalorder %s27, 1
        %s3114 = scalar_select %p3113, %s27, 1
        %p3115 = scmp.lt.s32.totalorder %s29, 0
        %s3116 = scalar_select %p3115, %s29, 0
        %p3117 = scmp.lt.s32.totalorder %s28, 0
        %s3118 = scalar_select %p3117, %s28, 0
        %s3119 = sadd.s32 %s3118, %s3116
        %s3120 = sadd.s32 %s3119, %s3114
        %s3121 = smul.addr %s3120, 2
        %s3122 = scalar_lea.vmem %s7, %s3121
      $region64: #{encoder_forward.4} parent=55 // pred_fallthru
        _
    $region56: #{encoder_forward.4} parent=5 // pred_fallthru
      _
  $region6: #{encoder_forward.4} parent=0 // loop_footer
    %s18 = sadd.s32 1, %s14
  $region7: #{encoder_forward.4} parent=0 // loop_footer_branch
    %13 = sbr.rel target = $region3
  $region8: #{encoder_forward.4} parent=0 // loop_exit
    _

// kernel: encoder_forward.3
$region0: #{encoder_forward.3}
  #allocation0 [shape = 'u32[]', space=smem, size = 0x4, offset = 0x4, fixed_abs, tag = 'smem constant byte address 0x4 - core index']
  #allocation1 [shape = 'u32[144,128]{1,0:T(1,128)}', space=vmem, size = 0x12000, scoped, tag = 'internal scratch']
  %s0 = inlined_call_operand.vmem [shape: bf16[2,16,16,4], index: 0, kind: input, shape index: {}, may-alias: {0,1,2}]
  %s1 = inlined_call_operand.vmem [shape: bf16[2,16,16,4], index: 1, kind: input, shape index: {}, may-alias: {0,1,2}]
  %s2 = inlined_call_operand.vmem [shape: bf16[2,16,16,4], index: 2, kind: input, shape index: {}, may-alias: {0,1,2}]
  %s3 = inlined_call_operand.vmem [shape: bf16[36,64], index: 3, kind: input, shape index: {}]
  %s4 = inlined_call_operand.vmem [shape: f32[1,4], index: 4, kind: input, shape index: {}]
  %s5 = inlined_call_operand.vmem [shape: f32[1,4], index: 5, kind: input, shape index: {}]
  %s6 = inlined_call_operand.vmem [shape: bf16[2,14,14,64], index: 6, kind: output, shape index: {0}]
  %s7 = inlined_call_operand.vmem [shape: f32[2,1,2,64], index: 7, kind: output, shape index: {1}]
  %8 = xla_tuple %s6, %s7
  %s9 = sld [smem:[#allocation0]]
  $region65: #{encoder_forward.3} parent=0
    _
  %s11 = ssub.s32 1, %s9
  %s12 = scalar_select 0, %s11, %s9
  loop: start=0, step=1, limit=4
  $region2: #{encoder_forward.3} parent=0 // loop_pre_header
    _
  $region3: #{encoder_forward.3} parent=0 // loop_header
    %s14 = sphi 0, %s18
    %p15 = scmp.ge.s32.totalorder %s14, 4
    %s21 = sphi 0, %s40
    %s22 = sphi 0, %s36
    %s23 = sphi 0, %s32
    %s24 = sphi 0, %s21
    %s25 = sphi 0, %s22
    %s26 = sphi 0, %s23
    %s27 = sphi 0, %s24
    %s28 = sphi 0, %s25
    %s29 = sphi 0, %s26
    %s45 = sphi 0, %s47
    %s48 = sphi 0, %s45
    %s49 = sphi 0, %s48
    %s65 = sphi 0, %s49
    %s77 = sphi 0, %s79
    %s80 = sphi 0, %s77
    %s81 = sphi 0, %s80
    %s97 = sphi 0, %s81
    %s109 = sphi 0, %s111
    %s112 = sphi 0, %s109
    %s113 = sphi 0, %s112
    %s129 = sphi 0, %s113
    %s135 = sphi 0, %s137
    %s138 = sphi 0, %s135
    %s139 = sphi 0, %s138
    %s155 = sphi 0, %s139
    %s159 = sphi 0, %s159
    %s161 = sphi 0, %s159
    %s162 = sphi 0, %s161
    %s176 = sphi 0, %s162
    %s180 = sphi 0, %s180
    %s182 = sphi 0, %s180
    %s183 = sphi 0, %s182
    %s197 = sphi 0, %s183
    %s207 = sphi 0, %s209
    %s210 = sphi 0, %s207
    %s211 = sphi 0, %s210
    %s227 = sphi 0, %s211
    %s237 = sphi 0, %s239
    %s240 = sphi 0, %s237
    %s241 = sphi 0, %s240
    %s257 = sphi 0, %s241
  $region4: #{encoder_forward.3} parent=0 // loop_header_branch
    %17 = sbr.rel (%p15) target = $region8
  $region5: #{encoder_forward.3} parent=0 // loop_body
    %s19 = ssub.s32 %s14, 1
    %s20 = ssub.s32 %s14, 2
    %s30 = sadd.s32 1, %s23
    %p31 = scmp.ge.s32.totalorder %s30, 1
    %s32 = scalar_select %p31, 0, %s30
    %s33 = sadd.s32 1, %s22
    %s34 = scalar_select %p31, %s33, %s22
    %p35 = scmp.ge.s32.totalorder %s34, 1
    %s36 = scalar_select %p35, 0, %s34
    %s37 = sadd.s32 1, %s21
    %s38 = scalar_select %p35, %s37, %s21
    %p39 = scmp.ge.s32.totalorder %s38, 2
    %s40 = scalar_select %p39, 0, %s38
    %s41 = ssub.s32 %s21, %s40
    %s42 = ssub.s32 %s23, %s32
    %s43 = sor.u32 %s41, %s42
    %p44 = scmp.eq.s32.totalorder %s43, 0
    %s46 = sadd.s32 %s45, 1
    %s47 = scalar_select %p44, %s45, %s46
    %p50 = pneg %p44
    %p51 = scmp.eq.s32.totalorder %s14, 1
    %p52 = por %p50, %p51
    %p53 = scmp.ne.s32.totalorder %s45, %s48
    %p54 = scmp.eq.s32.totalorder %s14, 0
    %p55 = por %p53, %p54
    %p56 = scmp.ne.s32.totalorder %s45, %s48
    %p57 = scmp.eq.s32.totalorder %s19, 1
    %p58 = por %p56, %p57
    %p59 = scmp.ne.s32.totalorder %s48, %s49
    %p60 = scmp.eq.s32.totalorder %s19, 0
    %p61 = por %p59, %p60
    %p62 = scmp.ne.s32.totalorder %s48, %s49
    %p63 = scmp.eq.s32.totalorder %s20, 1
    %p64 = por %p62, %p63
    %p66 = scmp.ne.s32.totalorder %s49, %s65
    %p67 = scmp.eq.s32.totalorder %s20, 0
    %p68 = por %p66, %p67
    %s69 = smul.u32 %s23, 14
    %s70 = sadd.s32 %s69, 14
    %s71 = smul.u32 %s32, 14
    %s72 = sadd.s32 %s71, 14
    %s73 = ssub.s32 %s21, %s40
    %s74 = ssub.s32 %s70, %s72
    %s75 = sor.u32 %s73, %s74
    %p76 = scmp.eq.s32.totalorder %s75, 0
    %s78 = sadd.s32 %s77, 1
    %s79 = scalar_select %p76, %s77, %s78
    %p82 = pneg %p76
    %p83 = scmp.eq.s32.totalorder %s14, 1
    %p84 = por %p82, %p83
    %p85 = scmp.ne.s32.totalorder %s77, %s80
    %p86 = scmp.eq.s32.totalorder %s14, 0
    %p87 = por %p85, %p86
    %p88 = scmp.ne.s32.totalorder %s77, %s80
    %p89 = scmp.eq.s32.totalorder %s19, 1
    %p90 = por %p88, %p89
    %p91 = scmp.ne.s32.totalorder %s80, %s81
    %p92 = scmp.eq.s32.totalorder %s19, 0
    %p93 = por %p91, %p92
    %p94 = scmp.ne.s32.totalorder %s80, %s81
    %p95 = scmp.eq.s32.totalorder %s20, 1
    %p96 = por %p94, %p95
    %p98 = scmp.ne.s32.totalorder %s81, %s97
    %p99 = scmp.eq.s32.totalorder %s20, 0
    %p100 = por %p98, %p99
    %s101 = smul.u32 %s23, 14
    %s102 = sadd.s32 %s101, 15
    %s103 = smul.u32 %s32, 14
    %s104 = sadd.s32 %s103, 15
    %s105 = ssub.s32 %s21, %s40
    %s106 = ssub.s32 %s102, %s104
    %s107 = sor.u32 %s105, %s106
    %p108 = scmp.eq.s32.totalorder %s107, 0
    %s110 = sadd.s32 %s109, 1
    %s111 = scalar_select %p108, %s109, %s110
    %p114 = pneg %p108
    %p115 = scmp.eq.s32.totalorder %s14, 1
    %p116 = por %p114, %p115
    %p117 = scmp.ne.s32.totalorder %s109, %s112
    %p118 = scmp.eq.s32.totalorder %s14, 0
    %p119 = por %p117, %p118
    %p120 = scmp.ne.s32.totalorder %s109, %s112
    %p121 = scmp.eq.s32.totalorder %s19, 1
    %p122 = por %p120, %p121
    %p123 = scmp.ne.s32.totalorder %s112, %s113
    %p124 = scmp.eq.s32.totalorder %s19, 0
    %p125 = por %p123, %p124
    %p126 = scmp.ne.s32.totalorder %s112, %s113
    %p127 = scmp.eq.s32.totalorder %s20, 1
    %p128 = por %p126, %p127
    %p130 = scmp.ne.s32.totalorder %s113, %s129
    %p131 = scmp.eq.s32.totalorder %s20, 0
    %p132 = por %p130, %p131
    %s133 = ssub.s32 %s22, %s36
    %p134 = scmp.eq.s32.totalorder %s133, 0
    %s136 = sadd.s32 %s135, 1
    %s137 = scalar_select %p134, %s135, %s136
    %p140 = pneg %p134
    %p141 = scmp.eq.s32.totalorder %s14, 1
    %p142 = por %p140, %p141
    %p143 = scmp.ne.s32.totalorder %s135, %s138
    %p144 = scmp.eq.s32.totalorder %s14, 0
    %p145 = por %p143, %p144
    %p146 = scmp.ne.s32.totalorder %s135, %s138
    %p147 = scmp.eq.s32.totalorder %s19, 1
    %p148 = por %p146, %p147
    %p149 = scmp.ne.s32.totalorder %s138, %s139
    %p150 = scmp.eq.s32.totalorder %s19, 0
    %p151 = por %p149, %p150
    %p152 = scmp.ne.s32.totalorder %s138, %s139
    %p153 = scmp.eq.s32.totalorder %s20, 1
    %p154 = por %p152, %p153
    %p156 = scmp.ne.s32.totalorder %s139, %s155
    %p157 = scmp.eq.s32.totalorder %s20, 0
    %p158 = por %p156, %p157
    %s160 = sadd.s32 %s159, 1
    %p163 = scmp.eq.s32.totalorder %s14, 1
    %p164 = scmp.ne.s32.totalorder %s159, %s161
    %p165 = scmp.eq.s32.totalorder %s14, 0
    %p166 = por %p164, %p165
    %p167 = scmp.ne.s32.totalorder %s159, %s161
    %p168 = scmp.eq.s32.totalorder %s19, 1
    %p169 = por %p167, %p168
    %p170 = scmp.ne.s32.totalorder %s161, %s162
    %p171 = scmp.eq.s32.totalorder %s19, 0
    %p172 = por %p170, %p171
    %p173 = scmp.ne.s32.totalorder %s161, %s162
    %p174 = scmp.eq.s32.totalorder %s20, 1
    %p175 = por %p173, %p174
    %p177 = scmp.ne.s32.totalorder %s162, %s176
    %p178 = scmp.eq.s32.totalorder %s20, 0
    %p179 = por %p177, %p178
    %s181 = sadd.s32 %s180, 1
    %p184 = scmp.eq.s32.totalorder %s14, 1
    %p185 = scmp.ne.s32.totalorder %s180, %s182
    %p186 = scmp.eq.s32.totalorder %s14, 0
    %p187 = por %p185, %p186
    %p188 = scmp.ne.s32.totalorder %s180, %s182
    %p189 = scmp.eq.s32.totalorder %s19, 1
    %p190 = por %p188, %p189
    %p191 = scmp.ne.s32.totalorder %s182, %s183
    %p192 = scmp.eq.s32.totalorder %s19, 0
    %p193 = por %p191, %p192
    %p194 = scmp.ne.s32.totalorder %s182, %s183
    %p195 = scmp.eq.s32.totalorder %s20, 1
    %p196 = por %p194, %p195
    %p198 = scmp.ne.s32.totalorder %s183, %s197
    %p199 = scmp.eq.s32.totalorder %s20, 0
    %p200 = por %p198, %p199
    %s201 = ssub.s32 %s21, %s40
    %s202 = ssub.s32 %s23, %s32
    %s203 = sor.u32 %s201, %s202
    %s204 = ssub.s32 %s22, %s36
    %s205 = sor.u32 %s203, %s204
    %p206 = scmp.eq.s32.totalorder %s205, 0
    %s208 = sadd.s32 %s207, 1
    %s209 = scalar_select %p206, %s207, %s208
    %p212 = pneg %p206
    %p213 = scmp.eq.s32.totalorder %s14, 1
    %p214 = por %p212, %p213
    %p215 = scmp.ne.s32.totalorder %s207, %s210
    %p216 = scmp.eq.s32.totalorder %s14, 0
    %p217 = por %p215, %p216
    %p218 = scmp.ne.s32.totalorder %s207, %s210
    %p219 = scmp.eq.s32.totalorder %s19, 1
    %p220 = por %p218, %p219
    %p221 = scmp.ne.s32.totalorder %s210, %s211
    %p222 = scmp.eq.s32.totalorder %s19, 0
    %p223 = por %p221, %p222
    %p224 = scmp.ne.s32.totalorder %s210, %s211
    %p225 = scmp.eq.s32.totalorder %s20, 1
    %p226 = por %p224, %p225
    %p228 = scmp.ne.s32.totalorder %s211, %s227
    %p229 = scmp.eq.s32.totalorder %s20, 0
    %p230 = por %p228, %p229
    %s231 = ssub.s32 %s21, %s40
    %s232 = ssub.s32 %s23, %s32
    %s233 = sor.u32 %s231, %s232
    %s234 = ssub.s32 %s22, %s36
    %s235 = sor.u32 %s233, %s234
    %p236 = scmp.eq.s32.totalorder %s235, 0
    %s238 = sadd.s32 %s237, 1
    %s239 = scalar_select %p236, %s237, %s238
    %p242 = pneg %p236
    %p243 = scmp.eq.s32.totalorder %s14, 1
    %p244 = por %p242, %p243
    %p245 = scmp.ne.s32.totalorder %s237, %s240
    %p246 = scmp.eq.s32.totalorder %s14, 0
    %p247 = por %p245, %p246
    %p248 = scmp.ne.s32.totalorder %s237, %s240
    %p249 = scmp.eq.s32.totalorder %s19, 1
    %p250 = por %p248, %p249
    %p251 = scmp.ne.s32.totalorder %s240, %s241
    %p252 = scmp.eq.s32.totalorder %s19, 0
    %p253 = por %p251, %p252
    %p254 = scmp.ne.s32.totalorder %s240, %s241
    %p255 = scmp.eq.s32.totalorder %s20, 1
    %p256 = por %p254, %p255
    %p258 = scmp.ne.s32.totalorder %s241, %s257
    %p259 = scmp.eq.s32.totalorder %s20, 0
    %p260 = por %p258, %p259
    %p261 = scmp.le.s32.totalorder 1, %s14
    %p262 = scmp.lt.s32.totalorder %s14, 3
    %p263 = pnand %p261, %p262
    %p264 = pneg %p263
    // Predicated region
    $region9: #{encoder_forward.3} parent=5 // pred_check
      _
    $region10: #{encoder_forward.3} parent=5 // pred_check_branch
      %266 = sbr.rel (%p263) target = $region12
    $region11: #{encoder_forward.3} parent=5 // pred_region
      %s267 = ssub.s32 %s14, 1
      // Predicated region
      $region13: #{encoder_forward.3} parent=11 // pred_check
        %p268 = pneg %p151
      $region14: #{encoder_forward.3} parent=11 // pred_check_branch
        %270 = sbr.rel (%p268) target = $region16
      $region15: #{encoder_forward.3} parent=11 // pred_region
        %p271 = scmp.lt.s32.totalorder %s25, 0
        %s272 = scalar_select %p271, %s25, 0
        %s273 = smul.addr %s272, 4
        %s274 = scalar_lea.vmem %s3, %s273
      $region16: #{encoder_forward.3} parent=11 // pred_fallthru
        _
      // Predicated region
      $region17: #{encoder_forward.3} parent=11 // pred_check
        %p275 = pneg %p172
      $region18: #{encoder_forward.3} parent=11 // pred_check_branch
        %277 = sbr.rel (%p275) target = $region20
      $region19: #{encoder_forward.3} parent=11 // pred_region
        _
      $region20: #{encoder_forward.3} parent=11 // pred_fallthru
        _
      // Predicated region
      $region21: #{encoder_forward.3} parent=11 // pred_check
        %p278 = pneg %p193
      $region22: #{encoder_forward.3} parent=11 // pred_check_branch
        %280 = sbr.rel (%p278) target = $region24
      $region23: #{encoder_forward.3} parent=11 // pred_region
        _
      $region24: #{encoder_forward.3} parent=11 // pred_fallthru
        _
    $region12: #{encoder_forward.3} parent=5 // pred_fallthru
      _
    %p281 = scmp.lt.s32.totalorder %s14, 2
    // Predicated region
    $region25: #{encoder_forward.3} parent=5 // pred_check
      %p282 = pneg %p281
    $region26: #{encoder_forward.3} parent=5 // pred_check_branch
      %284 = sbr.rel (%p282) target = $region28
    $region27: #{encoder_forward.3} parent=5 // pred_region
      // Predicated region
      $region29: #{encoder_forward.3} parent=27 // pred_check
        %p285 = pneg %p55
      $region30: #{encoder_forward.3} parent=27 // pred_check_branch
        %287 = sbr.rel (%p285) target = $region32
      $region31: #{encoder_forward.3} parent=27 // pred_region
        %s288 = smul.u32 14, %s23
        %s289 = ssub.s32 16, %s288
        %p290 = scmp.lt.s32.totalorder %s289, 14
        %s291 = scalar_select %p290, %s289, 14
        %s292 = smul.u32 64, %s291
        %s293 = smul.u32 %s292, 2
        %p294 = scmp.lt.s32.totalorder %s21, 1
        %s295 = scalar_select %p294, %s21, 1
        %p296 = scmp.lt.s32.totalorder %s288, 15
        %s297 = scalar_select %p296, %s288, 15
        %s298 = smul.addr %s297, 2
        %s299 = smul.addr %s295, 32
        %s300 = sadd.s32 %s298, %s299
        %s301 = smul.addr %s300, 4
        %s302 = scalar_lea.vmem %s0, %s301
        %s303 = smul.u32 14, %s23
        %s304 = ssub.s32 16, %s303
        %p305 = scmp.lt.s32.totalorder %s304, 14
        %s306 = scalar_select %p305, %s304, 14
        %s307 = smul.u32 64, %s306
        %s308 = smul.u32 %s307, 2
      $region32: #{encoder_forward.3} parent=27 // pred_fallthru
        _
      // Predicated region
      $region33: #{encoder_forward.3} parent=27 // pred_check
        %p309 = pneg %p87
      $region34: #{encoder_forward.3} parent=27 // pred_check_branch
        %311 = sbr.rel (%p309) target = $region36
      $region35: #{encoder_forward.3} parent=27 // pred_region
        %s312 = smul.u32 %s23, 14
        %s313 = sadd.s32 %s312, 14
        %p314 = scmp.lt.s32.totalorder %s21, 1
        %s315 = scalar_select %p314, %s21, 1
        %p316 = scmp.lt.s32.totalorder %s313, 15
        %s317 = scalar_select %p316, %s313, 15
        %s318 = smul.addr %s317, 2
        %s319 = smul.addr %s315, 32
        %s320 = sadd.s32 %s318, %s319
        %s321 = smul.addr %s320, 4
        %s322 = scalar_lea.vmem %s1, %s321
        %s323 = smul.u32 %s23, 14
        %s324 = sadd.s32 %s323, 14
      $region36: #{encoder_forward.3} parent=27 // pred_fallthru
        _
      // Predicated region
      $region37: #{encoder_forward.3} parent=27 // pred_check
        %p325 = pneg %p119
      $region38: #{encoder_forward.3} parent=27 // pred_check_branch
        %327 = sbr.rel (%p325) target = $region40
      $region39: #{encoder_forward.3} parent=27 // pred_region
        %s328 = smul.u32 %s23, 14
        %s329 = sadd.s32 %s328, 15
        %p330 = scmp.lt.s32.totalorder %s21, 1
        %s331 = scalar_select %p330, %s21, 1
        %p332 = scmp.lt.s32.totalorder %s329, 15
        %s333 = scalar_select %p332, %s329, 15
        %s334 = smul.addr %s333, 2
        %s335 = smul.addr %s331, 32
        %s336 = sadd.s32 %s334, %s335
        %s337 = smul.addr %s336, 4
        %s338 = scalar_lea.vmem %s2, %s337
        %s339 = smul.u32 %s23, 14
        %s340 = sadd.s32 %s339, 15
      $region40: #{encoder_forward.3} parent=27 // pred_fallthru
        _
    $region28: #{encoder_forward.3} parent=5 // pred_fallthru
      _
    %p341 = scmp.le.s32.totalorder 1, %s14
    %p342 = scmp.lt.s32.totalorder %s14, 3
    %p343 = pnand %p341, %p342
    %p344 = pneg %p343
    // Predicated region
    $region41: #{encoder_forward.3} parent=5 // pred_check
      _
    $region42: #{encoder_forward.3} parent=5 // pred_check_branch
      %346 = sbr.rel (%p343) target = $region44
    $region43: #{encoder_forward.3} parent=5 // pred_region
      %s347 = ssub.s32 %s14, 1
      %s348 = smul.u32 14, %s26
      %s349 = ssub.s32 16, %s348
      %p350 = scmp.lt.s32.totalorder %s349, 14
      %s351 = scalar_select %p350, %s349, 14
      %s352 = smul.u32 64, %s351
      %s353 = smul.u32 %s352, 2
      %p354 = scmp.lt.s32.totalorder %s24, 1
      %s355 = scalar_select %p354, %s24, 1
      %p356 = scmp.lt.s32.totalorder %s348, 15
      %s357 = scalar_select %p356, %s348, 15
      %s358 = smul.addr %s357, 2
      %s359 = smul.addr %s355, 32
      %s360 = sadd.s32 %s358, %s359
      %s361 = smul.addr %s360, 4
      %s362 = scalar_lea.vmem %s0, %s361
      %p363 = pneg %p61
      %p364 = pneg %p58
      %s365 = smul.u32 %s26, 14
      %s366 = sadd.s32 %s365, 14
      %p367 = scmp.lt.s32.totalorder %s24, 1
      %s368 = scalar_select %p367, %s24, 1
      %p369 = scmp.lt.s32.totalorder %s366, 15
      %s370 = scalar_select %p369, %s366, 15
      %s371 = smul.addr %s370, 2
      %s372 = smul.addr %s368, 32
      %s373 = sadd.s32 %s371, %s372
      %s374 = smul.addr %s373, 4
      %s375 = scalar_lea.vmem %s1, %s374
      %p376 = pneg %p93
      %p377 = pneg %p90
      %s378 = smul.u32 %s26, 14
      %s379 = sadd.s32 %s378, 15
      %p380 = scmp.lt.s32.totalorder %s24, 1
      %s381 = scalar_select %p380, %s24, 1
      %p382 = scmp.lt.s32.totalorder %s379, 15
      %s383 = scalar_select %p382, %s379, 15
      %s384 = smul.addr %s383, 2
      %s385 = smul.addr %s381, 32
      %s386 = sadd.s32 %s384, %s385
      %s387 = smul.addr %s386, 4
      %s388 = scalar_lea.vmem %s2, %s387
      %p389 = pneg %p125
      %p390 = pneg %p122
      %p391 = scmp.lt.s32.totalorder %s25, 0
      %s392 = scalar_select %p391, %s25, 0
      %s393 = smul.addr %s392, 4
      %s394 = scalar_lea.vmem %s3, %s393
      %p395 = pneg %p151
      %p396 = pneg %p148
      %p397 = pneg %p172
      %p398 = pneg %p169
      %p399 = pneg %p193
      %p400 = pneg %p190
      %p401 = pneg %p223
      %p402 = pneg %p220
      %s403 = smul.u32 14, %s26
      %p404 = scmp.lt.s32.totalorder %s24, 1
      %s405 = scalar_select %p404, %s24, 1
      %p406 = scmp.lt.s32.totalorder %s403, 13
      %s407 = scalar_select %p406, %s403, 13
      %p408 = scmp.lt.s32.totalorder %s25, 0
      %s409 = scalar_select %p408, %s25, 0
      %s410 = smul.addr %s407, 2
      %s411 = sadd.s32 %s409, %s410
      %s412 = smul.addr %s405, 28
      %s413 = sadd.s32 %s411, %s412
      %s414 = smul.addr %s413, 4
      %s415 = scalar_lea.vmem %s6, %s414
      %p416 = pneg %p253
      %p417 = pneg %p250
      %p418 = scmp.lt.s32.totalorder %s24, 1
      %s419 = scalar_select %p418, %s24, 1
      %p420 = scmp.lt.s32.totalorder %s26, 0
      %s421 = scalar_select %p420, %s26, 0
      %p422 = scmp.lt.s32.totalorder %s25, 0
      %s423 = scalar_select %p422, %s25, 0
      %s424 = sadd.s32 %s423, %s421
      %s425 = sadd.s32 %s424, %s419
      %s426 = smul.addr %s425, 2
      %s427 = scalar_lea.vmem %s7, %s426
      %s428 = smul.u32 14, %s26
      %s429 = ssub.s32 16, %s428
      %p430 = scmp.lt.s32.totalorder %s429, 14
      %s431 = scalar_select %p430, %s429, 14
      %s432 = smul.u32 64, %s431
      %s433 = smul.u32 %s432, 2
      %p434 = scmp.lt.s32.totalorder %s24, 1
      %s435 = scalar_select %p434, %s24, 1
      %p436 = scmp.lt.s32.totalorder %s428, 15
      %s437 = scalar_select %p436, %s428, 15
      %s438 = smul.addr %s437, 2
      %s439 = smul.addr %s435, 32
      %s440 = sadd.s32 %s438, %s439
      %s441 = smul.addr %s440, 4
      %s442 = scalar_lea.vmem %s0, %s441
      %s443 = smul.u32 14, %s26
      %s444 = ssub.s32 16, %s443
      %p445 = scmp.lt.s32.totalorder %s444, 14
      %s446 = scalar_select %p445, %s444, 14
      %s447 = smul.u32 64, %s446
      %s448 = smul.u32 %s447, 2
      %s449 = smul.u32 %s26, 14
      %s450 = sadd.s32 %s449, 14
      %p451 = scmp.lt.s32.totalorder %s24, 1
      %s452 = scalar_select %p451, %s24, 1
      %p453 = scmp.lt.s32.totalorder %s450, 15
      %s454 = scalar_select %p453, %s450, 15
      %s455 = smul.addr %s454, 2
      %s456 = smul.addr %s452, 32
      %s457 = sadd.s32 %s455, %s456
      %s458 = smul.addr %s457, 4
      %s459 = scalar_lea.vmem %s1, %s458
      %s460 = smul.u32 %s26, 14
      %s461 = sadd.s32 %s460, 14
      %s462 = smul.u32 %s26, 14
      %s463 = sadd.s32 %s462, 15
      %p464 = scmp.lt.s32.totalorder %s24, 1
      %s465 = scalar_select %p464, %s24, 1
      %p466 = scmp.lt.s32.totalorder %s463, 15
      %s467 = scalar_select %p466, %s463, 15
      %s468 = smul.addr %s467, 2
      %s469 = smul.addr %s465, 32
      %s470 = sadd.s32 %s468, %s469
      %s471 = smul.addr %s470, 4
      %s472 = scalar_lea.vmem %s2, %s471
      %s473 = smul.u32 %s26, 14
      %s474 = sadd.s32 %s473, 15
      %p475 = scmp.lt.s32.totalorder %s25, 0
      %s476 = scalar_select %p475, %s25, 0
      %s477 = smul.addr %s476, 4
      %s478 = scalar_lea.vmem %s3, %s477
      %s479 = smul.u32 14, %s26
      %p480 = scmp.lt.s32.totalorder %s24, 1
      %s481 = scalar_select %p480, %s24, 1
      %p482 = scmp.lt.s32.totalorder %s479, 13
      %s483 = scalar_select %p482, %s479, 13
      %p484 = scmp.lt.s32.totalorder %s25, 0
      %s485 = scalar_select %p484, %s25, 0
      %s486 = smul.addr %s483, 2
      %s487 = sadd.s32 %s485, %s486
      %s488 = smul.addr %s481, 28
      %s489 = sadd.s32 %s487, %s488
      %s490 = smul.addr %s489, 4
      %s491 = scalar_lea.vmem %s6, %s490
      %s492 = smul.u32 14, %s26
      %p493 = scmp.lt.s32.totalorder %s24, 1
      %s494 = scalar_select %p493, %s24, 1
      %p495 = scmp.lt.s32.totalorder %s26, 0
      %s496 = scalar_select %p495, %s26, 0
      %p497 = scmp.lt.s32.totalorder %s25, 0
      %s498 = scalar_select %p497, %s25, 0
      %s499 = sadd.s32 %s498, %s496
      %s500 = sadd.s32 %s499, %s494
      %s501 = smul.addr %s500, 2
      %s502 = scalar_lea.vmem %s7, %s501
      %v504 = vld [vmem:[%s442] sm:$0xf]
      %v505 = vld [vmem:[%s442 + $0x4] sm:$0xf]
      %v506 = vld [vmem:[%s442 + $0x8] sm:$0xf]
      %v507 = vld [vmem:[%s442 + $0xc] sm:$0xf]
      %v508 = vld [vmem:[%s442 + $0x10] sm:$0xf]
      %v509 = vld [vmem:[%s442 + $0x14] sm:$0xf]
      %v510 = vld [vmem:[%s442 + $0x18] sm:$0xf]
      %v511 = vld [vmem:[%s442 + $0x1c] sm:$0xf]
      %v512 = vld [vmem:[%s442 + $0x20] sm:$0xf]
      %v513 = vld [vmem:[%s442 + $0x24] sm:$0xf]
      %v514 = vld [vmem:[%s442 + $0x28] sm:$0xf]
      %v515 = vld [vmem:[%s442 + $0x2c] sm:$0xf]
      %v516 = vld [vmem:[%s442 + $0x30] sm:$0xf]
      %v517 = vld [vmem:[%s442 + $0x34] sm:$0xf]
      %v518 = vld [vmem:[%s442 + $0x38] sm:$0xf]
      %v519 = vld [vmem:[%s442 + $0x3c] sm:$0xf]
      %v520 = vld [vmem:[%s442 + $0x40] sm:$0xf]
      %v521 = vld [vmem:[%s442 + $0x44] sm:$0xf]
      %v522 = vld [vmem:[%s442 + $0x48] sm:$0xf]
      %v523 = vld [vmem:[%s442 + $0x4c] sm:$0xf]
      %v524 = vld [vmem:[%s442 + $0x50] sm:$0xf]
      %v525 = vld [vmem:[%s442 + $0x54] sm:$0xf]
      %v526 = vld [vmem:[%s442 + $0x58] sm:$0xf]
      %v527 = vld [vmem:[%s442 + $0x5c] sm:$0xf]
      %v528 = vld [vmem:[%s442 + $0x60] sm:$0xf]
      %v529 = vld [vmem:[%s442 + $0x64] sm:$0xf]
      %v530 = vld [vmem:[%s442 + $0x68] sm:$0xf]
      %v531 = vld [vmem:[%s442 + $0x6c] sm:$0xf]
      %v532 = vld [vmem:[%s459] sm:$0xf]
      %v533 = vld [vmem:[%s459 + $0x4] sm:$0xf]
      %v534 = vld [vmem:[%s472] sm:$0xf]
      %v535 = vld [vmem:[%s472 + $0x4] sm:$0xf]
      %v564 = vunpack.c.l.b16 %v504
      %v565 = vunpack.c.l.b16 %v505
      %v566 = vunpack.c.l.b16 %v506
      %v567 = vunpack.c.l.b16 %v507
      %v568 = vunpack.c.l.b16 %v508
      %v569 = vunpack.c.l.b16 %v509
      %v570 = vunpack.c.l.b16 %v510
      %v571 = vunpack.c.l.b16 %v511
      %v572 = vunpack.c.l.b16 %v512
      %v573 = vunpack.c.l.b16 %v513
      %v574 = vunpack.c.l.b16 %v514
      %v575 = vunpack.c.l.b16 %v515
      %v576 = vunpack.c.l.b16 %v516
      %v577 = vunpack.c.l.b16 %v517
      %v578 = vunpack.c.l.b16 %v518
      %v579 = vunpack.c.l.b16 %v519
      %v580 = vunpack.c.l.b16 %v520
      %v581 = vunpack.c.l.b16 %v521
      %v582 = vunpack.c.l.b16 %v522
      %v583 = vunpack.c.l.b16 %v523
      %v584 = vunpack.c.l.b16 %v524
      %v585 = vunpack.c.l.b16 %v525
      %v586 = vunpack.c.l.b16 %v526
      %v587 = vunpack.c.l.b16 %v527
      %v588 = vunpack.c.l.b16 %v528
      %v589 = vunpack.c.l.b16 %v529
      %v590 = vunpack.c.l.b16 %v530
      %v591 = vunpack.c.l.b16 %v531
      %v592 = vpack.c.b16 %v565, %v564
      %v593 = vpack.c.b16 %v567, %v566
      %v594 = vpack.c.b16 %v569, %v568
      %v595 = vpack.c.b16 %v571, %v570
      %v596 = vpack.c.b16 %v573, %v572
      %v597 = vpack.c.b16 %v575, %v574
      %v598 = vpack.c.b16 %v577, %v576
      %v599 = vpack.c.b16 %v579, %v578
      %v600 = vpack.c.b16 %v581, %v580
      %v601 = vpack.c.b16 %v583, %v582
      %v602 = vpack.c.b16 %v585, %v584
      %v603 = vpack.c.b16 %v587, %v586
      %v604 = vpack.c.b16 %v589, %v588
      %v605 = vpack.c.b16 %v591, %v590
      %v607 = vshrl.u32 %v592, 16
      %v609 = vshll.u32 %v592, 16
      %v611 = vrot.slane %v609, 1
      %v612 = vor.u32 %v607, %v611
      %v614 = vshrl.u32 %v593, 16
      %v616 = vshll.u32 %v593, 16
      %v618 = vrot.slane %v616, 1
      %v619 = vor.u32 %v614, %v618
      %v621 = vshrl.u32 %v594, 16
      %v623 = vshll.u32 %v594, 16
      %v625 = vrot.slane %v623, 1
      %v626 = vor.u32 %v621, %v625
      %v628 = vshrl.u32 %v595, 16
      %v630 = vshll.u32 %v595, 16
      %v632 = vrot.slane %v630, 1
      %v633 = vor.u32 %v628, %v632
      %v635 = vshrl.u32 %v596, 16
      %v637 = vshll.u32 %v596, 16
      %v639 = vrot.slane %v637, 1
      %v640 = vor.u32 %v635, %v639
      %v642 = vshrl.u32 %v597, 16
      %v644 = vshll.u32 %v597, 16
      %v646 = vrot.slane %v644, 1
      %v647 = vor.u32 %v642, %v646
      %v649 = vshrl.u32 %v598, 16
      %v651 = vshll.u32 %v598, 16
      %v653 = vrot.slane %v651, 1
      %v654 = vor.u32 %v649, %v653
      %v656 = vshrl.u32 %v599, 16
      %v658 = vshll.u32 %v599, 16
      %v660 = vrot.slane %v658, 1
      %v661 = vor.u32 %v656, %v660
      %v663 = vshrl.u32 %v600, 16
      %v665 = vshll.u32 %v600, 16
      %v667 = vrot.slane %v665, 1
      %v668 = vor.u32 %v663, %v667
      %v670 = vshrl.u32 %v601, 16
      %v672 = vshll.u32 %v601, 16
      %v674 = vrot.slane %v672, 1
      %v675 = vor.u32 %v670, %v674
      %v677 = vshrl.u32 %v602, 16
      %v679 = vshll.u32 %v602, 16
      %v681 = vrot.slane %v679, 1
      %v682 = vor.u32 %v677, %v681
      %v684 = vshrl.u32 %v603, 16
      %v686 = vshll.u32 %v603, 16
      %v688 = vrot.slane %v686, 1
      %v689 = vor.u32 %v684, %v688
      %v691 = vshrl.u32 %v604, 16
      %v693 = vshll.u32 %v604, 16
      %v695 = vrot.slane %v693, 1
      %v696 = vor.u32 %v691, %v695
      %v698 = vshrl.u32 %v605, 16
      %v700 = vshll.u32 %v605, 16
      %v702 = vrot.slane %v700, 1
      %v703 = vor.u32 %v698, %v702
      %704 = vrot.lane.b32.xlu0 %v612, 4
      %v705 = vpop.permute.xlu0 %704
      %706 = vrot.lane.b32.xlu0 %v619, 4
      %v707 = vpop.permute.xlu0 %706
      %708 = vrot.lane.b32.xlu0 %v626, 4
      %v709 = vpop.permute.xlu0 %708
      %710 = vrot.lane.b32.xlu0 %v633, 4
      %v711 = vpop.permute.xlu0 %710
      %712 = vrot.lane.b32.xlu0 %v640, 4
      %v713 = vpop.permute.xlu0 %712
      %714 = vrot.lane.b32.xlu0 %v647, 4
      %v715 = vpop.permute.xlu0 %714
      %716 = vrot.lane.b32.xlu0 %v654, 4
      %v717 = vpop.permute.xlu0 %716
      %718 = vrot.lane.b32.xlu0 %v661, 4
      %v719 = vpop.permute.xlu0 %718
      %720 = vrot.lane.b32.xlu0 %v668, 4
      %v721 = vpop.permute.xlu0 %720
      %722 = vrot.lane.b32.xlu0 %v675, 4
      %v723 = vpop.permute.xlu0 %722
      %724 = vrot.lane.b32.xlu0 %v682, 4
      %v725 = vpop.permute.xlu0 %724
      %726 = vrot.lane.b32.xlu0 %v689, 4
      %v727 = vpop.permute.xlu0 %726
      %728 = vrot.lane.b32.xlu0 %v696, 4
      %v729 = vpop.permute.xlu0 %728
      %730 = vrot.lane.b32.xlu0 %v703, 4
      %v731 = vpop.permute.xlu0 %730
      %v732 = vrot.slane %v592, 1
      %v733 = vrot.slane %v593, 1
      %v734 = vrot.slane %v594, 1
      %v735 = vrot.slane %v595, 1
      %v736 = vrot.slane %v596, 1
      %v737 = vrot.slane %v597, 1
      %v738 = vrot.slane %v598, 1
      %v739 = vrot.slane %v599, 1
      %v740 = vrot.slane %v600, 1
      %v741 = vrot.slane %v601, 1
      %v742 = vrot.slane %v602, 1
      %v743 = vrot.slane %v603, 1
      %v744 = vrot.slane %v604, 1
      %v745 = vrot.slane %v605, 1
      %746 = vrot.lane.b32.xlu0 %v732, 8
      %v747 = vpop.permute.xlu0 %746
      %748 = vrot.lane.b32.xlu0 %v733, 8
      %v749 = vpop.permute.xlu0 %748
      %750 = vrot.lane.b32.xlu0 %v734, 8
      %v751 = vpop.permute.xlu0 %750
      %752 = vrot.lane.b32.xlu0 %v735, 8
      %v753 = vpop.permute.xlu0 %752
      %754 = vrot.lane.b32.xlu0 %v736, 8
      %v755 = vpop.permute.xlu0 %754
      %756 = vrot.lane.b32.xlu0 %v737, 8
      %v757 = vpop.permute.xlu0 %756
      %758 = vrot.lane.b32.xlu0 %v738, 8
      %v759 = vpop.permute.xlu0 %758
      %760 = vrot.lane.b32.xlu0 %v739, 8
      %v761 = vpop.permute.xlu0 %760
      %762 = vrot.lane.b32.xlu0 %v740, 8
      %v763 = vpop.permute.xlu0 %762
      %764 = vrot.lane.b32.xlu0 %v741, 8
      %v765 = vpop.permute.xlu0 %764
      %766 = vrot.lane.b32.xlu0 %v742, 8
      %v767 = vpop.permute.xlu0 %766
      %768 = vrot.lane.b32.xlu0 %v743, 8
      %v769 = vpop.permute.xlu0 %768
      %770 = vrot.lane.b32.xlu0 %v744, 8
      %v771 = vpop.permute.xlu0 %770
      %772 = vrot.lane.b32.xlu0 %v745, 8
      %v773 = vpop.permute.xlu0 %772
      %v776 = vunpack.c.l.b16 %v532
      %v777 = vunpack.c.l.b16 %v533
      %v778 = vpack.c.b16 %v777, %v776
      %779 = vrot.lane.b32.xlu0 %v593, 12
      %v780 = vpop.permute.xlu0 %779
      %781 = vrot.lane.b32.xlu0 %v594, 12
      %v782 = vpop.permute.xlu0 %781
      %783 = vrot.lane.b32.xlu0 %v595, 12
      %v784 = vpop.permute.xlu0 %783
      %785 = vrot.lane.b32.xlu0 %v596, 12
      %v786 = vpop.permute.xlu0 %785
      %787 = vrot.lane.b32.xlu0 %v597, 12
      %v788 = vpop.permute.xlu0 %787
      %789 = vrot.lane.b32.xlu0 %v598, 12
      %v790 = vpop.permute.xlu0 %789
      %791 = vrot.lane.b32.xlu0 %v599, 12
      %v792 = vpop.permute.xlu0 %791
      %793 = vrot.lane.b32.xlu0 %v600, 12
      %v794 = vpop.permute.xlu0 %793
      %795 = vrot.lane.b32.xlu0 %v601, 12
      %v796 = vpop.permute.xlu0 %795
      %797 = vrot.lane.b32.xlu0 %v602, 12
      %v798 = vpop.permute.xlu0 %797
      %799 = vrot.lane.b32.xlu0 %v603, 12
      %v800 = vpop.permute.xlu0 %799
      %801 = vrot.lane.b32.xlu0 %v604, 12
      %v802 = vpop.permute.xlu0 %801
      %803 = vrot.lane.b32.xlu0 %v605, 12
      %v804 = vpop.permute.xlu0 %803
      %805 = vrot.lane.b32.xlu0 %v778, 12
      %v806 = vpop.permute.xlu0 %805
      %v808 = vshrl.u32 %v778, 16
      %v810 = vshll.u32 %v778, 16
      %v812 = vrot.slane %v810, 1
      %v813 = vor.u32 %v808, %v812
      %814 = vrot.lane.b32.xlu0 %v619, 16
      %v815 = vpop.permute.xlu0 %814
      %816 = vrot.lane.b32.xlu0 %v626, 16
      %v817 = vpop.permute.xlu0 %816
      %818 = vrot.lane.b32.xlu0 %v633, 16
      %v819 = vpop.permute.xlu0 %818
      %820 = vrot.lane.b32.xlu0 %v640, 16
      %v821 = vpop.permute.xlu0 %820
      %822 = vrot.lane.b32.xlu0 %v647, 16
      %v823 = vpop.permute.xlu0 %822
      %824 = vrot.lane.b32.xlu0 %v654, 16
      %v825 = vpop.permute.xlu0 %824
      %826 = vrot.lane.b32.xlu0 %v661, 16
      %v827 = vpop.permute.xlu0 %826
      %828 = vrot.lane.b32.xlu0 %v668, 16
      %v829 = vpop.permute.xlu0 %828
      %830 = vrot.lane.b32.xlu0 %v675, 16
      %v831 = vpop.permute.xlu0 %830
      %832 = vrot.lane.b32.xlu0 %v682, 16
      %v833 = vpop.permute.xlu0 %832
      %834 = vrot.lane.b32.xlu0 %v689, 16
      %v835 = vpop.permute.xlu0 %834
      %836 = vrot.lane.b32.xlu0 %v696, 16
      %v837 = vpop.permute.xlu0 %836
      %838 = vrot.lane.b32.xlu0 %v703, 16
      %v839 = vpop.permute.xlu0 %838
      %840 = vrot.lane.b32.xlu0 %v813, 16
      %v841 = vpop.permute.xlu0 %840
      %v842 = vrot.slane %v778, 1
      %843 = vrot.lane.b32.xlu0 %v733, 20
      %v844 = vpop.permute.xlu0 %843
      %845 = vrot.lane.b32.xlu0 %v734, 20
      %v846 = vpop.permute.xlu0 %845
      %847 = vrot.lane.b32.xlu0 %v735, 20
      %v848 = vpop.permute.xlu0 %847
      %849 = vrot.lane.b32.xlu0 %v736, 20
      %v850 = vpop.permute.xlu0 %849
      %851 = vrot.lane.b32.xlu0 %v737, 20
      %v852 = vpop.permute.xlu0 %851
      %853 = vrot.lane.b32.xlu0 %v738, 20
      %v854 = vpop.permute.xlu0 %853
      %855 = vrot.lane.b32.xlu0 %v739, 20
      %v856 = vpop.permute.xlu0 %855
      %857 = vrot.lane.b32.xlu0 %v740, 20
      %v858 = vpop.permute.xlu0 %857
      %859 = vrot.lane.b32.xlu0 %v741, 20
      %v860 = vpop.permute.xlu0 %859
      %861 = vrot.lane.b32.xlu0 %v742, 20
      %v862 = vpop.permute.xlu0 %861
      %863 = vrot.lane.b32.xlu0 %v743, 20
      %v864 = vpop.permute.xlu0 %863
      %865 = vrot.lane.b32.xlu0 %v744, 20
      %v866 = vpop.permute.xlu0 %865
      %867 = vrot.lane.b32.xlu0 %v745, 20
      %v868 = vpop.permute.xlu0 %867
      %869 = vrot.lane.b32.xlu0 %v842, 20
      %v870 = vpop.permute.xlu0 %869
      %v873 = vunpack.c.l.b16 %v534
      %v874 = vunpack.c.l.b16 %v535
      %v875 = vpack.c.b16 %v874, %v873
      %876 = vrot.lane.b32.xlu0 %v594, 24
      %v877 = vpop.permute.xlu0 %876
      %878 = vrot.lane.b32.xlu0 %v595, 24
      %v879 = vpop.permute.xlu0 %878
      %880 = vrot.lane.b32.xlu0 %v596, 24
      %v881 = vpop.permute.xlu0 %880
      %882 = vrot.lane.b32.xlu0 %v597, 24
      %v883 = vpop.permute.xlu0 %882
      %884 = vrot.lane.b32.xlu0 %v598, 24
      %v885 = vpop.permute.xlu0 %884
      %886 = vrot.lane.b32.xlu0 %v599, 24
      %v887 = vpop.permute.xlu0 %886
      %888 = vrot.lane.b32.xlu0 %v600, 24
      %v889 = vpop.permute.xlu0 %888
      %890 = vrot.lane.b32.xlu0 %v601, 24
      %v891 = vpop.permute.xlu0 %890
      %892 = vrot.lane.b32.xlu0 %v602, 24
      %v893 = vpop.permute.xlu0 %892
      %894 = vrot.lane.b32.xlu0 %v603, 24
      %v895 = vpop.permute.xlu0 %894
      %896 = vrot.lane.b32.xlu0 %v604, 24
      %v897 = vpop.permute.xlu0 %896
      %898 = vrot.lane.b32.xlu0 %v605, 24
      %v899 = vpop.permute.xlu0 %898
      %900 = vrot.lane.b32.xlu0 %v778, 24
      %v901 = vpop.permute.xlu0 %900
      %902 = vrot.lane.b32.xlu0 %v875, 24
      %v903 = vpop.permute.xlu0 %902
      %v905 = vshrl.u32 %v875, 16
      %v907 = vshll.u32 %v875, 16
      %v909 = vrot.slane %v907, 1
      %v910 = vor.u32 %v905, %v909
      %911 = vrot.lane.b32.xlu0 %v626, 28
      %v912 = vpop.permute.xlu0 %911
      %913 = vrot.lane.b32.xlu0 %v633, 28
      %v914 = vpop.permute.xlu0 %913
      %915 = vrot.lane.b32.xlu0 %v640, 28
      %v916 = vpop.permute.xlu0 %915
      %917 = vrot.lane.b32.xlu0 %v647, 28
      %v918 = vpop.permute.xlu0 %917
      %919 = vrot.lane.b32.xlu0 %v654, 28
      %v920 = vpop.permute.xlu0 %919
      %921 = vrot.lane.b32.xlu0 %v661, 28
      %v922 = vpop.permute.xlu0 %921
      %923 = vrot.lane.b32.xlu0 %v668, 28
      %v924 = vpop.permute.xlu0 %923
      %925 = vrot.lane.b32.xlu0 %v675, 28
      %v926 = vpop.permute.xlu0 %925
      %927 = vrot.lane.b32.xlu0 %v682, 28
      %v928 = vpop.permute.xlu0 %927
      %929 = vrot.lane.b32.xlu0 %v689, 28
      %v930 = vpop.permute.xlu0 %929
      %931 = vrot.lane.b32.xlu0 %v696, 28
      %v932 = vpop.permute.xlu0 %931
      %933 = vrot.lane.b32.xlu0 %v703, 28
      %v934 = vpop.permute.xlu0 %933
      %935 = vrot.lane.b32.xlu0 %v813, 28
      %v936 = vpop.permute.xlu0 %935
      %937 = vrot.lane.b32.xlu0 %v910, 28
      %v938 = vpop.permute.xlu0 %937
      %v939 = vrot.slane %v875, 1
      %940 = vrot.lane.b32.xlu0 %v734, 32
      %v941 = vpop.permute.xlu0 %940
      %942 = vrot.lane.b32.xlu0 %v735, 32
      %v943 = vpop.permute.xlu0 %942
      %944 = vrot.lane.b32.xlu0 %v736, 32
      %v945 = vpop.permute.xlu0 %944
      %946 = vrot.lane.b32.xlu0 %v737, 32
      %v947 = vpop.permute.xlu0 %946
      %948 = vrot.lane.b32.xlu0 %v738, 32
      %v949 = vpop.permute.xlu0 %948
      %950 = vrot.lane.b32.xlu0 %v739, 32
      %v951 = vpop.permute.xlu0 %950
      %952 = vrot.lane.b32.xlu0 %v740, 32
      %v953 = vpop.permute.xlu0 %952
      %954 = vrot.lane.b32.xlu0 %v741, 32
      %v955 = vpop.permute.xlu0 %954
      %956 = vrot.lane.b32.xlu0 %v742, 32
      %v957 = vpop.permute.xlu0 %956
      %958 = vrot.lane.b32.xlu0 %v743, 32
      %v959 = vpop.permute.xlu0 %958
      %960 = vrot.lane.b32.xlu0 %v744, 32
      %v961 = vpop.permute.xlu0 %960
      %962 = vrot.lane.b32.xlu0 %v745, 32
      %v963 = vpop.permute.xlu0 %962
      %964 = vrot.lane.b32.xlu0 %v842, 32
      %v965 = vpop.permute.xlu0 %964
      %966 = vrot.lane.b32.xlu0 %v939, 32
      %v967 = vpop.permute.xlu0 %966
      %vm968 = vcmask 31744
      %v970 = vsel %vm968, %v592, %v705
      %v972 = vsel %vm968, %v593, %v707
      %v974 = vsel %vm968, %v594, %v709
      %v976 = vsel %vm968, %v595, %v711
      %v978 = vsel %vm968, %v596, %v713
      %v980 = vsel %vm968, %v597, %v715
      %v982 = vsel %vm968, %v598, %v717
      %v984 = vsel %vm968, %v599, %v719
      %v986 = vsel %vm968, %v600, %v721
      %v988 = vsel %vm968, %v601, %v723
      %v990 = vsel %vm968, %v602, %v725
      %v992 = vsel %vm968, %v603, %v727
      %v994 = vsel %vm968, %v604, %v729
      %v996 = vsel %vm968, %v605, %v731
      %vm997 = vcmask 64512
      %v999 = vsel %vm997, %v970, %v747
      %v1001 = vsel %vm997, %v972, %v749
      %v1003 = vsel %vm997, %v974, %v751
      %v1005 = vsel %vm997, %v976, %v753
      %v1007 = vsel %vm997, %v978, %v755
      %v1009 = vsel %vm997, %v980, %v757
      %v1011 = vsel %vm997, %v982, %v759
      %v1013 = vsel %vm997, %v984, %v761
      %v1015 = vsel %vm997, %v986, %v763
      %v1017 = vsel %vm997, %v988, %v765
      %v1019 = vsel %vm997, %v990, %v767
      %v1021 = vsel %vm997, %v992, %v769
      %v1023 = vsel %vm997, %v994, %v771
      %v1025 = vsel %vm997, %v996, %v773
      %vm1026 = vcmask 97280
      %v1028 = vsel %vm1026, %v999, %v780
      %v1030 = vsel %vm1026, %v1001, %v782
      %v1032 = vsel %vm1026, %v1003, %v784
      %v1034 = vsel %vm1026, %v1005, %v786
      %v1036 = vsel %vm1026, %v1007, %v788
      %v1038 = vsel %vm1026, %v1009, %v790
      %v1040 = vsel %vm1026, %v1011, %v792
      %v1042 = vsel %vm1026, %v1013, %v794
      %v1044 = vsel %vm1026, %v1015, %v796
      %v1046 = vsel %vm1026, %v1017, %v798
      %v1048 = vsel %vm1026, %v1019, %v800
      %v1050 = vsel %vm1026, %v1021, %v802
      %v1052 = vsel %vm1026, %v1023, %v804
      %v1054 = vsel %vm1026, %v1025, %v806
      %vm1055 = vcmask 130048
      %v1057 = vsel %vm1055, %v1028, %v815
      %v1059 = vsel %vm1055, %v1030, %v817
      %v1061 = vsel %vm1055, %v1032, %v819
      %v1063 = vsel %vm1055, %v1034, %v821
      %v1065 = vsel %vm1055, %v1036, %v823
      %v1067 = vsel %vm1055, %v1038, %v825
      %v1069 = vsel %vm1055, %v1040, %v827
      %v1071 = vsel %vm1055, %v1042, %v829
      %v1073 = vsel %vm1055, %v1044, %v831
      %v1075 = vsel %vm1055, %v1046, %v833
      %v1077 = vsel %vm1055, %v1048, %v835
      %v1079 = vsel %vm1055, %v1050, %v837
      %v1081 = vsel %vm1055, %v1052, %v839
      %v1083 = vsel %vm1055, %v1054, %v841
      %vm1084 = vcmask 162816
      %v1086 = vsel %vm1084, %v1057, %v844
      %v1088 = vsel %vm1084, %v1059, %v846
      %v1090 = vsel %vm1084, %v1061, %v848
      %v1092 = vsel %vm1084, %v1063, %v850
      %v1094 = vsel %vm1084, %v1065, %v852
      %v1096 = vsel %vm1084, %v1067, %v854
      %v1098 = vsel %vm1084, %v1069, %v856
      %v1100 = vsel %vm1084, %v1071, %v858
      %v1102 = vsel %vm1084, %v1073, %v860
      %v1104 = vsel %vm1084, %v1075, %v862
      %v1106 = vsel %vm1084, %v1077, %v864
      %v1108 = vsel %vm1084, %v1079, %v866
      %v1110 = vsel %vm1084, %v1081, %v868
      %v1112 = vsel %vm1084, %v1083, %v870
      %vm1113 = vcmask 195584
      %v1115 = vsel %vm1113, %v1086, %v877
      %v1117 = vsel %vm1113, %v1088, %v879
      %v1119 = vsel %vm1113, %v1090, %v881
      %v1121 = vsel %vm1113, %v1092, %v883
      %v1123 = vsel %vm1113, %v1094, %v885
      %v1125 = vsel %vm1113, %v1096, %v887
      %v1127 = vsel %vm1113, %v1098, %v889
      %v1129 = vsel %vm1113, %v1100, %v891
      %v1131 = vsel %vm1113, %v1102, %v893
      %v1133 = vsel %vm1113, %v1104, %v895
      %v1135 = vsel %vm1113, %v1106, %v897
      %v1137 = vsel %vm1113, %v1108, %v899
      %v1139 = vsel %vm1113, %v1110, %v901
      %v1141 = vsel %vm1113, %v1112, %v903
      %vm1142 = vcmask 228352
      %v1144 = vsel %vm1142, %v1115, %v912
      %v1146 = vsel %vm1142, %v1117, %v914
      %v1148 = vsel %vm1142, %v1119, %v916
      %v1150 = vsel %vm1142, %v1121, %v918
      %v1152 = vsel %vm1142, %v1123, %v920
      %v1154 = vsel %vm1142, %v1125, %v922
      %v1156 = vsel %vm1142, %v1127, %v924
      %v1158 = vsel %vm1142, %v1129, %v926
      %v1160 = vsel %vm1142, %v1131, %v928
      %v1162 = vsel %vm1142, %v1133, %v930
      %v1164 = vsel %vm1142, %v1135, %v932
      %v1166 = vsel %vm1142, %v1137, %v934
      %v1168 = vsel %vm1142, %v1139, %v936
      %v1170 = vsel %vm1142, %v1141, %v938
      %vm1171 = vcmask 261120
      %v1173 = vsel %vm1171, %v1144, %v941
      %v1175 = vsel %vm1171, %v1146, %v943
      %v1177 = vsel %vm1171, %v1148, %v945
      %v1179 = vsel %vm1171, %v1150, %v947
      %v1181 = vsel %vm1171, %v1152, %v949
      %v1183 = vsel %vm1171, %v1154, %v951
      %v1185 = vsel %vm1171, %v1156, %v953
      %v1187 = vsel %vm1171, %v1158, %v955
      %v1189 = vsel %vm1171, %v1160, %v957
      %v1191 = vsel %vm1171, %v1162, %v959
      %v1193 = vsel %vm1171, %v1164, %v961
      %v1195 = vsel %vm1171, %v1166, %v963
      %v1197 = vsel %vm1171, %v1168, %v965
      %v1199 = vsel %vm1171, %v1170, %v967
      %v1214 = vcombine.high %v1173, %v1173
      %v1216 = vunpack.c.l.s4 1966171168
      %v1217 = vunpack.c.0.s8 %v1216
      %v1218 = vlaneseq
      %v1219 = vshrl.u32 %v1218, 7
      %v1220 = vsub.s32 %v1217, %v1219
      %v1221 = vrot.slane %v1173, %v1220
      %v1223 = vunpack.c.l.s4 1966171168
      %v1224 = vunpack.c.0.s8 %v1223
      %v1225 = vlaneseq
      %v1226 = vshrl.u32 %v1225, 7
      %v1227 = vsub.s32 %v1224, %v1226
      %v1228 = vrot.slane %v1214, %v1227
      %v1229 = vcombine.high %v1221, %v1221
      %v1230 = vcombine.high %v1228, %v1228
      %v1232 = vunpack.c.l.s4 1966171168
      %v1233 = vunpack.c.0.s8 %v1232
      %v1234 = vlaneseq
      %v1235 = vshrl.u32 %v1234, 7
      %v1236 = vsub.s32 %v1233, %v1235
      %v1237 = vrot.slane %v1221, %v1236
      %v1239 = vunpack.c.l.s4 1966171168
      %v1240 = vunpack.c.0.s8 %v1239
      %v1241 = vlaneseq
      %v1242 = vshrl.u32 %v1241, 7
      %v1243 = vsub.s32 %v1240, %v1242
      %v1244 = vrot.slane %v1228, %v1243
      %v1246 = vunpack.c.l.s4 1966171168
      %v1247 = vunpack.c.0.s8 %v1246
      %v1248 = vlaneseq
      %v1249 = vshrl.u32 %v1248, 7
      %v1250 = vsub.s32 %v1247, %v1249
      %v1251 = vrot.slane %v1229, %v1250
      %v1253 = vunpack.c.l.s4 1966171168
      %v1254 = vunpack.c.0.s8 %v1253
      %v1255 = vlaneseq
      %v1256 = vshrl.u32 %v1255, 7
      %v1257 = vsub.s32 %v1254, %v1256
      %v1258 = vrot.slane %v1230, %v1257
      %v1259 = vcombine.high %v1237, %v1237
      %v1260 = vcombine.high %v1244, %v1244
      %v1261 = vcombine.high %v1251, %v1251
      %v1262 = vcombine.high %v1175, %v1175
      %v1264 = vunpack.c.l.s4 1966171168
      %v1265 = vunpack.c.0.s8 %v1264
      %v1266 = vlaneseq
      %v1267 = vshrl.u32 %v1266, 7
      %v1268 = vsub.s32 %v1265, %v1267
      %v1269 = vrot.slane %v1175, %v1268
      %v1271 = vunpack.c.l.s4 1966171168
      %v1272 = vunpack.c.0.s8 %v1271
      %v1273 = vlaneseq
      %v1274 = vshrl.u32 %v1273, 7
      %v1275 = vsub.s32 %v1272, %v1274
      %v1276 = vrot.slane %v1262, %v1275
      %v1277 = vcombine.high %v1269, %v1269
      %v1278 = vcombine.high %v1276, %v1276
      %v1280 = vunpack.c.l.s4 1966171168
      %v1281 = vunpack.c.0.s8 %v1280
      %v1282 = vlaneseq
      %v1283 = vshrl.u32 %v1282, 7
      %v1284 = vsub.s32 %v1281, %v1283
      %v1285 = vrot.slane %v1269, %v1284
      %v1287 = vunpack.c.l.s4 1966171168
      %v1288 = vunpack.c.0.s8 %v1287
      %v1289 = vlaneseq
      %v1290 = vshrl.u32 %v1289, 7
      %v1291 = vsub.s32 %v1288, %v1290
      %v1292 = vrot.slane %v1276, %v1291
      %v1294 = vunpack.c.l.s4 1966171168
      %v1295 = vunpack.c.0.s8 %v1294
      %v1296 = vlaneseq
      %v1297 = vshrl.u32 %v1296, 7
      %v1298 = vsub.s32 %v1295, %v1297
      %v1299 = vrot.slane %v1277, %v1298
      %v1301 = vunpack.c.l.s4 1966171168
      %v1302 = vunpack.c.0.s8 %v1301
      %v1303 = vlaneseq
      %v1304 = vshrl.u32 %v1303, 7
      %v1305 = vsub.s32 %v1302, %v1304
      %v1306 = vrot.slane %v1278, %v1305
      %v1307 = vcombine.high %v1285, %v1285
      %v1308 = vcombine.high %v1292, %v1292
      %v1309 = vcombine.high %v1299, %v1299
      %v1310 = vcombine.high %v1177, %v1177
      %v1312 = vunpack.c.l.s4 1966171168
      %v1313 = vunpack.c.0.s8 %v1312
      %v1314 = vlaneseq
      %v1315 = vshrl.u32 %v1314, 7
      %v1316 = vsub.s32 %v1313, %v1315
      %v1317 = vrot.slane %v1177, %v1316
      %v1319 = vunpack.c.l.s4 1966171168
      %v1320 = vunpack.c.0.s8 %v1319
      %v1321 = vlaneseq
      %v1322 = vshrl.u32 %v1321, 7
      %v1323 = vsub.s32 %v1320, %v1322
      %v1324 = vrot.slane %v1310, %v1323
      %v1325 = vcombine.high %v1317, %v1317
      %v1326 = vcombine.high %v1324, %v1324
      %v1328 = vunpack.c.l.s4 1966171168
      %v1329 = vunpack.c.0.s8 %v1328
      %v1330 = vlaneseq
      %v1331 = vshrl.u32 %v1330, 7
      %v1332 = vsub.s32 %v1329, %v1331
      %v1333 = vrot.slane %v1317, %v1332
      %v1335 = vunpack.c.l.s4 1966171168
      %v1336 = vunpack.c.0.s8 %v1335
      %v1337 = vlaneseq
      %v1338 = vshrl.u32 %v1337, 7
      %v1339 = vsub.s32 %v1336, %v1338
      %v1340 = vrot.slane %v1324, %v1339
      %v1342 = vunpack.c.l.s4 1966171168
      %v1343 = vunpack.c.0.s8 %v1342
      %v1344 = vlaneseq
      %v1345 = vshrl.u32 %v1344, 7
      %v1346 = vsub.s32 %v1343, %v1345
      %v1347 = vrot.slane %v1325, %v1346
      %v1349 = vunpack.c.l.s4 1966171168
      %v1350 = vunpack.c.0.s8 %v1349
      %v1351 = vlaneseq
      %v1352 = vshrl.u32 %v1351, 7
      %v1353 = vsub.s32 %v1350, %v1352
      %v1354 = vrot.slane %v1326, %v1353
      %v1355 = vcombine.high %v1333, %v1333
      %v1356 = vcombine.high %v1340, %v1340
      %v1357 = vcombine.high %v1347, %v1347
      %v1358 = vcombine.high %v1179, %v1179
      %v1360 = vunpack.c.l.s4 1966171168
      %v1361 = vunpack.c.0.s8 %v1360
      %v1362 = vlaneseq
      %v1363 = vshrl.u32 %v1362, 7
      %v1364 = vsub.s32 %v1361, %v1363
      %v1365 = vrot.slane %v1179, %v1364
      %v1367 = vunpack.c.l.s4 1966171168
      %v1368 = vunpack.c.0.s8 %v1367
      %v1369 = vlaneseq
      %v1370 = vshrl.u32 %v1369, 7
      %v1371 = vsub.s32 %v1368, %v1370
      %v1372 = vrot.slane %v1358, %v1371
      %v1373 = vcombine.high %v1365, %v1365
      %v1374 = vcombine.high %v1372, %v1372
      %v1376 = vunpack.c.l.s4 1966171168
      %v1377 = vunpack.c.0.s8 %v1376
      %v1378 = vlaneseq
      %v1379 = vshrl.u32 %v1378, 7
      %v1380 = vsub.s32 %v1377, %v1379
      %v1381 = vrot.slane %v1365, %v1380
      %v1383 = vunpack.c.l.s4 1966171168
      %v1384 = vunpack.c.0.s8 %v1383
      %v1385 = vlaneseq
      %v1386 = vshrl.u32 %v1385, 7
      %v1387 = vsub.s32 %v1384, %v1386
      %v1388 = vrot.slane %v1372, %v1387
      %v1390 = vunpack.c.l.s4 1966171168
      %v1391 = vunpack.c.0.s8 %v1390
      %v1392 = vlaneseq
      %v1393 = vshrl.u32 %v1392, 7
      %v1394 = vsub.s32 %v1391, %v1393
      %v1395 = vrot.slane %v1373, %v1394
      %v1397 = vunpack.c.l.s4 1966171168
      %v1398 = vunpack.c.0.s8 %v1397
      %v1399 = vlaneseq
      %v1400 = vshrl.u32 %v1399, 7
      %v1401 = vsub.s32 %v1398, %v1400
      %v1402 = vrot.slane %v1374, %v1401
      %v1403 = vcombine.high %v1381, %v1381
      %v1404 = vcombine.high %v1388, %v1388
      %v1405 = vcombine.high %v1395, %v1395
      %v1406 = vcombine.high %v1181, %v1181
      %v1408 = vunpack.c.l.s4 1966171168
      %v1409 = vunpack.c.0.s8 %v1408
      %v1410 = vlaneseq
      %v1411 = vshrl.u32 %v1410, 7
      %v1412 = vsub.s32 %v1409, %v1411
      %v1413 = vrot.slane %v1181, %v1412
      %v1415 = vunpack.c.l.s4 1966171168
      %v1416 = vunpack.c.0.s8 %v1415
      %v1417 = vlaneseq
      %v1418 = vshrl.u32 %v1417, 7
      %v1419 = vsub.s32 %v1416, %v1418
      %v1420 = vrot.slane %v1406, %v1419
      %v1421 = vcombine.high %v1413, %v1413
      %v1422 = vcombine.high %v1420, %v1420
      %v1424 = vunpack.c.l.s4 1966171168
      %v1425 = vunpack.c.0.s8 %v1424
      %v1426 = vlaneseq
      %v1427 = vshrl.u32 %v1426, 7
      %v1428 = vsub.s32 %v1425, %v1427
      %v1429 = vrot.slane %v1413, %v1428
      %v1431 = vunpack.c.l.s4 1966171168
      %v1432 = vunpack.c.0.s8 %v1431
      %v1433 = vlaneseq
      %v1434 = vshrl.u32 %v1433, 7
      %v1435 = vsub.s32 %v1432, %v1434
      %v1436 = vrot.slane %v1420, %v1435
      %v1438 = vunpack.c.l.s4 1966171168
      %v1439 = vunpack.c.0.s8 %v1438
      %v1440 = vlaneseq
      %v1441 = vshrl.u32 %v1440, 7
      %v1442 = vsub.s32 %v1439, %v1441
      %v1443 = vrot.slane %v1421, %v1442
      %v1445 = vunpack.c.l.s4 1966171168
      %v1446 = vunpack.c.0.s8 %v1445
      %v1447 = vlaneseq
      %v1448 = vshrl.u32 %v1447, 7
      %v1449 = vsub.s32 %v1446, %v1448
      %v1450 = vrot.slane %v1422, %v1449
      %v1451 = vcombine.high %v1429, %v1429
      %v1452 = vcombine.high %v1436, %v1436
      %v1453 = vcombine.high %v1443, %v1443
      %v1454 = vcombine.high %v1183, %v1183
      %v1456 = vunpack.c.l.s4 1966171168
      %v1457 = vunpack.c.0.s8 %v1456
      %v1458 = vlaneseq
      %v1459 = vshrl.u32 %v1458, 7
      %v1460 = vsub.s32 %v1457, %v1459
      %v1461 = vrot.slane %v1183, %v1460
      %v1463 = vunpack.c.l.s4 1966171168
      %v1464 = vunpack.c.0.s8 %v1463
      %v1465 = vlaneseq
      %v1466 = vshrl.u32 %v1465, 7
      %v1467 = vsub.s32 %v1464, %v1466
      %v1468 = vrot.slane %v1454, %v1467
      %v1469 = vcombine.high %v1461, %v1461
      %v1470 = vcombine.high %v1468, %v1468
      %v1472 = vunpack.c.l.s4 1966171168
      %v1473 = vunpack.c.0.s8 %v1472
      %v1474 = vlaneseq
      %v1475 = vshrl.u32 %v1474, 7
      %v1476 = vsub.s32 %v1473, %v1475
      %v1477 = vrot.slane %v1461, %v1476
      %v1479 = vunpack.c.l.s4 1966171168
      %v1480 = vunpack.c.0.s8 %v1479
      %v1481 = vlaneseq
      %v1482 = vshrl.u32 %v1481, 7
      %v1483 = vsub.s32 %v1480, %v1482
      %v1484 = vrot.slane %v1468, %v1483
      %v1486 = vunpack.c.l.s4 1966171168
      %v1487 = vunpack.c.0.s8 %v1486
      %v1488 = vlaneseq
      %v1489 = vshrl.u32 %v1488, 7
      %v1490 = vsub.s32 %v1487, %v1489
      %v1491 = vrot.slane %v1469, %v1490
      %v1493 = vunpack.c.l.s4 1966171168
      %v1494 = vunpack.c.0.s8 %v1493
      %v1495 = vlaneseq
      %v1496 = vshrl.u32 %v1495, 7
      %v1497 = vsub.s32 %v1494, %v1496
      %v1498 = vrot.slane %v1470, %v1497
      %v1499 = vcombine.high %v1477, %v1477
      %v1500 = vcombine.high %v1484, %v1484
      %v1501 = vcombine.high %v1491, %v1491
      %v1502 = vcombine.high %v1185, %v1185
      %v1504 = vunpack.c.l.s4 1966171168
      %v1505 = vunpack.c.0.s8 %v1504
      %v1506 = vlaneseq
      %v1507 = vshrl.u32 %v1506, 7
      %v1508 = vsub.s32 %v1505, %v1507
      %v1509 = vrot.slane %v1185, %v1508
      %v1511 = vunpack.c.l.s4 1966171168
      %v1512 = vunpack.c.0.s8 %v1511
      %v1513 = vlaneseq
      %v1514 = vshrl.u32 %v1513, 7
      %v1515 = vsub.s32 %v1512, %v1514
      %v1516 = vrot.slane %v1502, %v1515
      %v1517 = vcombine.high %v1509, %v1509
      %v1518 = vcombine.high %v1516, %v1516
      %v1520 = vunpack.c.l.s4 1966171168
      %v1521 = vunpack.c.0.s8 %v1520
      %v1522 = vlaneseq
      %v1523 = vshrl.u32 %v1522, 7
      %v1524 = vsub.s32 %v1521, %v1523
      %v1525 = vrot.slane %v1509, %v1524
      %v1527 = vunpack.c.l.s4 1966171168
      %v1528 = vunpack.c.0.s8 %v1527
      %v1529 = vlaneseq
      %v1530 = vshrl.u32 %v1529, 7
      %v1531 = vsub.s32 %v1528, %v1530
      %v1532 = vrot.slane %v1516, %v1531
      %v1534 = vunpack.c.l.s4 1966171168
      %v1535 = vunpack.c.0.s8 %v1534
      %v1536 = vlaneseq
      %v1537 = vshrl.u32 %v1536, 7
      %v1538 = vsub.s32 %v1535, %v1537
      %v1539 = vrot.slane %v1517, %v1538
      %v1541 = vunpack.c.l.s4 1966171168
      %v1542 = vunpack.c.0.s8 %v1541
      %v1543 = vlaneseq
      %v1544 = vshrl.u32 %v1543, 7
      %v1545 = vsub.s32 %v1542, %v1544
      %v1546 = vrot.slane %v1518, %v1545
      %v1547 = vcombine.high %v1525, %v1525
      %v1548 = vcombine.high %v1532, %v1532
      %v1549 = vcombine.high %v1539, %v1539
      %v1550 = vcombine.high %v1187, %v1187
      %v1552 = vunpack.c.l.s4 1966171168
      %v1553 = vunpack.c.0.s8 %v1552
      %v1554 = vlaneseq
      %v1555 = vshrl.u32 %v1554, 7
      %v1556 = vsub.s32 %v1553, %v1555
      %v1557 = vrot.slane %v1187, %v1556
      %v1559 = vunpack.c.l.s4 1966171168
      %v1560 = vunpack.c.0.s8 %v1559
      %v1561 = vlaneseq
      %v1562 = vshrl.u32 %v1561, 7
      %v1563 = vsub.s32 %v1560, %v1562
      %v1564 = vrot.slane %v1550, %v1563
      %v1565 = vcombine.high %v1557, %v1557
      %v1566 = vcombine.high %v1564, %v1564
      %v1568 = vunpack.c.l.s4 1966171168
      %v1569 = vunpack.c.0.s8 %v1568
      %v1570 = vlaneseq
      %v1571 = vshrl.u32 %v1570, 7
      %v1572 = vsub.s32 %v1569, %v1571
      %v1573 = vrot.slane %v1557, %v1572
      %v1575 = vunpack.c.l.s4 1966171168
      %v1576 = vunpack.c.0.s8 %v1575
      %v1577 = vlaneseq
      %v1578 = vshrl.u32 %v1577, 7
      %v1579 = vsub.s32 %v1576, %v1578
      %v1580 = vrot.slane %v1564, %v1579
      %v1582 = vunpack.c.l.s4 1966171168
      %v1583 = vunpack.c.0.s8 %v1582
      %v1584 = vlaneseq
      %v1585 = vshrl.u32 %v1584, 7
      %v1586 = vsub.s32 %v1583, %v1585
      %v1587 = vrot.slane %v1565, %v1586
      %v1589 = vunpack.c.l.s4 1966171168
      %v1590 = vunpack.c.0.s8 %v1589
      %v1591 = vlaneseq
      %v1592 = vshrl.u32 %v1591, 7
      %v1593 = vsub.s32 %v1590, %v1592
      %v1594 = vrot.slane %v1566, %v1593
      %v1595 = vcombine.high %v1573, %v1573
      %v1596 = vcombine.high %v1580, %v1580
      %v1597 = vcombine.high %v1587, %v1587
      %v1598 = vcombine.high %v1189, %v1189
      %v1600 = vunpack.c.l.s4 1966171168
      %v1601 = vunpack.c.0.s8 %v1600
      %v1602 = vlaneseq
      %v1603 = vshrl.u32 %v1602, 7
      %v1604 = vsub.s32 %v1601, %v1603
      %v1605 = vrot.slane %v1189, %v1604
      %v1607 = vunpack.c.l.s4 1966171168
      %v1608 = vunpack.c.0.s8 %v1607
      %v1609 = vlaneseq
      %v1610 = vshrl.u32 %v1609, 7
      %v1611 = vsub.s32 %v1608, %v1610
      %v1612 = vrot.slane %v1598, %v1611
      %v1613 = vcombine.high %v1605, %v1605
      %v1614 = vcombine.high %v1612, %v1612
      %v1616 = vunpack.c.l.s4 1966171168
      %v1617 = vunpack.c.0.s8 %v1616
      %v1618 = vlaneseq
      %v1619 = vshrl.u32 %v1618, 7
      %v1620 = vsub.s32 %v1617, %v1619
      %v1621 = vrot.slane %v1605, %v1620
      %v1623 = vunpack.c.l.s4 1966171168
      %v1624 = vunpack.c.0.s8 %v1623
      %v1625 = vlaneseq
      %v1626 = vshrl.u32 %v1625, 7
      %v1627 = vsub.s32 %v1624, %v1626
      %v1628 = vrot.slane %v1612, %v1627
      %v1630 = vunpack.c.l.s4 1966171168
      %v1631 = vunpack.c.0.s8 %v1630
      %v1632 = vlaneseq
      %v1633 = vshrl.u32 %v1632, 7
      %v1634 = vsub.s32 %v1631, %v1633
      %v1635 = vrot.slane %v1613, %v1634
      %v1637 = vunpack.c.l.s4 1966171168
      %v1638 = vunpack.c.0.s8 %v1637
      %v1639 = vlaneseq
      %v1640 = vshrl.u32 %v1639, 7
      %v1641 = vsub.s32 %v1638, %v1640
      %v1642 = vrot.slane %v1614, %v1641
      %v1643 = vcombine.high %v1621, %v1621
      %v1644 = vcombine.high %v1628, %v1628
      %v1645 = vcombine.high %v1635, %v1635
      %v1646 = vcombine.high %v1191, %v1191
      %v1648 = vunpack.c.l.s4 1966171168
      %v1649 = vunpack.c.0.s8 %v1648
      %v1650 = vlaneseq
      %v1651 = vshrl.u32 %v1650, 7
      %v1652 = vsub.s32 %v1649, %v1651
      %v1653 = vrot.slane %v1191, %v1652
      %v1655 = vunpack.c.l.s4 1966171168
      %v1656 = vunpack.c.0.s8 %v1655
      %v1657 = vlaneseq
      %v1658 = vshrl.u32 %v1657, 7
      %v1659 = vsub.s32 %v1656, %v1658
      %v1660 = vrot.slane %v1646, %v1659
      %v1661 = vcombine.high %v1653, %v1653
      %v1662 = vcombine.high %v1660, %v1660
      %v1664 = vunpack.c.l.s4 1966171168
      %v1665 = vunpack.c.0.s8 %v1664
      %v1666 = vlaneseq
      %v1667 = vshrl.u32 %v1666, 7
      %v1668 = vsub.s32 %v1665, %v1667
      %v1669 = vrot.slane %v1653, %v1668
      %v1671 = vunpack.c.l.s4 1966171168
      %v1672 = vunpack.c.0.s8 %v1671
      %v1673 = vlaneseq
      %v1674 = vshrl.u32 %v1673, 7
      %v1675 = vsub.s32 %v1672, %v1674
      %v1676 = vrot.slane %v1660, %v1675
      %v1678 = vunpack.c.l.s4 1966171168
      %v1679 = vunpack.c.0.s8 %v1678
      %v1680 = vlaneseq
      %v1681 = vshrl.u32 %v1680, 7
      %v1682 = vsub.s32 %v1679, %v1681
      %v1683 = vrot.slane %v1661, %v1682
      %v1685 = vunpack.c.l.s4 1966171168
      %v1686 = vunpack.c.0.s8 %v1685
      %v1687 = vlaneseq
      %v1688 = vshrl.u32 %v1687, 7
      %v1689 = vsub.s32 %v1686, %v1688
      %v1690 = vrot.slane %v1662, %v1689
      %v1691 = vcombine.high %v1669, %v1669
      %v1692 = vcombine.high %v1676, %v1676
      %v1693 = vcombine.high %v1683, %v1683
      %v1694 = vcombine.high %v1193, %v1193
      %v1696 = vunpack.c.l.s4 1966171168
      %v1697 = vunpack.c.0.s8 %v1696
      %v1698 = vlaneseq
      %v1699 = vshrl.u32 %v1698, 7
      %v1700 = vsub.s32 %v1697, %v1699
      %v1701 = vrot.slane %v1193, %v1700
      %v1703 = vunpack.c.l.s4 1966171168
      %v1704 = vunpack.c.0.s8 %v1703
      %v1705 = vlaneseq
      %v1706 = vshrl.u32 %v1705, 7
      %v1707 = vsub.s32 %v1704, %v1706
      %v1708 = vrot.slane %v1694, %v1707
      %v1709 = vcombine.high %v1701, %v1701
      %v1710 = vcombine.high %v1708, %v1708
      %v1712 = vunpack.c.l.s4 1966171168
      %v1713 = vunpack.c.0.s8 %v1712
      %v1714 = vlaneseq
      %v1715 = vshrl.u32 %v1714, 7
      %v1716 = vsub.s32 %v1713, %v1715
      %v1717 = vrot.slane %v1701, %v1716
      %v1719 = vunpack.c.l.s4 1966171168
      %v1720 = vunpack.c.0.s8 %v1719
      %v1721 = vlaneseq
      %v1722 = vshrl.u32 %v1721, 7
      %v1723 = vsub.s32 %v1720, %v1722
      %v1724 = vrot.slane %v1708, %v1723
      %v1726 = vunpack.c.l.s4 1966171168
      %v1727 = vunpack.c.0.s8 %v1726
      %v1728 = vlaneseq
      %v1729 = vshrl.u32 %v1728, 7
      %v1730 = vsub.s32 %v1727, %v1729
      %v1731 = vrot.slane %v1709, %v1730
      %v1733 = vunpack.c.l.s4 1966171168
      %v1734 = vunpack.c.0.s8 %v1733
      %v1735 = vlaneseq
      %v1736 = vshrl.u32 %v1735, 7
      %v1737 = vsub.s32 %v1734, %v1736
      %v1738 = vrot.slane %v1710, %v1737
      %v1739 = vcombine.high %v1717, %v1717
      %v1740 = vcombine.high %v1724, %v1724
      %v1741 = vcombine.high %v1731, %v1731
      %v1742 = vcombine.high %v1195, %v1195
      %v1744 = vunpack.c.l.s4 1966171168
      %v1745 = vunpack.c.0.s8 %v1744
      %v1746 = vlaneseq
      %v1747 = vshrl.u32 %v1746, 7
      %v1748 = vsub.s32 %v1745, %v1747
      %v1749 = vrot.slane %v1195, %v1748
      %v1751 = vunpack.c.l.s4 1966171168
      %v1752 = vunpack.c.0.s8 %v1751
      %v1753 = vlaneseq
      %v1754 = vshrl.u32 %v1753, 7
      %v1755 = vsub.s32 %v1752, %v1754
      %v1756 = vrot.slane %v1742, %v1755
      %v1757 = vcombine.high %v1749, %v1749
      %v1758 = vcombine.high %v1756, %v1756
      %v1760 = vunpack.c.l.s4 1966171168
      %v1761 = vunpack.c.0.s8 %v1760
      %v1762 = vlaneseq
      %v1763 = vshrl.u32 %v1762, 7
      %v1764 = vsub.s32 %v1761, %v1763
      %v1765 = vrot.slane %v1749, %v1764
      %v1767 = vunpack.c.l.s4 1966171168
      %v1768 = vunpack.c.0.s8 %v1767
      %v1769 = vlaneseq
      %v1770 = vshrl.u32 %v1769, 7
      %v1771 = vsub.s32 %v1768, %v1770
      %v1772 = vrot.slane %v1756, %v1771
      %v1774 = vunpack.c.l.s4 1966171168
      %v1775 = vunpack.c.0.s8 %v1774
      %v1776 = vlaneseq
      %v1777 = vshrl.u32 %v1776, 7
      %v1778 = vsub.s32 %v1775, %v1777
      %v1779 = vrot.slane %v1757, %v1778
      %v1781 = vunpack.c.l.s4 1966171168
      %v1782 = vunpack.c.0.s8 %v1781
      %v1783 = vlaneseq
      %v1784 = vshrl.u32 %v1783, 7
      %v1785 = vsub.s32 %v1782, %v1784
      %v1786 = vrot.slane %v1758, %v1785
      %v1787 = vcombine.high %v1765, %v1765
      %v1788 = vcombine.high %v1772, %v1772
      %v1789 = vcombine.high %v1779, %v1779
      %v1790 = vcombine.high %v1197, %v1197
      %v1792 = vunpack.c.l.s4 1966171168
      %v1793 = vunpack.c.0.s8 %v1792
      %v1794 = vlaneseq
      %v1795 = vshrl.u32 %v1794, 7
      %v1796 = vsub.s32 %v1793, %v1795
      %v1797 = vrot.slane %v1197, %v1796
      %v1799 = vunpack.c.l.s4 1966171168
      %v1800 = vunpack.c.0.s8 %v1799
      %v1801 = vlaneseq
      %v1802 = vshrl.u32 %v1801, 7
      %v1803 = vsub.s32 %v1800, %v1802
      %v1804 = vrot.slane %v1790, %v1803
      %v1805 = vcombine.high %v1797, %v1797
      %v1806 = vcombine.high %v1804, %v1804
      %v1808 = vunpack.c.l.s4 1966171168
      %v1809 = vunpack.c.0.s8 %v1808
      %v1810 = vlaneseq
      %v1811 = vshrl.u32 %v1810, 7
      %v1812 = vsub.s32 %v1809, %v1811
      %v1813 = vrot.slane %v1797, %v1812
      %v1815 = vunpack.c.l.s4 1966171168
      %v1816 = vunpack.c.0.s8 %v1815
      %v1817 = vlaneseq
      %v1818 = vshrl.u32 %v1817, 7
      %v1819 = vsub.s32 %v1816, %v1818
      %v1820 = vrot.slane %v1804, %v1819
      %v1822 = vunpack.c.l.s4 1966171168
      %v1823 = vunpack.c.0.s8 %v1822
      %v1824 = vlaneseq
      %v1825 = vshrl.u32 %v1824, 7
      %v1826 = vsub.s32 %v1823, %v1825
      %v1827 = vrot.slane %v1805, %v1826
      %v1829 = vunpack.c.l.s4 1966171168
      %v1830 = vunpack.c.0.s8 %v1829
      %v1831 = vlaneseq
      %v1832 = vshrl.u32 %v1831, 7
      %v1833 = vsub.s32 %v1830, %v1832
      %v1834 = vrot.slane %v1806, %v1833
      %v1835 = vcombine.high %v1813, %v1813
      %v1836 = vcombine.high %v1820, %v1820
      %v1837 = vcombine.high %v1827, %v1827
      %v1838 = vcombine.high %v1199, %v1199
      %v1840 = vunpack.c.l.s4 1966171168
      %v1841 = vunpack.c.0.s8 %v1840
      %v1842 = vlaneseq
      %v1843 = vshrl.u32 %v1842, 7
      %v1844 = vsub.s32 %v1841, %v1843
      %v1845 = vrot.slane %v1199, %v1844
      %v1847 = vunpack.c.l.s4 1966171168
      %v1848 = vunpack.c.0.s8 %v1847
      %v1849 = vlaneseq
      %v1850 = vshrl.u32 %v1849, 7
      %v1851 = vsub.s32 %v1848, %v1850
      %v1852 = vrot.slane %v1838, %v1851
      %v1853 = vcombine.high %v1845, %v1845
      %v1854 = vcombine.high %v1852, %v1852
      %v1856 = vunpack.c.l.s4 1966171168
      %v1857 = vunpack.c.0.s8 %v1856
      %v1858 = vlaneseq
      %v1859 = vshrl.u32 %v1858, 7
      %v1860 = vsub.s32 %v1857, %v1859
      %v1861 = vrot.slane %v1845, %v1860
      %v1863 = vunpack.c.l.s4 1966171168
      %v1864 = vunpack.c.0.s8 %v1863
      %v1865 = vlaneseq
      %v1866 = vshrl.u32 %v1865, 7
      %v1867 = vsub.s32 %v1864, %v1866
      %v1868 = vrot.slane %v1852, %v1867
      %v1870 = vunpack.c.l.s4 1966171168
      %v1871 = vunpack.c.0.s8 %v1870
      %v1872 = vlaneseq
      %v1873 = vshrl.u32 %v1872, 7
      %v1874 = vsub.s32 %v1871, %v1873
      %v1875 = vrot.slane %v1853, %v1874
      %v1877 = vunpack.c.l.s4 1966171168
      %v1878 = vunpack.c.0.s8 %v1877
      %v1879 = vlaneseq
      %v1880 = vshrl.u32 %v1879, 7
      %v1881 = vsub.s32 %v1878, %v1880
      %v1882 = vrot.slane %v1854, %v1881
      %v1883 = vcombine.high %v1861, %v1861
      %v1884 = vcombine.high %v1868, %v1868
      %v1885 = vcombine.high %v1875, %v1875
      %v1886 = vld [vmem:[%s478] sm:$0xf]
      %v1887 = vld [vmem:[%s478 + $0x4] sm:$0xf]
      %v1888 = vld [vmem:[%s478 + $0x8] sm:$0xf]
      %v1889 = vld [vmem:[%s478 + $0xc] sm:$0xf]
      %v1890 = vld [vmem:[%s478 + $0x10] sm:$0x3]
      %v1891 = vcombine.low %v1237, %v1251
      %v1892 = vcombine.low %v1259, %v1261
      %v1893 = vcombine.low %v1244, %v1258
      %v1894 = vcombine.low %v1260, %v1285
      %v1896 = vunpack.c.l.s4 1966171168
      %v1897 = vunpack.c.0.s8 %v1896
      %v1898 = vlaneseq
      %v1899 = vshrl.u32 %v1898, 7
      %v1900 = vsub.s32 %v1897, %v1899
      %v1901 = vrot.slane %v1891, %v1900
      %v1903 = vunpack.c.l.s4 1966171168
      %v1904 = vunpack.c.0.s8 %v1903
      %v1905 = vlaneseq
      %v1906 = vshrl.u32 %v1905, 7
      %v1907 = vsub.s32 %v1904, %v1906
      %v1908 = vrot.slane %v1892, %v1907
      %v1910 = vunpack.c.l.s4 1966171168
      %v1911 = vunpack.c.0.s8 %v1910
      %v1912 = vlaneseq
      %v1913 = vshrl.u32 %v1912, 7
      %v1914 = vsub.s32 %v1911, %v1913
      %v1915 = vrot.slane %v1893, %v1914
      %v1917 = vunpack.c.l.s4 1966171168
      %v1918 = vunpack.c.0.s8 %v1917
      %v1919 = vlaneseq
      %v1920 = vshrl.u32 %v1919, 7
      %v1921 = vsub.s32 %v1918, %v1920
      %v1922 = vrot.slane %v1894, %v1921
      %v1923 = vcombine.low %v1901, %v1908
      %v1924 = vcombine.low %v1915, %v1922
      %v1926 = vunpack.c.l.s4 1966171168
      %v1927 = vunpack.c.0.s8 %v1926
      %v1928 = vlaneseq
      %v1929 = vshrl.u32 %v1928, 7
      %v1930 = vsub.s32 %v1927, %v1929
      %v1931 = vrot.slane %v1923, %v1930
      %v1933 = vunpack.c.l.s4 1966171168
      %v1934 = vunpack.c.0.s8 %v1933
      %v1935 = vlaneseq
      %v1936 = vshrl.u32 %v1935, 7
      %v1937 = vsub.s32 %v1934, %v1936
      %v1938 = vrot.slane %v1924, %v1937
      %v1939 = vcombine.low %v1931, %v1938
      %v1940 = vcombine.low %v1299, %v1307
      %v1941 = vcombine.low %v1309, %v1292
      %v1942 = vcombine.low %v1306, %v1308
      %v1943 = vcombine.low %v1333, %v1347
      %v1945 = vunpack.c.l.s4 1966171168
      %v1946 = vunpack.c.0.s8 %v1945
      %v1947 = vlaneseq
      %v1948 = vshrl.u32 %v1947, 7
      %v1949 = vsub.s32 %v1946, %v1948
      %v1950 = vrot.slane %v1940, %v1949
      %v1952 = vunpack.c.l.s4 1966171168
      %v1953 = vunpack.c.0.s8 %v1952
      %v1954 = vlaneseq
      %v1955 = vshrl.u32 %v1954, 7
      %v1956 = vsub.s32 %v1953, %v1955
      %v1957 = vrot.slane %v1941, %v1956
      %v1959 = vunpack.c.l.s4 1966171168
      %v1960 = vunpack.c.0.s8 %v1959
      %v1961 = vlaneseq
      %v1962 = vshrl.u32 %v1961, 7
      %v1963 = vsub.s32 %v1960, %v1962
      %v1964 = vrot.slane %v1942, %v1963
      %v1966 = vunpack.c.l.s4 1966171168
      %v1967 = vunpack.c.0.s8 %v1966
      %v1968 = vlaneseq
      %v1969 = vshrl.u32 %v1968, 7
      %v1970 = vsub.s32 %v1967, %v1969
      %v1971 = vrot.slane %v1943, %v1970
      %v1972 = vcombine.low %v1950, %v1957
      %v1973 = vcombine.low %v1964, %v1971
      %v1975 = vunpack.c.l.s4 1966171168
      %v1976 = vunpack.c.0.s8 %v1975
      %v1977 = vlaneseq
      %v1978 = vshrl.u32 %v1977, 7
      %v1979 = vsub.s32 %v1976, %v1978
      %v1980 = vrot.slane %v1972, %v1979
      %v1982 = vunpack.c.l.s4 1966171168
      %v1983 = vunpack.c.0.s8 %v1982
      %v1984 = vlaneseq
      %v1985 = vshrl.u32 %v1984, 7
      %v1986 = vsub.s32 %v1983, %v1985
      %v1987 = vrot.slane %v1973, %v1986
      %v1988 = vcombine.low %v1980, %v1987
      %v1989 = vcombine.low %v1355, %v1357
      %v1990 = vcombine.low %v1340, %v1354
      %v1991 = vcombine.low %v1356, %v1381
      %v1992 = vcombine.low %v1395, %v1403
      %v1994 = vunpack.c.l.s4 1966171168
      %v1995 = vunpack.c.0.s8 %v1994
      %v1996 = vlaneseq
      %v1997 = vshrl.u32 %v1996, 7
      %v1998 = vsub.s32 %v1995, %v1997
      %v1999 = vrot.slane %v1989, %v1998
      %v2001 = vunpack.c.l.s4 1966171168
      %v2002 = vunpack.c.0.s8 %v2001
      %v2003 = vlaneseq
      %v2004 = vshrl.u32 %v2003, 7
      %v2005 = vsub.s32 %v2002, %v2004
      %v2006 = vrot.slane %v1990, %v2005
      %v2008 = vunpack.c.l.s4 1966171168
      %v2009 = vunpack.c.0.s8 %v2008
      %v2010 = vlaneseq
      %v2011 = vshrl.u32 %v2010, 7
      %v2012 = vsub.s32 %v2009, %v2011
      %v2013 = vrot.slane %v1991, %v2012
      %v2015 = vunpack.c.l.s4 1966171168
      %v2016 = vunpack.c.0.s8 %v2015
      %v2017 = vlaneseq
      %v2018 = vshrl.u32 %v2017, 7
      %v2019 = vsub.s32 %v2016, %v2018
      %v2020 = vrot.slane %v1992, %v2019
      %v2021 = vcombine.low %v1999, %v2006
      %v2022 = vcombine.low %v2013, %v2020
      %v2024 = vunpack.c.l.s4 1966171168
      %v2025 = vunpack.c.0.s8 %v2024
      %v2026 = vlaneseq
      %v2027 = vshrl.u32 %v2026, 7
      %v2028 = vsub.s32 %v2025, %v2027
      %v2029 = vrot.slane %v2021, %v2028
      %v2031 = vunpack.c.l.s4 1966171168
      %v2032 = vunpack.c.0.s8 %v2031
      %v2033 = vlaneseq
      %v2034 = vshrl.u32 %v2033, 7
      %v2035 = vsub.s32 %v2032, %v2034
      %v2036 = vrot.slane %v2022, %v2035
      %v2037 = vcombine.low %v2029, %v2036
      %v2038 = vcombine.low %v1405, %v1388
      %v2039 = vcombine.low %v1402, %v1404
      %v2040 = vcombine.low %v1429, %v1443
      %v2041 = vcombine.low %v1451, %v1453
      %v2043 = vunpack.c.l.s4 1966171168
      %v2044 = vunpack.c.0.s8 %v2043
      %v2045 = vlaneseq
      %v2046 = vshrl.u32 %v2045, 7
      %v2047 = vsub.s32 %v2044, %v2046
      %v2048 = vrot.slane %v2038, %v2047
      %v2050 = vunpack.c.l.s4 1966171168
      %v2051 = vunpack.c.0.s8 %v2050
      %v2052 = vlaneseq
      %v2053 = vshrl.u32 %v2052, 7
      %v2054 = vsub.s32 %v2051, %v2053
      %v2055 = vrot.slane %v2039, %v2054
      %v2057 = vunpack.c.l.s4 1966171168
      %v2058 = vunpack.c.0.s8 %v2057
      %v2059 = vlaneseq
      %v2060 = vshrl.u32 %v2059, 7
      %v2061 = vsub.s32 %v2058, %v2060
      %v2062 = vrot.slane %v2040, %v2061
      %v2064 = vunpack.c.l.s4 1966171168
      %v2065 = vunpack.c.0.s8 %v2064
      %v2066 = vlaneseq
      %v2067 = vshrl.u32 %v2066, 7
      %v2068 = vsub.s32 %v2065, %v2067
      %v2069 = vrot.slane %v2041, %v2068
      %v2070 = vcombine.low %v2048, %v2055
      %v2071 = vcombine.low %v2062, %v2069
      %v2073 = vunpack.c.l.s4 1966171168
      %v2074 = vunpack.c.0.s8 %v2073
      %v2075 = vlaneseq
      %v2076 = vshrl.u32 %v2075, 7
      %v2077 = vsub.s32 %v2074, %v2076
      %v2078 = vrot.slane %v2070, %v2077
      %v2080 = vunpack.c.l.s4 1966171168
      %v2081 = vunpack.c.0.s8 %v2080
      %v2082 = vlaneseq
      %v2083 = vshrl.u32 %v2082, 7
      %v2084 = vsub.s32 %v2081, %v2083
      %v2085 = vrot.slane %v2071, %v2084
      %v2086 = vcombine.low %v2078, %v2085
      %v2087 = vcombine.low %v1436, %v1450
      %v2088 = vcombine.low %v1452, %v1477
      %v2089 = vcombine.low %v1491, %v1499
      %v2090 = vcombine.low %v1501, %v1484
      %v2092 = vunpack.c.l.s4 1966171168
      %v2093 = vunpack.c.0.s8 %v2092
      %v2094 = vlaneseq
      %v2095 = vshrl.u32 %v2094, 7
      %v2096 = vsub.s32 %v2093, %v2095
      %v2097 = vrot.slane %v2087, %v2096
      %v2099 = vunpack.c.l.s4 1966171168
      %v2100 = vunpack.c.0.s8 %v2099
      %v2101 = vlaneseq
      %v2102 = vshrl.u32 %v2101, 7
      %v2103 = vsub.s32 %v2100, %v2102
      %v2104 = vrot.slane %v2088, %v2103
      %v2106 = vunpack.c.l.s4 1966171168
      %v2107 = vunpack.c.0.s8 %v2106
      %v2108 = vlaneseq
      %v2109 = vshrl.u32 %v2108, 7
      %v2110 = vsub.s32 %v2107, %v2109
      %v2111 = vrot.slane %v2089, %v2110
      %v2113 = vunpack.c.l.s4 1966171168
      %v2114 = vunpack.c.0.s8 %v2113
      %v2115 = vlaneseq
      %v2116 = vshrl.u32 %v2115, 7
      %v2117 = vsub.s32 %v2114, %v2116
      %v2118 = vrot.slane %v2090, %v2117
      %v2119 = vcombine.low %v2097, %v2104
      %v2120 = vcombine.low %v2111, %v2118
      %v2122 = vunpack.c.l.s4 1966171168
      %v2123 = vunpack.c.0.s8 %v2122
      %v2124 = vlaneseq
      %v2125 = vshrl.u32 %v2124, 7
      %v2126 = vsub.s32 %v2123, %v2125
      %v2127 = vrot.slane %v2119, %v2126
      %v2129 = vunpack.c.l.s4 1966171168
      %v2130 = vunpack.c.0.s8 %v2129
      %v2131 = vlaneseq
      %v2132 = vshrl.u32 %v2131, 7
      %v2133 = vsub.s32 %v2130, %v2132
      %v2134 = vrot.slane %v2120, %v2133
      %v2135 = vcombine.low %v2127, %v2134
      %v2136 = vcombine.low %v1498, %v1500
      %v2137 = vcombine.low %v1525, %v1539
      %v2138 = vcombine.low %v1547, %v1549
      %v2139 = vcombine.low %v1532, %v1546
      %v2141 = vunpack.c.l.s4 1966171168
      %v2142 = vunpack.c.0.s8 %v2141
      %v2143 = vlaneseq
      %v2144 = vshrl.u32 %v2143, 7
      %v2145 = vsub.s32 %v2142, %v2144
      %v2146 = vrot.slane %v2136, %v2145
      %v2148 = vunpack.c.l.s4 1966171168
      %v2149 = vunpack.c.0.s8 %v2148
      %v2150 = vlaneseq
      %v2151 = vshrl.u32 %v2150, 7
      %v2152 = vsub.s32 %v2149, %v2151
      %v2153 = vrot.slane %v2137, %v2152
      %v2155 = vunpack.c.l.s4 1966171168
      %v2156 = vunpack.c.0.s8 %v2155
      %v2157 = vlaneseq
      %v2158 = vshrl.u32 %v2157, 7
      %v2159 = vsub.s32 %v2156, %v2158
      %v2160 = vrot.slane %v2138, %v2159
      %v2162 = vunpack.c.l.s4 1966171168
      %v2163 = vunpack.c.0.s8 %v2162
      %v2164 = vlaneseq
      %v2165 = vshrl.u32 %v2164, 7
      %v2166 = vsub.s32 %v2163, %v2165
      %v2167 = vrot.slane %v2139, %v2166
      %v2168 = vcombine.low %v2146, %v2153
      %v2169 = vcombine.low %v2160, %v2167
      %v2171 = vunpack.c.l.s4 1966171168
      %v2172 = vunpack.c.0.s8 %v2171
      %v2173 = vlaneseq
      %v2174 = vshrl.u32 %v2173, 7
      %v2175 = vsub.s32 %v2172, %v2174
      %v2176 = vrot.slane %v2168, %v2175
      %v2178 = vunpack.c.l.s4 1966171168
      %v2179 = vunpack.c.0.s8 %v2178
      %v2180 = vlaneseq
      %v2181 = vshrl.u32 %v2180, 7
      %v2182 = vsub.s32 %v2179, %v2181
      %v2183 = vrot.slane %v2169, %v2182
      %v2184 = vcombine.low %v2176, %v2183
      %v2185 = vcombine.low %v1548, %v1573
      %v2186 = vcombine.low %v1587, %v1595
      %v2187 = vcombine.low %v1597, %v1580
      %v2188 = vcombine.low %v1594, %v1596
      %v2190 = vunpack.c.l.s4 1966171168
      %v2191 = vunpack.c.0.s8 %v2190
      %v2192 = vlaneseq
      %v2193 = vshrl.u32 %v2192, 7
      %v2194 = vsub.s32 %v2191, %v2193
      %v2195 = vrot.slane %v2185, %v2194
      %v2197 = vunpack.c.l.s4 1966171168
      %v2198 = vunpack.c.0.s8 %v2197
      %v2199 = vlaneseq
      %v2200 = vshrl.u32 %v2199, 7
      %v2201 = vsub.s32 %v2198, %v2200
      %v2202 = vrot.slane %v2186, %v2201
      %v2204 = vunpack.c.l.s4 1966171168
      %v2205 = vunpack.c.0.s8 %v2204
      %v2206 = vlaneseq
      %v2207 = vshrl.u32 %v2206, 7
      %v2208 = vsub.s32 %v2205, %v2207
      %v2209 = vrot.slane %v2187, %v2208
      %v2211 = vunpack.c.l.s4 1966171168
      %v2212 = vunpack.c.0.s8 %v2211
      %v2213 = vlaneseq
      %v2214 = vshrl.u32 %v2213, 7
      %v2215 = vsub.s32 %v2212, %v2214
      %v2216 = vrot.slane %v2188, %v2215
      %v2217 = vcombine.low %v2195, %v2202
      %v2218 = vcombine.low %v2209, %v2216
      %v2220 = vunpack.c.l.s4 1966171168
      %v2221 = vunpack.c.0.s8 %v2220
      %v2222 = vlaneseq
      %v2223 = vshrl.u32 %v2222, 7
      %v2224 = vsub.s32 %v2221, %v2223
      %v2225 = vrot.slane %v2217, %v2224
      %v2227 = vunpack.c.l.s4 1966171168
      %v2228 = vunpack.c.0.s8 %v2227
      %v2229 = vlaneseq
      %v2230 = vshrl.u32 %v2229, 7
      %v2231 = vsub.s32 %v2228, %v2230
      %v2232 = vrot.slane %v2218, %v2231
      %v2233 = vcombine.low %v2225, %v2232
      %v2234 = vcombine.low %v1621, %v1635
      %v2235 = vcombine.low %v1643, %v1645
      %v2236 = vcombine.low %v1628, %v1642
      %v2237 = vcombine.low %v1644, %v1669
      %v2239 = vunpack.c.l.s4 1966171168
      %v2240 = vunpack.c.0.s8 %v2239
      %v2241 = vlaneseq
      %v2242 = vshrl.u32 %v2241, 7
      %v2243 = vsub.s32 %v2240, %v2242
      %v2244 = vrot.slane %v2234, %v2243
      %v2246 = vunpack.c.l.s4 1966171168
      %v2247 = vunpack.c.0.s8 %v2246
      %v2248 = vlaneseq
      %v2249 = vshrl.u32 %v2248, 7
      %v2250 = vsub.s32 %v2247, %v2249
      %v2251 = vrot.slane %v2235, %v2250
      %v2253 = vunpack.c.l.s4 1966171168
      %v2254 = vunpack.c.0.s8 %v2253
      %v2255 = vlaneseq
      %v2256 = vshrl.u32 %v2255, 7
      %v2257 = vsub.s32 %v2254, %v2256
      %v2258 = vrot.slane %v2236, %v2257
      %v2260 = vunpack.c.l.s4 1966171168
      %v2261 = vunpack.c.0.s8 %v2260
      %v2262 = vlaneseq
      %v2263 = vshrl.u32 %v2262, 7
      %v2264 = vsub.s32 %v2261, %v2263
      %v2265 = vrot.slane %v2237, %v2264
      %v2266 = vcombine.low %v2244, %v2251
      %v2267 = vcombine.low %v2258, %v2265
      %v2269 = vunpack.c.l.s4 1966171168
      %v2270 = vunpack.c.0.s8 %v2269
      %v2271 = vlaneseq
      %v2272 = vshrl.u32 %v2271, 7
      %v2273 = vsub.s32 %v2270, %v2272
      %v2274 = vrot.slane %v2266, %v2273
      %v2276 = vunpack.c.l.s4 1966171168
      %v2277 = vunpack.c.0.s8 %v2276
      %v2278 = vlaneseq
      %v2279 = vshrl.u32 %v2278, 7
      %v2280 = vsub.s32 %v2277, %v2279
      %v2281 = vrot.slane %v2267, %v2280
      %v2282 = vcombine.low %v2274, %v2281
      %v2283 = vcombine.low %v1683, %v1691
      %v2284 = vcombine.low %v1693, %v1676
      %v2285 = vcombine.low %v1690, %v1692
      %v2286 = vcombine.low %v1717, %v1731
      %v2288 = vunpack.c.l.s4 1966171168
      %v2289 = vunpack.c.0.s8 %v2288
      %v2290 = vlaneseq
      %v2291 = vshrl.u32 %v2290, 7
      %v2292 = vsub.s32 %v2289, %v2291
      %v2293 = vrot.slane %v2283, %v2292
      %v2295 = vunpack.c.l.s4 1966171168
      %v2296 = vunpack.c.0.s8 %v2295
      %v2297 = vlaneseq
      %v2298 = vshrl.u32 %v2297, 7
      %v2299 = vsub.s32 %v2296, %v2298
      %v2300 = vrot.slane %v2284, %v2299
      %v2302 = vunpack.c.l.s4 1966171168
      %v2303 = vunpack.c.0.s8 %v2302
      %v2304 = vlaneseq
      %v2305 = vshrl.u32 %v2304, 7
      %v2306 = vsub.s32 %v2303, %v2305
      %v2307 = vrot.slane %v2285, %v2306
      %v2309 = vunpack.c.l.s4 1966171168
      %v2310 = vunpack.c.0.s8 %v2309
      %v2311 = vlaneseq
      %v2312 = vshrl.u32 %v2311, 7
      %v2313 = vsub.s32 %v2310, %v2312
      %v2314 = vrot.slane %v2286, %v2313
      %v2315 = vcombine.low %v2293, %v2300
      %v2316 = vcombine.low %v2307, %v2314
      %v2318 = vunpack.c.l.s4 1966171168
      %v2319 = vunpack.c.0.s8 %v2318
      %v2320 = vlaneseq
      %v2321 = vshrl.u32 %v2320, 7
      %v2322 = vsub.s32 %v2319, %v2321
      %v2323 = vrot.slane %v2315, %v2322
      %v2325 = vunpack.c.l.s4 1966171168
      %v2326 = vunpack.c.0.s8 %v2325
      %v2327 = vlaneseq
      %v2328 = vshrl.u32 %v2327, 7
      %v2329 = vsub.s32 %v2326, %v2328
      %v2330 = vrot.slane %v2316, %v2329
      %v2331 = vcombine.low %v2323, %v2330
      %v2332 = vcombine.low %v1739, %v1741
      %v2333 = vcombine.low %v1724, %v1738
      %v2334 = vcombine.low %v1740, %v1765
      %v2335 = vcombine.low %v1779, %v1787
      %v2337 = vunpack.c.l.s4 1966171168
      %v2338 = vunpack.c.0.s8 %v2337
      %v2339 = vlaneseq
      %v2340 = vshrl.u32 %v2339, 7
      %v2341 = vsub.s32 %v2338, %v2340
      %v2342 = vrot.slane %v2332, %v2341
      %v2344 = vunpack.c.l.s4 1966171168
      %v2345 = vunpack.c.0.s8 %v2344
      %v2346 = vlaneseq
      %v2347 = vshrl.u32 %v2346, 7
      %v2348 = vsub.s32 %v2345, %v2347
      %v2349 = vrot.slane %v2333, %v2348
      %v2351 = vunpack.c.l.s4 1966171168
      %v2352 = vunpack.c.0.s8 %v2351
      %v2353 = vlaneseq
      %v2354 = vshrl.u32 %v2353, 7
      %v2355 = vsub.s32 %v2352, %v2354
      %v2356 = vrot.slane %v2334, %v2355
      %v2358 = vunpack.c.l.s4 1966171168
      %v2359 = vunpack.c.0.s8 %v2358
      %v2360 = vlaneseq
      %v2361 = vshrl.u32 %v2360, 7
      %v2362 = vsub.s32 %v2359, %v2361
      %v2363 = vrot.slane %v2335, %v2362
      %v2364 = vcombine.low %v2342, %v2349
      %v2365 = vcombine.low %v2356, %v2363
      %v2367 = vunpack.c.l.s4 1966171168
      %v2368 = vunpack.c.0.s8 %v2367
      %v2369 = vlaneseq
      %v2370 = vshrl.u32 %v2369, 7
      %v2371 = vsub.s32 %v2368, %v2370
      %v2372 = vrot.slane %v2364, %v2371
      %v2374 = vunpack.c.l.s4 1966171168
      %v2375 = vunpack.c.0.s8 %v2374
      %v2376 = vlaneseq
      %v2377 = vshrl.u32 %v2376, 7
      %v2378 = vsub.s32 %v2375, %v2377
      %v2379 = vrot.slane %v2365, %v2378
      %v2380 = vcombine.low %v2372, %v2379
      %v2381 = vcombine.low %v1789, %v1772
      %v2382 = vcombine.low %v1786, %v1788
      %v2383 = vcombine.low %v1813, %v1827
      %v2384 = vcombine.low %v1835, %v1837
      %v2386 = vunpack.c.l.s4 1966171168
      %v2387 = vunpack.c.0.s8 %v2386
      %v2388 = vlaneseq
      %v2389 = vshrl.u32 %v2388, 7
      %v2390 = vsub.s32 %v2387, %v2389
      %v2391 = vrot.slane %v2381, %v2390
      %v2393 = vunpack.c.l.s4 1966171168
      %v2394 = vunpack.c.0.s8 %v2393
      %v2395 = vlaneseq
      %v2396 = vshrl.u32 %v2395, 7
      %v2397 = vsub.s32 %v2394, %v2396
      %v2398 = vrot.slane %v2382, %v2397
      %v2400 = vunpack.c.l.s4 1966171168
      %v2401 = vunpack.c.0.s8 %v2400
      %v2402 = vlaneseq
      %v2403 = vshrl.u32 %v2402, 7
      %v2404 = vsub.s32 %v2401, %v2403
      %v2405 = vrot.slane %v2383, %v2404
      %v2407 = vunpack.c.l.s4 1966171168
      %v2408 = vunpack.c.0.s8 %v2407
      %v2409 = vlaneseq
      %v2410 = vshrl.u32 %v2409, 7
      %v2411 = vsub.s32 %v2408, %v2410
      %v2412 = vrot.slane %v2384, %v2411
      %v2413 = vcombine.low %v2391, %v2398
      %v2414 = vcombine.low %v2405, %v2412
      %v2416 = vunpack.c.l.s4 1966171168
      %v2417 = vunpack.c.0.s8 %v2416
      %v2418 = vlaneseq
      %v2419 = vshrl.u32 %v2418, 7
      %v2420 = vsub.s32 %v2417, %v2419
      %v2421 = vrot.slane %v2413, %v2420
      %v2423 = vunpack.c.l.s4 1966171168
      %v2424 = vunpack.c.0.s8 %v2423
      %v2425 = vlaneseq
      %v2426 = vshrl.u32 %v2425, 7
      %v2427 = vsub.s32 %v2424, %v2426
      %v2428 = vrot.slane %v2414, %v2427
      %v2429 = vcombine.low %v2421, %v2428
      %v2430 = vcombine.low %v1820, %v1834
      %v2431 = vcombine.low %v1836, %v1861
      %v2432 = vcombine.low %v1875, %v1883
      %v2433 = vcombine.low %v1885, %v1868
      %v2435 = vunpack.c.l.s4 1966171168
      %v2436 = vunpack.c.0.s8 %v2435
      %v2437 = vlaneseq
      %v2438 = vshrl.u32 %v2437, 7
      %v2439 = vsub.s32 %v2436, %v2438
      %v2440 = vrot.slane %v2430, %v2439
      %v2442 = vunpack.c.l.s4 1966171168
      %v2443 = vunpack.c.0.s8 %v2442
      %v2444 = vlaneseq
      %v2445 = vshrl.u32 %v2444, 7
      %v2446 = vsub.s32 %v2443, %v2445
      %v2447 = vrot.slane %v2431, %v2446
      %v2449 = vunpack.c.l.s4 1966171168
      %v2450 = vunpack.c.0.s8 %v2449
      %v2451 = vlaneseq
      %v2452 = vshrl.u32 %v2451, 7
      %v2453 = vsub.s32 %v2450, %v2452
      %v2454 = vrot.slane %v2432, %v2453
      %v2456 = vunpack.c.l.s4 1966171168
      %v2457 = vunpack.c.0.s8 %v2456
      %v2458 = vlaneseq
      %v2459 = vshrl.u32 %v2458, 7
      %v2460 = vsub.s32 %v2457, %v2459
      %v2461 = vrot.slane %v2433, %v2460
      %v2462 = vcombine.low %v2440, %v2447
      %v2463 = vcombine.low %v2454, %v2461
      %v2465 = vunpack.c.l.s4 1966171168
      %v2466 = vunpack.c.0.s8 %v2465
      %v2467 = vlaneseq
      %v2468 = vshrl.u32 %v2467, 7
      %v2469 = vsub.s32 %v2466, %v2468
      %v2470 = vrot.slane %v2462, %v2469
      %v2472 = vunpack.c.l.s4 1966171168
      %v2473 = vunpack.c.0.s8 %v2472
      %v2474 = vlaneseq
      %v2475 = vshrl.u32 %v2474, 7
      %v2476 = vsub.s32 %v2473, %v2475
      %v2477 = vrot.slane %v2463, %v2476
      %v2478 = vcombine.low %v2470, %v2477
      %v2479 = vcombine.low %v1882, %v1884
      %v2481 = vunpack.c.l.s4 1966171168
      %v2482 = vunpack.c.0.s8 %v2481
      %v2483 = vlaneseq
      %v2484 = vshrl.u32 %v2483, 7
      %v2485 = vsub.s32 %v2482, %v2484
      %v2486 = vrot.slane %v2479, %v2485
      %v2488 = vunpack.c.l.s4 1966171168
      %v2489 = vunpack.c.0.s8 %v2488
      %v2490 = vlaneseq
      %v2491 = vshrl.u32 %v2490, 7
      %v2492 = vsub.s32 %v2489, %v2491
      %v2493 = vrot.slane %v2486, %v2492
      %v2499 = vunpack.c.l.b16 %v1886
      %v2500 = vunpack.c.l.b16 %v1887
      %v2501 = vunpack.c.l.b16 %v1888
      %v2502 = vunpack.c.l.b16 %v1889
      %v2503 = vunpack.c.l.b16 %v1890
      %v2504 = vpack.c.b16 %v2500, %v2499
      %v2505 = vpack.c.b16 %v2502, %v2501
      %v2506 = vpack.c.b16 %v2503, %v2503
      %vm2509 = vcmask 293888
      %v2511 = vsel %vm2509, %v1939, 0
      %v2514 = vsel %vm2509, %v1988, 0
      %v2517 = vsel %vm2509, %v2037, 0
      %v2520 = vsel %vm2509, %v2086, 0
      %v2523 = vsel %vm2509, %v2135, 0
      %v2526 = vsel %vm2509, %v2184, 0
      %v2529 = vsel %vm2509, %v2233, 0
      %v2532 = vsel %vm2509, %v2282, 0
      %v2535 = vsel %vm2509, %v2331, 0
      %v2538 = vsel %vm2509, %v2380, 0
      %v2541 = vsel %vm2509, %v2429, 0
      %v2544 = vsel %vm2509, %v2478, 0
      %v2547 = vsel %vm2509, %v2493, 0
      %vm2549 = vcmask 1041408
      %v2551 = vsel %vm2549, %v2506, 0
      %2553 = vmatprep.subr.bf16.mxu0 0
      %2554 = vmatpush1.bf16.msra.mxu0 0
      %2555 = vmatprep.subr.bf16.mxu0 0
      %2556 = vmatpush1.bf16.msra.mxu0 0
      %2557 = vmatprep.subr.bf16.mxu0 0
      %2558 = vmatpush1.bf16.msra.mxu0 0
      %2559 = vmatprep.subr.bf16.mxu0 0
      %2560 = vmatpush1.bf16.msra.mxu0 0
      %2561 = vmatprep.subr.bf16.mxu0 0
      %2562 = vmatpush1.bf16.msra.mxu0 0
      %2563 = vmatprep.subr.bf16.mxu0 0
      %2564 = vmatpush1.bf16.msra.mxu0 %v2551
      %2565 = vmatprep.subr.bf16.mxu0 0
      %2566 = vmatpush1.bf16.msra.mxu0 %v2505
      %2567 = vmatprep.subr.bf16.mxu0 0
      %2568 = vmatpush1.bf16.msra.mxu0 %v2504
      %2569 = vmatprep.subr.bf16.mxu0 0
      %2570 = vmatpush2.bf16.msra.mxu0 0
      %2571 = vmatprep.subr.bf16.mxu0 0
      %2572 = vmatpush2.bf16.msra.mxu0 0
      %2573 = vmatprep.subr.bf16.mxu0 0
      %2574 = vmatpush2.bf16.msra.mxu0 0
      %2575 = vmatprep.subr.bf16.mxu0 0
      %2576 = vmatpush2.bf16.msra.mxu0 0
      %2577 = vmatprep.subr.bf16.mxu0 0
      %2578 = vmatpush2.bf16.msra.mxu0 0
      %2579 = vmatprep.subr.bf16.mxu0 0
      %2580 = vmatpush2.bf16.msra.mxu0 0
      %2581 = vmatprep.subr.bf16.mxu0 0
      %2582 = vmatpush2.bf16.msra.mxu0 0
      %2583 = vmatprep.subr.bf16.mxu0 0
      %2584 = vmatpush2.bf16.msra.mxu0 0
      %2585 = vmatprep.mubr.bf16.mxu0 0
      %2586 = vmatmul.mubr.bf16.gmra.mxu0 %v2511
      %v2587 = vpop.f32.mrf.mxu0
      %v2588 = vadd.f32 0.0, %v2587
      %v2589 = vpop.f32.mrf.mxu0
      %v2590 = vpop.f32.mrf.mxu0
      %v2591 = vadd.f32 0.0, %v2590
      %v2592 = vpop.f32.mrf.mxu0
      %2593 = vmatprep.mubr.bf16.mxu0 0
      %2594 = vmatmul.mubr.bf16.gmra.mxu0 %v2514
      %v2595 = vpop.f32.mrf.mxu0
      %v2596 = vadd.f32 0.0, %v2595
      %v2597 = vpop.f32.mrf.mxu0
      %v2598 = vpop.f32.mrf.mxu0
      %v2599 = vadd.f32 0.0, %v2598
      %v2600 = vpop.f32.mrf.mxu0
      %2601 = vmatprep.mubr.bf16.mxu0 0
      %2602 = vmatmul.mubr.bf16.gmra.mxu0 %v2517
      %v2603 = vpop.f32.mrf.mxu0
      %v2604 = vadd.f32 0.0, %v2603
      %v2605 = vpop.f32.mrf.mxu0
      %v2606 = vpop.f32.mrf.mxu0
      %v2607 = vadd.f32 0.0, %v2606
      %v2608 = vpop.f32.mrf.mxu0
      %2609 = vmatprep.mubr.bf16.mxu0 0
      %2610 = vmatmul.mubr.bf16.gmra.mxu0 %v2520
      %v2611 = vpop.f32.mrf.mxu0
      %v2612 = vadd.f32 0.0, %v2611
      %v2613 = vpop.f32.mrf.mxu0
      %v2614 = vpop.f32.mrf.mxu0
      %v2615 = vadd.f32 0.0, %v2614
      %v2616 = vpop.f32.mrf.mxu0
      %2617 = vmatprep.mubr.bf16.mxu0 0
      %2618 = vmatmul.mubr.bf16.gmra.mxu0 %v2523
      %v2619 = vpop.f32.mrf.mxu0
      %v2620 = vadd.f32 0.0, %v2619
      %v2621 = vpop.f32.mrf.mxu0
      %v2622 = vpop.f32.mrf.mxu0
      %v2623 = vadd.f32 0.0, %v2622
      %v2624 = vpop.f32.mrf.mxu0
      %2625 = vmatprep.mubr.bf16.mxu0 0
      %2626 = vmatmul.mubr.bf16.gmra.mxu0 %v2526
      %v2627 = vpop.f32.mrf.mxu0
      %v2628 = vadd.f32 0.0, %v2627
      %v2629 = vpop.f32.mrf.mxu0
      %v2630 = vpop.f32.mrf.mxu0
      %v2631 = vadd.f32 0.0, %v2630
      %v2632 = vpop.f32.mrf.mxu0
      %2633 = vmatprep.mubr.bf16.mxu0 0
      %2634 = vmatmul.mubr.bf16.gmra.mxu0 %v2529
      %v2635 = vpop.f32.mrf.mxu0
      %v2636 = vadd.f32 0.0, %v2635
      %v2637 = vpop.f32.mrf.mxu0
      %v2638 = vpop.f32.mrf.mxu0
      %v2639 = vadd.f32 0.0, %v2638
      %v2640 = vpop.f32.mrf.mxu0
      %2641 = vmatprep.mubr.bf16.mxu0 0
      %2642 = vmatmul.mubr.bf16.gmra.mxu0 %v2532
      %v2643 = vpop.f32.mrf.mxu0
      %v2644 = vadd.f32 0.0, %v2643
      %v2645 = vpop.f32.mrf.mxu0
      %v2646 = vpop.f32.mrf.mxu0
      %v2647 = vadd.f32 0.0, %v2646
      %v2648 = vpop.f32.mrf.mxu0
      %2649 = vmatprep.mubr.bf16.mxu0 0
      %2650 = vmatmul.mubr.bf16.gmra.mxu0 %v2535
      %v2651 = vpop.f32.mrf.mxu0
      %v2652 = vadd.f32 0.0, %v2651
      %v2653 = vpop.f32.mrf.mxu0
      %v2654 = vpop.f32.mrf.mxu0
      %v2655 = vadd.f32 0.0, %v2654
      %v2656 = vpop.f32.mrf.mxu0
      %2657 = vmatprep.mubr.bf16.mxu0 0
      %2658 = vmatmul.mubr.bf16.gmra.mxu0 %v2538
      %v2659 = vpop.f32.mrf.mxu0
      %v2660 = vadd.f32 0.0, %v2659
      %v2661 = vpop.f32.mrf.mxu0
      %v2662 = vpop.f32.mrf.mxu0
      %v2663 = vadd.f32 0.0, %v2662
      %v2664 = vpop.f32.mrf.mxu0
      %2665 = vmatprep.mubr.bf16.mxu0 0
      %2666 = vmatmul.mubr.bf16.gmra.mxu0 %v2541
      %v2667 = vpop.f32.mrf.mxu0
      %v2668 = vadd.f32 0.0, %v2667
      %v2669 = vpop.f32.mrf.mxu0
      %v2670 = vpop.f32.mrf.mxu0
      %v2671 = vadd.f32 0.0, %v2670
      %v2672 = vpop.f32.mrf.mxu0
      %2673 = vmatprep.mubr.bf16.mxu0 0
      %2674 = vmatmul.mubr.bf16.gmra.mxu0 %v2544
      %v2675 = vpop.f32.mrf.mxu0
      %v2676 = vadd.f32 0.0, %v2675
      %v2677 = vpop.f32.mrf.mxu0
      %v2678 = vpop.f32.mrf.mxu0
      %v2679 = vadd.f32 0.0, %v2678
      %v2680 = vpop.f32.mrf.mxu0
      %2681 = vmatprep.mubr.bf16.mxu0 0
      %2682 = vmatmul.mubr.bf16.gmra.mxu0 %v2547
      %v2683 = vpop.f32.mrf.mxu0
      %v2684 = vadd.f32 0.0, %v2683
      %v2685 = vpop.f32.mrf.mxu0
      %v2686 = vpop.f32.mrf.mxu0
      %v2687 = vpop.f32.mrf.mxu0
      %2688 = vdwg.mxu0
      %v2714 = vcombine.high %v2588, %v2588
      %v2716 = vunpack.c.l.s4 1983009808
      %v2717 = vunpack.c.0.s8 %v2716
      %v2718 = vlaneseq
      %v2719 = vshrl.u32 %v2718, 7
      %v2720 = vsub.s32 %v2717, %v2719
      %v2721 = vrot.slane %v2588, %v2720
      %v2723 = vunpack.c.l.s4 1983009808
      %v2724 = vunpack.c.0.s8 %v2723
      %v2725 = vlaneseq
      %v2726 = vshrl.u32 %v2725, 7
      %v2727 = vsub.s32 %v2724, %v2726
      %v2728 = vrot.slane %v2714, %v2727
      %v2729 = vcombine.high %v2721, %v2721
      %v2730 = vcombine.high %v2728, %v2728
      %v2731 = vcombine.high %v2591, %v2591
      %v2733 = vunpack.c.l.s4 1983009808
      %v2734 = vunpack.c.0.s8 %v2733
      %v2735 = vlaneseq
      %v2736 = vshrl.u32 %v2735, 7
      %v2737 = vsub.s32 %v2734, %v2736
      %v2738 = vrot.slane %v2591, %v2737
      %v2740 = vunpack.c.l.s4 1983009808
      %v2741 = vunpack.c.0.s8 %v2740
      %v2742 = vlaneseq
      %v2743 = vshrl.u32 %v2742, 7
      %v2744 = vsub.s32 %v2741, %v2743
      %v2745 = vrot.slane %v2731, %v2744
      %v2746 = vcombine.high %v2738, %v2738
      %v2747 = vcombine.high %v2745, %v2745
      %v2748 = vcombine.high %v2596, %v2596
      %v2750 = vunpack.c.l.s4 1983009808
      %v2751 = vunpack.c.0.s8 %v2750
      %v2752 = vlaneseq
      %v2753 = vshrl.u32 %v2752, 7
      %v2754 = vsub.s32 %v2751, %v2753
      %v2755 = vrot.slane %v2596, %v2754
      %v2757 = vunpack.c.l.s4 1983009808
      %v2758 = vunpack.c.0.s8 %v2757
      %v2759 = vlaneseq
      %v2760 = vshrl.u32 %v2759, 7
      %v2761 = vsub.s32 %v2758, %v2760
      %v2762 = vrot.slane %v2748, %v2761
      %v2763 = vcombine.high %v2755, %v2755
      %v2764 = vcombine.high %v2762, %v2762
      %v2765 = vcombine.high %v2599, %v2599
      %v2767 = vunpack.c.l.s4 1983009808
      %v2768 = vunpack.c.0.s8 %v2767
      %v2769 = vlaneseq
      %v2770 = vshrl.u32 %v2769, 7
      %v2771 = vsub.s32 %v2768, %v2770
      %v2772 = vrot.slane %v2599, %v2771
      %v2774 = vunpack.c.l.s4 1983009808
      %v2775 = vunpack.c.0.s8 %v2774
      %v2776 = vlaneseq
      %v2777 = vshrl.u32 %v2776, 7
      %v2778 = vsub.s32 %v2775, %v2777
      %v2779 = vrot.slane %v2765, %v2778
      %v2780 = vcombine.high %v2772, %v2772
      %v2781 = vcombine.high %v2779, %v2779
      %v2782 = vcombine.high %v2604, %v2604
      %v2784 = vunpack.c.l.s4 1983009808
      %v2785 = vunpack.c.0.s8 %v2784
      %v2786 = vlaneseq
      %v2787 = vshrl.u32 %v2786, 7
      %v2788 = vsub.s32 %v2785, %v2787
      %v2789 = vrot.slane %v2604, %v2788
      %v2791 = vunpack.c.l.s4 1983009808
      %v2792 = vunpack.c.0.s8 %v2791
      %v2793 = vlaneseq
      %v2794 = vshrl.u32 %v2793, 7
      %v2795 = vsub.s32 %v2792, %v2794
      %v2796 = vrot.slane %v2782, %v2795
      %v2797 = vcombine.high %v2789, %v2789
      %v2798 = vcombine.high %v2796, %v2796
      %v2799 = vcombine.high %v2607, %v2607
      %v2801 = vunpack.c.l.s4 1983009808
      %v2802 = vunpack.c.0.s8 %v2801
      %v2803 = vlaneseq
      %v2804 = vshrl.u32 %v2803, 7
      %v2805 = vsub.s32 %v2802, %v2804
      %v2806 = vrot.slane %v2607, %v2805
      %v2808 = vunpack.c.l.s4 1983009808
      %v2809 = vunpack.c.0.s8 %v2808
      %v2810 = vlaneseq
      %v2811 = vshrl.u32 %v2810, 7
      %v2812 = vsub.s32 %v2809, %v2811
      %v2813 = vrot.slane %v2799, %v2812
      %v2814 = vcombine.high %v2806, %v2806
      %v2815 = vcombine.high %v2813, %v2813
      %v2816 = vcombine.high %v2612, %v2612
      %v2818 = vunpack.c.l.s4 1983009808
      %v2819 = vunpack.c.0.s8 %v2818
      %v2820 = vlaneseq
      %v2821 = vshrl.u32 %v2820, 7
      %v2822 = vsub.s32 %v2819, %v2821
      %v2823 = vrot.slane %v2612, %v2822
      %v2825 = vunpack.c.l.s4 1983009808
      %v2826 = vunpack.c.0.s8 %v2825
      %v2827 = vlaneseq
      %v2828 = vshrl.u32 %v2827, 7
      %v2829 = vsub.s32 %v2826, %v2828
      %v2830 = vrot.slane %v2816, %v2829
      %v2831 = vcombine.high %v2823, %v2823
      %v2832 = vcombine.high %v2830, %v2830
      %v2833 = vcombine.high %v2615, %v2615
      %v2835 = vunpack.c.l.s4 1983009808
      %v2836 = vunpack.c.0.s8 %v2835
      %v2837 = vlaneseq
      %v2838 = vshrl.u32 %v2837, 7
      %v2839 = vsub.s32 %v2836, %v2838
      %v2840 = vrot.slane %v2615, %v2839
      %v2842 = vunpack.c.l.s4 1983009808
      %v2843 = vunpack.c.0.s8 %v2842
      %v2844 = vlaneseq
      %v2845 = vshrl.u32 %v2844, 7
      %v2846 = vsub.s32 %v2843, %v2845
      %v2847 = vrot.slane %v2833, %v2846
      %v2848 = vcombine.high %v2840, %v2840
      %v2849 = vcombine.high %v2847, %v2847
      %v2850 = vcombine.high %v2620, %v2620
      %v2852 = vunpack.c.l.s4 1983009808
      %v2853 = vunpack.c.0.s8 %v2852
      %v2854 = vlaneseq
      %v2855 = vshrl.u32 %v2854, 7
      %v2856 = vsub.s32 %v2853, %v2855
      %v2857 = vrot.slane %v2620, %v2856
      %v2859 = vunpack.c.l.s4 1983009808
      %v2860 = vunpack.c.0.s8 %v2859
      %v2861 = vlaneseq
      %v2862 = vshrl.u32 %v2861, 7
      %v2863 = vsub.s32 %v2860, %v2862
      %v2864 = vrot.slane %v2850, %v2863
      %v2865 = vcombine.high %v2857, %v2857
      %v2866 = vcombine.high %v2864, %v2864
      %v2867 = vcombine.high %v2623, %v2623
      %v2869 = vunpack.c.l.s4 1983009808
      %v2870 = vunpack.c.0.s8 %v2869
      %v2871 = vlaneseq
      %v2872 = vshrl.u32 %v2871, 7
      %v2873 = vsub.s32 %v2870, %v2872
      %v2874 = vrot.slane %v2623, %v2873
      %v2876 = vunpack.c.l.s4 1983009808
      %v2877 = vunpack.c.0.s8 %v2876
      %v2878 = vlaneseq
      %v2879 = vshrl.u32 %v2878, 7
      %v2880 = vsub.s32 %v2877, %v2879
      %v2881 = vrot.slane %v2867, %v2880
      %v2882 = vcombine.high %v2874, %v2874
      %v2883 = vcombine.high %v2881, %v2881
      %v2884 = vcombine.high %v2628, %v2628
      %v2886 = vunpack.c.l.s4 1983009808
      %v2887 = vunpack.c.0.s8 %v2886
      %v2888 = vlaneseq
      %v2889 = vshrl.u32 %v2888, 7
      %v2890 = vsub.s32 %v2887, %v2889
      %v2891 = vrot.slane %v2628, %v2890
      %v2893 = vunpack.c.l.s4 1983009808
      %v2894 = vunpack.c.0.s8 %v2893
      %v2895 = vlaneseq
      %v2896 = vshrl.u32 %v2895, 7
      %v2897 = vsub.s32 %v2894, %v2896
      %v2898 = vrot.slane %v2884, %v2897
      %v2899 = vcombine.high %v2891, %v2891
      %v2900 = vcombine.high %v2898, %v2898
      %v2901 = vcombine.high %v2631, %v2631
      %v2903 = vunpack.c.l.s4 1983009808
      %v2904 = vunpack.c.0.s8 %v2903
      %v2905 = vlaneseq
      %v2906 = vshrl.u32 %v2905, 7
      %v2907 = vsub.s32 %v2904, %v2906
      %v2908 = vrot.slane %v2631, %v2907
      %v2910 = vunpack.c.l.s4 1983009808
      %v2911 = vunpack.c.0.s8 %v2910
      %v2912 = vlaneseq
      %v2913 = vshrl.u32 %v2912, 7
      %v2914 = vsub.s32 %v2911, %v2913
      %v2915 = vrot.slane %v2901, %v2914
      %v2916 = vcombine.high %v2908, %v2908
      %v2917 = vcombine.high %v2915, %v2915
      %v2918 = vcombine.high %v2636, %v2636
      %v2920 = vunpack.c.l.s4 1983009808
      %v2921 = vunpack.c.0.s8 %v2920
      %v2922 = vlaneseq
      %v2923 = vshrl.u32 %v2922, 7
      %v2924 = vsub.s32 %v2921, %v2923
      %v2925 = vrot.slane %v2636, %v2924
      %v2927 = vunpack.c.l.s4 1983009808
      %v2928 = vunpack.c.0.s8 %v2927
      %v2929 = vlaneseq
      %v2930 = vshrl.u32 %v2929, 7
      %v2931 = vsub.s32 %v2928, %v2930
      %v2932 = vrot.slane %v2918, %v2931
      %v2933 = vcombine.high %v2925, %v2925
      %v2934 = vcombine.high %v2932, %v2932
      %v2935 = vcombine.high %v2639, %v2639
      %v2937 = vunpack.c.l.s4 1983009808
      %v2938 = vunpack.c.0.s8 %v2937
      %v2939 = vlaneseq
      %v2940 = vshrl.u32 %v2939, 7
      %v2941 = vsub.s32 %v2938, %v2940
      %v2942 = vrot.slane %v2639, %v2941
      %v2944 = vunpack.c.l.s4 1983009808
      %v2945 = vunpack.c.0.s8 %v2944
      %v2946 = vlaneseq
      %v2947 = vshrl.u32 %v2946, 7
      %v2948 = vsub.s32 %v2945, %v2947
      %v2949 = vrot.slane %v2935, %v2948
      %v2950 = vcombine.high %v2942, %v2942
      %v2951 = vcombine.high %v2949, %v2949
      %v2952 = vcombine.high %v2644, %v2644
      %v2954 = vunpack.c.l.s4 1983009808
      %v2955 = vunpack.c.0.s8 %v2954
      %v2956 = vlaneseq
      %v2957 = vshrl.u32 %v2956, 7
      %v2958 = vsub.s32 %v2955, %v2957
      %v2959 = vrot.slane %v2644, %v2958
      %v2961 = vunpack.c.l.s4 1983009808
      %v2962 = vunpack.c.0.s8 %v2961
      %v2963 = vlaneseq
      %v2964 = vshrl.u32 %v2963, 7
      %v2965 = vsub.s32 %v2962, %v2964
      %v2966 = vrot.slane %v2952, %v2965
      %v2967 = vcombine.high %v2959, %v2959
      %v2968 = vcombine.high %v2966, %v2966
      %v2969 = vcombine.high %v2647, %v2647
      %v2971 = vunpack.c.l.s4 1983009808
      %v2972 = vunpack.c.0.s8 %v2971
      %v2973 = vlaneseq
      %v2974 = vshrl.u32 %v2973, 7
      %v2975 = vsub.s32 %v2972, %v2974
      %v2976 = vrot.slane %v2647, %v2975
      %v2978 = vunpack.c.l.s4 1983009808
      %v2979 = vunpack.c.0.s8 %v2978
      %v2980 = vlaneseq
      %v2981 = vshrl.u32 %v2980, 7
      %v2982 = vsub.s32 %v2979, %v2981
      %v2983 = vrot.slane %v2969, %v2982
      %v2984 = vcombine.high %v2976, %v2976
      %v2985 = vcombine.high %v2983, %v2983
      %v2986 = vcombine.high %v2652, %v2652
      %v2988 = vunpack.c.l.s4 1983009808
      %v2989 = vunpack.c.0.s8 %v2988
      %v2990 = vlaneseq
      %v2991 = vshrl.u32 %v2990, 7
      %v2992 = vsub.s32 %v2989, %v2991
      %v2993 = vrot.slane %v2652, %v2992
      %v2995 = vunpack.c.l.s4 1983009808
      %v2996 = vunpack.c.0.s8 %v2995
      %v2997 = vlaneseq
      %v2998 = vshrl.u32 %v2997, 7
      %v2999 = vsub.s32 %v2996, %v2998
      %v3000 = vrot.slane %v2986, %v2999
      %v3001 = vcombine.high %v2993, %v2993
      %v3002 = vcombine.high %v3000, %v3000
      %v3003 = vcombine.high %v2655, %v2655
      %v3005 = vunpack.c.l.s4 1983009808
      %v3006 = vunpack.c.0.s8 %v3005
      %v3007 = vlaneseq
      %v3008 = vshrl.u32 %v3007, 7
      %v3009 = vsub.s32 %v3006, %v3008
      %v3010 = vrot.slane %v2655, %v3009
      %v3012 = vunpack.c.l.s4 1983009808
      %v3013 = vunpack.c.0.s8 %v3012
      %v3014 = vlaneseq
      %v3015 = vshrl.u32 %v3014, 7
      %v3016 = vsub.s32 %v3013, %v3015
      %v3017 = vrot.slane %v3003, %v3016
      %v3018 = vcombine.high %v3010, %v3010
      %v3019 = vcombine.high %v3017, %v3017
      %v3020 = vcombine.high %v2660, %v2660
      %v3022 = vunpack.c.l.s4 1983009808
      %v3023 = vunpack.c.0.s8 %v3022
      %v3024 = vlaneseq
      %v3025 = vshrl.u32 %v3024, 7
      %v3026 = vsub.s32 %v3023, %v3025
      %v3027 = vrot.slane %v2660, %v3026
      %v3029 = vunpack.c.l.s4 1983009808
      %v3030 = vunpack.c.0.s8 %v3029
      %v3031 = vlaneseq
      %v3032 = vshrl.u32 %v3031, 7
      %v3033 = vsub.s32 %v3030, %v3032
      %v3034 = vrot.slane %v3020, %v3033
      %v3035 = vcombine.high %v3027, %v3027
      %v3036 = vcombine.high %v3034, %v3034
      %v3037 = vcombine.high %v2663, %v2663
      %v3039 = vunpack.c.l.s4 1983009808
      %v3040 = vunpack.c.0.s8 %v3039
      %v3041 = vlaneseq
      %v3042 = vshrl.u32 %v3041, 7
      %v3043 = vsub.s32 %v3040, %v3042
      %v3044 = vrot.slane %v2663, %v3043
      %v3046 = vunpack.c.l.s4 1983009808
      %v3047 = vunpack.c.0.s8 %v3046
      %v3048 = vlaneseq
      %v3049 = vshrl.u32 %v3048, 7
      %v3050 = vsub.s32 %v3047, %v3049
      %v3051 = vrot.slane %v3037, %v3050
      %v3052 = vcombine.high %v3044, %v3044
      %v3053 = vcombine.high %v3051, %v3051
      %v3054 = vcombine.high %v2668, %v2668
      %v3056 = vunpack.c.l.s4 1983009808
      %v3057 = vunpack.c.0.s8 %v3056
      %v3058 = vlaneseq
      %v3059 = vshrl.u32 %v3058, 7
      %v3060 = vsub.s32 %v3057, %v3059
      %v3061 = vrot.slane %v2668, %v3060
      %v3063 = vunpack.c.l.s4 1983009808
      %v3064 = vunpack.c.0.s8 %v3063
      %v3065 = vlaneseq
      %v3066 = vshrl.u32 %v3065, 7
      %v3067 = vsub.s32 %v3064, %v3066
      %v3068 = vrot.slane %v3054, %v3067
      %v3069 = vcombine.high %v3061, %v3061
      %v3070 = vcombine.high %v3068, %v3068
      %v3071 = vcombine.high %v2671, %v2671
      %v3073 = vunpack.c.l.s4 1983009808
      %v3074 = vunpack.c.0.s8 %v3073
      %v3075 = vlaneseq
      %v3076 = vshrl.u32 %v3075, 7
      %v3077 = vsub.s32 %v3074, %v3076
      %v3078 = vrot.slane %v2671, %v3077
      %v3080 = vunpack.c.l.s4 1983009808
      %v3081 = vunpack.c.0.s8 %v3080
      %v3082 = vlaneseq
      %v3083 = vshrl.u32 %v3082, 7
      %v3084 = vsub.s32 %v3081, %v3083
      %v3085 = vrot.slane %v3071, %v3084
      %v3086 = vcombine.high %v3078, %v3078
      %v3087 = vcombine.high %v3085, %v3085
      %v3088 = vcombine.high %v2676, %v2676
      %v3090 = vunpack.c.l.s4 1983009808
      %v3091 = vunpack.c.0.s8 %v3090
      %v3092 = vlaneseq
      %v3093 = vshrl.u32 %v3092, 7
      %v3094 = vsub.s32 %v3091, %v3093
      %v3095 = vrot.slane %v2676, %v3094
      %v3097 = vunpack.c.l.s4 1983009808
      %v3098 = vunpack.c.0.s8 %v3097
      %v3099 = vlaneseq
      %v3100 = vshrl.u32 %v3099, 7
      %v3101 = vsub.s32 %v3098, %v3100
      %v3102 = vrot.slane %v3088, %v3101
      %v3103 = vcombine.high %v3095, %v3095
      %v3104 = vcombine.high %v3102, %v3102
      %v3105 = vcombine.high %v2679, %v2679
      %v3107 = vunpack.c.l.s4 1983009808
      %v3108 = vunpack.c.0.s8 %v3107
      %v3109 = vlaneseq
      %v3110 = vshrl.u32 %v3109, 7
      %v3111 = vsub.s32 %v3108, %v3110
      %v3112 = vrot.slane %v2679, %v3111
      %v3114 = vunpack.c.l.s4 1983009808
      %v3115 = vunpack.c.0.s8 %v3114
      %v3116 = vlaneseq
      %v3117 = vshrl.u32 %v3116, 7
      %v3118 = vsub.s32 %v3115, %v3117
      %v3119 = vrot.slane %v3105, %v3118
      %v3120 = vcombine.high %v3112, %v3112
      %v3121 = vcombine.high %v3119, %v3119
      %v3123 = vunpack.c.l.s4 1983009808
      %v3124 = vunpack.c.0.s8 %v3123
      %v3125 = vlaneseq
      %v3126 = vshrl.u32 %v3125, 7
      %v3127 = vsub.s32 %v3124, %v3126
      %v3128 = vrot.slane %v2684, %v3127
      %v3129 = vcombine.high %v3128, %v3128
      %v3130 = vcombine.low %v2721, %v2729
      %v3131 = vcombine.low %v2728, %v2730
      %v3133 = vunpack.c.l.s4 1983009808
      %v3134 = vunpack.c.0.s8 %v3133
      %v3135 = vlaneseq
      %v3136 = vshrl.u32 %v3135, 7
      %v3137 = vsub.s32 %v3134, %v3136
      %v3138 = vrot.slane %v3130, %v3137
      %v3140 = vunpack.c.l.s4 1983009808
      %v3141 = vunpack.c.0.s8 %v3140
      %v3142 = vlaneseq
      %v3143 = vshrl.u32 %v3142, 7
      %v3144 = vsub.s32 %v3141, %v3143
      %v3145 = vrot.slane %v3131, %v3144
      %v3146 = vcombine.low %v3138, %v3145
      %v3147 = vcombine.low %v2738, %v2746
      %v3149 = vunpack.c.l.s4 1983009808
      %v3150 = vunpack.c.0.s8 %v3149
      %v3151 = vlaneseq
      %v3152 = vshrl.u32 %v3151, 7
      %v3153 = vsub.s32 %v3150, %v3152
      %v3154 = vrot.slane %v3147, %v3153
      %v3156 = vunpack.c.l.s4 1983009808
      %v3157 = vunpack.c.0.s8 %v3156
      %v3158 = vlaneseq
      %v3159 = vshrl.u32 %v3158, 7
      %v3160 = vsub.s32 %v3157, %v3159
      %v3161 = vrot.slane %v2745, %v3160
      %v3162 = vcombine.low %v3154, %v3161
      %v3163 = vcombine.low %v2747, %v2755
      %v3164 = vcombine.low %v2763, %v2762
      %v3166 = vunpack.c.l.s4 1983009808
      %v3167 = vunpack.c.0.s8 %v3166
      %v3168 = vlaneseq
      %v3169 = vshrl.u32 %v3168, 7
      %v3170 = vsub.s32 %v3167, %v3169
      %v3171 = vrot.slane %v3163, %v3170
      %v3173 = vunpack.c.l.s4 1983009808
      %v3174 = vunpack.c.0.s8 %v3173
      %v3175 = vlaneseq
      %v3176 = vshrl.u32 %v3175, 7
      %v3177 = vsub.s32 %v3174, %v3176
      %v3178 = vrot.slane %v3164, %v3177
      %v3179 = vcombine.low %v3171, %v3178
      %v3180 = vcombine.low %v2764, %v2772
      %v3182 = vunpack.c.l.s4 1983009808
      %v3183 = vunpack.c.0.s8 %v3182
      %v3184 = vlaneseq
      %v3185 = vshrl.u32 %v3184, 7
      %v3186 = vsub.s32 %v3183, %v3185
      %v3187 = vrot.slane %v3180, %v3186
      %v3189 = vunpack.c.l.s4 1983009808
      %v3190 = vunpack.c.0.s8 %v3189
      %v3191 = vlaneseq
      %v3192 = vshrl.u32 %v3191, 7
      %v3193 = vsub.s32 %v3190, %v3192
      %v3194 = vrot.slane %v2780, %v3193
      %v3195 = vcombine.low %v3187, %v3194
      %v3196 = vcombine.low %v2779, %v2781
      %v3197 = vcombine.low %v2789, %v2797
      %v3199 = vunpack.c.l.s4 1983009808
      %v3200 = vunpack.c.0.s8 %v3199
      %v3201 = vlaneseq
      %v3202 = vshrl.u32 %v3201, 7
      %v3203 = vsub.s32 %v3200, %v3202
      %v3204 = vrot.slane %v3196, %v3203
      %v3206 = vunpack.c.l.s4 1983009808
      %v3207 = vunpack.c.0.s8 %v3206
      %v3208 = vlaneseq
      %v3209 = vshrl.u32 %v3208, 7
      %v3210 = vsub.s32 %v3207, %v3209
      %v3211 = vrot.slane %v3197, %v3210
      %v3212 = vcombine.low %v3204, %v3211
      %v3213 = vcombine.low %v2796, %v2798
      %v3215 = vunpack.c.l.s4 1983009808
      %v3216 = vunpack.c.0.s8 %v3215
      %v3217 = vlaneseq
      %v3218 = vshrl.u32 %v3217, 7
      %v3219 = vsub.s32 %v3216, %v3218
      %v3220 = vrot.slane %v3213, %v3219
      %v3222 = vunpack.c.l.s4 1983009808
      %v3223 = vunpack.c.0.s8 %v3222
      %v3224 = vlaneseq
      %v3225 = vshrl.u32 %v3224, 7
      %v3226 = vsub.s32 %v3223, %v3225
      %v3227 = vrot.slane %v2806, %v3226
      %v3228 = vcombine.low %v3220, %v3227
      %v3229 = vcombine.low %v2814, %v2813
      %v3230 = vcombine.low %v2815, %v2823
      %v3232 = vunpack.c.l.s4 1983009808
      %v3233 = vunpack.c.0.s8 %v3232
      %v3234 = vlaneseq
      %v3235 = vshrl.u32 %v3234, 7
      %v3236 = vsub.s32 %v3233, %v3235
      %v3237 = vrot.slane %v3229, %v3236
      %v3239 = vunpack.c.l.s4 1983009808
      %v3240 = vunpack.c.0.s8 %v3239
      %v3241 = vlaneseq
      %v3242 = vshrl.u32 %v3241, 7
      %v3243 = vsub.s32 %v3240, %v3242
      %v3244 = vrot.slane %v3230, %v3243
      %v3245 = vcombine.low %v3237, %v3244
      %v3246 = vcombine.low %v2831, %v2830
      %v3248 = vunpack.c.l.s4 1983009808
      %v3249 = vunpack.c.0.s8 %v3248
      %v3250 = vlaneseq
      %v3251 = vshrl.u32 %v3250, 7
      %v3252 = vsub.s32 %v3249, %v3251
      %v3253 = vrot.slane %v3246, %v3252
      %v3255 = vunpack.c.l.s4 1983009808
      %v3256 = vunpack.c.0.s8 %v3255
      %v3257 = vlaneseq
      %v3258 = vshrl.u32 %v3257, 7
      %v3259 = vsub.s32 %v3256, %v3258
      %v3260 = vrot.slane %v2832, %v3259
      %v3261 = vcombine.low %v3253, %v3260
      %v3262 = vcombine.low %v2840, %v2848
      %v3263 = vcombine.low %v2847, %v2849
      %v3265 = vunpack.c.l.s4 1983009808
      %v3266 = vunpack.c.0.s8 %v3265
      %v3267 = vlaneseq
      %v3268 = vshrl.u32 %v3267, 7
      %v3269 = vsub.s32 %v3266, %v3268
      %v3270 = vrot.slane %v3262, %v3269
      %v3272 = vunpack.c.l.s4 1983009808
      %v3273 = vunpack.c.0.s8 %v3272
      %v3274 = vlaneseq
      %v3275 = vshrl.u32 %v3274, 7
      %v3276 = vsub.s32 %v3273, %v3275
      %v3277 = vrot.slane %v3263, %v3276
      %v3278 = vcombine.low %v3270, %v3277
      %v3279 = vcombine.low %v2857, %v2865
      %v3281 = vunpack.c.l.s4 1983009808
      %v3282 = vunpack.c.0.s8 %v3281
      %v3283 = vlaneseq
      %v3284 = vshrl.u32 %v3283, 7
      %v3285 = vsub.s32 %v3282, %v3284
      %v3286 = vrot.slane %v3279, %v3285
      %v3288 = vunpack.c.l.s4 1983009808
      %v3289 = vunpack.c.0.s8 %v3288
      %v3290 = vlaneseq
      %v3291 = vshrl.u32 %v3290, 7
      %v3292 = vsub.s32 %v3289, %v3291
      %v3293 = vrot.slane %v2864, %v3292
      %v3294 = vcombine.low %v3286, %v3293
      %v3295 = vcombine.low %v2866, %v2874
      %v3296 = vcombine.low %v2882, %v2881
      %v3298 = vunpack.c.l.s4 1983009808
      %v3299 = vunpack.c.0.s8 %v3298
      %v3300 = vlaneseq
      %v3301 = vshrl.u32 %v3300, 7
      %v3302 = vsub.s32 %v3299, %v3301
      %v3303 = vrot.slane %v3295, %v3302
      %v3305 = vunpack.c.l.s4 1983009808
      %v3306 = vunpack.c.0.s8 %v3305
      %v3307 = vlaneseq
      %v3308 = vshrl.u32 %v3307, 7
      %v3309 = vsub.s32 %v3306, %v3308
      %v3310 = vrot.slane %v3296, %v3309
      %v3311 = vcombine.low %v3303, %v3310
      %v3312 = vcombine.low %v2883, %v2891
      %v3314 = vunpack.c.l.s4 1983009808
      %v3315 = vunpack.c.0.s8 %v3314
      %v3316 = vlaneseq
      %v3317 = vshrl.u32 %v3316, 7
      %v3318 = vsub.s32 %v3315, %v3317
      %v3319 = vrot.slane %v3312, %v3318
      %v3321 = vunpack.c.l.s4 1983009808
      %v3322 = vunpack.c.0.s8 %v3321
      %v3323 = vlaneseq
      %v3324 = vshrl.u32 %v3323, 7
      %v3325 = vsub.s32 %v3322, %v3324
      %v3326 = vrot.slane %v2899, %v3325
      %v3327 = vcombine.low %v3319, %v3326
      %v3328 = vcombine.low %v2898, %v2900
      %v3329 = vcombine.low %v2908, %v2916
      %v3331 = vunpack.c.l.s4 1983009808
      %v3332 = vunpack.c.0.s8 %v3331
      %v3333 = vlaneseq
      %v3334 = vshrl.u32 %v3333, 7
      %v3335 = vsub.s32 %v3332, %v3334
      %v3336 = vrot.slane %v3328, %v3335
      %v3338 = vunpack.c.l.s4 1983009808
      %v3339 = vunpack.c.0.s8 %v3338
      %v3340 = vlaneseq
      %v3341 = vshrl.u32 %v3340, 7
      %v3342 = vsub.s32 %v3339, %v3341
      %v3343 = vrot.slane %v3329, %v3342
      %v3344 = vcombine.low %v3336, %v3343
      %v3345 = vcombine.low %v2915, %v2917
      %v3347 = vunpack.c.l.s4 1983009808
      %v3348 = vunpack.c.0.s8 %v3347
      %v3349 = vlaneseq
      %v3350 = vshrl.u32 %v3349, 7
      %v3351 = vsub.s32 %v3348, %v3350
      %v3352 = vrot.slane %v3345, %v3351
      %v3354 = vunpack.c.l.s4 1983009808
      %v3355 = vunpack.c.0.s8 %v3354
      %v3356 = vlaneseq
      %v3357 = vshrl.u32 %v3356, 7
      %v3358 = vsub.s32 %v3355, %v3357
      %v3359 = vrot.slane %v2925, %v3358
      %v3360 = vcombine.low %v3352, %v3359
      %v3361 = vcombine.low %v2933, %v2932
      %v3362 = vcombine.low %v2934, %v2942
      %v3364 = vunpack.c.l.s4 1983009808
      %v3365 = vunpack.c.0.s8 %v3364
      %v3366 = vlaneseq
      %v3367 = vshrl.u32 %v3366, 7
      %v3368 = vsub.s32 %v3365, %v3367
      %v3369 = vrot.slane %v3361, %v3368
      %v3371 = vunpack.c.l.s4 1983009808
      %v3372 = vunpack.c.0.s8 %v3371
      %v3373 = vlaneseq
      %v3374 = vshrl.u32 %v3373, 7
      %v3375 = vsub.s32 %v3372, %v3374
      %v3376 = vrot.slane %v3362, %v3375
      %v3377 = vcombine.low %v3369, %v3376
      %v3378 = vcombine.low %v2950, %v2949
      %v3380 = vunpack.c.l.s4 1983009808
      %v3381 = vunpack.c.0.s8 %v3380
      %v3382 = vlaneseq
      %v3383 = vshrl.u32 %v3382, 7
      %v3384 = vsub.s32 %v3381, %v3383
      %v3385 = vrot.slane %v3378, %v3384
      %v3387 = vunpack.c.l.s4 1983009808
      %v3388 = vunpack.c.0.s8 %v3387
      %v3389 = vlaneseq
      %v3390 = vshrl.u32 %v3389, 7
      %v3391 = vsub.s32 %v3388, %v3390
      %v3392 = vrot.slane %v2951, %v3391
      %v3393 = vcombine.low %v3385, %v3392
      %v3394 = vcombine.low %v2959, %v2967
      %v3395 = vcombine.low %v2966, %v2968
      %v3397 = vunpack.c.l.s4 1983009808
      %v3398 = vunpack.c.0.s8 %v3397
      %v3399 = vlaneseq
      %v3400 = vshrl.u32 %v3399, 7
      %v3401 = vsub.s32 %v3398, %v3400
      %v3402 = vrot.slane %v3394, %v3401
      %v3404 = vunpack.c.l.s4 1983009808
      %v3405 = vunpack.c.0.s8 %v3404
      %v3406 = vlaneseq
      %v3407 = vshrl.u32 %v3406, 7
      %v3408 = vsub.s32 %v3405, %v3407
      %v3409 = vrot.slane %v3395, %v3408
      %v3410 = vcombine.low %v3402, %v3409
      %v3411 = vcombine.low %v2976, %v2984
      %v3413 = vunpack.c.l.s4 1983009808
      %v3414 = vunpack.c.0.s8 %v3413
      %v3415 = vlaneseq
      %v3416 = vshrl.u32 %v3415, 7
      %v3417 = vsub.s32 %v3414, %v3416
      %v3418 = vrot.slane %v3411, %v3417
      %v3420 = vunpack.c.l.s4 1983009808
      %v3421 = vunpack.c.0.s8 %v3420
      %v3422 = vlaneseq
      %v3423 = vshrl.u32 %v3422, 7
      %v3424 = vsub.s32 %v3421, %v3423
      %v3425 = vrot.slane %v2983, %v3424
      %v3426 = vcombine.low %v3418, %v3425
      %v3427 = vcombine.low %v2985, %v2993
      %v3428 = vcombine.low %v3001, %v3000
      %v3430 = vunpack.c.l.s4 1983009808
      %v3431 = vunpack.c.0.s8 %v3430
      %v3432 = vlaneseq
      %v3433 = vshrl.u32 %v3432, 7
      %v3434 = vsub.s32 %v3431, %v3433
      %v3435 = vrot.slane %v3427, %v3434
      %v3437 = vunpack.c.l.s4 1983009808
      %v3438 = vunpack.c.0.s8 %v3437
      %v3439 = vlaneseq
      %v3440 = vshrl.u32 %v3439, 7
      %v3441 = vsub.s32 %v3438, %v3440
      %v3442 = vrot.slane %v3428, %v3441
      %v3443 = vcombine.low %v3435, %v3442
      %v3444 = vcombine.low %v3002, %v3010
      %v3446 = vunpack.c.l.s4 1983009808
      %v3447 = vunpack.c.0.s8 %v3446
      %v3448 = vlaneseq
      %v3449 = vshrl.u32 %v3448, 7
      %v3450 = vsub.s32 %v3447, %v3449
      %v3451 = vrot.slane %v3444, %v3450
      %v3453 = vunpack.c.l.s4 1983009808
      %v3454 = vunpack.c.0.s8 %v3453
      %v3455 = vlaneseq
      %v3456 = vshrl.u32 %v3455, 7
      %v3457 = vsub.s32 %v3454, %v3456
      %v3458 = vrot.slane %v3018, %v3457
      %v3459 = vcombine.low %v3451, %v3458
      %v3460 = vcombine.low %v3017, %v3019
      %v3461 = vcombine.low %v3027, %v3035
      %v3463 = vunpack.c.l.s4 1983009808
      %v3464 = vunpack.c.0.s8 %v3463
      %v3465 = vlaneseq
      %v3466 = vshrl.u32 %v3465, 7
      %v3467 = vsub.s32 %v3464, %v3466
      %v3468 = vrot.slane %v3460, %v3467
      %v3470 = vunpack.c.l.s4 1983009808
      %v3471 = vunpack.c.0.s8 %v3470
      %v3472 = vlaneseq
      %v3473 = vshrl.u32 %v3472, 7
      %v3474 = vsub.s32 %v3471, %v3473
      %v3475 = vrot.slane %v3461, %v3474
      %v3476 = vcombine.low %v3468, %v3475
      %v3477 = vcombine.low %v3034, %v3036
      %v3479 = vunpack.c.l.s4 1983009808
      %v3480 = vunpack.c.0.s8 %v3479
      %v3481 = vlaneseq
      %v3482 = vshrl.u32 %v3481, 7
      %v3483 = vsub.s32 %v3480, %v3482
      %v3484 = vrot.slane %v3477, %v3483
      %v3486 = vunpack.c.l.s4 1983009808
      %v3487 = vunpack.c.0.s8 %v3486
      %v3488 = vlaneseq
      %v3489 = vshrl.u32 %v3488, 7
      %v3490 = vsub.s32 %v3487, %v3489
      %v3491 = vrot.slane %v3044, %v3490
      %v3492 = vcombine.low %v3484, %v3491
      %v3493 = vcombine.low %v3052, %v3051
      %v3494 = vcombine.low %v3053, %v3061
      %v3496 = vunpack.c.l.s4 1983009808
      %v3497 = vunpack.c.0.s8 %v3496
      %v3498 = vlaneseq
      %v3499 = vshrl.u32 %v3498, 7
      %v3500 = vsub.s32 %v3497, %v3499
      %v3501 = vrot.slane %v3493, %v3500
      %v3503 = vunpack.c.l.s4 1983009808
      %v3504 = vunpack.c.0.s8 %v3503
      %v3505 = vlaneseq
      %v3506 = vshrl.u32 %v3505, 7
      %v3507 = vsub.s32 %v3504, %v3506
      %v3508 = vrot.slane %v3494, %v3507
      %v3509 = vcombine.low %v3501, %v3508
      %v3510 = vcombine.low %v3069, %v3068
      %v3512 = vunpack.c.l.s4 1983009808
      %v3513 = vunpack.c.0.s8 %v3512
      %v3514 = vlaneseq
      %v3515 = vshrl.u32 %v3514, 7
      %v3516 = vsub.s32 %v3513, %v3515
      %v3517 = vrot.slane %v3510, %v3516
      %v3519 = vunpack.c.l.s4 1983009808
      %v3520 = vunpack.c.0.s8 %v3519
      %v3521 = vlaneseq
      %v3522 = vshrl.u32 %v3521, 7
      %v3523 = vsub.s32 %v3520, %v3522
      %v3524 = vrot.slane %v3070, %v3523
      %v3525 = vcombine.low %v3517, %v3524
      %v3526 = vcombine.low %v3078, %v3086
      %v3527 = vcombine.low %v3085, %v3087
      %v3529 = vunpack.c.l.s4 1983009808
      %v3530 = vunpack.c.0.s8 %v3529
      %v3531 = vlaneseq
      %v3532 = vshrl.u32 %v3531, 7
      %v3533 = vsub.s32 %v3530, %v3532
      %v3534 = vrot.slane %v3526, %v3533
      %v3536 = vunpack.c.l.s4 1983009808
      %v3537 = vunpack.c.0.s8 %v3536
      %v3538 = vlaneseq
      %v3539 = vshrl.u32 %v3538, 7
      %v3540 = vsub.s32 %v3537, %v3539
      %v3541 = vrot.slane %v3527, %v3540
      %v3542 = vcombine.low %v3534, %v3541
      %v3543 = vcombine.low %v3095, %v3103
      %v3545 = vunpack.c.l.s4 1983009808
      %v3546 = vunpack.c.0.s8 %v3545
      %v3547 = vlaneseq
      %v3548 = vshrl.u32 %v3547, 7
      %v3549 = vsub.s32 %v3546, %v3548
      %v3550 = vrot.slane %v3543, %v3549
      %v3552 = vunpack.c.l.s4 1983009808
      %v3553 = vunpack.c.0.s8 %v3552
      %v3554 = vlaneseq
      %v3555 = vshrl.u32 %v3554, 7
      %v3556 = vsub.s32 %v3553, %v3555
      %v3557 = vrot.slane %v3102, %v3556
      %v3558 = vcombine.low %v3550, %v3557
      %v3559 = vcombine.low %v3104, %v3112
      %v3560 = vcombine.low %v3120, %v3119
      %v3562 = vunpack.c.l.s4 1983009808
      %v3563 = vunpack.c.0.s8 %v3562
      %v3564 = vlaneseq
      %v3565 = vshrl.u32 %v3564, 7
      %v3566 = vsub.s32 %v3563, %v3565
      %v3567 = vrot.slane %v3559, %v3566
      %v3569 = vunpack.c.l.s4 1983009808
      %v3570 = vunpack.c.0.s8 %v3569
      %v3571 = vlaneseq
      %v3572 = vshrl.u32 %v3571, 7
      %v3573 = vsub.s32 %v3570, %v3572
      %v3574 = vrot.slane %v3560, %v3573
      %v3575 = vcombine.low %v3567, %v3574
      %v3576 = vcombine.low %v3121, %v3128
      %v3578 = vunpack.c.l.s4 1983009808
      %v3579 = vunpack.c.0.s8 %v3578
      %v3580 = vlaneseq
      %v3581 = vshrl.u32 %v3580, 7
      %v3582 = vsub.s32 %v3579, %v3581
      %v3583 = vrot.slane %v3576, %v3582
      %v3585 = vunpack.c.l.s4 1983009808
      %v3586 = vunpack.c.0.s8 %v3585
      %v3587 = vlaneseq
      %v3588 = vshrl.u32 %v3587, 7
      %v3589 = vsub.s32 %v3586, %v3588
      %v3590 = vrot.slane %v3129, %v3589
      %v3591 = vcombine.low %v3583, %v3590
      %v3620 = vpack.c.bf16 %v3162, %v3146
      %v3621 = vpack.c.bf16 %v3195, %v3179
      %v3622 = vpack.c.bf16 %v3228, %v3212
      %v3623 = vpack.c.bf16 %v3261, %v3245
      %v3624 = vpack.c.bf16 %v3294, %v3278
      %v3625 = vpack.c.bf16 %v3327, %v3311
      %v3626 = vpack.c.bf16 %v3360, %v3344
      %v3627 = vpack.c.bf16 %v3393, %v3377
      %v3628 = vpack.c.bf16 %v3426, %v3410
      %v3629 = vpack.c.bf16 %v3459, %v3443
      %v3630 = vpack.c.bf16 %v3492, %v3476
      %v3631 = vpack.c.bf16 %v3525, %v3509
      %v3632 = vpack.c.bf16 %v3558, %v3542
      %v3633 = vpack.c.bf16 %v3591, %v3575
      %v3648 = vunpack.c.l.b16 %v3620
      %v3649 = vunpack.c.h.b16 %v3620
      %v3650 = vunpack.c.l.b16 %v3621
      %v3651 = vunpack.c.h.b16 %v3621
      %v3652 = vunpack.c.l.b16 %v3622
      %v3653 = vunpack.c.h.b16 %v3622
      %v3654 = vunpack.c.l.b16 %v3623
      %v3655 = vunpack.c.h.b16 %v3623
      %v3656 = vunpack.c.l.b16 %v3624
      %v3657 = vunpack.c.h.b16 %v3624
      %v3658 = vunpack.c.l.b16 %v3625
      %v3659 = vunpack.c.h.b16 %v3625
      %v3660 = vunpack.c.l.b16 %v3626
      %v3661 = vunpack.c.h.b16 %v3626
      %v3662 = vunpack.c.l.b16 %v3627
      %v3663 = vunpack.c.h.b16 %v3627
      %v3664 = vunpack.c.l.b16 %v3628
      %v3665 = vunpack.c.h.b16 %v3628
      %v3666 = vunpack.c.l.b16 %v3629
      %v3667 = vunpack.c.h.b16 %v3629
      %v3668 = vunpack.c.l.b16 %v3630
      %v3669 = vunpack.c.h.b16 %v3630
      %v3670 = vunpack.c.l.b16 %v3631
      %v3671 = vunpack.c.h.b16 %v3631
      %v3672 = vunpack.c.l.b16 %v3632
      %v3673 = vunpack.c.h.b16 %v3632
      %v3674 = vunpack.c.l.b16 %v3633
      %v3675 = vunpack.c.h.b16 %v3633
      %v3676 = vpack.c.b16 %v3648, %v3648
      %v3677 = vpack.c.b16 %v3649, %v3649
      %v3678 = vpack.c.b16 %v3650, %v3650
      %v3679 = vpack.c.b16 %v3651, %v3651
      %v3680 = vpack.c.b16 %v3652, %v3652
      %v3681 = vpack.c.b16 %v3653, %v3653
      %v3682 = vpack.c.b16 %v3654, %v3654
      %v3683 = vpack.c.b16 %v3655, %v3655
      %v3684 = vpack.c.b16 %v3656, %v3656
      %v3685 = vpack.c.b16 %v3657, %v3657
      %v3686 = vpack.c.b16 %v3658, %v3658
      %v3687 = vpack.c.b16 %v3659, %v3659
      %v3688 = vpack.c.b16 %v3660, %v3660
      %v3689 = vpack.c.b16 %v3661, %v3661
      %v3690 = vpack.c.b16 %v3662, %v3662
      %v3691 = vpack.c.b16 %v3663, %v3663
      %v3692 = vpack.c.b16 %v3664, %v3664
      %v3693 = vpack.c.b16 %v3665, %v3665
      %v3694 = vpack.c.b16 %v3666, %v3666
      %v3695 = vpack.c.b16 %v3667, %v3667
      %v3696 = vpack.c.b16 %v3668, %v3668
      %v3697 = vpack.c.b16 %v3669, %v3669
      %v3698 = vpack.c.b16 %v3670, %v3670
      %v3699 = vpack.c.b16 %v3671, %v3671
      %v3700 = vpack.c.b16 %v3672, %v3672
      %v3701 = vpack.c.b16 %v3673, %v3673
      %v3702 = vpack.c.b16 %v3674, %v3674
      %v3703 = vpack.c.b16 %v3675, %v3675
      %vm3732 = vcmask 519168
      %3733 = vst.msk [vmem:[%s491] sm:$0xf] %vm3732, %v3676
      %vm3734 = vcmask 518144
      %3735 = vst.msk [vmem:[%s491 + $0x4] sm:$0x7] %vm3734, %v3677
      %3736 = vst.msk [vmem:[%s491 + $0x8] sm:$0xf] %vm3732, %v3678
      %3737 = vst.msk [vmem:[%s491 + $0xc] sm:$0x7] %vm3734, %v3679
      %3738 = vst.msk [vmem:[%s491 + $0x10] sm:$0xf] %vm3732, %v3680
      %3739 = vst.msk [vmem:[%s491 + $0x14] sm:$0x7] %vm3734, %v3681
      %3740 = vst.msk [vmem:[%s491 + $0x18] sm:$0xf] %vm3732, %v3682
      %3741 = vst.msk [vmem:[%s491 + $0x1c] sm:$0x7] %vm3734, %v3683
      %3742 = vst.msk [vmem:[%s491 + $0x20] sm:$0xf] %vm3732, %v3684
      %3743 = vst.msk [vmem:[%s491 + $0x24] sm:$0x7] %vm3734, %v3685
      %3744 = vst.msk [vmem:[%s491 + $0x28] sm:$0xf] %vm3732, %v3686
      %3745 = vst.msk [vmem:[%s491 + $0x2c] sm:$0x7] %vm3734, %v3687
      %3746 = vst.msk [vmem:[%s491 + $0x30] sm:$0xf] %vm3732, %v3688
      %3747 = vst.msk [vmem:[%s491 + $0x34] sm:$0x7] %vm3734, %v3689
      %3748 = vst.msk [vmem:[%s491 + $0x38] sm:$0xf] %vm3732, %v3690
      %3749 = vst.msk [vmem:[%s491 + $0x3c] sm:$0x7] %vm3734, %v3691
      %3750 = vst.msk [vmem:[%s491 + $0x40] sm:$0xf] %vm3732, %v3692
      %3751 = vst.msk [vmem:[%s491 + $0x44] sm:$0x7] %vm3734, %v3693
      %3752 = vst.msk [vmem:[%s491 + $0x48] sm:$0xf] %vm3732, %v3694
      %3753 = vst.msk [vmem:[%s491 + $0x4c] sm:$0x7] %vm3734, %v3695
      %3754 = vst.msk [vmem:[%s491 + $0x50] sm:$0xf] %vm3732, %v3696
      %3755 = vst.msk [vmem:[%s491 + $0x54] sm:$0x7] %vm3734, %v3697
      %3756 = vst.msk [vmem:[%s491 + $0x58] sm:$0xf] %vm3732, %v3698
      %3757 = vst.msk [vmem:[%s491 + $0x5c] sm:$0x7] %vm3734, %v3699
      %3758 = vst.msk [vmem:[%s491 + $0x60] sm:$0xf] %vm3732, %v3700
      %3759 = vst.msk [vmem:[%s491 + $0x64] sm:$0x7] %vm3734, %v3701
      %3760 = vst.msk [vmem:[%s491 + $0x68] sm:$0xf] %vm3732, %v3702
      %3761 = vst.msk [vmem:[%s491 + $0x6c] sm:$0x7] %vm3734, %v3703
      %vm3762 = vcmask 523264
      %v3763 = vsel %vm3762, %v2588, 0.0
      %v3764 = vsel %vm3762, %v2591, 0.0
      %v3765 = vadd.f32 %v3763, %v3764
      %v3766 = vsel %vm3762, %v2596, 0.0
      %v3767 = vadd.f32 %v3765, %v3766
      %v3768 = vsel %vm3762, %v2599, 0.0
      %v3769 = vadd.f32 %v3767, %v3768
      %v3770 = vsel %vm3762, %v2604, 0.0
      %v3771 = vadd.f32 %v3769, %v3770
      %v3772 = vsel %vm3762, %v2607, 0.0
      %v3773 = vadd.f32 %v3771, %v3772
      %v3774 = vsel %vm3762, %v2612, 0.0
      %v3775 = vadd.f32 %v3773, %v3774
      %v3776 = vsel %vm3762, %v2615, 0.0
      %v3777 = vadd.f32 %v3775, %v3776
      %v3778 = vsel %vm3762, %v2620, 0.0
      %v3779 = vadd.f32 %v3777, %v3778
      %v3780 = vsel %vm3762, %v2623, 0.0
      %v3781 = vadd.f32 %v3779, %v3780
      %v3782 = vsel %vm3762, %v2628, 0.0
      %v3783 = vadd.f32 %v3781, %v3782
      %v3784 = vsel %vm3762, %v2631, 0.0
      %v3785 = vadd.f32 %v3783, %v3784
      %v3786 = vsel %vm3762, %v2636, 0.0
      %v3787 = vadd.f32 %v3785, %v3786
      %v3788 = vsel %vm3762, %v2639, 0.0
      %v3789 = vadd.f32 %v3787, %v3788
      %v3790 = vsel %vm3762, %v2644, 0.0
      %v3791 = vadd.f32 %v3789, %v3790
      %v3792 = vsel %vm3762, %v2647, 0.0
      %v3793 = vadd.f32 %v3791, %v3792
      %v3794 = vsel %vm3762, %v2652, 0.0
      %v3795 = vadd.f32 %v3793, %v3794
      %v3796 = vsel %vm3762, %v2655, 0.0
      %v3797 = vadd.f32 %v3795, %v3796
      %v3798 = vsel %vm3762, %v2660, 0.0
      %v3799 = vadd.f32 %v3797, %v3798
      %v3800 = vsel %vm3762, %v2663, 0.0
      %v3801 = vadd.f32 %v3799, %v3800
      %v3802 = vsel %vm3762, %v2668, 0.0
      %v3803 = vadd.f32 %v3801, %v3802
      %v3804 = vsel %vm3762, %v2671, 0.0
      %v3805 = vadd.f32 %v3803, %v3804
      %v3806 = vsel %vm3762, %v2676, 0.0
      %v3807 = vadd.f32 %v3805, %v3806
      %v3808 = vsel %vm3762, %v2679, 0.0
      %v3809 = vadd.f32 %v3807, %v3808
      %v3810 = vsel %vm3732, %v2684, 0.0
      %v3811 = vadd.f32 %v3809, %v3810
      %v3812 = vrot.slane %v3811, 4
      %v3813 = vadd.f32 %v3811, %v3812
      %v3814 = vrot.slane %v3813, 2
      %v3815 = vadd.f32 %v3813, %v3814
      %v3816 = vrot.slane %v3815, 1
      %v3817 = vadd.f32 %v3815, %v3816
      %v3818 = vmul.f32 %v2588, %v2588
      %v3819 = vmul.f32 %v2591, %v2591
      %v3820 = vmul.f32 %v2596, %v2596
      %v3821 = vmul.f32 %v2599, %v2599
      %v3822 = vmul.f32 %v2604, %v2604
      %v3823 = vmul.f32 %v2607, %v2607
      %v3824 = vmul.f32 %v2612, %v2612
      %v3825 = vmul.f32 %v2615, %v2615
      %v3826 = vmul.f32 %v2620, %v2620
      %v3827 = vmul.f32 %v2623, %v2623
      %v3828 = vmul.f32 %v2628, %v2628
      %v3829 = vmul.f32 %v2631, %v2631
      %v3830 = vmul.f32 %v2636, %v2636
      %v3831 = vmul.f32 %v2639, %v2639
      %v3832 = vmul.f32 %v2644, %v2644
      %v3833 = vmul.f32 %v2647, %v2647
      %v3834 = vmul.f32 %v2652, %v2652
      %v3835 = vmul.f32 %v2655, %v2655
      %v3836 = vmul.f32 %v2660, %v2660
      %v3837 = vmul.f32 %v2663, %v2663
      %v3838 = vmul.f32 %v2668, %v2668
      %v3839 = vmul.f32 %v2671, %v2671
      %v3840 = vmul.f32 %v2676, %v2676
      %v3841 = vmul.f32 %v2679, %v2679
      %v3842 = vmul.f32 %v2684, %v2684
      %v3843 = vsel %vm3762, %v3818, 0.0
      %v3844 = vsel %vm3762, %v3819, 0.0
      %v3845 = vadd.f32 %v3843, %v3844
      %v3846 = vsel %vm3762, %v3820, 0.0
      %v3847 = vadd.f32 %v3845, %v3846
      %v3848 = vsel %vm3762, %v3821, 0.0
      %v3849 = vadd.f32 %v3847, %v3848
      %v3850 = vsel %vm3762, %v3822, 0.0
      %v3851 = vadd.f32 %v3849, %v3850
      %v3852 = vsel %vm3762, %v3823, 0.0
      %v3853 = vadd.f32 %v3851, %v3852
      %v3854 = vsel %vm3762, %v3824, 0.0
      %v3855 = vadd.f32 %v3853, %v3854
      %v3856 = vsel %vm3762, %v3825, 0.0
      %v3857 = vadd.f32 %v3855, %v3856
      %v3858 = vsel %vm3762, %v3826, 0.0
      %v3859 = vadd.f32 %v3857, %v3858
      %v3860 = vsel %vm3762, %v3827, 0.0
      %v3861 = vadd.f32 %v3859, %v3860
      %v3862 = vsel %vm3762, %v3828, 0.0
      %v3863 = vadd.f32 %v3861, %v3862
      %v3864 = vsel %vm3762, %v3829, 0.0
      %v3865 = vadd.f32 %v3863, %v3864
      %v3866 = vsel %vm3762, %v3830, 0.0
      %v3867 = vadd.f32 %v3865, %v3866
      %v3868 = vsel %vm3762, %v3831, 0.0
      %v3869 = vadd.f32 %v3867, %v3868
      %v3870 = vsel %vm3762, %v3832, 0.0
      %v3871 = vadd.f32 %v3869, %v3870
      %v3872 = vsel %vm3762, %v3833, 0.0
      %v3873 = vadd.f32 %v3871, %v3872
      %v3874 = vsel %vm3762, %v3834, 0.0
      %v3875 = vadd.f32 %v3873, %v3874
      %v3876 = vsel %vm3762, %v3835, 0.0
      %v3877 = vadd.f32 %v3875, %v3876
      %v3878 = vsel %vm3762, %v3836, 0.0
      %v3879 = vadd.f32 %v3877, %v3878
      %v3880 = vsel %vm3762, %v3837, 0.0
      %v3881 = vadd.f32 %v3879, %v3880
      %v3882 = vsel %vm3762, %v3838, 0.0
      %v3883 = vadd.f32 %v3881, %v3882
      %v3884 = vsel %vm3762, %v3839, 0.0
      %v3885 = vadd.f32 %v3883, %v3884
      %v3886 = vsel %vm3762, %v3840, 0.0
      %v3887 = vadd.f32 %v3885, %v3886
      %v3888 = vsel %vm3762, %v3841, 0.0
      %v3889 = vadd.f32 %v3887, %v3888
      %v3890 = vsel %vm3732, %v3842, 0.0
      %v3891 = vadd.f32 %v3889, %v3890
      %v3892 = vrot.slane %v3891, 4
      %v3893 = vadd.f32 %v3891, %v3892
      %v3894 = vrot.slane %v3893, 2
      %v3895 = vadd.f32 %v3893, %v3894
      %v3896 = vrot.slane %v3895, 1
      %v3897 = vadd.f32 %v3895, %v3896
      %vm3898 = vcmask 1040384
      %v3899 = vsel %vm3898, %v3817, %v3897
      %vm3900 = vcmask 517120
      %3901 = vst.msk [vmem:[%s502] sm:$0x3] %vm3900, %v3899
      %s3902 = smul.u32 14, %s26
      %p3903 = scmp.lt.s32.totalorder %s24, 1
      %s3904 = scalar_select %p3903, %s24, 1
      %p3905 = scmp.lt.s32.totalorder %s3902, 13
      %s3906 = scalar_select %p3905, %s3902, 13
      %p3907 = scmp.lt.s32.totalorder %s25, 0
      %s3908 = scalar_select %p3907, %s25, 0
      %s3909 = smul.addr %s3906, 2
      %s3910 = sadd.s32 %s3908, %s3909
      %s3911 = smul.addr %s3904, 28
      %s3912 = sadd.s32 %s3910, %s3911
      %s3913 = smul.addr %s3912, 4
      %s3914 = scalar_lea.vmem %s6, %s3913
      %p3915 = scmp.lt.s32.totalorder %s24, 1
      %s3916 = scalar_select %p3915, %s24, 1
      %p3917 = scmp.lt.s32.totalorder %s26, 0
      %s3918 = scalar_select %p3917, %s26, 0
      %p3919 = scmp.lt.s32.totalorder %s25, 0
      %s3920 = scalar_select %p3919, %s25, 0
      %s3921 = sadd.s32 %s3920, %s3918
      %s3922 = sadd.s32 %s3921, %s3916
      %s3923 = smul.addr %s3922, 2
      %s3924 = scalar_lea.vmem %s7, %s3923
      // Predicated region
      $region45: #{encoder_forward.3} parent=43 // pred_check
        %p3925 = pneg %p220
      $region46: #{encoder_forward.3} parent=43 // pred_check_branch
        %3927 = sbr.rel (%p3925) target = $region48
      $region47: #{encoder_forward.3} parent=43 // pred_region
        %s3928 = smul.u32 14, %s26
      $region48: #{encoder_forward.3} parent=43 // pred_fallthru
        _
      // Predicated region
      $region49: #{encoder_forward.3} parent=43 // pred_check
        %p3929 = pneg %p250
      $region50: #{encoder_forward.3} parent=43 // pred_check_branch
        %3931 = sbr.rel (%p3929) target = $region52
      $region51: #{encoder_forward.3} parent=43 // pred_region
        _
      $region52: #{encoder_forward.3} parent=43 // pred_fallthru
        _
    $region44: #{encoder_forward.3} parent=5 // pred_fallthru
      _
    %p3932 = scmp.le.s32.totalorder 2, %s14
    // Predicated region
    $region53: #{encoder_forward.3} parent=5 // pred_check
      %p3933 = pneg %p3932
    $region54: #{encoder_forward.3} parent=5 // pred_check_branch
      %3935 = sbr.rel (%p3933) target = $region56
    $region55: #{encoder_forward.3} parent=5 // pred_region
      %s3936 = ssub.s32 %s14, 2
      // Predicated region
      $region57: #{encoder_forward.3} parent=55 // pred_check
        %p3937 = pneg %p226
      $region58: #{encoder_forward.3} parent=55 // pred_check_branch
        %3939 = sbr.rel (%p3937) target = $region60
      $region59: #{encoder_forward.3} parent=55 // pred_region
        %s3940 = smul.u32 14, %s29
        %p3941 = scmp.lt.s32.totalorder %s27, 1
        %s3942 = scalar_select %p3941, %s27, 1
        %p3943 = scmp.lt.s32.totalorder %s3940, 13
        %s3944 = scalar_select %p3943, %s3940, 13
        %p3945 = scmp.lt.s32.totalorder %s28, 0
        %s3946 = scalar_select %p3945, %s28, 0
        %s3947 = smul.addr %s3944, 2
        %s3948 = sadd.s32 %s3946, %s3947
        %s3949 = smul.addr %s3942, 28
        %s3950 = sadd.s32 %s3948, %s3949
        %s3951 = smul.addr %s3950, 4
        %s3952 = scalar_lea.vmem %s6, %s3951
      $region60: #{encoder_forward.3} parent=55 // pred_fallthru
        _
      // Predicated region
      $region61: #{encoder_forward.3} parent=55 // pred_check
        %p3953 = pneg %p256
      $region62: #{encoder_forward.3} parent=55 // pred_check_branch
        %3955 = sbr.rel (%p3953) target = $region64
      $region63: #{encoder_forward.3} parent=55 // pred_region
        %p3956 = scmp.lt.s32.totalorder %s27, 1
        %s3957 = scalar_select %p3956, %s27, 1
        %p3958 = scmp.lt.s32.totalorder %s29, 0
        %s3959 = scalar_select %p3958, %s29, 0
        %p3960 = scmp.lt.s32.totalorder %s28, 0
        %s3961 = scalar_select %p3960, %s28, 0
        %s3962 = sadd.s32 %s3961, %s3959
        %s3963 = sadd.s32 %s3962, %s3957
        %s3964 = smul.addr %s3963, 2
        %s3965 = scalar_lea.vmem %s7, %s3964
      $region64: #{encoder_forward.3} parent=55 // pred_fallthru
        _
    $region56: #{encoder_forward.3} parent=5 // pred_fallthru
      _
  $region6: #{encoder_forward.3} parent=0 // loop_footer
    %s18 = sadd.s32 1, %s14
  $region7: #{encoder_forward.3} parent=0 // loop_footer_branch
    %13 = sbr.rel target = $region3
  $region8: #{encoder_forward.3} parent=0 // loop_exit
    _

</llo_original>
